<compile_context>
chip_gen: v7x
topology: tpu7x:2x2x1
jax: 0.10.0
libtpu: 0.0.40
codegen_flags: <defaults>
</compile_context>

<pallas_src>
import functools

import jax
import jax.numpy as jnp
import numpy as np
from jax.experimental import pallas as pl
from jax.experimental.pallas import tpu as pltpu


def _round_up(x, m):
    return (x + m - 1) // m * m


def _double_conv_kernel(x_ref, w1_ref, s1_ref, w2_ref, s2_ref, o_ref, y1_ref,
                        *, H, W, WP):
    """Fused (conv3x3 + BN + ReLU) x 2 for one batch element.

    Spatial layout is flattened: a pixel (r, c) of a padded image lives at flat
    row r*WP + c, so the 3x3 tap (dy, dx) of the conv is simply a contiguous
    shifted slab at a static flat offset.

    x_ref:  (1, (H+3)*WP, CinP)  bf16  zero-padded input (1 top / 2 bottom rows,
                                       1 left col, >=1 right cols), flattened;
                                       interior pixel (y, x) at (y+1)*WP + (x+1)
    w1_ref: (9, CinP, C1P)       bf16  layer-1 weights, BN1 scale folded in
    s1_ref: (1, C1P)             f32   layer-1 folded bias/BN shift
    w2_ref: (9, C1P, C2P)        bf16  layer-2 weights, BN2 scale folded in
    s2_ref: (1, C2P)             f32   layer-2 folded bias/BN shift
    o_ref:  (1, H*WP, C2P)       f32   output slab (pad columns sliced off by
                                       the wrapper)
    y1_ref: ((H+4)*WP, C1P)      bf16  VMEM scratch: padded layer-1 activation;
                                       interior pixel (y, x) at (y+2)*WP + x
                                       (slab start 2*WP is sublane-aligned)
    """
    L = H * WP                      # number of slab rows computed per layer
    c1p = w1_ref.shape[2]
    c2p = w2_ref.shape[2]

    # Zero only the halo strips of the layer-1 scratch (interior is fully
    # overwritten below).  Both stores are sublane-aligned (WP % 8 == 0).
    zeros_halo = jnp.zeros((2 * WP, c1p), y1_ref.dtype)
    y1_ref[pl.ds(0, 2 * WP), :] = zeros_halo
    y1_ref[pl.ds(2 * WP + L, 2 * WP), :] = zeros_halo

    # ---------------- layer 1: conv3x3 (*BN scale folded) + shift + ReLU ----
    # Output pixel (y, x) -> slab row r = y*WP + x; tap (dy, dx) reads the
    # padded input at flat r + dy*WP + dx.
    acc = jnp.zeros((L, c1p), jnp.float32)
    for dy in range(3):
        for dx in range(3):
            off = dy * WP + dx      # static offset -> contiguous shifted slab
            acc += jnp.dot(x_ref[0, pl.ds(off, L), :],
                           w1_ref[dy * 3 + dx],
                           preferred_element_type=jnp.float32)
    y = jnp.maximum(acc + s1_ref[...], 0.0)

    # Zero the width-padding columns so layer 2 sees a clean zero ring.
    col = jax.lax.broadcasted_iota(jnp.int32, (L, 1), 0) % WP
    y = jnp.where(col < W, y, 0.0)

    # Stage the layer-1 activation in VMEM (bf16) at aligned offset 2*WP.
    y1_ref[pl.ds(2 * WP, L), :] = y.astype(y1_ref.dtype)

    # ---------------- layer 2: conv3x3 (*BN scale folded) + shift + ReLU ----
    # Interior pixel (y, x) of the scratch lives at flat (y+2)*WP + x, so the
    # tap (dy, dx) for output slab row r reads flat r + (dy+1)*WP + dx - 1.
    # Left/right pad columns and top/bottom halo strips are all zero.
    acc2 = jnp.zeros((L, c2p), jnp.float32)
    for dy in range(3):
        for dx in range(3):
            off = (dy + 1) * WP + dx - 1
            acc2 += jnp.dot(y1_ref[pl.ds(off, L), :],
                            w2_ref[dy * 3 + dx],
                            preferred_element_type=jnp.float32)
    o_ref[0] = jnp.maximum(acc2 + s2_ref[...], 0.0).astype(o_ref.dtype)


@jax.jit
def double_conv_forward(x_nchw, params1, params2):
    """Equivalent of double_conv.forward on NCHW input (returns NCHW)."""
    w1, s1 = params1                 # w: (3,3,Cin,Cout) f32, BN scale folded
    w2, s2 = params2
    N, Cin, H, W = x_nchw.shape
    C1, C2 = w1.shape[-1], w2.shape[-1]

    # Lane-dense channel padding (128-lane vregs / MXU width).
    CinP = _round_up(Cin, 128)
    C1P = _round_up(C1, 128)
    C2P = _round_up(C2, 128)
    # Padded width: >= W+2 (zero ring for "same" conv) and a multiple of 8 so
    # the flattened (row*WP) slab stays sublane-tile friendly/aligned.
    WP = _round_up(W + 2, 8)
    HP = H + 3                       # 1 top + 2 bottom zero rows (the extra
                                     # bottom row keeps the last shifted-slab
                                     # reads in bounds)
    L = H * WP

    # NCHW -> NHWC, pad spatially + channels, flatten spatial, cast bf16.
    x = jnp.transpose(x_nchw, (0, 2, 3, 1))
    x = jnp.pad(x, ((0, 0), (1, 2), (1, WP - 1 - W), (0, CinP - Cin)))
    x = x.reshape(N, HP * WP, CinP).astype(jnp.bfloat16)

    def prep_w(w_hwio, cin_p, cout_p):
        w = jnp.pad(w_hwio, ((0, 0), (0, 0),
                             (0, cin_p - w_hwio.shape[2]),
                             (0, cout_p - w_hwio.shape[3])))
        return w.reshape(9, cin_p, cout_p).astype(jnp.bfloat16)

    w1k = prep_w(w1, CinP, C1P)
    w2k = prep_w(w2, C1P, C2P)
    s1k = jnp.pad(s1, (0, C1P - C1)).reshape(1, C1P).astype(jnp.float32)
    s2k = jnp.pad(s2, (0, C2P - C2)).reshape(1, C2P).astype(jnp.float32)

    out = pl.pallas_call(
        functools.partial(_double_conv_kernel, H=H, W=W, WP=WP),
        out_shape=jax.ShapeDtypeStruct((N, L, C2P), jnp.float32),
        grid=(N,),
        in_specs=[
            pl.BlockSpec((1, HP * WP, CinP), lambda n: (n, 0, 0)),
            pl.BlockSpec((9, CinP, C1P), lambda n: (0, 0, 0)),
            pl.BlockSpec((1, C1P), lambda n: (0, 0)),
            pl.BlockSpec((9, C1P, C2P), lambda n: (0, 0, 0)),
            pl.BlockSpec((1, C2P), lambda n: (0, 0)),
        ],
        out_specs=pl.BlockSpec((1, L, C2P), lambda n: (n, 0, 0)),
        scratch_shapes=[pltpu.VMEM(((H + 4) * WP, C1P), jnp.bfloat16)],
        compiler_params=pltpu.CompilerParams(
            dimension_semantics=("parallel",)),
    )(x, w1k, s1k, w2k, s2k)

    # Drop the width-pad columns and the channel padding; back to NCHW.
    out = out.reshape(N, H, WP, C2P)[:, :, :W, :C2]
    return jnp.transpose(out, (0, 3, 1, 2))


def make_params(key, in_ch, out_ch, eps=1e-5):
    """Synthetic Conv2d+BatchNorm2d parameters, pre-folded (inference mode).

    Returns (w_hwio_folded, shift):
        conv(x, w) + b -> BN -> equals  conv(x, w * scale) + shift
        with scale = gamma / sqrt(var+eps), shift = beta + (b - mean) * scale.
    """
    k = jax.random.split(key, 6)
    w_oihw = 0.1 * jax.random.normal(k[0], (out_ch, in_ch, 3, 3), jnp.float32)
    conv_b = 0.1 * jax.random.normal(k[1], (out_ch,), jnp.float32)
    gamma = 1.0 + 0.1 * jax.random.normal(k[2], (out_ch,), jnp.float32)
    beta = 0.1 * jax.random.normal(k[3], (out_ch,), jnp.float32)
    r_mean = 0.1 * jax.random.normal(k[4], (out_ch,), jnp.float32)
    r_var = jnp.abs(jax.random.normal(k[5], (out_ch,), jnp.float32)) + 0.5
    scale = gamma / jnp.sqrt(r_var + eps)
    w_hwio = jnp.transpose(w_oihw, (2, 3, 1, 0)) * scale   # fold BN scale
    shift = beta + (conv_b - r_mean) * scale
    return w_hwio, shift


def _reference(x_nchw, params1, params2):
    """Pure-JAX f32 reference (lax conv) for correctness."""
    def one(x, w_hwio, shift):
        y = jax.lax.conv_general_dilated(
            x, w_hwio, window_strides=(1, 1), padding="SAME",
            dimension_numbers=("NHWC", "HWIO", "NHWC"),
            precision=jax.lax.Precision.HIGHEST)
        return jnp.maximum(y + shift[None, None, None, :], 0.0)

    x = jnp.transpose(x_nchw, (0, 2, 3, 1))
    x = one(x, *params1)
    x = one(x, *params2)
    return jnp.transpose(x, (0, 3, 1, 2))


if __name__ == "__main__":
    in_ch, out_ch = 4, 8
    N, H, W = 2, 16, 16

    root = jax.random.PRNGKey(0)
    kx, k1, k2 = jax.random.split(root, 3)
    x = jax.random.normal(kx, (N, in_ch, H, W), jnp.float32)

    params1 = make_params(k1, in_ch, out_ch)
    params2 = make_params(k2, out_ch, out_ch)

    out = jax.block_until_ready(double_conv_forward(x, params1, params2))
    ref = jax.block_until_ready(_reference(x, params1, params2))

    # bf16 inputs/weights with f32 accumulation -> slightly widened tolerance.
    np.testing.assert_allclose(np.asarray(out), np.asarray(ref),
                               rtol=2e-2, atol=2e-2)

    print("KERNEL_OK")
</pallas_src>

<mosaic_0001>
module attributes {stable_mosaic.version = 11 : i64} {
  func.func @_double_conv_kernel(%arg0: i32, %arg1: memref<1x456x128xbf16, #tpu.memory_space<vmem>>, %arg2: memref<9x128x128xbf16, #tpu.memory_space<vmem>>, %arg3: memref<1x128xf32, #tpu.memory_space<vmem>>, %arg4: memref<9x128x128xbf16, #tpu.memory_space<vmem>>, %arg5: memref<1x128xf32, #tpu.memory_space<vmem>>, %arg6: memref<1x384x128xf32, #tpu.memory_space<vmem>>, %arg7: memref<480x128xbf16, #tpu.memory_space<vmem>>) attributes {dimension_semantics = [#tpu.dimension_semantics<parallel>], iteration_bounds = array<i64: 2>, scalar_prefetch = 0 : i64, scratch_operands = 1 : i64, tpu.core_type = #tpu.core_type<tc>, window_params = [{transform_indices = @transform_0, window_bounds = array<i64: 1, 456, 128>}, {pipeline_mode = #tpu.pipeline_mode<synchronous>, transform_indices = @transform_1, window_bounds = array<i64: 9, 128, 128>}, {pipeline_mode = #tpu.pipeline_mode<synchronous>, transform_indices = @transform_2, window_bounds = array<i64: 1, 128>}, {pipeline_mode = #tpu.pipeline_mode<synchronous>, transform_indices = @transform_3, window_bounds = array<i64: 9, 128, 128>}, {pipeline_mode = #tpu.pipeline_mode<synchronous>, transform_indices = @transform_4, window_bounds = array<i64: 1, 128>}, {transform_indices = @transform_5, window_bounds = array<i64: 1, 384, 128>}]} {
    %cst = arith.constant 0.000000e+00 : bf16
    %0 = vector.broadcast %cst : bf16 to vector<48x128xbf16>
    %c0 = arith.constant 0 : index
    %c0_0 = arith.constant 0 : index
    %1 = vector.load %arg7[%c0, %c0_0] : memref<480x128xbf16, #tpu.memory_space<vmem>>, vector<48x128xbf16>
    tpu.vector_store %arg7[%c0, %c0_0], %0 {strides = array<i32>} : memref<480x128xbf16, #tpu.memory_space<vmem>>, vector<48x128xbf16>,
    %c432 = arith.constant 432 : index
    %c0_1 = arith.constant 0 : index
    %2 = vector.load %arg7[%c432, %c0_1] : memref<480x128xbf16, #tpu.memory_space<vmem>>, vector<48x128xbf16>
    tpu.vector_store %arg7[%c432, %c0_1], %0 {strides = array<i32>} : memref<480x128xbf16, #tpu.memory_space<vmem>>, vector<48x128xbf16>,
    %cst_2 = arith.constant 0.000000e+00 : f32
    %3 = vector.broadcast %cst_2 : f32 to vector<384x128xf32>
    %c0_3 = arith.constant 0 : index
    %c0_4 = arith.constant 0 : index
    %c0_5 = arith.constant 0 : index
    %4 = vector.load %arg1[%c0_3, %c0_4, %c0_5] : memref<1x456x128xbf16, #tpu.memory_space<vmem>>, vector<1x384x128xbf16>
    %5 = vector.shape_cast %4 : vector<1x384x128xbf16> to vector<384x128xbf16>
    %c0_6 = arith.constant 0 : index
    %c0_7 = arith.constant 0 : index
    %c0_8 = arith.constant 0 : index
    %6 = vector.load %arg2[%c0_6, %c0_7, %c0_8] : memref<9x128x128xbf16, #tpu.memory_space<vmem>>, vector<1x128x128xbf16>
    %7 = vector.shape_cast %6 : vector<1x128x128xbf16> to vector<128x128xbf16>
    %cst_9 = arith.constant dense<0.000000e+00> : vector<384x128xf32>
    %8 = tpu.matmul %5, %7, %cst_9 {dimension_numbers = #tpu.dot_dimension_numbers<[1], [0], [0], [1], [0, 0, 1, 1], [], []>} : vector<384x128xbf16>, vector<128x128xbf16>, vector<384x128xf32> -> vector<384x128xf32>
    %9 = arith.addf %3, %8 : vector<384x128xf32>
    %c0_10 = arith.constant 0 : index
    %c1 = arith.constant 1 : index
    %c0_11 = arith.constant 0 : index
    %10 = vector.load %arg1[%c0_10, %c1, %c0_11] : memref<1x456x128xbf16, #tpu.memory_space<vmem>>, vector<1x384x128xbf16>
    %11 = vector.shape_cast %10 : vector<1x384x128xbf16> to vector<384x128xbf16>
    %c1_12 = arith.constant 1 : index
    %c0_13 = arith.constant 0 : index
    %c0_14 = arith.constant 0 : index
    %12 = vector.load %arg2[%c1_12, %c0_13, %c0_14] : memref<9x128x128xbf16, #tpu.memory_space<vmem>>, vector<1x128x128xbf16>
    %13 = vector.shape_cast %12 : vector<1x128x128xbf16> to vector<128x128xbf16>
    %cst_15 = arith.constant dense<0.000000e+00> : vector<384x128xf32>
    %14 = tpu.matmul %11, %13, %cst_15 {dimension_numbers = #tpu.dot_dimension_numbers<[1], [0], [0], [1], [0, 0, 1, 1], [], []>} : vector<384x128xbf16>, vector<128x128xbf16>, vector<384x128xf32> -> vector<384x128xf32>
    %15 = arith.addf %9, %14 : vector<384x128xf32>
    %c0_16 = arith.constant 0 : index
    %c2 = arith.constant 2 : index
    %c0_17 = arith.constant 0 : index
    %16 = vector.load %arg1[%c0_16, %c2, %c0_17] : memref<1x456x128xbf16, #tpu.memory_space<vmem>>, vector<1x384x128xbf16>
    %17 = vector.shape_cast %16 : vector<1x384x128xbf16> to vector<384x128xbf16>
    %c2_18 = arith.constant 2 : index
    %c0_19 = arith.constant 0 : index
    %c0_20 = arith.constant 0 : index
    %18 = vector.load %arg2[%c2_18, %c0_19, %c0_20] : memref<9x128x128xbf16, #tpu.memory_space<vmem>>, vector<1x128x128xbf16>
    %19 = vector.shape_cast %18 : vector<1x128x128xbf16> to vector<128x128xbf16>
    %cst_21 = arith.constant dense<0.000000e+00> : vector<384x128xf32>
    %20 = tpu.matmul %17, %19, %cst_21 {dimension_numbers = #tpu.dot_dimension_numbers<[1], [0], [0], [1], [0, 0, 1, 1], [], []>} : vector<384x128xbf16>, vector<128x128xbf16>, vector<384x128xf32> -> vector<384x128xf32>
    %21 = arith.addf %15, %20 : vector<384x128xf32>
    %c0_22 = arith.constant 0 : index
    %c24 = arith.constant 24 : index
    %c0_23 = arith.constant 0 : index
    %22 = vector.load %arg1[%c0_22, %c24, %c0_23] : memref<1x456x128xbf16, #tpu.memory_space<vmem>>, vector<1x384x128xbf16>
    %23 = vector.shape_cast %22 : vector<1x384x128xbf16> to vector<384x128xbf16>
    %c3 = arith.constant 3 : index
    %c0_24 = arith.constant 0 : index
    %c0_25 = arith.constant 0 : index
    %24 = vector.load %arg2[%c3, %c0_24, %c0_25] : memref<9x128x128xbf16, #tpu.memory_space<vmem>>, vector<1x128x128xbf16>
    %25 = vector.shape_cast %24 : vector<1x128x128xbf16> to vector<128x128xbf16>
    %cst_26 = arith.constant dense<0.000000e+00> : vector<384x128xf32>
    %26 = tpu.matmul %23, %25, %cst_26 {dimension_numbers = #tpu.dot_dimension_numbers<[1], [0], [0], [1], [0, 0, 1, 1], [], []>} : vector<384x128xbf16>, vector<128x128xbf16>, vector<384x128xf32> -> vector<384x128xf32>
    %27 = arith.addf %21, %26 : vector<384x128xf32>
    %c0_27 = arith.constant 0 : index
    %c25 = arith.constant 25 : index
    %c0_28 = arith.constant 0 : index
    %28 = vector.load %arg1[%c0_27, %c25, %c0_28] : memref<1x456x128xbf16, #tpu.memory_space<vmem>>, vector<1x384x128xbf16>
    %29 = vector.shape_cast %28 : vector<1x384x128xbf16> to vector<384x128xbf16>
    %c4 = arith.constant 4 : index
    %c0_29 = arith.constant 0 : index
    %c0_30 = arith.constant 0 : index
    %30 = vector.load %arg2[%c4, %c0_29, %c0_30] : memref<9x128x128xbf16, #tpu.memory_space<vmem>>, vector<1x128x128xbf16>
    %31 = vector.shape_cast %30 : vector<1x128x128xbf16> to vector<128x128xbf16>
    %cst_31 = arith.constant dense<0.000000e+00> : vector<384x128xf32>
    %32 = tpu.matmul %29, %31, %cst_31 {dimension_numbers = #tpu.dot_dimension_numbers<[1], [0], [0], [1], [0, 0, 1, 1], [], []>} : vector<384x128xbf16>, vector<128x128xbf16>, vector<384x128xf32> -> vector<384x128xf32>
    %33 = arith.addf %27, %32 : vector<384x128xf32>
    %c0_32 = arith.constant 0 : index
    %c26 = arith.constant 26 : index
    %c0_33 = arith.constant 0 : index
    %34 = vector.load %arg1[%c0_32, %c26, %c0_33] : memref<1x456x128xbf16, #tpu.memory_space<vmem>>, vector<1x384x128xbf16>
    %35 = vector.shape_cast %34 : vector<1x384x128xbf16> to vector<384x128xbf16>
    %c5 = arith.constant 5 : index
    %c0_34 = arith.constant 0 : index
    %c0_35 = arith.constant 0 : index
    %36 = vector.load %arg2[%c5, %c0_34, %c0_35] : memref<9x128x128xbf16, #tpu.memory_space<vmem>>, vector<1x128x128xbf16>
    %37 = vector.shape_cast %36 : vector<1x128x128xbf16> to vector<128x128xbf16>
    %cst_36 = arith.constant dense<0.000000e+00> : vector<384x128xf32>
    %38 = tpu.matmul %35, %37, %cst_36 {dimension_numbers = #tpu.dot_dimension_numbers<[1], [0], [0], [1], [0, 0, 1, 1], [], []>} : vector<384x128xbf16>, vector<128x128xbf16>, vector<384x128xf32> -> vector<384x128xf32>
    %39 = arith.addf %33, %38 : vector<384x128xf32>
    %c0_37 = arith.constant 0 : index
    %c48 = arith.constant 48 : index
    %c0_38 = arith.constant 0 : index
    %40 = vector.load %arg1[%c0_37, %c48, %c0_38] : memref<1x456x128xbf16, #tpu.memory_space<vmem>>, vector<1x384x128xbf16>
    %41 = vector.shape_cast %40 : vector<1x384x128xbf16> to vector<384x128xbf16>
    %c6 = arith.constant 6 : index
    %c0_39 = arith.constant 0 : index
    %c0_40 = arith.constant 0 : index
    %42 = vector.load %arg2[%c6, %c0_39, %c0_40] : memref<9x128x128xbf16, #tpu.memory_space<vmem>>, vector<1x128x128xbf16>
    %43 = vector.shape_cast %42 : vector<1x128x128xbf16> to vector<128x128xbf16>
    %cst_41 = arith.constant dense<0.000000e+00> : vector<384x128xf32>
    %44 = tpu.matmul %41, %43, %cst_41 {dimension_numbers = #tpu.dot_dimension_numbers<[1], [0], [0], [1], [0, 0, 1, 1], [], []>} : vector<384x128xbf16>, vector<128x128xbf16>, vector<384x128xf32> -> vector<384x128xf32>
    %45 = arith.addf %39, %44 : vector<384x128xf32>
    %c0_42 = arith.constant 0 : index
    %c49 = arith.constant 49 : index
    %c0_43 = arith.constant 0 : index
    %46 = vector.load %arg1[%c0_42, %c49, %c0_43] : memref<1x456x128xbf16, #tpu.memory_space<vmem>>, vector<1x384x128xbf16>
    %47 = vector.shape_cast %46 : vector<1x384x128xbf16> to vector<384x128xbf16>
    %c7 = arith.constant 7 : index
    %c0_44 = arith.constant 0 : index
    %c0_45 = arith.constant 0 : index
    %48 = vector.load %arg2[%c7, %c0_44, %c0_45] : memref<9x128x128xbf16, #tpu.memory_space<vmem>>, vector<1x128x128xbf16>
    %49 = vector.shape_cast %48 : vector<1x128x128xbf16> to vector<128x128xbf16>
    %cst_46 = arith.constant dense<0.000000e+00> : vector<384x128xf32>
    %50 = tpu.matmul %47, %49, %cst_46 {dimension_numbers = #tpu.dot_dimension_numbers<[1], [0], [0], [1], [0, 0, 1, 1], [], []>} : vector<384x128xbf16>, vector<128x128xbf16>, vector<384x128xf32> -> vector<384x128xf32>
    %51 = arith.addf %45, %50 : vector<384x128xf32>
    %c0_47 = arith.constant 0 : index
    %c50 = arith.constant 50 : index
    %c0_48 = arith.constant 0 : index
    %52 = vector.load %arg1[%c0_47, %c50, %c0_48] : memref<1x456x128xbf16, #tpu.memory_space<vmem>>, vector<1x384x128xbf16>
    %53 = vector.shape_cast %52 : vector<1x384x128xbf16> to vector<384x128xbf16>
    %c8 = arith.constant 8 : index
    %c0_49 = arith.constant 0 : index
    %c0_50 = arith.constant 0 : index
    %54 = vector.load %arg2[%c8, %c0_49, %c0_50] : memref<9x128x128xbf16, #tpu.memory_space<vmem>>, vector<1x128x128xbf16>
    %55 = vector.shape_cast %54 : vector<1x128x128xbf16> to vector<128x128xbf16>
    %cst_51 = arith.constant dense<0.000000e+00> : vector<384x128xf32>
    %56 = tpu.matmul %53, %55, %cst_51 {dimension_numbers = #tpu.dot_dimension_numbers<[1], [0], [0], [1], [0, 0, 1, 1], [], []>} : vector<384x128xbf16>, vector<128x128xbf16>, vector<384x128xf32> -> vector<384x128xf32>
    %57 = arith.addf %51, %56 : vector<384x128xf32>
    %c0_52 = arith.constant 0 : index
    %c0_53 = arith.constant 0 : index
    %58 = vector.load %arg3[%c0_52, %c0_53] : memref<1x128xf32, #tpu.memory_space<vmem>>, vector<1x128xf32>
    %59 = vector.broadcast %58 : vector<1x128xf32> to vector<384x128xf32>
    %60 = arith.addf %57, %59 : vector<384x128xf32>
    %cst_54 = arith.constant 0.000000e+00 : f32
    %61 = vector.broadcast %cst_54 : f32 to vector<384x128xf32>
    %62 = arith.maximumf %60, %61 : vector<384x128xf32>
    %63 = tpu.iota {dimensions = array<i32: 0>} : vector<384x1xi32>
    %c24_i32 = arith.constant 24 : i32
    %c0_i32 = arith.constant 0 : i32
    %64 = arith.cmpi eq, %c24_i32, %c0_i32 : i32
    %c1_i32 = arith.constant 1 : i32
    %65 = arith.select %64, %c1_i32, %c24_i32 : i32
    %66 = vector.broadcast %65 : i32 to vector<384x1xi32>
    %67 = arith.remsi %63, %66 : vector<384x1xi32>
    %c0_i32_55 = arith.constant 0 : i32
    %68 = vector.broadcast %c0_i32_55 : i32 to vector<384x1xi32>
    %69 = arith.cmpi ne, %67, %68 : vector<384x1xi32>
    %c0_i32_56 = arith.constant 0 : i32
    %70 = vector.broadcast %c0_i32_56 : i32 to vector<384x1xi32>
    %71 = arith.cmpi slt, %67, %70 : vector<384x1xi32>
    %c0_i32_57 = arith.constant 0 : i32
    %72 = arith.cmpi slt, %65, %c0_i32_57 : i32
    %73 = vector.broadcast %72 : i1 to vector<384x1xi1>
    %74 = vector.broadcast %73 : vector<384x1xi1> to vector<384x1xi1>
    %75 = arith.xori %71, %74 : vector<384x1xi1>
    %76 = arith.andi %75, %69 : vector<384x1xi1>
    %77 = vector.broadcast %65 : i32 to vector<384x1xi32>
    %78 = arith.addi %67, %77 : vector<384x1xi32>
    %79 = arith.select %76, %78, %67 : vector<384x1xi1>, vector<384x1xi32>
    %c16_i32 = arith.constant 16 : i32
    %80 = vector.broadcast %c16_i32 : i32 to vector<384x1xi32>
    %81 = arith.cmpi slt, %79, %80 : vector<384x1xi32>
    %cst_58 = arith.constant 0.000000e+00 : f32
    %82 = vector.shape_cast %81 : vector<384x1xi1> to vector<384x1xi1>
    %83 = vector.broadcast %82 : vector<384x1xi1> to vector<384x128xi1>
    %84 = vector.broadcast %cst_58 : f32 to vector<384x128xf32>
    %85 = arith.select %83, %62, %84 : vector<384x128xi1>, vector<384x128xf32>
    %86 = arith.truncf %85 : vector<384x128xf32> to vector<384x128xbf16>
    %c48_59 = arith.constant 48 : index
    %c0_60 = arith.constant 0 : index
    %87 = vector.load %arg7[%c48_59, %c0_60] : memref<480x128xbf16, #tpu.memory_space<vmem>>, vector<384x128xbf16>
    tpu.vector_store %arg7[%c48_59, %c0_60], %86 {strides = array<i32>} : memref<480x128xbf16, #tpu.memory_space<vmem>>, vector<384x128xbf16>,
    %cst_61 = arith.constant 0.000000e+00 : f32
    %88 = vector.broadcast %cst_61 : f32 to vector<384x128xf32>
    %c23 = arith.constant 23 : index
    %c0_62 = arith.constant 0 : index
    %89 = vector.load %arg7[%c23, %c0_62] : memref<480x128xbf16, #tpu.memory_space<vmem>>, vector<384x128xbf16>
    %c0_63 = arith.constant 0 : index
    %c0_64 = arith.constant 0 : index
    %c0_65 = arith.constant 0 : index
    %90 = vector.load %arg4[%c0_63, %c0_64, %c0_65] : memref<9x128x128xbf16, #tpu.memory_space<vmem>>, vector<1x128x128xbf16>
    %91 = vector.shape_cast %90 : vector<1x128x128xbf16> to vector<128x128xbf16>
    %cst_66 = arith.constant dense<0.000000e+00> : vector<384x128xf32>
    %92 = tpu.matmul %89, %91, %cst_66 {dimension_numbers = #tpu.dot_dimension_numbers<[1], [0], [0], [1], [0, 0, 1, 1], [], []>} : vector<384x128xbf16>, vector<128x128xbf16>, vector<384x128xf32> -> vector<384x128xf32>
    %93 = arith.addf %88, %92 : vector<384x128xf32>
    %c24_67 = arith.constant 24 : index
    %c0_68 = arith.constant 0 : index
    %94 = vector.load %arg7[%c24_67, %c0_68] : memref<480x128xbf16, #tpu.memory_space<vmem>>, vector<384x128xbf16>
    %c1_69 = arith.constant 1 : index
    %c0_70 = arith.constant 0 : index
    %c0_71 = arith.constant 0 : index
    %95 = vector.load %arg4[%c1_69, %c0_70, %c0_71] : memref<9x128x128xbf16, #tpu.memory_space<vmem>>, vector<1x128x128xbf16>
    %96 = vector.shape_cast %95 : vector<1x128x128xbf16> to vector<128x128xbf16>
    %cst_72 = arith.constant dense<0.000000e+00> : vector<384x128xf32>
    %97 = tpu.matmul %94, %96, %cst_72 {dimension_numbers = #tpu.dot_dimension_numbers<[1], [0], [0], [1], [0, 0, 1, 1], [], []>} : vector<384x128xbf16>, vector<128x128xbf16>, vector<384x128xf32> -> vector<384x128xf32>
    %98 = arith.addf %93, %97 : vector<384x128xf32>
    %c25_73 = arith.constant 25 : index
    %c0_74 = arith.constant 0 : index
    %99 = vector.load %arg7[%c25_73, %c0_74] : memref<480x128xbf16, #tpu.memory_space<vmem>>, vector<384x128xbf16>
    %c2_75 = arith.constant 2 : index
    %c0_76 = arith.constant 0 : index
    %c0_77 = arith.constant 0 : index
    %100 = vector.load %arg4[%c2_75, %c0_76, %c0_77] : memref<9x128x128xbf16, #tpu.memory_space<vmem>>, vector<1x128x128xbf16>
    %101 = vector.shape_cast %100 : vector<1x128x128xbf16> to vector<128x128xbf16>
    %cst_78 = arith.constant dense<0.000000e+00> : vector<384x128xf32>
    %102 = tpu.matmul %99, %101, %cst_78 {dimension_numbers = #tpu.dot_dimension_numbers<[1], [0], [0], [1], [0, 0, 1, 1], [], []>} : vector<384x128xbf16>, vector<128x128xbf16>, vector<384x128xf32> -> vector<384x128xf32>
    %103 = arith.addf %98, %102 : vector<384x128xf32>
    %c47 = arith.constant 47 : index
    %c0_79 = arith.constant 0 : index
    %104 = vector.load %arg7[%c47, %c0_79] : memref<480x128xbf16, #tpu.memory_space<vmem>>, vector<384x128xbf16>
    %c3_80 = arith.constant 3 : index
    %c0_81 = arith.constant 0 : index
    %c0_82 = arith.constant 0 : index
    %105 = vector.load %arg4[%c3_80, %c0_81, %c0_82] : memref<9x128x128xbf16, #tpu.memory_space<vmem>>, vector<1x128x128xbf16>
    %106 = vector.shape_cast %105 : vector<1x128x128xbf16> to vector<128x128xbf16>
    %cst_83 = arith.constant dense<0.000000e+00> : vector<384x128xf32>
    %107 = tpu.matmul %104, %106, %cst_83 {dimension_numbers = #tpu.dot_dimension_numbers<[1], [0], [0], [1], [0, 0, 1, 1], [], []>} : vector<384x128xbf16>, vector<128x128xbf16>, vector<384x128xf32> -> vector<384x128xf32>
    %108 = arith.addf %103, %107 : vector<384x128xf32>
    %c48_84 = arith.constant 48 : index
    %c0_85 = arith.constant 0 : index
    %109 = vector.load %arg7[%c48_84, %c0_85] : memref<480x128xbf16, #tpu.memory_space<vmem>>, vector<384x128xbf16>
    %c4_86 = arith.constant 4 : index
    %c0_87 = arith.constant 0 : index
    %c0_88 = arith.constant 0 : index
    %110 = vector.load %arg4[%c4_86, %c0_87, %c0_88] : memref<9x128x128xbf16, #tpu.memory_space<vmem>>, vector<1x128x128xbf16>
    %111 = vector.shape_cast %110 : vector<1x128x128xbf16> to vector<128x128xbf16>
    %cst_89 = arith.constant dense<0.000000e+00> : vector<384x128xf32>
    %112 = tpu.matmul %109, %111, %cst_89 {dimension_numbers = #tpu.dot_dimension_numbers<[1], [0], [0], [1], [0, 0, 1, 1], [], []>} : vector<384x128xbf16>, vector<128x128xbf16>, vector<384x128xf32> -> vector<384x128xf32>
    %113 = arith.addf %108, %112 : vector<384x128xf32>
    %c49_90 = arith.constant 49 : index
    %c0_91 = arith.constant 0 : index
    %114 = vector.load %arg7[%c49_90, %c0_91] : memref<480x128xbf16, #tpu.memory_space<vmem>>, vector<384x128xbf16>
    %c5_92 = arith.constant 5 : index
    %c0_93 = arith.constant 0 : index
    %c0_94 = arith.constant 0 : index
    %115 = vector.load %arg4[%c5_92, %c0_93, %c0_94] : memref<9x128x128xbf16, #tpu.memory_space<vmem>>, vector<1x128x128xbf16>
    %116 = vector.shape_cast %115 : vector<1x128x128xbf16> to vector<128x128xbf16>
    %cst_95 = arith.constant dense<0.000000e+00> : vector<384x128xf32>
    %117 = tpu.matmul %114, %116, %cst_95 {dimension_numbers = #tpu.dot_dimension_numbers<[1], [0], [0], [1], [0, 0, 1, 1], [], []>} : vector<384x128xbf16>, vector<128x128xbf16>, vector<384x128xf32> -> vector<384x128xf32>
    %118 = arith.addf %113, %117 : vector<384x128xf32>
    %c71 = arith.constant 71 : index
    %c0_96 = arith.constant 0 : index
    %119 = vector.load %arg7[%c71, %c0_96] : memref<480x128xbf16, #tpu.memory_space<vmem>>, vector<384x128xbf16>
    %c6_97 = arith.constant 6 : index
    %c0_98 = arith.constant 0 : index
    %c0_99 = arith.constant 0 : index
    %120 = vector.load %arg4[%c6_97, %c0_98, %c0_99] : memref<9x128x128xbf16, #tpu.memory_space<vmem>>, vector<1x128x128xbf16>
    %121 = vector.shape_cast %120 : vector<1x128x128xbf16> to vector<128x128xbf16>
    %cst_100 = arith.constant dense<0.000000e+00> : vector<384x128xf32>
    %122 = tpu.matmul %119, %121, %cst_100 {dimension_numbers = #tpu.dot_dimension_numbers<[1], [0], [0], [1], [0, 0, 1, 1], [], []>} : vector<384x128xbf16>, vector<128x128xbf16>, vector<384x128xf32> -> vector<384x128xf32>
    %123 = arith.addf %118, %122 : vector<384x128xf32>
    %c72 = arith.constant 72 : index
    %c0_101 = arith.constant 0 : index
    %124 = vector.load %arg7[%c72, %c0_101] : memref<480x128xbf16, #tpu.memory_space<vmem>>, vector<384x128xbf16>
    %c7_102 = arith.constant 7 : index
    %c0_103 = arith.constant 0 : index
    %c0_104 = arith.constant 0 : index
    %125 = vector.load %arg4[%c7_102, %c0_103, %c0_104] : memref<9x128x128xbf16, #tpu.memory_space<vmem>>, vector<1x128x128xbf16>
    %126 = vector.shape_cast %125 : vector<1x128x128xbf16> to vector<128x128xbf16>
    %cst_105 = arith.constant dense<0.000000e+00> : vector<384x128xf32>
    %127 = tpu.matmul %124, %126, %cst_105 {dimension_numbers = #tpu.dot_dimension_numbers<[1], [0], [0], [1], [0, 0, 1, 1], [], []>} : vector<384x128xbf16>, vector<128x128xbf16>, vector<384x128xf32> -> vector<384x128xf32>
    %128 = arith.addf %123, %127 : vector<384x128xf32>
    %c73 = arith.constant 73 : index
    %c0_106 = arith.constant 0 : index
    %129 = vector.load %arg7[%c73, %c0_106] : memref<480x128xbf16, #tpu.memory_space<vmem>>, vector<384x128xbf16>
    %c8_107 = arith.constant 8 : index
    %c0_108 = arith.constant 0 : index
    %c0_109 = arith.constant 0 : index
    %130 = vector.load %arg4[%c8_107, %c0_108, %c0_109] : memref<9x128x128xbf16, #tpu.memory_space<vmem>>, vector<1x128x128xbf16>
    %131 = vector.shape_cast %130 : vector<1x128x128xbf16> to vector<128x128xbf16>
    %cst_110 = arith.constant dense<0.000000e+00> : vector<384x128xf32>
    %132 = tpu.matmul %129, %131, %cst_110 {dimension_numbers = #tpu.dot_dimension_numbers<[1], [0], [0], [1], [0, 0, 1, 1], [], []>} : vector<384x128xbf16>, vector<128x128xbf16>, vector<384x128xf32> -> vector<384x128xf32>
    %133 = arith.addf %128, %132 : vector<384x128xf32>
    %c0_111 = arith.constant 0 : index
    %c0_112 = arith.constant 0 : index
    %134 = vector.load %arg5[%c0_111, %c0_112] : memref<1x128xf32, #tpu.memory_space<vmem>>, vector<1x128xf32>
    %135 = vector.broadcast %134 : vector<1x128xf32> to vector<384x128xf32>
    %136 = arith.addf %133, %135 : vector<384x128xf32>
    %cst_113 = arith.constant 0.000000e+00 : f32
    %137 = vector.broadcast %cst_113 : f32 to vector<384x128xf32>
    %138 = arith.maximumf %136, %137 : vector<384x128xf32>
    %c0_114 = arith.constant 0 : index
    %c0_115 = arith.constant 0 : index
    %c0_116 = arith.constant 0 : index
    %139 = vector.load %arg6[%c0_114, %c0_115, %c0_116] : memref<1x384x128xf32, #tpu.memory_space<vmem>>, vector<1x384x128xf32>
    %140 = vector.shape_cast %139 : vector<1x384x128xf32> to vector<384x128xf32>
    %141 = vector.shape_cast %138 : vector<384x128xf32> to vector<1x384x128xf32>
    tpu.vector_store %arg6[%c0_114, %c0_115, %c0_116], %141 {strides = array<i32>} : memref<1x384x128xf32, #tpu.memory_space<vmem>>, vector<1x384x128xf32>,
    return
  }
  func.func @transform_0(%arg0: i32) -> (i32, i32, i32) {
    %c0_i32 = arith.constant 0 : i32
    %c0_i32_0 = arith.constant 0 : i32
    %c0_i32_1 = arith.constant 0 : i32
    return %arg0, %c0_i32, %c0_i32_0 : i32, i32, i32
  }
  func.func @transform_1(%arg0: i32) -> (i32, i32, i32) {
    %c0_i32 = arith.constant 0 : i32
    %c0_i32_0 = arith.constant 0 : i32
    %c0_i32_1 = arith.constant 0 : i32
    %c0_i32_2 = arith.constant 0 : i32
    return %c0_i32, %c0_i32_0, %c0_i32_1 : i32, i32, i32
  }
  func.func @transform_2(%arg0: i32) -> (i32, i32) {
    %c0_i32 = arith.constant 0 : i32
    %c0_i32_0 = arith.constant 0 : i32
    %c0_i32_1 = arith.constant 0 : i32
    return %c0_i32, %c0_i32_0 : i32, i32
  }
  func.func @transform_3(%arg0: i32) -> (i32, i32, i32) {
    %c0_i32 = arith.constant 0 : i32
    %c0_i32_0 = arith.constant 0 : i32
    %c0_i32_1 = arith.constant 0 : i32
    %c0_i32_2 = arith.constant 0 : i32
    return %c0_i32, %c0_i32_0, %c0_i32_1 : i32, i32, i32
  }
  func.func @transform_4(%arg0: i32) -> (i32, i32) {
    %c0_i32 = arith.constant 0 : i32
    %c0_i32_0 = arith.constant 0 : i32
    %c0_i32_1 = arith.constant 0 : i32
    return %c0_i32, %c0_i32_0 : i32, i32
  }
  func.func @transform_5(%arg0: i32) -> (i32, i32, i32) {
    %c0_i32 = arith.constant 0 : i32
    %c0_i32_0 = arith.constant 0 : i32
    %c0_i32_1 = arith.constant 0 : i32
    return %arg0, %c0_i32, %c0_i32_0 : i32, i32, i32
  }
}

</mosaic_0001>

<llo_original>
// kernel: double_conv_forward.1
$region0: #{double_conv_forward.1}
  #allocation0 [shape = 'u32[]', space=smem, size = 0x4, offset = 0x4, fixed_abs, tag = 'smem constant byte address 0x4 - core index']
  #allocation1 [shape = 'u32[144,128]{1,0:T(1,128)}', space=vmem, size = 0x12000, scoped, tag = 'internal scratch']
  #allocation2 [shape = 'bf16[480,128]{1,0:T(16,128)(2,1)}', space=vmem, size = 0x1e000, scoped, tag = 'scratch operand']
  %s0 = inlined_call_operand.vmem [shape: bf16[2,456,128], index: 0, kind: input, shape index: {}]
  %s1 = inlined_call_operand.vmem [shape: bf16[9,128,128], index: 1, kind: input, shape index: {}]
  %s2 = inlined_call_operand.vmem [shape: f32[1,128], index: 2, kind: input, shape index: {}]
  %s3 = inlined_call_operand.vmem [shape: bf16[9,128,128], index: 3, kind: input, shape index: {}]
  %s4 = inlined_call_operand.vmem [shape: f32[1,128], index: 4, kind: input, shape index: {}]
  %s5 = inlined_call_operand.vmem [shape: f32[2,384,128], index: 5, kind: output, shape index: {}]
  %s6 = sld [smem:[#allocation0]]
  $region53: #{double_conv_forward.1} parent=0
    _
  %s8 = ssub.s32 1, %s6
  %s9 = scalar_select 0, %s8, %s6
  loop: start=0, step=1, limit=4
  $region2: #{double_conv_forward.1} parent=0 // loop_pre_header
    _
  $region3: #{double_conv_forward.1} parent=0 // loop_header
    %s11 = sphi 0, %s15
    %p12 = scmp.ge.s32.totalorder %s11, 4
    %s21 = sphi 0, %s23
    %s24 = sphi 0, %s21
    %s25 = sphi 0, %s24
    %s41 = sphi 0, %s25
    %s45 = sphi 0, %s45
    %s47 = sphi 0, %s45
    %s48 = sphi 0, %s47
    %s62 = sphi 0, %s48
    %s66 = sphi 0, %s66
    %s68 = sphi 0, %s66
    %s69 = sphi 0, %s68
    %s83 = sphi 0, %s69
    %s87 = sphi 0, %s87
    %s89 = sphi 0, %s87
    %s90 = sphi 0, %s89
    %s104 = sphi 0, %s90
    %s108 = sphi 0, %s108
    %s110 = sphi 0, %s108
    %s111 = sphi 0, %s110
    %s125 = sphi 0, %s111
    %s131 = sphi 0, %s133
    %s134 = sphi 0, %s131
    %s135 = sphi 0, %s134
    %s151 = sphi 0, %s135
  $region4: #{double_conv_forward.1} parent=0 // loop_header_branch
    %14 = sbr.rel (%p12) target = $region8
  $region5: #{double_conv_forward.1} parent=0 // loop_body
    %s16 = ssub.s32 %s11, 1
    %s17 = ssub.s32 %s11, 2
    %s18 = sadd.s32 %s11, 1
    %s19 = ssub.s32 %s11, %s18
    %p20 = scmp.eq.s32.totalorder %s19, 0
    %s22 = sadd.s32 %s21, 1
    %s23 = scalar_select %p20, %s21, %s22
    %p26 = pneg %p20
    %p27 = scmp.eq.s32.totalorder %s11, 1
    %p28 = por %p26, %p27
    %p29 = scmp.ne.s32.totalorder %s21, %s24
    %p30 = scmp.eq.s32.totalorder %s11, 0
    %p31 = por %p29, %p30
    %p32 = scmp.ne.s32.totalorder %s21, %s24
    %p33 = scmp.eq.s32.totalorder %s16, 1
    %p34 = por %p32, %p33
    %p35 = scmp.ne.s32.totalorder %s24, %s25
    %p36 = scmp.eq.s32.totalorder %s16, 0
    %p37 = por %p35, %p36
    %p38 = scmp.ne.s32.totalorder %s24, %s25
    %p39 = scmp.eq.s32.totalorder %s17, 1
    %p40 = por %p38, %p39
    %p42 = scmp.ne.s32.totalorder %s25, %s41
    %p43 = scmp.eq.s32.totalorder %s17, 0
    %p44 = por %p42, %p43
    %s46 = sadd.s32 %s45, 1
    %p49 = scmp.eq.s32.totalorder %s11, 1
    %p50 = scmp.ne.s32.totalorder %s45, %s47
    %p51 = scmp.eq.s32.totalorder %s11, 0
    %p52 = por %p50, %p51
    %p53 = scmp.ne.s32.totalorder %s45, %s47
    %p54 = scmp.eq.s32.totalorder %s16, 1
    %p55 = por %p53, %p54
    %p56 = scmp.ne.s32.totalorder %s47, %s48
    %p57 = scmp.eq.s32.totalorder %s16, 0
    %p58 = por %p56, %p57
    %p59 = scmp.ne.s32.totalorder %s47, %s48
    %p60 = scmp.eq.s32.totalorder %s17, 1
    %p61 = por %p59, %p60
    %p63 = scmp.ne.s32.totalorder %s48, %s62
    %p64 = scmp.eq.s32.totalorder %s17, 0
    %p65 = por %p63, %p64
    %s67 = sadd.s32 %s66, 1
    %p70 = scmp.eq.s32.totalorder %s11, 1
    %p71 = scmp.ne.s32.totalorder %s66, %s68
    %p72 = scmp.eq.s32.totalorder %s11, 0
    %p73 = por %p71, %p72
    %p74 = scmp.ne.s32.totalorder %s66, %s68
    %p75 = scmp.eq.s32.totalorder %s16, 1
    %p76 = por %p74, %p75
    %p77 = scmp.ne.s32.totalorder %s68, %s69
    %p78 = scmp.eq.s32.totalorder %s16, 0
    %p79 = por %p77, %p78
    %p80 = scmp.ne.s32.totalorder %s68, %s69
    %p81 = scmp.eq.s32.totalorder %s17, 1
    %p82 = por %p80, %p81
    %p84 = scmp.ne.s32.totalorder %s69, %s83
    %p85 = scmp.eq.s32.totalorder %s17, 0
    %p86 = por %p84, %p85
    %s88 = sadd.s32 %s87, 1
    %p91 = scmp.eq.s32.totalorder %s11, 1
    %p92 = scmp.ne.s32.totalorder %s87, %s89
    %p93 = scmp.eq.s32.totalorder %s11, 0
    %p94 = por %p92, %p93
    %p95 = scmp.ne.s32.totalorder %s87, %s89
    %p96 = scmp.eq.s32.totalorder %s16, 1
    %p97 = por %p95, %p96
    %p98 = scmp.ne.s32.totalorder %s89, %s90
    %p99 = scmp.eq.s32.totalorder %s16, 0
    %p100 = por %p98, %p99
    %p101 = scmp.ne.s32.totalorder %s89, %s90
    %p102 = scmp.eq.s32.totalorder %s17, 1
    %p103 = por %p101, %p102
    %p105 = scmp.ne.s32.totalorder %s90, %s104
    %p106 = scmp.eq.s32.totalorder %s17, 0
    %p107 = por %p105, %p106
    %s109 = sadd.s32 %s108, 1
    %p112 = scmp.eq.s32.totalorder %s11, 1
    %p113 = scmp.ne.s32.totalorder %s108, %s110
    %p114 = scmp.eq.s32.totalorder %s11, 0
    %p115 = por %p113, %p114
    %p116 = scmp.ne.s32.totalorder %s108, %s110
    %p117 = scmp.eq.s32.totalorder %s16, 1
    %p118 = por %p116, %p117
    %p119 = scmp.ne.s32.totalorder %s110, %s111
    %p120 = scmp.eq.s32.totalorder %s16, 0
    %p121 = por %p119, %p120
    %p122 = scmp.ne.s32.totalorder %s110, %s111
    %p123 = scmp.eq.s32.totalorder %s17, 1
    %p124 = por %p122, %p123
    %p126 = scmp.ne.s32.totalorder %s111, %s125
    %p127 = scmp.eq.s32.totalorder %s17, 0
    %p128 = por %p126, %p127
    %s129 = ssub.s32 %s11, %s18
    %p130 = scmp.eq.s32.totalorder %s129, 0
    %s132 = sadd.s32 %s131, 1
    %s133 = scalar_select %p130, %s131, %s132
    %p136 = pneg %p130
    %p137 = scmp.eq.s32.totalorder %s11, 1
    %p138 = por %p136, %p137
    %p139 = scmp.ne.s32.totalorder %s131, %s134
    %p140 = scmp.eq.s32.totalorder %s11, 0
    %p141 = por %p139, %p140
    %p142 = scmp.ne.s32.totalorder %s131, %s134
    %p143 = scmp.eq.s32.totalorder %s16, 1
    %p144 = por %p142, %p143
    %p145 = scmp.ne.s32.totalorder %s134, %s135
    %p146 = scmp.eq.s32.totalorder %s16, 0
    %p147 = por %p145, %p146
    %p148 = scmp.ne.s32.totalorder %s134, %s135
    %p149 = scmp.eq.s32.totalorder %s17, 1
    %p150 = por %p148, %p149
    %p152 = scmp.ne.s32.totalorder %s135, %s151
    %p153 = scmp.eq.s32.totalorder %s17, 0
    %p154 = por %p152, %p153
    %p155 = scmp.le.s32.totalorder 1, %s11
    %p156 = scmp.lt.s32.totalorder %s11, 3
    %p157 = pnand %p155, %p156
    %p158 = pneg %p157
    // Predicated region
    $region9: #{double_conv_forward.1} parent=5 // pred_check
      _
    $region10: #{double_conv_forward.1} parent=5 // pred_check_branch
      %160 = sbr.rel (%p157) target = $region12
    $region11: #{double_conv_forward.1} parent=5 // pred_region
      %s161 = ssub.s32 %s11, 1
      // Predicated region
      $region13: #{double_conv_forward.1} parent=11 // pred_check
        %p162 = pneg %p58
      $region14: #{double_conv_forward.1} parent=11 // pred_check_branch
        %164 = sbr.rel (%p162) target = $region16
      $region15: #{double_conv_forward.1} parent=11 // pred_region
        _
      $region16: #{double_conv_forward.1} parent=11 // pred_fallthru
        _
      // Predicated region
      $region17: #{double_conv_forward.1} parent=11 // pred_check
        %p165 = pneg %p79
      $region18: #{double_conv_forward.1} parent=11 // pred_check_branch
        %167 = sbr.rel (%p165) target = $region20
      $region19: #{double_conv_forward.1} parent=11 // pred_region
        _
      $region20: #{double_conv_forward.1} parent=11 // pred_fallthru
        _
      // Predicated region
      $region21: #{double_conv_forward.1} parent=11 // pred_check
        %p168 = pneg %p100
      $region22: #{double_conv_forward.1} parent=11 // pred_check_branch
        %170 = sbr.rel (%p168) target = $region24
      $region23: #{double_conv_forward.1} parent=11 // pred_region
        _
      $region24: #{double_conv_forward.1} parent=11 // pred_fallthru
        _
      // Predicated region
      $region25: #{double_conv_forward.1} parent=11 // pred_check
        %p171 = pneg %p121
      $region26: #{double_conv_forward.1} parent=11 // pred_check_branch
        %173 = sbr.rel (%p171) target = $region28
      $region27: #{double_conv_forward.1} parent=11 // pred_region
        _
      $region28: #{double_conv_forward.1} parent=11 // pred_fallthru
        _
    $region12: #{double_conv_forward.1} parent=5 // pred_fallthru
      _
    %p174 = scmp.lt.s32.totalorder %s11, 2
    // Predicated region
    $region29: #{double_conv_forward.1} parent=5 // pred_check
      %p175 = pneg %p174
    $region30: #{double_conv_forward.1} parent=5 // pred_check_branch
      %177 = sbr.rel (%p175) target = $region32
    $region31: #{double_conv_forward.1} parent=5 // pred_region
      // Predicated region
      $region33: #{double_conv_forward.1} parent=31 // pred_check
        %p178 = pneg %p31
      $region34: #{double_conv_forward.1} parent=31 // pred_check_branch
        %180 = sbr.rel (%p178) target = $region36
      $region35: #{double_conv_forward.1} parent=31 // pred_region
        %p181 = scmp.lt.s32.totalorder %s11, 1
        %s182 = scalar_select %p181, %s11, 1
        %s183 = smul.addr %s182, 57
        %s184 = smul.addr %s183, 4
        %s185 = scalar_lea.vmem %s0, %s184
      $region36: #{double_conv_forward.1} parent=31 // pred_fallthru
        _
    $region32: #{double_conv_forward.1} parent=5 // pred_fallthru
      _
    %p186 = scmp.le.s32.totalorder 1, %s11
    %p187 = scmp.lt.s32.totalorder %s11, 3
    %p188 = pnand %p186, %p187
    %p189 = pneg %p188
    // Predicated region
    $region37: #{double_conv_forward.1} parent=5 // pred_check
      _
    $region38: #{double_conv_forward.1} parent=5 // pred_check_branch
      %191 = sbr.rel (%p188) target = $region40
    $region39: #{double_conv_forward.1} parent=5 // pred_region
      %s192 = ssub.s32 %s11, 1
      %p193 = scmp.lt.s32.totalorder %s16, 1
      %s194 = scalar_select %p193, %s16, 1
      %s195 = smul.addr %s194, 57
      %s196 = smul.addr %s195, 4
      %s197 = scalar_lea.vmem %s0, %s196
      %p198 = pneg %p37
      %p199 = pneg %p34
      %p200 = pneg %p58
      %p201 = pneg %p55
      %p202 = pneg %p79
      %p203 = pneg %p76
      %p204 = pneg %p100
      %p205 = pneg %p97
      %p206 = pneg %p121
      %p207 = pneg %p118
      %p208 = pneg %p147
      %p209 = pneg %p144
      %p210 = scmp.lt.s32.totalorder %s16, 1
      %s211 = scalar_select %p210, %s16, 1
      %s212 = smul.addr %s211, 48
      %s213 = smul.addr %s212, 8
      %s214 = scalar_lea.vmem %s5, %s213
      %p215 = scmp.lt.s32.totalorder %s16, 1
      %s216 = scalar_select %p215, %s16, 1
      %s217 = smul.addr %s216, 57
      %s218 = smul.addr %s217, 4
      %s219 = scalar_lea.vmem %s0, %s218
      %p220 = scmp.lt.s32.totalorder %s16, 1
      %s221 = scalar_select %p220, %s16, 1
      %s222 = smul.addr %s221, 48
      %s223 = smul.addr %s222, 8
      %s224 = scalar_lea.vmem %s5, %s223
      %226 = vst [vmem:[#allocation2] sm:$0xff] 0
      %227 = vst [vmem:[#allocation2 + $0x8] sm:$0xff] 0
      %228 = vst [vmem:[#allocation2 + $0x10] sm:$0xff] 0
      %229 = vst [vmem:[#allocation2 + $0xd8] sm:$0xff] 0
      %230 = vst [vmem:[#allocation2 + $0xe0] sm:$0xff] 0
      %231 = vst [vmem:[#allocation2 + $0xe8] sm:$0xff] 0
      %v232 = vld [vmem:[%s219] sm:$0xf]
      %v233 = vld [vmem:[%s219 + $0x4] sm:$0xf]
      %v234 = vld [vmem:[%s219 + $0x8] sm:$0xf]
      %v235 = vld [vmem:[%s219 + $0xc] sm:$0xf]
      %v236 = vld [vmem:[%s219 + $0x10] sm:$0xf]
      %v237 = vld [vmem:[%s219 + $0x14] sm:$0xf]
      %v238 = vld [vmem:[%s219 + $0x18] sm:$0xf]
      %v239 = vld [vmem:[%s219 + $0x1c] sm:$0xf]
      %v240 = vld [vmem:[%s219 + $0x20] sm:$0xf]
      %v241 = vld [vmem:[%s219 + $0x24] sm:$0xf]
      %v242 = vld [vmem:[%s219 + $0x28] sm:$0xf]
      %v243 = vld [vmem:[%s219 + $0x2c] sm:$0xf]
      %v244 = vld [vmem:[%s219 + $0x30] sm:$0xf]
      %v245 = vld [vmem:[%s219 + $0x34] sm:$0xf]
      %v246 = vld [vmem:[%s219 + $0x38] sm:$0xf]
      %v247 = vld [vmem:[%s219 + $0x3c] sm:$0xf]
      %v248 = vld [vmem:[%s219 + $0x40] sm:$0xf]
      %v249 = vld [vmem:[%s219 + $0x44] sm:$0xf]
      %v250 = vld [vmem:[%s219 + $0x48] sm:$0xf]
      %v251 = vld [vmem:[%s219 + $0x4c] sm:$0xf]
      %v252 = vld [vmem:[%s219 + $0x50] sm:$0xf]
      %v253 = vld [vmem:[%s219 + $0x54] sm:$0xf]
      %v254 = vld [vmem:[%s219 + $0x58] sm:$0xf]
      %v255 = vld [vmem:[%s219 + $0x5c] sm:$0xf]
      %v256 = vld [vmem:[%s219 + $0x60] sm:$0xf]
      %v257 = vld [vmem:[%s219 + $0x64] sm:$0xf]
      %v258 = vld [vmem:[%s219 + $0x68] sm:$0xf]
      %v259 = vld [vmem:[%s219 + $0x6c] sm:$0xf]
      %v260 = vld [vmem:[%s219 + $0x70] sm:$0xf]
      %v261 = vld [vmem:[%s219 + $0x74] sm:$0xf]
      %v262 = vld [vmem:[%s219 + $0x78] sm:$0xf]
      %v263 = vld [vmem:[%s219 + $0x7c] sm:$0xf]
      %v264 = vld [vmem:[%s219 + $0x80] sm:$0xf]
      %v265 = vld [vmem:[%s219 + $0x84] sm:$0xf]
      %v266 = vld [vmem:[%s219 + $0x88] sm:$0xf]
      %v267 = vld [vmem:[%s219 + $0x8c] sm:$0xf]
      %v268 = vld [vmem:[%s219 + $0x90] sm:$0xf]
      %v269 = vld [vmem:[%s219 + $0x94] sm:$0xf]
      %v270 = vld [vmem:[%s219 + $0x98] sm:$0xf]
      %v271 = vld [vmem:[%s219 + $0x9c] sm:$0xf]
      %v272 = vld [vmem:[%s219 + $0xa0] sm:$0xf]
      %v273 = vld [vmem:[%s219 + $0xa4] sm:$0xf]
      %v274 = vld [vmem:[%s219 + $0xa8] sm:$0xf]
      %v275 = vld [vmem:[%s219 + $0xac] sm:$0xf]
      %v276 = vld [vmem:[%s219 + $0xb0] sm:$0xf]
      %v277 = vld [vmem:[%s219 + $0xb4] sm:$0xf]
      %v278 = vld [vmem:[%s219 + $0xb8] sm:$0xf]
      %v279 = vld [vmem:[%s219 + $0xbc] sm:$0xf]
      %v280 = vld [vmem:[%s1] sm:$0xf]
      %v281 = vld [vmem:[%s1 + $0x4] sm:$0xf]
      %v282 = vld [vmem:[%s1 + $0x8] sm:$0xf]
      %v283 = vld [vmem:[%s1 + $0xc] sm:$0xf]
      %v284 = vld [vmem:[%s1 + $0x10] sm:$0xf]
      %v285 = vld [vmem:[%s1 + $0x14] sm:$0xf]
      %v286 = vld [vmem:[%s1 + $0x18] sm:$0xf]
      %v287 = vld [vmem:[%s1 + $0x1c] sm:$0xf]
      %v288 = vld [vmem:[%s1 + $0x20] sm:$0xf]
      %v289 = vld [vmem:[%s1 + $0x24] sm:$0xf]
      %v290 = vld [vmem:[%s1 + $0x28] sm:$0xf]
      %v291 = vld [vmem:[%s1 + $0x2c] sm:$0xf]
      %v292 = vld [vmem:[%s1 + $0x30] sm:$0xf]
      %v293 = vld [vmem:[%s1 + $0x34] sm:$0xf]
      %v294 = vld [vmem:[%s1 + $0x38] sm:$0xf]
      %v295 = vld [vmem:[%s1 + $0x3c] sm:$0xf]
      %v296 = vld [vmem:[%s219 + $0xc0] sm:$0x1]
      %s297 = scalar_lea.vmem %s1, 64
      %v298 = vld [vmem:[%s297] sm:$0xf]
      %v299 = vld [vmem:[%s297 + $0x4] sm:$0xf]
      %v300 = vld [vmem:[%s297 + $0x8] sm:$0xf]
      %v301 = vld [vmem:[%s297 + $0xc] sm:$0xf]
      %v302 = vld [vmem:[%s297 + $0x10] sm:$0xf]
      %v303 = vld [vmem:[%s297 + $0x14] sm:$0xf]
      %v304 = vld [vmem:[%s297 + $0x18] sm:$0xf]
      %v305 = vld [vmem:[%s297 + $0x1c] sm:$0xf]
      %v306 = vld [vmem:[%s297 + $0x20] sm:$0xf]
      %v307 = vld [vmem:[%s297 + $0x24] sm:$0xf]
      %v308 = vld [vmem:[%s297 + $0x28] sm:$0xf]
      %v309 = vld [vmem:[%s297 + $0x2c] sm:$0xf]
      %v310 = vld [vmem:[%s297 + $0x30] sm:$0xf]
      %v311 = vld [vmem:[%s297 + $0x34] sm:$0xf]
      %v312 = vld [vmem:[%s297 + $0x38] sm:$0xf]
      %v313 = vld [vmem:[%s297 + $0x3c] sm:$0xf]
      %v363 = vunpack.c.l.b16 %v232
      %v364 = vunpack.c.l.b16 %v233
      %v365 = vunpack.c.l.b16 %v234
      %v366 = vunpack.c.l.b16 %v235
      %v367 = vunpack.c.l.b16 %v236
      %v368 = vunpack.c.l.b16 %v237
      %v369 = vunpack.c.l.b16 %v238
      %v370 = vunpack.c.l.b16 %v239
      %v371 = vunpack.c.l.b16 %v240
      %v372 = vunpack.c.l.b16 %v241
      %v373 = vunpack.c.l.b16 %v242
      %v374 = vunpack.c.l.b16 %v243
      %v375 = vunpack.c.l.b16 %v244
      %v376 = vunpack.c.l.b16 %v245
      %v377 = vunpack.c.l.b16 %v246
      %v378 = vunpack.c.l.b16 %v247
      %v379 = vunpack.c.l.b16 %v248
      %v380 = vunpack.c.l.b16 %v249
      %v381 = vunpack.c.l.b16 %v250
      %v382 = vunpack.c.l.b16 %v251
      %v383 = vunpack.c.l.b16 %v252
      %v384 = vunpack.c.l.b16 %v253
      %v385 = vunpack.c.l.b16 %v254
      %v386 = vunpack.c.l.b16 %v255
      %v387 = vunpack.c.l.b16 %v256
      %v388 = vunpack.c.l.b16 %v257
      %v389 = vunpack.c.l.b16 %v258
      %v390 = vunpack.c.l.b16 %v259
      %v391 = vunpack.c.l.b16 %v260
      %v392 = vunpack.c.l.b16 %v261
      %v393 = vunpack.c.l.b16 %v262
      %v394 = vunpack.c.l.b16 %v263
      %v395 = vunpack.c.l.b16 %v264
      %v396 = vunpack.c.l.b16 %v265
      %v397 = vunpack.c.l.b16 %v266
      %v398 = vunpack.c.l.b16 %v267
      %v399 = vunpack.c.l.b16 %v268
      %v400 = vunpack.c.l.b16 %v269
      %v401 = vunpack.c.l.b16 %v270
      %v402 = vunpack.c.l.b16 %v271
      %v403 = vunpack.c.l.b16 %v272
      %v404 = vunpack.c.l.b16 %v273
      %v405 = vunpack.c.l.b16 %v274
      %v406 = vunpack.c.l.b16 %v275
      %v407 = vunpack.c.l.b16 %v276
      %v408 = vunpack.c.l.b16 %v277
      %v409 = vunpack.c.l.b16 %v278
      %v410 = vunpack.c.l.b16 %v279
      %v411 = vunpack.c.l.b16 %v296
      %v412 = vpack.c.b16 %v364, %v363
      %v413 = vpack.c.b16 %v366, %v365
      %v414 = vpack.c.b16 %v368, %v367
      %v415 = vpack.c.b16 %v370, %v369
      %v416 = vpack.c.b16 %v372, %v371
      %v417 = vpack.c.b16 %v374, %v373
      %v418 = vpack.c.b16 %v376, %v375
      %v419 = vpack.c.b16 %v378, %v377
      %v420 = vpack.c.b16 %v380, %v379
      %v421 = vpack.c.b16 %v382, %v381
      %v422 = vpack.c.b16 %v384, %v383
      %v423 = vpack.c.b16 %v386, %v385
      %v424 = vpack.c.b16 %v388, %v387
      %v425 = vpack.c.b16 %v390, %v389
      %v426 = vpack.c.b16 %v392, %v391
      %v427 = vpack.c.b16 %v394, %v393
      %v428 = vpack.c.b16 %v396, %v395
      %v429 = vpack.c.b16 %v398, %v397
      %v430 = vpack.c.b16 %v400, %v399
      %v431 = vpack.c.b16 %v402, %v401
      %v432 = vpack.c.b16 %v404, %v403
      %v433 = vpack.c.b16 %v406, %v405
      %v434 = vpack.c.b16 %v408, %v407
      %v435 = vpack.c.b16 %v410, %v409
      %v436 = vpack.c.b16 %v411, %v411
      %vm437 = vsmask.f32 7424
      %v439 = vshrl.u32 %v412, 16
      %v441 = vshll.u32 %v412, 16
      %v443 = vrot.slane %v441, 1
      %v444 = vor.u32 %v439, %v443
      %v446 = vshll.u32 %v413, 16
      %v448 = vrot.slane %v446, 1
      %v449 = vsel %vm437, %v444, %v448
      %v450 = vshrl.u32 %v413, 16
      %v452 = vor.u32 %v450, %v448
      %v454 = vshll.u32 %v414, 16
      %v456 = vrot.slane %v454, 1
      %v457 = vsel %vm437, %v452, %v456
      %v458 = vshrl.u32 %v414, 16
      %v460 = vor.u32 %v458, %v456
      %v462 = vshll.u32 %v415, 16
      %v464 = vrot.slane %v462, 1
      %v465 = vsel %vm437, %v460, %v464
      %v466 = vshrl.u32 %v415, 16
      %v468 = vor.u32 %v466, %v464
      %v470 = vshll.u32 %v416, 16
      %v472 = vrot.slane %v470, 1
      %v473 = vsel %vm437, %v468, %v472
      %v474 = vshrl.u32 %v416, 16
      %v476 = vor.u32 %v474, %v472
      %v478 = vshll.u32 %v417, 16
      %v480 = vrot.slane %v478, 1
      %v481 = vsel %vm437, %v476, %v480
      %v482 = vshrl.u32 %v417, 16
      %v484 = vor.u32 %v482, %v480
      %v486 = vshll.u32 %v418, 16
      %v488 = vrot.slane %v486, 1
      %v489 = vsel %vm437, %v484, %v488
      %v490 = vshrl.u32 %v418, 16
      %v492 = vor.u32 %v490, %v488
      %v494 = vshll.u32 %v419, 16
      %v496 = vrot.slane %v494, 1
      %v497 = vsel %vm437, %v492, %v496
      %v498 = vshrl.u32 %v419, 16
      %v500 = vor.u32 %v498, %v496
      %v502 = vshll.u32 %v420, 16
      %v504 = vrot.slane %v502, 1
      %v505 = vsel %vm437, %v500, %v504
      %v506 = vshrl.u32 %v420, 16
      %v508 = vor.u32 %v506, %v504
      %v510 = vshll.u32 %v421, 16
      %v512 = vrot.slane %v510, 1
      %v513 = vsel %vm437, %v508, %v512
      %v514 = vshrl.u32 %v421, 16
      %v516 = vor.u32 %v514, %v512
      %v518 = vshll.u32 %v422, 16
      %v520 = vrot.slane %v518, 1
      %v521 = vsel %vm437, %v516, %v520
      %v522 = vshrl.u32 %v422, 16
      %v524 = vor.u32 %v522, %v520
      %v526 = vshll.u32 %v423, 16
      %v528 = vrot.slane %v526, 1
      %v529 = vsel %vm437, %v524, %v528
      %v530 = vshrl.u32 %v423, 16
      %v532 = vor.u32 %v530, %v528
      %v534 = vshll.u32 %v424, 16
      %v536 = vrot.slane %v534, 1
      %v537 = vsel %vm437, %v532, %v536
      %v538 = vshrl.u32 %v424, 16
      %v540 = vor.u32 %v538, %v536
      %v542 = vshll.u32 %v425, 16
      %v544 = vrot.slane %v542, 1
      %v545 = vsel %vm437, %v540, %v544
      %v546 = vshrl.u32 %v425, 16
      %v548 = vor.u32 %v546, %v544
      %v550 = vshll.u32 %v426, 16
      %v552 = vrot.slane %v550, 1
      %v553 = vsel %vm437, %v548, %v552
      %v554 = vshrl.u32 %v426, 16
      %v556 = vor.u32 %v554, %v552
      %v558 = vshll.u32 %v427, 16
      %v560 = vrot.slane %v558, 1
      %v561 = vsel %vm437, %v556, %v560
      %v562 = vshrl.u32 %v427, 16
      %v564 = vor.u32 %v562, %v560
      %v566 = vshll.u32 %v428, 16
      %v568 = vrot.slane %v566, 1
      %v569 = vsel %vm437, %v564, %v568
      %v570 = vshrl.u32 %v428, 16
      %v572 = vor.u32 %v570, %v568
      %v574 = vshll.u32 %v429, 16
      %v576 = vrot.slane %v574, 1
      %v577 = vsel %vm437, %v572, %v576
      %v578 = vshrl.u32 %v429, 16
      %v580 = vor.u32 %v578, %v576
      %v582 = vshll.u32 %v430, 16
      %v584 = vrot.slane %v582, 1
      %v585 = vsel %vm437, %v580, %v584
      %v586 = vshrl.u32 %v430, 16
      %v588 = vor.u32 %v586, %v584
      %v590 = vshll.u32 %v431, 16
      %v592 = vrot.slane %v590, 1
      %v593 = vsel %vm437, %v588, %v592
      %v594 = vshrl.u32 %v431, 16
      %v596 = vor.u32 %v594, %v592
      %v598 = vshll.u32 %v432, 16
      %v600 = vrot.slane %v598, 1
      %v601 = vsel %vm437, %v596, %v600
      %v602 = vshrl.u32 %v432, 16
      %v604 = vor.u32 %v602, %v600
      %v606 = vshll.u32 %v433, 16
      %v608 = vrot.slane %v606, 1
      %v609 = vsel %vm437, %v604, %v608
      %v610 = vshrl.u32 %v433, 16
      %v612 = vor.u32 %v610, %v608
      %v614 = vshll.u32 %v434, 16
      %v616 = vrot.slane %v614, 1
      %v617 = vsel %vm437, %v612, %v616
      %v618 = vshrl.u32 %v434, 16
      %v620 = vor.u32 %v618, %v616
      %v622 = vshll.u32 %v435, 16
      %v624 = vrot.slane %v622, 1
      %v625 = vsel %vm437, %v620, %v624
      %v626 = vshrl.u32 %v435, 16
      %v628 = vor.u32 %v626, %v624
      %v630 = vshll.u32 %v436, 16
      %v632 = vrot.slane %v630, 1
      %v633 = vsel %vm437, %v628, %v632
      %v674 = vunpack.c.l.b16 %v298
      %v675 = vunpack.c.l.b16 %v299
      %v676 = vunpack.c.l.b16 %v300
      %v677 = vunpack.c.l.b16 %v301
      %v678 = vunpack.c.l.b16 %v302
      %v679 = vunpack.c.l.b16 %v303
      %v680 = vunpack.c.l.b16 %v304
      %v681 = vunpack.c.l.b16 %v305
      %v682 = vunpack.c.l.b16 %v306
      %v683 = vunpack.c.l.b16 %v307
      %v684 = vunpack.c.l.b16 %v308
      %v685 = vunpack.c.l.b16 %v309
      %v686 = vunpack.c.l.b16 %v310
      %v687 = vunpack.c.l.b16 %v311
      %v688 = vunpack.c.l.b16 %v312
      %v689 = vunpack.c.l.b16 %v313
      %v690 = vpack.c.b16 %v675, %v674
      %v691 = vpack.c.b16 %v677, %v676
      %v692 = vpack.c.b16 %v679, %v678
      %v693 = vpack.c.b16 %v681, %v680
      %v694 = vpack.c.b16 %v683, %v682
      %v695 = vpack.c.b16 %v685, %v684
      %v696 = vpack.c.b16 %v687, %v686
      %v697 = vpack.c.b16 %v689, %v688
      %706 = vmatprep.subr.bf16.mxu0 0
      %707 = vmatpush1.bf16.msra.mxu0 %v690
      %708 = vmatprep.subr.bf16.mxu0 0
      %709 = vmatpush1.bf16.msra.mxu0 %v691
      %710 = vmatprep.subr.bf16.mxu0 0
      %711 = vmatpush1.bf16.msra.mxu0 %v692
      %712 = vmatprep.subr.bf16.mxu0 0
      %713 = vmatpush1.bf16.msra.mxu0 %v693
      %714 = vmatprep.subr.bf16.mxu0 0
      %715 = vmatpush1.bf16.msra.mxu0 %v694
      %716 = vmatprep.subr.bf16.mxu0 0
      %717 = vmatpush1.bf16.msra.mxu0 %v695
      %718 = vmatprep.subr.bf16.mxu0 0
      %719 = vmatpush1.bf16.msra.mxu0 %v696
      %720 = vmatprep.subr.bf16.mxu0 0
      %721 = vmatpush1.bf16.msra.mxu0 %v697
      %722 = vmatprep.subr.bf16.mxu0 0
      %723 = vmatpush1.bf16.msra.mxu0 0
      %724 = vmatprep.subr.bf16.mxu0 0
      %725 = vmatpush1.bf16.msra.mxu0 0
      %726 = vmatprep.subr.bf16.mxu0 0
      %727 = vmatpush1.bf16.msra.mxu0 0
      %728 = vmatprep.subr.bf16.mxu0 0
      %729 = vmatpush1.bf16.msra.mxu0 0
      %730 = vmatprep.subr.bf16.mxu0 0
      %731 = vmatpush1.bf16.msra.mxu0 0
      %732 = vmatprep.subr.bf16.mxu0 0
      %733 = vmatpush1.bf16.msra.mxu0 0
      %734 = vmatprep.subr.bf16.mxu0 0
      %735 = vmatpush1.bf16.msra.mxu0 0
      %736 = vmatprep.subr.bf16.mxu0 0
      %737 = vmatpush1.bf16.msra.mxu0 0
      %738 = vmatprep.mubr.bf16.mxu0 0
      %739 = vmatmul.mubr.bf16.gmra.mrb[0].mxu0 %v449
      %v740 = vpop.f32.mrb[0].mxu0
      %v741 = vadd.f32 0.0, %v740
      %v742 = vpop.f32.mrb[0].mxu0
      %v743 = vpop.f32.mrb[0].mxu0
      %v744 = vadd.f32 0.0, %v743
      %v745 = vpop.f32.mrb[0].mxu0
      %746 = vmatprep.mubr.bf16.mxu0 0
      %747 = vmatmul.mubr.bf16.gmra.mrb[0].mxu0 %v457
      %v748 = vpop.f32.mrb[0].mxu0
      %v749 = vadd.f32 0.0, %v748
      %v750 = vpop.f32.mrb[0].mxu0
      %v751 = vpop.f32.mrb[0].mxu0
      %v752 = vadd.f32 0.0, %v751
      %v753 = vpop.f32.mrb[0].mxu0
      %754 = vmatprep.mubr.bf16.mxu0 0
      %755 = vmatmul.mubr.bf16.gmra.mrb[0].mxu0 %v465
      %v756 = vpop.f32.mrb[0].mxu0
      %v757 = vadd.f32 0.0, %v756
      %v758 = vpop.f32.mrb[0].mxu0
      %v759 = vpop.f32.mrb[0].mxu0
      %v760 = vadd.f32 0.0, %v759
      %v761 = vpop.f32.mrb[0].mxu0
      %762 = vmatprep.mubr.bf16.mxu0 0
      %763 = vmatmul.mubr.bf16.gmra.mrb[0].mxu0 %v473
      %v764 = vpop.f32.mrb[0].mxu0
      %v765 = vadd.f32 0.0, %v764
      %v766 = vpop.f32.mrb[0].mxu0
      %v767 = vpop.f32.mrb[0].mxu0
      %v768 = vadd.f32 0.0, %v767
      %v769 = vpop.f32.mrb[0].mxu0
      %770 = vmatprep.mubr.bf16.mxu0 0
      %771 = vmatmul.mubr.bf16.gmra.mrb[0].mxu0 %v481
      %v772 = vpop.f32.mrb[0].mxu0
      %v773 = vadd.f32 0.0, %v772
      %v774 = vpop.f32.mrb[0].mxu0
      %v775 = vpop.f32.mrb[0].mxu0
      %v776 = vadd.f32 0.0, %v775
      %v777 = vpop.f32.mrb[0].mxu0
      %778 = vmatprep.mubr.bf16.mxu0 0
      %779 = vmatmul.mubr.bf16.gmra.mrb[0].mxu0 %v489
      %v780 = vpop.f32.mrb[0].mxu0
      %v781 = vadd.f32 0.0, %v780
      %v782 = vpop.f32.mrb[0].mxu0
      %v783 = vpop.f32.mrb[0].mxu0
      %v784 = vadd.f32 0.0, %v783
      %v785 = vpop.f32.mrb[0].mxu0
      %786 = vmatprep.mubr.bf16.mxu0 0
      %787 = vmatmul.mubr.bf16.gmra.mrb[0].mxu0 %v497
      %v788 = vpop.f32.mrb[0].mxu0
      %v789 = vadd.f32 0.0, %v788
      %v790 = vpop.f32.mrb[0].mxu0
      %v791 = vpop.f32.mrb[0].mxu0
      %v792 = vadd.f32 0.0, %v791
      %v793 = vpop.f32.mrb[0].mxu0
      %794 = vmatprep.mubr.bf16.mxu0 0
      %795 = vmatmul.mubr.bf16.gmra.mrb[0].mxu0 %v505
      %v796 = vpop.f32.mrb[0].mxu0
      %v797 = vadd.f32 0.0, %v796
      %v798 = vpop.f32.mrb[0].mxu0
      %v799 = vpop.f32.mrb[0].mxu0
      %v800 = vadd.f32 0.0, %v799
      %v801 = vpop.f32.mrb[0].mxu0
      %802 = vmatprep.mubr.bf16.mxu0 0
      %803 = vmatmul.mubr.bf16.gmra.mrb[0].mxu0 %v513
      %v804 = vpop.f32.mrb[0].mxu0
      %v805 = vadd.f32 0.0, %v804
      %v806 = vpop.f32.mrb[0].mxu0
      %v807 = vpop.f32.mrb[0].mxu0
      %v808 = vadd.f32 0.0, %v807
      %v809 = vpop.f32.mrb[0].mxu0
      %810 = vmatprep.mubr.bf16.mxu0 0
      %811 = vmatmul.mubr.bf16.gmra.mrb[0].mxu0 %v521
      %v812 = vpop.f32.mrb[0].mxu0
      %v813 = vadd.f32 0.0, %v812
      %v814 = vpop.f32.mrb[0].mxu0
      %v815 = vpop.f32.mrb[0].mxu0
      %v816 = vadd.f32 0.0, %v815
      %v817 = vpop.f32.mrb[0].mxu0
      %818 = vmatprep.mubr.bf16.mxu0 0
      %819 = vmatmul.mubr.bf16.gmra.mrb[0].mxu0 %v529
      %v820 = vpop.f32.mrb[0].mxu0
      %v821 = vadd.f32 0.0, %v820
      %v822 = vpop.f32.mrb[0].mxu0
      %v823 = vpop.f32.mrb[0].mxu0
      %v824 = vadd.f32 0.0, %v823
      %v825 = vpop.f32.mrb[0].mxu0
      %826 = vmatprep.mubr.bf16.mxu0 0
      %827 = vmatmul.mubr.bf16.gmra.mrb[0].mxu0 %v537
      %v828 = vpop.f32.mrb[0].mxu0
      %v829 = vadd.f32 0.0, %v828
      %v830 = vpop.f32.mrb[0].mxu0
      %v831 = vpop.f32.mrb[0].mxu0
      %v832 = vadd.f32 0.0, %v831
      %v833 = vpop.f32.mrb[0].mxu0
      %834 = vmatprep.mubr.bf16.mxu0 0
      %835 = vmatmul.mubr.bf16.gmra.mrb[0].mxu0 %v545
      %v836 = vpop.f32.mrb[0].mxu0
      %v837 = vadd.f32 0.0, %v836
      %v838 = vpop.f32.mrb[0].mxu0
      %v839 = vpop.f32.mrb[0].mxu0
      %v840 = vadd.f32 0.0, %v839
      %v841 = vpop.f32.mrb[0].mxu0
      %842 = vmatprep.mubr.bf16.mxu0 0
      %843 = vmatmul.mubr.bf16.gmra.mrb[0].mxu0 %v553
      %v844 = vpop.f32.mrb[0].mxu0
      %v845 = vadd.f32 0.0, %v844
      %v846 = vpop.f32.mrb[0].mxu0
      %v847 = vpop.f32.mrb[0].mxu0
      %v848 = vadd.f32 0.0, %v847
      %v849 = vpop.f32.mrb[0].mxu0
      %850 = vmatprep.mubr.bf16.mxu0 0
      %851 = vmatmul.mubr.bf16.gmra.mrb[0].mxu0 %v561
      %v852 = vpop.f32.mrb[0].mxu0
      %v853 = vadd.f32 0.0, %v852
      %v854 = vpop.f32.mrb[0].mxu0
      %v855 = vpop.f32.mrb[0].mxu0
      %v856 = vadd.f32 0.0, %v855
      %v857 = vpop.f32.mrb[0].mxu0
      %858 = vmatprep.mubr.bf16.mxu0 0
      %859 = vmatmul.mubr.bf16.gmra.mrb[0].mxu0 %v569
      %v860 = vpop.f32.mrb[0].mxu0
      %v861 = vadd.f32 0.0, %v860
      %v862 = vpop.f32.mrb[0].mxu0
      %v863 = vpop.f32.mrb[0].mxu0
      %v864 = vadd.f32 0.0, %v863
      %v865 = vpop.f32.mrb[0].mxu0
      %866 = vmatprep.mubr.bf16.mxu0 0
      %867 = vmatmul.mubr.bf16.gmra.mrb[0].mxu0 %v577
      %v868 = vpop.f32.mrb[0].mxu0
      %v869 = vadd.f32 0.0, %v868
      %v870 = vpop.f32.mrb[0].mxu0
      %v871 = vpop.f32.mrb[0].mxu0
      %v872 = vadd.f32 0.0, %v871
      %v873 = vpop.f32.mrb[0].mxu0
      %874 = vmatprep.mubr.bf16.mxu0 0
      %875 = vmatmul.mubr.bf16.gmra.mrb[0].mxu0 %v585
      %v876 = vpop.f32.mrb[0].mxu0
      %v877 = vadd.f32 0.0, %v876
      %v878 = vpop.f32.mrb[0].mxu0
      %v879 = vpop.f32.mrb[0].mxu0
      %v880 = vadd.f32 0.0, %v879
      %v881 = vpop.f32.mrb[0].mxu0
      %882 = vmatprep.mubr.bf16.mxu0 0
      %883 = vmatmul.mubr.bf16.gmra.mrb[0].mxu0 %v593
      %v884 = vpop.f32.mrb[0].mxu0
      %v885 = vadd.f32 0.0, %v884
      %v886 = vpop.f32.mrb[0].mxu0
      %v887 = vpop.f32.mrb[0].mxu0
      %v888 = vadd.f32 0.0, %v887
      %v889 = vpop.f32.mrb[0].mxu0
      %890 = vmatprep.mubr.bf16.mxu0 0
      %891 = vmatmul.mubr.bf16.gmra.mrb[0].mxu0 %v601
      %v892 = vpop.f32.mrb[0].mxu0
      %v893 = vadd.f32 0.0, %v892
      %v894 = vpop.f32.mrb[0].mxu0
      %v895 = vpop.f32.mrb[0].mxu0
      %v896 = vadd.f32 0.0, %v895
      %v897 = vpop.f32.mrb[0].mxu0
      %898 = vmatprep.mubr.bf16.mxu0 0
      %899 = vmatmul.mubr.bf16.gmra.mrb[0].mxu0 %v609
      %v900 = vpop.f32.mrb[0].mxu0
      %v901 = vadd.f32 0.0, %v900
      %v902 = vpop.f32.mrb[0].mxu0
      %v903 = vpop.f32.mrb[0].mxu0
      %v904 = vadd.f32 0.0, %v903
      %v905 = vpop.f32.mrb[0].mxu0
      %906 = vmatprep.mubr.bf16.mxu0 0
      %907 = vmatmul.mubr.bf16.gmra.mrb[0].mxu0 %v617
      %v908 = vpop.f32.mrb[0].mxu0
      %v909 = vadd.f32 0.0, %v908
      %v910 = vpop.f32.mrb[0].mxu0
      %v911 = vpop.f32.mrb[0].mxu0
      %v912 = vadd.f32 0.0, %v911
      %v913 = vpop.f32.mrb[0].mxu0
      %914 = vmatprep.mubr.bf16.mxu0 0
      %915 = vmatmul.mubr.bf16.gmra.mrb[0].mxu0 %v625
      %v916 = vpop.f32.mrb[0].mxu0
      %v917 = vadd.f32 0.0, %v916
      %v918 = vpop.f32.mrb[0].mxu0
      %v919 = vpop.f32.mrb[0].mxu0
      %v920 = vadd.f32 0.0, %v919
      %v921 = vpop.f32.mrb[0].mxu0
      %922 = vmatprep.mubr.bf16.mxu0 0
      %923 = vmatmul.mubr.bf16.gmra.mrb[0].mxu0 %v633
      %v924 = vpop.f32.mrb[0].mxu0
      %v925 = vadd.f32 0.0, %v924
      %v926 = vpop.f32.mrb[0].mxu0
      %v927 = vpop.f32.mrb[0].mxu0
      %v928 = vadd.f32 0.0, %v927
      %v929 = vpop.f32.mrb[0].mxu0
      %930 = vdwg.mxu0
      %v971 = vunpack.c.l.b16 %v280
      %v972 = vunpack.c.l.b16 %v281
      %v973 = vunpack.c.l.b16 %v282
      %v974 = vunpack.c.l.b16 %v283
      %v975 = vunpack.c.l.b16 %v284
      %v976 = vunpack.c.l.b16 %v285
      %v977 = vunpack.c.l.b16 %v286
      %v978 = vunpack.c.l.b16 %v287
      %v979 = vunpack.c.l.b16 %v288
      %v980 = vunpack.c.l.b16 %v289
      %v981 = vunpack.c.l.b16 %v290
      %v982 = vunpack.c.l.b16 %v291
      %v983 = vunpack.c.l.b16 %v292
      %v984 = vunpack.c.l.b16 %v293
      %v985 = vunpack.c.l.b16 %v294
      %v986 = vunpack.c.l.b16 %v295
      %v987 = vpack.c.b16 %v972, %v971
      %v988 = vpack.c.b16 %v974, %v973
      %v989 = vpack.c.b16 %v976, %v975
      %v990 = vpack.c.b16 %v978, %v977
      %v991 = vpack.c.b16 %v980, %v979
      %v992 = vpack.c.b16 %v982, %v981
      %v993 = vpack.c.b16 %v984, %v983
      %v994 = vpack.c.b16 %v986, %v985
      %1003 = vmatprep.subr.bf16.mxu0 0
      %1004 = vmatpush1.bf16.msra.mxu0 %v987
      %1005 = vmatprep.subr.bf16.mxu0 0
      %1006 = vmatpush1.bf16.msra.mxu0 %v988
      %1007 = vmatprep.subr.bf16.mxu0 0
      %1008 = vmatpush1.bf16.msra.mxu0 %v989
      %1009 = vmatprep.subr.bf16.mxu0 0
      %1010 = vmatpush1.bf16.msra.mxu0 %v990
      %1011 = vmatprep.subr.bf16.mxu0 0
      %1012 = vmatpush1.bf16.msra.mxu0 %v991
      %1013 = vmatprep.subr.bf16.mxu0 0
      %1014 = vmatpush1.bf16.msra.mxu0 %v992
      %1015 = vmatprep.subr.bf16.mxu0 0
      %1016 = vmatpush1.bf16.msra.mxu0 %v993
      %1017 = vmatprep.subr.bf16.mxu0 0
      %1018 = vmatpush1.bf16.msra.mxu0 %v994
      %1019 = vmatprep.subr.bf16.mxu0 0
      %1020 = vmatpush1.bf16.msra.mxu0 0
      %1021 = vmatprep.subr.bf16.mxu0 0
      %1022 = vmatpush1.bf16.msra.mxu0 0
      %1023 = vmatprep.subr.bf16.mxu0 0
      %1024 = vmatpush1.bf16.msra.mxu0 0
      %1025 = vmatprep.subr.bf16.mxu0 0
      %1026 = vmatpush1.bf16.msra.mxu0 0
      %1027 = vmatprep.subr.bf16.mxu0 0
      %1028 = vmatpush1.bf16.msra.mxu0 0
      %1029 = vmatprep.subr.bf16.mxu0 0
      %1030 = vmatpush1.bf16.msra.mxu0 0
      %1031 = vmatprep.subr.bf16.mxu0 0
      %1032 = vmatpush1.bf16.msra.mxu0 0
      %1033 = vmatprep.subr.bf16.mxu0 0
      %1034 = vmatpush1.bf16.msra.mxu0 0
      %1035 = vmatprep.mubr.bf16.mxu0 0
      %1036 = vmatmul.mubr.bf16.gmra.mrb[0].mxu0 %v412
      %v1037 = vpop.f32.mrb[0].mxu0
      %v1038 = vadd.f32 %v741, %v1037
      %v1039 = vpop.f32.mrb[0].mxu0
      %v1040 = vpop.f32.mrb[0].mxu0
      %v1041 = vadd.f32 %v744, %v1040
      %v1042 = vpop.f32.mrb[0].mxu0
      %1043 = vmatprep.mubr.bf16.mxu0 0
      %1044 = vmatmul.mubr.bf16.gmra.mrb[0].mxu0 %v413
      %v1045 = vpop.f32.mrb[0].mxu0
      %v1046 = vadd.f32 %v749, %v1045
      %v1047 = vpop.f32.mrb[0].mxu0
      %v1048 = vpop.f32.mrb[0].mxu0
      %v1049 = vadd.f32 %v752, %v1048
      %v1050 = vpop.f32.mrb[0].mxu0
      %1051 = vmatprep.mubr.bf16.mxu0 0
      %1052 = vmatmul.mubr.bf16.gmra.mrb[0].mxu0 %v414
      %v1053 = vpop.f32.mrb[0].mxu0
      %v1054 = vadd.f32 %v757, %v1053
      %v1055 = vpop.f32.mrb[0].mxu0
      %v1056 = vpop.f32.mrb[0].mxu0
      %v1057 = vadd.f32 %v760, %v1056
      %v1058 = vpop.f32.mrb[0].mxu0
      %1059 = vmatprep.mubr.bf16.mxu0 0
      %1060 = vmatmul.mubr.bf16.gmra.mrb[0].mxu0 %v415
      %v1061 = vpop.f32.mrb[0].mxu0
      %v1062 = vadd.f32 %v765, %v1061
      %v1063 = vpop.f32.mrb[0].mxu0
      %v1064 = vpop.f32.mrb[0].mxu0
      %v1065 = vadd.f32 %v768, %v1064
      %v1066 = vpop.f32.mrb[0].mxu0
      %1067 = vmatprep.mubr.bf16.mxu0 0
      %1068 = vmatmul.mubr.bf16.gmra.mrb[0].mxu0 %v416
      %v1069 = vpop.f32.mrb[0].mxu0
      %v1070 = vadd.f32 %v773, %v1069
      %v1071 = vpop.f32.mrb[0].mxu0
      %v1072 = vpop.f32.mrb[0].mxu0
      %v1073 = vadd.f32 %v776, %v1072
      %v1074 = vpop.f32.mrb[0].mxu0
      %1075 = vmatprep.mubr.bf16.mxu0 0
      %1076 = vmatmul.mubr.bf16.gmra.mrb[0].mxu0 %v417
      %v1077 = vpop.f32.mrb[0].mxu0
      %v1078 = vadd.f32 %v781, %v1077
      %v1079 = vpop.f32.mrb[0].mxu0
      %v1080 = vpop.f32.mrb[0].mxu0
      %v1081 = vadd.f32 %v784, %v1080
      %v1082 = vpop.f32.mrb[0].mxu0
      %1083 = vmatprep.mubr.bf16.mxu0 0
      %1084 = vmatmul.mubr.bf16.gmra.mrb[0].mxu0 %v418
      %v1085 = vpop.f32.mrb[0].mxu0
      %v1086 = vadd.f32 %v789, %v1085
      %v1087 = vpop.f32.mrb[0].mxu0
      %v1088 = vpop.f32.mrb[0].mxu0
      %v1089 = vadd.f32 %v792, %v1088
      %v1090 = vpop.f32.mrb[0].mxu0
      %1091 = vmatprep.mubr.bf16.mxu0 0
      %1092 = vmatmul.mubr.bf16.gmra.mrb[0].mxu0 %v419
      %v1093 = vpop.f32.mrb[0].mxu0
      %v1094 = vadd.f32 %v797, %v1093
      %v1095 = vpop.f32.mrb[0].mxu0
      %v1096 = vpop.f32.mrb[0].mxu0
      %v1097 = vadd.f32 %v800, %v1096
      %v1098 = vpop.f32.mrb[0].mxu0
      %1099 = vmatprep.mubr.bf16.mxu0 0
      %1100 = vmatmul.mubr.bf16.gmra.mrb[0].mxu0 %v420
      %v1101 = vpop.f32.mrb[0].mxu0
      %v1102 = vadd.f32 %v805, %v1101
      %v1103 = vpop.f32.mrb[0].mxu0
      %v1104 = vpop.f32.mrb[0].mxu0
      %v1105 = vadd.f32 %v808, %v1104
      %v1106 = vpop.f32.mrb[0].mxu0
      %1107 = vmatprep.mubr.bf16.mxu0 0
      %1108 = vmatmul.mubr.bf16.gmra.mrb[0].mxu0 %v421
      %v1109 = vpop.f32.mrb[0].mxu0
      %v1110 = vadd.f32 %v813, %v1109
      %v1111 = vpop.f32.mrb[0].mxu0
      %v1112 = vpop.f32.mrb[0].mxu0
      %v1113 = vadd.f32 %v816, %v1112
      %v1114 = vpop.f32.mrb[0].mxu0
      %1115 = vmatprep.mubr.bf16.mxu0 0
      %1116 = vmatmul.mubr.bf16.gmra.mrb[0].mxu0 %v422
      %v1117 = vpop.f32.mrb[0].mxu0
      %v1118 = vadd.f32 %v821, %v1117
      %v1119 = vpop.f32.mrb[0].mxu0
      %v1120 = vpop.f32.mrb[0].mxu0
      %v1121 = vadd.f32 %v824, %v1120
      %v1122 = vpop.f32.mrb[0].mxu0
      %1123 = vmatprep.mubr.bf16.mxu0 0
      %1124 = vmatmul.mubr.bf16.gmra.mrb[0].mxu0 %v423
      %v1125 = vpop.f32.mrb[0].mxu0
      %v1126 = vadd.f32 %v829, %v1125
      %v1127 = vpop.f32.mrb[0].mxu0
      %v1128 = vpop.f32.mrb[0].mxu0
      %v1129 = vadd.f32 %v832, %v1128
      %v1130 = vpop.f32.mrb[0].mxu0
      %1131 = vmatprep.mubr.bf16.mxu0 0
      %1132 = vmatmul.mubr.bf16.gmra.mrb[0].mxu0 %v424
      %v1133 = vpop.f32.mrb[0].mxu0
      %v1134 = vadd.f32 %v837, %v1133
      %v1135 = vpop.f32.mrb[0].mxu0
      %v1136 = vpop.f32.mrb[0].mxu0
      %v1137 = vadd.f32 %v840, %v1136
      %v1138 = vpop.f32.mrb[0].mxu0
      %1139 = vmatprep.mubr.bf16.mxu0 0
      %1140 = vmatmul.mubr.bf16.gmra.mrb[0].mxu0 %v425
      %v1141 = vpop.f32.mrb[0].mxu0
      %v1142 = vadd.f32 %v845, %v1141
      %v1143 = vpop.f32.mrb[0].mxu0
      %v1144 = vpop.f32.mrb[0].mxu0
      %v1145 = vadd.f32 %v848, %v1144
      %v1146 = vpop.f32.mrb[0].mxu0
      %1147 = vmatprep.mubr.bf16.mxu0 0
      %1148 = vmatmul.mubr.bf16.gmra.mrb[0].mxu0 %v426
      %v1149 = vpop.f32.mrb[0].mxu0
      %v1150 = vadd.f32 %v853, %v1149
      %v1151 = vpop.f32.mrb[0].mxu0
      %v1152 = vpop.f32.mrb[0].mxu0
      %v1153 = vadd.f32 %v856, %v1152
      %v1154 = vpop.f32.mrb[0].mxu0
      %1155 = vmatprep.mubr.bf16.mxu0 0
      %1156 = vmatmul.mubr.bf16.gmra.mrb[0].mxu0 %v427
      %v1157 = vpop.f32.mrb[0].mxu0
      %v1158 = vadd.f32 %v861, %v1157
      %v1159 = vpop.f32.mrb[0].mxu0
      %v1160 = vpop.f32.mrb[0].mxu0
      %v1161 = vadd.f32 %v864, %v1160
      %v1162 = vpop.f32.mrb[0].mxu0
      %1163 = vmatprep.mubr.bf16.mxu0 0
      %1164 = vmatmul.mubr.bf16.gmra.mrb[0].mxu0 %v428
      %v1165 = vpop.f32.mrb[0].mxu0
      %v1166 = vadd.f32 %v869, %v1165
      %v1167 = vpop.f32.mrb[0].mxu0
      %v1168 = vpop.f32.mrb[0].mxu0
      %v1169 = vadd.f32 %v872, %v1168
      %v1170 = vpop.f32.mrb[0].mxu0
      %1171 = vmatprep.mubr.bf16.mxu0 0
      %1172 = vmatmul.mubr.bf16.gmra.mrb[0].mxu0 %v429
      %v1173 = vpop.f32.mrb[0].mxu0
      %v1174 = vadd.f32 %v877, %v1173
      %v1175 = vpop.f32.mrb[0].mxu0
      %v1176 = vpop.f32.mrb[0].mxu0
      %v1177 = vadd.f32 %v880, %v1176
      %v1178 = vpop.f32.mrb[0].mxu0
      %1179 = vmatprep.mubr.bf16.mxu0 0
      %1180 = vmatmul.mubr.bf16.gmra.mrb[0].mxu0 %v430
      %v1181 = vpop.f32.mrb[0].mxu0
      %v1182 = vadd.f32 %v885, %v1181
      %v1183 = vpop.f32.mrb[0].mxu0
      %v1184 = vpop.f32.mrb[0].mxu0
      %v1185 = vadd.f32 %v888, %v1184
      %v1186 = vpop.f32.mrb[0].mxu0
      %1187 = vmatprep.mubr.bf16.mxu0 0
      %1188 = vmatmul.mubr.bf16.gmra.mrb[0].mxu0 %v431
      %v1189 = vpop.f32.mrb[0].mxu0
      %v1190 = vadd.f32 %v893, %v1189
      %v1191 = vpop.f32.mrb[0].mxu0
      %v1192 = vpop.f32.mrb[0].mxu0
      %v1193 = vadd.f32 %v896, %v1192
      %v1194 = vpop.f32.mrb[0].mxu0
      %1195 = vmatprep.mubr.bf16.mxu0 0
      %1196 = vmatmul.mubr.bf16.gmra.mrb[0].mxu0 %v432
      %v1197 = vpop.f32.mrb[0].mxu0
      %v1198 = vadd.f32 %v901, %v1197
      %v1199 = vpop.f32.mrb[0].mxu0
      %v1200 = vpop.f32.mrb[0].mxu0
      %v1201 = vadd.f32 %v904, %v1200
      %v1202 = vpop.f32.mrb[0].mxu0
      %1203 = vmatprep.mubr.bf16.mxu0 0
      %1204 = vmatmul.mubr.bf16.gmra.mrb[0].mxu0 %v433
      %v1205 = vpop.f32.mrb[0].mxu0
      %v1206 = vadd.f32 %v909, %v1205
      %v1207 = vpop.f32.mrb[0].mxu0
      %v1208 = vpop.f32.mrb[0].mxu0
      %v1209 = vadd.f32 %v912, %v1208
      %v1210 = vpop.f32.mrb[0].mxu0
      %1211 = vmatprep.mubr.bf16.mxu0 0
      %1212 = vmatmul.mubr.bf16.gmra.mrb[0].mxu0 %v434
      %v1213 = vpop.f32.mrb[0].mxu0
      %v1214 = vadd.f32 %v917, %v1213
      %v1215 = vpop.f32.mrb[0].mxu0
      %v1216 = vpop.f32.mrb[0].mxu0
      %v1217 = vadd.f32 %v920, %v1216
      %v1218 = vpop.f32.mrb[0].mxu0
      %1219 = vmatprep.mubr.bf16.mxu0 0
      %1220 = vmatmul.mubr.bf16.gmra.mrb[0].mxu0 %v435
      %v1221 = vpop.f32.mrb[0].mxu0
      %v1222 = vadd.f32 %v925, %v1221
      %v1223 = vpop.f32.mrb[0].mxu0
      %v1224 = vpop.f32.mrb[0].mxu0
      %v1225 = vadd.f32 %v928, %v1224
      %v1226 = vpop.f32.mrb[0].mxu0
      %1227 = vdwg.mxu0
      %v1228 = vld [vmem:[%s219] sm:$0xe]
      %s1229 = scalar_lea.vmem %s1, 128
      %v1230 = vld [vmem:[%s1229] sm:$0xf]
      %v1231 = vld [vmem:[%s1229 + $0x4] sm:$0xf]
      %v1232 = vld [vmem:[%s1229 + $0x8] sm:$0xf]
      %v1233 = vld [vmem:[%s1229 + $0xc] sm:$0xf]
      %v1234 = vld [vmem:[%s1229 + $0x10] sm:$0xf]
      %v1235 = vld [vmem:[%s1229 + $0x14] sm:$0xf]
      %v1236 = vld [vmem:[%s1229 + $0x18] sm:$0xf]
      %v1237 = vld [vmem:[%s1229 + $0x1c] sm:$0xf]
      %v1238 = vld [vmem:[%s1229 + $0x20] sm:$0xf]
      %v1239 = vld [vmem:[%s1229 + $0x24] sm:$0xf]
      %v1240 = vld [vmem:[%s1229 + $0x28] sm:$0xf]
      %v1241 = vld [vmem:[%s1229 + $0x2c] sm:$0xf]
      %v1242 = vld [vmem:[%s1229 + $0x30] sm:$0xf]
      %v1243 = vld [vmem:[%s1229 + $0x34] sm:$0xf]
      %v1244 = vld [vmem:[%s1229 + $0x38] sm:$0xf]
      %v1245 = vld [vmem:[%s1229 + $0x3c] sm:$0xf]
      %v1247 = vunpack.c.l.b16 %v1228
      %v1248 = vpack.c.b16 %v364, %v1247
      %vm1249 = vcmask 1046528
      %v1250 = vrot.slane %v1248, 1
      %v1251 = vrot.slane %v413, 1
      %v1252 = vsel %vm1249, %v1250, %v1251
      %v1253 = vrot.slane %v414, 1
      %v1254 = vsel %vm1249, %v1251, %v1253
      %v1255 = vrot.slane %v415, 1
      %v1256 = vsel %vm1249, %v1253, %v1255
      %v1257 = vrot.slane %v416, 1
      %v1258 = vsel %vm1249, %v1255, %v1257
      %v1259 = vrot.slane %v417, 1
      %v1260 = vsel %vm1249, %v1257, %v1259
      %v1261 = vrot.slane %v418, 1
      %v1262 = vsel %vm1249, %v1259, %v1261
      %v1263 = vrot.slane %v419, 1
      %v1264 = vsel %vm1249, %v1261, %v1263
      %v1265 = vrot.slane %v420, 1
      %v1266 = vsel %vm1249, %v1263, %v1265
      %v1267 = vrot.slane %v421, 1
      %v1268 = vsel %vm1249, %v1265, %v1267
      %v1269 = vrot.slane %v422, 1
      %v1270 = vsel %vm1249, %v1267, %v1269
      %v1271 = vrot.slane %v423, 1
      %v1272 = vsel %vm1249, %v1269, %v1271
      %v1273 = vrot.slane %v424, 1
      %v1274 = vsel %vm1249, %v1271, %v1273
      %v1275 = vrot.slane %v425, 1
      %v1276 = vsel %vm1249, %v1273, %v1275
      %v1277 = vrot.slane %v426, 1
      %v1278 = vsel %vm1249, %v1275, %v1277
      %v1279 = vrot.slane %v427, 1
      %v1280 = vsel %vm1249, %v1277, %v1279
      %v1281 = vrot.slane %v428, 1
      %v1282 = vsel %vm1249, %v1279, %v1281
      %v1283 = vrot.slane %v429, 1
      %v1284 = vsel %vm1249, %v1281, %v1283
      %v1285 = vrot.slane %v430, 1
      %v1286 = vsel %vm1249, %v1283, %v1285
      %v1287 = vrot.slane %v431, 1
      %v1288 = vsel %vm1249, %v1285, %v1287
      %v1289 = vrot.slane %v432, 1
      %v1290 = vsel %vm1249, %v1287, %v1289
      %v1291 = vrot.slane %v433, 1
      %v1292 = vsel %vm1249, %v1289, %v1291
      %v1293 = vrot.slane %v434, 1
      %v1294 = vsel %vm1249, %v1291, %v1293
      %v1295 = vrot.slane %v435, 1
      %v1296 = vsel %vm1249, %v1293, %v1295
      %v1297 = vrot.slane %v436, 1
      %v1298 = vsel %vm1249, %v1295, %v1297
      %v1339 = vunpack.c.l.b16 %v1230
      %v1340 = vunpack.c.l.b16 %v1231
      %v1341 = vunpack.c.l.b16 %v1232
      %v1342 = vunpack.c.l.b16 %v1233
      %v1343 = vunpack.c.l.b16 %v1234
      %v1344 = vunpack.c.l.b16 %v1235
      %v1345 = vunpack.c.l.b16 %v1236
      %v1346 = vunpack.c.l.b16 %v1237
      %v1347 = vunpack.c.l.b16 %v1238
      %v1348 = vunpack.c.l.b16 %v1239
      %v1349 = vunpack.c.l.b16 %v1240
      %v1350 = vunpack.c.l.b16 %v1241
      %v1351 = vunpack.c.l.b16 %v1242
      %v1352 = vunpack.c.l.b16 %v1243
      %v1353 = vunpack.c.l.b16 %v1244
      %v1354 = vunpack.c.l.b16 %v1245
      %v1355 = vpack.c.b16 %v1340, %v1339
      %v1356 = vpack.c.b16 %v1342, %v1341
      %v1357 = vpack.c.b16 %v1344, %v1343
      %v1358 = vpack.c.b16 %v1346, %v1345
      %v1359 = vpack.c.b16 %v1348, %v1347
      %v1360 = vpack.c.b16 %v1350, %v1349
      %v1361 = vpack.c.b16 %v1352, %v1351
      %v1362 = vpack.c.b16 %v1354, %v1353
      %1371 = vmatprep.subr.bf16.mxu0 0
      %1372 = vmatpush1.bf16.msra.mxu0 %v1355
      %1373 = vmatprep.subr.bf16.mxu0 0
      %1374 = vmatpush1.bf16.msra.mxu0 %v1356
      %1375 = vmatprep.subr.bf16.mxu0 0
      %1376 = vmatpush1.bf16.msra.mxu0 %v1357
      %1377 = vmatprep.subr.bf16.mxu0 0
      %1378 = vmatpush1.bf16.msra.mxu0 %v1358
      %1379 = vmatprep.subr.bf16.mxu0 0
      %1380 = vmatpush1.bf16.msra.mxu0 %v1359
      %1381 = vmatprep.subr.bf16.mxu0 0
      %1382 = vmatpush1.bf16.msra.mxu0 %v1360
      %1383 = vmatprep.subr.bf16.mxu0 0
      %1384 = vmatpush1.bf16.msra.mxu0 %v1361
      %1385 = vmatprep.subr.bf16.mxu0 0
      %1386 = vmatpush1.bf16.msra.mxu0 %v1362
      %1387 = vmatprep.subr.bf16.mxu0 0
      %1388 = vmatpush1.bf16.msra.mxu0 0
      %1389 = vmatprep.subr.bf16.mxu0 0
      %1390 = vmatpush1.bf16.msra.mxu0 0
      %1391 = vmatprep.subr.bf16.mxu0 0
      %1392 = vmatpush1.bf16.msra.mxu0 0
      %1393 = vmatprep.subr.bf16.mxu0 0
      %1394 = vmatpush1.bf16.msra.mxu0 0
      %1395 = vmatprep.subr.bf16.mxu0 0
      %1396 = vmatpush1.bf16.msra.mxu0 0
      %1397 = vmatprep.subr.bf16.mxu0 0
      %1398 = vmatpush1.bf16.msra.mxu0 0
      %1399 = vmatprep.subr.bf16.mxu0 0
      %1400 = vmatpush1.bf16.msra.mxu0 0
      %1401 = vmatprep.subr.bf16.mxu0 0
      %1402 = vmatpush1.bf16.msra.mxu0 0
      %1403 = vmatprep.mubr.bf16.mxu0 0
      %1404 = vmatmul.mubr.bf16.gmra.mrb[0].mxu0 %v1252
      %v1405 = vpop.f32.mrb[0].mxu0
      %v1406 = vadd.f32 0.0, %v1405
      %v1407 = vpop.f32.mrb[0].mxu0
      %v1408 = vpop.f32.mrb[0].mxu0
      %v1409 = vadd.f32 0.0, %v1408
      %v1410 = vpop.f32.mrb[0].mxu0
      %1411 = vmatprep.mubr.bf16.mxu0 0
      %1412 = vmatmul.mubr.bf16.gmra.mrb[0].mxu0 %v1254
      %v1413 = vpop.f32.mrb[0].mxu0
      %v1414 = vadd.f32 0.0, %v1413
      %v1415 = vpop.f32.mrb[0].mxu0
      %v1416 = vpop.f32.mrb[0].mxu0
      %v1417 = vadd.f32 0.0, %v1416
      %v1418 = vpop.f32.mrb[0].mxu0
      %1419 = vmatprep.mubr.bf16.mxu0 0
      %1420 = vmatmul.mubr.bf16.gmra.mrb[0].mxu0 %v1256
      %v1421 = vpop.f32.mrb[0].mxu0
      %v1422 = vadd.f32 0.0, %v1421
      %v1423 = vpop.f32.mrb[0].mxu0
      %v1424 = vpop.f32.mrb[0].mxu0
      %v1425 = vadd.f32 0.0, %v1424
      %v1426 = vpop.f32.mrb[0].mxu0
      %1427 = vmatprep.mubr.bf16.mxu0 0
      %1428 = vmatmul.mubr.bf16.gmra.mrb[0].mxu0 %v1258
      %v1429 = vpop.f32.mrb[0].mxu0
      %v1430 = vadd.f32 0.0, %v1429
      %v1431 = vpop.f32.mrb[0].mxu0
      %v1432 = vpop.f32.mrb[0].mxu0
      %v1433 = vadd.f32 0.0, %v1432
      %v1434 = vpop.f32.mrb[0].mxu0
      %1435 = vmatprep.mubr.bf16.mxu0 0
      %1436 = vmatmul.mubr.bf16.gmra.mrb[0].mxu0 %v1260
      %v1437 = vpop.f32.mrb[0].mxu0
      %v1438 = vadd.f32 0.0, %v1437
      %v1439 = vpop.f32.mrb[0].mxu0
      %v1440 = vpop.f32.mrb[0].mxu0
      %v1441 = vadd.f32 0.0, %v1440
      %v1442 = vpop.f32.mrb[0].mxu0
      %1443 = vmatprep.mubr.bf16.mxu0 0
      %1444 = vmatmul.mubr.bf16.gmra.mrb[0].mxu0 %v1262
      %v1445 = vpop.f32.mrb[0].mxu0
      %v1446 = vadd.f32 0.0, %v1445
      %v1447 = vpop.f32.mrb[0].mxu0
      %v1448 = vpop.f32.mrb[0].mxu0
      %v1449 = vadd.f32 0.0, %v1448
      %v1450 = vpop.f32.mrb[0].mxu0
      %1451 = vmatprep.mubr.bf16.mxu0 0
      %1452 = vmatmul.mubr.bf16.gmra.mrb[0].mxu0 %v1264
      %v1453 = vpop.f32.mrb[0].mxu0
      %v1454 = vadd.f32 0.0, %v1453
      %v1455 = vpop.f32.mrb[0].mxu0
      %v1456 = vpop.f32.mrb[0].mxu0
      %v1457 = vadd.f32 0.0, %v1456
      %v1458 = vpop.f32.mrb[0].mxu0
      %1459 = vmatprep.mubr.bf16.mxu0 0
      %1460 = vmatmul.mubr.bf16.gmra.mrb[0].mxu0 %v1266
      %v1461 = vpop.f32.mrb[0].mxu0
      %v1462 = vadd.f32 0.0, %v1461
      %v1463 = vpop.f32.mrb[0].mxu0
      %v1464 = vpop.f32.mrb[0].mxu0
      %v1465 = vadd.f32 0.0, %v1464
      %v1466 = vpop.f32.mrb[0].mxu0
      %1467 = vmatprep.mubr.bf16.mxu0 0
      %1468 = vmatmul.mubr.bf16.gmra.mrb[0].mxu0 %v1268
      %v1469 = vpop.f32.mrb[0].mxu0
      %v1470 = vadd.f32 0.0, %v1469
      %v1471 = vpop.f32.mrb[0].mxu0
      %v1472 = vpop.f32.mrb[0].mxu0
      %v1473 = vadd.f32 0.0, %v1472
      %v1474 = vpop.f32.mrb[0].mxu0
      %1475 = vmatprep.mubr.bf16.mxu0 0
      %1476 = vmatmul.mubr.bf16.gmra.mrb[0].mxu0 %v1270
      %v1477 = vpop.f32.mrb[0].mxu0
      %v1478 = vadd.f32 0.0, %v1477
      %v1479 = vpop.f32.mrb[0].mxu0
      %v1480 = vpop.f32.mrb[0].mxu0
      %v1481 = vadd.f32 0.0, %v1480
      %v1482 = vpop.f32.mrb[0].mxu0
      %1483 = vmatprep.mubr.bf16.mxu0 0
      %1484 = vmatmul.mubr.bf16.gmra.mrb[0].mxu0 %v1272
      %v1485 = vpop.f32.mrb[0].mxu0
      %v1486 = vadd.f32 0.0, %v1485
      %v1487 = vpop.f32.mrb[0].mxu0
      %v1488 = vpop.f32.mrb[0].mxu0
      %v1489 = vadd.f32 0.0, %v1488
      %v1490 = vpop.f32.mrb[0].mxu0
      %1491 = vmatprep.mubr.bf16.mxu0 0
      %1492 = vmatmul.mubr.bf16.gmra.mrb[0].mxu0 %v1274
      %v1493 = vpop.f32.mrb[0].mxu0
      %v1494 = vadd.f32 0.0, %v1493
      %v1495 = vpop.f32.mrb[0].mxu0
      %v1496 = vpop.f32.mrb[0].mxu0
      %v1497 = vadd.f32 0.0, %v1496
      %v1498 = vpop.f32.mrb[0].mxu0
      %1499 = vmatprep.mubr.bf16.mxu0 0
      %1500 = vmatmul.mubr.bf16.gmra.mrb[0].mxu0 %v1276
      %v1501 = vpop.f32.mrb[0].mxu0
      %v1502 = vadd.f32 0.0, %v1501
      %v1503 = vpop.f32.mrb[0].mxu0
      %v1504 = vpop.f32.mrb[0].mxu0
      %v1505 = vadd.f32 0.0, %v1504
      %v1506 = vpop.f32.mrb[0].mxu0
      %1507 = vmatprep.mubr.bf16.mxu0 0
      %1508 = vmatmul.mubr.bf16.gmra.mrb[0].mxu0 %v1278
      %v1509 = vpop.f32.mrb[0].mxu0
      %v1510 = vadd.f32 0.0, %v1509
      %v1511 = vpop.f32.mrb[0].mxu0
      %v1512 = vpop.f32.mrb[0].mxu0
      %v1513 = vadd.f32 0.0, %v1512
      %v1514 = vpop.f32.mrb[0].mxu0
      %1515 = vmatprep.mubr.bf16.mxu0 0
      %1516 = vmatmul.mubr.bf16.gmra.mrb[0].mxu0 %v1280
      %v1517 = vpop.f32.mrb[0].mxu0
      %v1518 = vadd.f32 0.0, %v1517
      %v1519 = vpop.f32.mrb[0].mxu0
      %v1520 = vpop.f32.mrb[0].mxu0
      %v1521 = vadd.f32 0.0, %v1520
      %v1522 = vpop.f32.mrb[0].mxu0
      %1523 = vmatprep.mubr.bf16.mxu0 0
      %1524 = vmatmul.mubr.bf16.gmra.mrb[0].mxu0 %v1282
      %v1525 = vpop.f32.mrb[0].mxu0
      %v1526 = vadd.f32 0.0, %v1525
      %v1527 = vpop.f32.mrb[0].mxu0
      %v1528 = vpop.f32.mrb[0].mxu0
      %v1529 = vadd.f32 0.0, %v1528
      %v1530 = vpop.f32.mrb[0].mxu0
      %1531 = vmatprep.mubr.bf16.mxu0 0
      %1532 = vmatmul.mubr.bf16.gmra.mrb[0].mxu0 %v1284
      %v1533 = vpop.f32.mrb[0].mxu0
      %v1534 = vadd.f32 0.0, %v1533
      %v1535 = vpop.f32.mrb[0].mxu0
      %v1536 = vpop.f32.mrb[0].mxu0
      %v1537 = vadd.f32 0.0, %v1536
      %v1538 = vpop.f32.mrb[0].mxu0
      %1539 = vmatprep.mubr.bf16.mxu0 0
      %1540 = vmatmul.mubr.bf16.gmra.mrb[0].mxu0 %v1286
      %v1541 = vpop.f32.mrb[0].mxu0
      %v1542 = vadd.f32 0.0, %v1541
      %v1543 = vpop.f32.mrb[0].mxu0
      %v1544 = vpop.f32.mrb[0].mxu0
      %v1545 = vadd.f32 0.0, %v1544
      %v1546 = vpop.f32.mrb[0].mxu0
      %1547 = vmatprep.mubr.bf16.mxu0 0
      %1548 = vmatmul.mubr.bf16.gmra.mrb[0].mxu0 %v1288
      %v1549 = vpop.f32.mrb[0].mxu0
      %v1550 = vadd.f32 0.0, %v1549
      %v1551 = vpop.f32.mrb[0].mxu0
      %v1552 = vpop.f32.mrb[0].mxu0
      %v1553 = vadd.f32 0.0, %v1552
      %v1554 = vpop.f32.mrb[0].mxu0
      %1555 = vmatprep.mubr.bf16.mxu0 0
      %1556 = vmatmul.mubr.bf16.gmra.mrb[0].mxu0 %v1290
      %v1557 = vpop.f32.mrb[0].mxu0
      %v1558 = vadd.f32 0.0, %v1557
      %v1559 = vpop.f32.mrb[0].mxu0
      %v1560 = vpop.f32.mrb[0].mxu0
      %v1561 = vadd.f32 0.0, %v1560
      %v1562 = vpop.f32.mrb[0].mxu0
      %1563 = vmatprep.mubr.bf16.mxu0 0
      %1564 = vmatmul.mubr.bf16.gmra.mrb[0].mxu0 %v1292
      %v1565 = vpop.f32.mrb[0].mxu0
      %v1566 = vadd.f32 0.0, %v1565
      %v1567 = vpop.f32.mrb[0].mxu0
      %v1568 = vpop.f32.mrb[0].mxu0
      %v1569 = vadd.f32 0.0, %v1568
      %v1570 = vpop.f32.mrb[0].mxu0
      %1571 = vmatprep.mubr.bf16.mxu0 0
      %1572 = vmatmul.mubr.bf16.gmra.mrb[0].mxu0 %v1294
      %v1573 = vpop.f32.mrb[0].mxu0
      %v1574 = vadd.f32 0.0, %v1573
      %v1575 = vpop.f32.mrb[0].mxu0
      %v1576 = vpop.f32.mrb[0].mxu0
      %v1577 = vadd.f32 0.0, %v1576
      %v1578 = vpop.f32.mrb[0].mxu0
      %1579 = vmatprep.mubr.bf16.mxu0 0
      %1580 = vmatmul.mubr.bf16.gmra.mrb[0].mxu0 %v1296
      %v1581 = vpop.f32.mrb[0].mxu0
      %v1582 = vadd.f32 0.0, %v1581
      %v1583 = vpop.f32.mrb[0].mxu0
      %v1584 = vpop.f32.mrb[0].mxu0
      %v1585 = vadd.f32 0.0, %v1584
      %v1586 = vpop.f32.mrb[0].mxu0
      %1587 = vmatprep.mubr.bf16.mxu0 0
      %1588 = vmatmul.mubr.bf16.gmra.mrb[0].mxu0 %v1298
      %v1589 = vpop.f32.mrb[0].mxu0
      %v1590 = vadd.f32 0.0, %v1589
      %v1591 = vpop.f32.mrb[0].mxu0
      %v1592 = vpop.f32.mrb[0].mxu0
      %v1593 = vadd.f32 0.0, %v1592
      %v1594 = vpop.f32.mrb[0].mxu0
      %1595 = vdwg.mxu0
      %v1596 = vadd.f32 %v1038, %v1406
      %v1597 = vadd.f32 %v1041, %v1409
      %v1598 = vadd.f32 %v1046, %v1414
      %v1599 = vadd.f32 %v1049, %v1417
      %v1600 = vadd.f32 %v1054, %v1422
      %v1601 = vadd.f32 %v1057, %v1425
      %v1602 = vadd.f32 %v1062, %v1430
      %v1603 = vadd.f32 %v1065, %v1433
      %v1604 = vadd.f32 %v1070, %v1438
      %v1605 = vadd.f32 %v1073, %v1441
      %v1606 = vadd.f32 %v1078, %v1446
      %v1607 = vadd.f32 %v1081, %v1449
      %v1608 = vadd.f32 %v1086, %v1454
      %v1609 = vadd.f32 %v1089, %v1457
      %v1610 = vadd.f32 %v1094, %v1462
      %v1611 = vadd.f32 %v1097, %v1465
      %v1612 = vadd.f32 %v1102, %v1470
      %v1613 = vadd.f32 %v1105, %v1473
      %v1614 = vadd.f32 %v1110, %v1478
      %v1615 = vadd.f32 %v1113, %v1481
      %v1616 = vadd.f32 %v1118, %v1486
      %v1617 = vadd.f32 %v1121, %v1489
      %v1618 = vadd.f32 %v1126, %v1494
      %v1619 = vadd.f32 %v1129, %v1497
      %v1620 = vadd.f32 %v1134, %v1502
      %v1621 = vadd.f32 %v1137, %v1505
      %v1622 = vadd.f32 %v1142, %v1510
      %v1623 = vadd.f32 %v1145, %v1513
      %v1624 = vadd.f32 %v1150, %v1518
      %v1625 = vadd.f32 %v1153, %v1521
      %v1626 = vadd.f32 %v1158, %v1526
      %v1627 = vadd.f32 %v1161, %v1529
      %v1628 = vadd.f32 %v1166, %v1534
      %v1629 = vadd.f32 %v1169, %v1537
      %v1630 = vadd.f32 %v1174, %v1542
      %v1631 = vadd.f32 %v1177, %v1545
      %v1632 = vadd.f32 %v1182, %v1550
      %v1633 = vadd.f32 %v1185, %v1553
      %v1634 = vadd.f32 %v1190, %v1558
      %v1635 = vadd.f32 %v1193, %v1561
      %v1636 = vadd.f32 %v1198, %v1566
      %v1637 = vadd.f32 %v1201, %v1569
      %v1638 = vadd.f32 %v1206, %v1574
      %v1639 = vadd.f32 %v1209, %v1577
      %v1640 = vadd.f32 %v1214, %v1582
      %v1641 = vadd.f32 %v1217, %v1585
      %v1642 = vadd.f32 %v1222, %v1590
      %v1643 = vadd.f32 %v1225, %v1593
      %v1644 = vld [vmem:[%s219 + $0xc] sm:$0xf]
      %v1645 = vld [vmem:[%s219 + $0x10] sm:$0xf]
      %v1646 = vld [vmem:[%s219 + $0x14] sm:$0xf]
      %v1647 = vld [vmem:[%s219 + $0x18] sm:$0xf]
      %v1648 = vld [vmem:[%s219 + $0x1c] sm:$0xf]
      %v1649 = vld [vmem:[%s219 + $0x20] sm:$0xf]
      %v1650 = vld [vmem:[%s219 + $0x24] sm:$0xf]
      %v1651 = vld [vmem:[%s219 + $0x28] sm:$0xf]
      %v1652 = vld [vmem:[%s219 + $0x2c] sm:$0xf]
      %v1653 = vld [vmem:[%s219 + $0x30] sm:$0xf]
      %v1654 = vld [vmem:[%s219 + $0x34] sm:$0xf]
      %v1655 = vld [vmem:[%s219 + $0x38] sm:$0xf]
      %v1656 = vld [vmem:[%s219 + $0x3c] sm:$0xf]
      %v1657 = vld [vmem:[%s219 + $0x40] sm:$0xf]
      %v1658 = vld [vmem:[%s219 + $0x44] sm:$0xf]
      %v1659 = vld [vmem:[%s219 + $0x48] sm:$0xf]
      %v1660 = vld [vmem:[%s219 + $0x4c] sm:$0xf]
      %v1661 = vld [vmem:[%s219 + $0x50] sm:$0xf]
      %v1662 = vld [vmem:[%s219 + $0x54] sm:$0xf]
      %v1663 = vld [vmem:[%s219 + $0x58] sm:$0xf]
      %v1664 = vld [vmem:[%s219 + $0x5c] sm:$0xf]
      %v1665 = vld [vmem:[%s219 + $0x60] sm:$0xf]
      %v1666 = vld [vmem:[%s219 + $0x64] sm:$0xf]
      %v1667 = vld [vmem:[%s219 + $0x68] sm:$0xf]
      %v1668 = vld [vmem:[%s219 + $0x6c] sm:$0xf]
      %v1669 = vld [vmem:[%s219 + $0x70] sm:$0xf]
      %v1670 = vld [vmem:[%s219 + $0x74] sm:$0xf]
      %v1671 = vld [vmem:[%s219 + $0x78] sm:$0xf]
      %v1672 = vld [vmem:[%s219 + $0x7c] sm:$0xf]
      %v1673 = vld [vmem:[%s219 + $0x80] sm:$0xf]
      %v1674 = vld [vmem:[%s219 + $0x84] sm:$0xf]
      %v1675 = vld [vmem:[%s219 + $0x88] sm:$0xf]
      %v1676 = vld [vmem:[%s219 + $0x8c] sm:$0xf]
      %v1677 = vld [vmem:[%s219 + $0x90] sm:$0xf]
      %v1678 = vld [vmem:[%s219 + $0x94] sm:$0xf]
      %v1679 = vld [vmem:[%s219 + $0x98] sm:$0xf]
      %v1680 = vld [vmem:[%s219 + $0x9c] sm:$0xf]
      %v1681 = vld [vmem:[%s219 + $0xa0] sm:$0xf]
      %v1682 = vld [vmem:[%s219 + $0xa4] sm:$0xf]
      %v1683 = vld [vmem:[%s219 + $0xa8] sm:$0xf]
      %v1684 = vld [vmem:[%s219 + $0xac] sm:$0xf]
      %v1685 = vld [vmem:[%s219 + $0xb0] sm:$0xf]
      %v1686 = vld [vmem:[%s219 + $0xb4] sm:$0xf]
      %v1687 = vld [vmem:[%s219 + $0xb8] sm:$0xf]
      %v1688 = vld [vmem:[%s219 + $0xbc] sm:$0xf]
      %v1689 = vld [vmem:[%s219 + $0xc0] sm:$0xf]
      %v1690 = vld [vmem:[%s219 + $0xc4] sm:$0xf]
      %v1691 = vld [vmem:[%s219 + $0xc8] sm:$0xf]
      %s1692 = scalar_lea.vmem %s1, 192
      %v1693 = vld [vmem:[%s1692] sm:$0xf]
      %v1694 = vld [vmem:[%s1692 + $0x4] sm:$0xf]
      %v1695 = vld [vmem:[%s1692 + $0x8] sm:$0xf]
      %v1696 = vld [vmem:[%s1692 + $0xc] sm:$0xf]
      %v1697 = vld [vmem:[%s1692 + $0x10] sm:$0xf]
      %v1698 = vld [vmem:[%s1692 + $0x14] sm:$0xf]
      %v1699 = vld [vmem:[%s1692 + $0x18] sm:$0xf]
      %v1700 = vld [vmem:[%s1692 + $0x1c] sm:$0xf]
      %v1701 = vld [vmem:[%s1692 + $0x20] sm:$0xf]
      %v1702 = vld [vmem:[%s1692 + $0x24] sm:$0xf]
      %v1703 = vld [vmem:[%s1692 + $0x28] sm:$0xf]
      %v1704 = vld [vmem:[%s1692 + $0x2c] sm:$0xf]
      %v1705 = vld [vmem:[%s1692 + $0x30] sm:$0xf]
      %v1706 = vld [vmem:[%s1692 + $0x34] sm:$0xf]
      %v1707 = vld [vmem:[%s1692 + $0x38] sm:$0xf]
      %v1708 = vld [vmem:[%s1692 + $0x3c] sm:$0xf]
      %v1757 = vunpack.c.l.b16 %v1644
      %v1758 = vunpack.c.l.b16 %v1645
      %v1759 = vunpack.c.l.b16 %v1646
      %v1760 = vunpack.c.l.b16 %v1647
      %v1761 = vunpack.c.l.b16 %v1648
      %v1762 = vunpack.c.l.b16 %v1649
      %v1763 = vunpack.c.l.b16 %v1650
      %v1764 = vunpack.c.l.b16 %v1651
      %v1765 = vunpack.c.l.b16 %v1652
      %v1766 = vunpack.c.l.b16 %v1653
      %v1767 = vunpack.c.l.b16 %v1654
      %v1768 = vunpack.c.l.b16 %v1655
      %v1769 = vunpack.c.l.b16 %v1656
      %v1770 = vunpack.c.l.b16 %v1657
      %v1771 = vunpack.c.l.b16 %v1658
      %v1772 = vunpack.c.l.b16 %v1659
      %v1773 = vunpack.c.l.b16 %v1660
      %v1774 = vunpack.c.l.b16 %v1661
      %v1775 = vunpack.c.l.b16 %v1662
      %v1776 = vunpack.c.l.b16 %v1663
      %v1777 = vunpack.c.l.b16 %v1664
      %v1778 = vunpack.c.l.b16 %v1665
      %v1779 = vunpack.c.l.b16 %v1666
      %v1780 = vunpack.c.l.b16 %v1667
      %v1781 = vunpack.c.l.b16 %v1668
      %v1782 = vunpack.c.l.b16 %v1669
      %v1783 = vunpack.c.l.b16 %v1670
      %v1784 = vunpack.c.l.b16 %v1671
      %v1785 = vunpack.c.l.b16 %v1672
      %v1786 = vunpack.c.l.b16 %v1673
      %v1787 = vunpack.c.l.b16 %v1674
      %v1788 = vunpack.c.l.b16 %v1675
      %v1789 = vunpack.c.l.b16 %v1676
      %v1790 = vunpack.c.l.b16 %v1677
      %v1791 = vunpack.c.l.b16 %v1678
      %v1792 = vunpack.c.l.b16 %v1679
      %v1793 = vunpack.c.l.b16 %v1680
      %v1794 = vunpack.c.l.b16 %v1681
      %v1795 = vunpack.c.l.b16 %v1682
      %v1796 = vunpack.c.l.b16 %v1683
      %v1797 = vunpack.c.l.b16 %v1684
      %v1798 = vunpack.c.l.b16 %v1685
      %v1799 = vunpack.c.l.b16 %v1686
      %v1800 = vunpack.c.l.b16 %v1687
      %v1801 = vunpack.c.l.b16 %v1688
      %v1802 = vunpack.c.l.b16 %v1689
      %v1803 = vunpack.c.l.b16 %v1690
      %v1804 = vunpack.c.l.b16 %v1691
      %v1805 = vpack.c.b16 %v1758, %v1757
      %v1806 = vpack.c.b16 %v1760, %v1759
      %v1807 = vpack.c.b16 %v1762, %v1761
      %v1808 = vpack.c.b16 %v1764, %v1763
      %v1809 = vpack.c.b16 %v1766, %v1765
      %v1810 = vpack.c.b16 %v1768, %v1767
      %v1811 = vpack.c.b16 %v1770, %v1769
      %v1812 = vpack.c.b16 %v1772, %v1771
      %v1813 = vpack.c.b16 %v1774, %v1773
      %v1814 = vpack.c.b16 %v1776, %v1775
      %v1815 = vpack.c.b16 %v1778, %v1777
      %v1816 = vpack.c.b16 %v1780, %v1779
      %v1817 = vpack.c.b16 %v1782, %v1781
      %v1818 = vpack.c.b16 %v1784, %v1783
      %v1819 = vpack.c.b16 %v1786, %v1785
      %v1820 = vpack.c.b16 %v1788, %v1787
      %v1821 = vpack.c.b16 %v1790, %v1789
      %v1822 = vpack.c.b16 %v1792, %v1791
      %v1823 = vpack.c.b16 %v1794, %v1793
      %v1824 = vpack.c.b16 %v1796, %v1795
      %v1825 = vpack.c.b16 %v1798, %v1797
      %v1826 = vpack.c.b16 %v1800, %v1799
      %v1827 = vpack.c.b16 %v1802, %v1801
      %v1828 = vpack.c.b16 %v1804, %v1803
      %v1869 = vunpack.c.l.b16 %v1693
      %v1870 = vunpack.c.l.b16 %v1694
      %v1871 = vunpack.c.l.b16 %v1695
      %v1872 = vunpack.c.l.b16 %v1696
      %v1873 = vunpack.c.l.b16 %v1697
      %v1874 = vunpack.c.l.b16 %v1698
      %v1875 = vunpack.c.l.b16 %v1699
      %v1876 = vunpack.c.l.b16 %v1700
      %v1877 = vunpack.c.l.b16 %v1701
      %v1878 = vunpack.c.l.b16 %v1702
      %v1879 = vunpack.c.l.b16 %v1703
      %v1880 = vunpack.c.l.b16 %v1704
      %v1881 = vunpack.c.l.b16 %v1705
      %v1882 = vunpack.c.l.b16 %v1706
      %v1883 = vunpack.c.l.b16 %v1707
      %v1884 = vunpack.c.l.b16 %v1708
      %v1885 = vpack.c.b16 %v1870, %v1869
      %v1886 = vpack.c.b16 %v1872, %v1871
      %v1887 = vpack.c.b16 %v1874, %v1873
      %v1888 = vpack.c.b16 %v1876, %v1875
      %v1889 = vpack.c.b16 %v1878, %v1877
      %v1890 = vpack.c.b16 %v1880, %v1879
      %v1891 = vpack.c.b16 %v1882, %v1881
      %v1892 = vpack.c.b16 %v1884, %v1883
      %1901 = vmatprep.subr.bf16.mxu0 0
      %1902 = vmatpush1.bf16.msra.mxu0 %v1885
      %1903 = vmatprep.subr.bf16.mxu0 0
      %1904 = vmatpush1.bf16.msra.mxu0 %v1886
      %1905 = vmatprep.subr.bf16.mxu0 0
      %1906 = vmatpush1.bf16.msra.mxu0 %v1887
      %1907 = vmatprep.subr.bf16.mxu0 0
      %1908 = vmatpush1.bf16.msra.mxu0 %v1888
      %1909 = vmatprep.subr.bf16.mxu0 0
      %1910 = vmatpush1.bf16.msra.mxu0 %v1889
      %1911 = vmatprep.subr.bf16.mxu0 0
      %1912 = vmatpush1.bf16.msra.mxu0 %v1890
      %1913 = vmatprep.subr.bf16.mxu0 0
      %1914 = vmatpush1.bf16.msra.mxu0 %v1891
      %1915 = vmatprep.subr.bf16.mxu0 0
      %1916 = vmatpush1.bf16.msra.mxu0 %v1892
      %1917 = vmatprep.subr.bf16.mxu0 0
      %1918 = vmatpush1.bf16.msra.mxu0 0
      %1919 = vmatprep.subr.bf16.mxu0 0
      %1920 = vmatpush1.bf16.msra.mxu0 0
      %1921 = vmatprep.subr.bf16.mxu0 0
      %1922 = vmatpush1.bf16.msra.mxu0 0
      %1923 = vmatprep.subr.bf16.mxu0 0
      %1924 = vmatpush1.bf16.msra.mxu0 0
      %1925 = vmatprep.subr.bf16.mxu0 0
      %1926 = vmatpush1.bf16.msra.mxu0 0
      %1927 = vmatprep.subr.bf16.mxu0 0
      %1928 = vmatpush1.bf16.msra.mxu0 0
      %1929 = vmatprep.subr.bf16.mxu0 0
      %1930 = vmatpush1.bf16.msra.mxu0 0
      %1931 = vmatprep.subr.bf16.mxu0 0
      %1932 = vmatpush1.bf16.msra.mxu0 0
      %1933 = vmatprep.mubr.bf16.mxu0 0
      %1934 = vmatmul.mubr.bf16.gmra.mrb[0].mxu0 %v1805
      %v1935 = vpop.f32.mrb[0].mxu0
      %v1936 = vadd.f32 0.0, %v1935
      %v1937 = vpop.f32.mrb[0].mxu0
      %v1938 = vpop.f32.mrb[0].mxu0
      %v1939 = vadd.f32 0.0, %v1938
      %v1940 = vpop.f32.mrb[0].mxu0
      %1941 = vmatprep.mubr.bf16.mxu0 0
      %1942 = vmatmul.mubr.bf16.gmra.mrb[0].mxu0 %v1806
      %v1943 = vpop.f32.mrb[0].mxu0
      %v1944 = vadd.f32 0.0, %v1943
      %v1945 = vpop.f32.mrb[0].mxu0
      %v1946 = vpop.f32.mrb[0].mxu0
      %v1947 = vadd.f32 0.0, %v1946
      %v1948 = vpop.f32.mrb[0].mxu0
      %1949 = vmatprep.mubr.bf16.mxu0 0
      %1950 = vmatmul.mubr.bf16.gmra.mrb[0].mxu0 %v1807
      %v1951 = vpop.f32.mrb[0].mxu0
      %v1952 = vadd.f32 0.0, %v1951
      %v1953 = vpop.f32.mrb[0].mxu0
      %v1954 = vpop.f32.mrb[0].mxu0
      %v1955 = vadd.f32 0.0, %v1954
      %v1956 = vpop.f32.mrb[0].mxu0
      %1957 = vmatprep.mubr.bf16.mxu0 0
      %1958 = vmatmul.mubr.bf16.gmra.mrb[0].mxu0 %v1808
      %v1959 = vpop.f32.mrb[0].mxu0
      %v1960 = vadd.f32 0.0, %v1959
      %v1961 = vpop.f32.mrb[0].mxu0
      %v1962 = vpop.f32.mrb[0].mxu0
      %v1963 = vadd.f32 0.0, %v1962
      %v1964 = vpop.f32.mrb[0].mxu0
      %1965 = vmatprep.mubr.bf16.mxu0 0
      %1966 = vmatmul.mubr.bf16.gmra.mrb[0].mxu0 %v1809
      %v1967 = vpop.f32.mrb[0].mxu0
      %v1968 = vadd.f32 0.0, %v1967
      %v1969 = vpop.f32.mrb[0].mxu0
      %v1970 = vpop.f32.mrb[0].mxu0
      %v1971 = vadd.f32 0.0, %v1970
      %v1972 = vpop.f32.mrb[0].mxu0
      %1973 = vmatprep.mubr.bf16.mxu0 0
      %1974 = vmatmul.mubr.bf16.gmra.mrb[0].mxu0 %v1810
      %v1975 = vpop.f32.mrb[0].mxu0
      %v1976 = vadd.f32 0.0, %v1975
      %v1977 = vpop.f32.mrb[0].mxu0
      %v1978 = vpop.f32.mrb[0].mxu0
      %v1979 = vadd.f32 0.0, %v1978
      %v1980 = vpop.f32.mrb[0].mxu0
      %1981 = vmatprep.mubr.bf16.mxu0 0
      %1982 = vmatmul.mubr.bf16.gmra.mrb[0].mxu0 %v1811
      %v1983 = vpop.f32.mrb[0].mxu0
      %v1984 = vadd.f32 0.0, %v1983
      %v1985 = vpop.f32.mrb[0].mxu0
      %v1986 = vpop.f32.mrb[0].mxu0
      %v1987 = vadd.f32 0.0, %v1986
      %v1988 = vpop.f32.mrb[0].mxu0
      %1989 = vmatprep.mubr.bf16.mxu0 0
      %1990 = vmatmul.mubr.bf16.gmra.mrb[0].mxu0 %v1812
      %v1991 = vpop.f32.mrb[0].mxu0
      %v1992 = vadd.f32 0.0, %v1991
      %v1993 = vpop.f32.mrb[0].mxu0
      %v1994 = vpop.f32.mrb[0].mxu0
      %v1995 = vadd.f32 0.0, %v1994
      %v1996 = vpop.f32.mrb[0].mxu0
      %1997 = vmatprep.mubr.bf16.mxu0 0
      %1998 = vmatmul.mubr.bf16.gmra.mrb[0].mxu0 %v1813
      %v1999 = vpop.f32.mrb[0].mxu0
      %v2000 = vadd.f32 0.0, %v1999
      %v2001 = vpop.f32.mrb[0].mxu0
      %v2002 = vpop.f32.mrb[0].mxu0
      %v2003 = vadd.f32 0.0, %v2002
      %v2004 = vpop.f32.mrb[0].mxu0
      %2005 = vmatprep.mubr.bf16.mxu0 0
      %2006 = vmatmul.mubr.bf16.gmra.mrb[0].mxu0 %v1814
      %v2007 = vpop.f32.mrb[0].mxu0
      %v2008 = vadd.f32 0.0, %v2007
      %v2009 = vpop.f32.mrb[0].mxu0
      %v2010 = vpop.f32.mrb[0].mxu0
      %v2011 = vadd.f32 0.0, %v2010
      %v2012 = vpop.f32.mrb[0].mxu0
      %2013 = vmatprep.mubr.bf16.mxu0 0
      %2014 = vmatmul.mubr.bf16.gmra.mrb[0].mxu0 %v1815
      %v2015 = vpop.f32.mrb[0].mxu0
      %v2016 = vadd.f32 0.0, %v2015
      %v2017 = vpop.f32.mrb[0].mxu0
      %v2018 = vpop.f32.mrb[0].mxu0
      %v2019 = vadd.f32 0.0, %v2018
      %v2020 = vpop.f32.mrb[0].mxu0
      %2021 = vmatprep.mubr.bf16.mxu0 0
      %2022 = vmatmul.mubr.bf16.gmra.mrb[0].mxu0 %v1816
      %v2023 = vpop.f32.mrb[0].mxu0
      %v2024 = vadd.f32 0.0, %v2023
      %v2025 = vpop.f32.mrb[0].mxu0
      %v2026 = vpop.f32.mrb[0].mxu0
      %v2027 = vadd.f32 0.0, %v2026
      %v2028 = vpop.f32.mrb[0].mxu0
      %2029 = vmatprep.mubr.bf16.mxu0 0
      %2030 = vmatmul.mubr.bf16.gmra.mrb[0].mxu0 %v1817
      %v2031 = vpop.f32.mrb[0].mxu0
      %v2032 = vadd.f32 0.0, %v2031
      %v2033 = vpop.f32.mrb[0].mxu0
      %v2034 = vpop.f32.mrb[0].mxu0
      %v2035 = vadd.f32 0.0, %v2034
      %v2036 = vpop.f32.mrb[0].mxu0
      %2037 = vmatprep.mubr.bf16.mxu0 0
      %2038 = vmatmul.mubr.bf16.gmra.mrb[0].mxu0 %v1818
      %v2039 = vpop.f32.mrb[0].mxu0
      %v2040 = vadd.f32 0.0, %v2039
      %v2041 = vpop.f32.mrb[0].mxu0
      %v2042 = vpop.f32.mrb[0].mxu0
      %v2043 = vadd.f32 0.0, %v2042
      %v2044 = vpop.f32.mrb[0].mxu0
      %2045 = vmatprep.mubr.bf16.mxu0 0
      %2046 = vmatmul.mubr.bf16.gmra.mrb[0].mxu0 %v1819
      %v2047 = vpop.f32.mrb[0].mxu0
      %v2048 = vadd.f32 0.0, %v2047
      %v2049 = vpop.f32.mrb[0].mxu0
      %v2050 = vpop.f32.mrb[0].mxu0
      %v2051 = vadd.f32 0.0, %v2050
      %v2052 = vpop.f32.mrb[0].mxu0
      %2053 = vmatprep.mubr.bf16.mxu0 0
      %2054 = vmatmul.mubr.bf16.gmra.mrb[0].mxu0 %v1820
      %v2055 = vpop.f32.mrb[0].mxu0
      %v2056 = vadd.f32 0.0, %v2055
      %v2057 = vpop.f32.mrb[0].mxu0
      %v2058 = vpop.f32.mrb[0].mxu0
      %v2059 = vadd.f32 0.0, %v2058
      %v2060 = vpop.f32.mrb[0].mxu0
      %2061 = vmatprep.mubr.bf16.mxu0 0
      %2062 = vmatmul.mubr.bf16.gmra.mrb[0].mxu0 %v1821
      %v2063 = vpop.f32.mrb[0].mxu0
      %v2064 = vadd.f32 0.0, %v2063
      %v2065 = vpop.f32.mrb[0].mxu0
      %v2066 = vpop.f32.mrb[0].mxu0
      %v2067 = vadd.f32 0.0, %v2066
      %v2068 = vpop.f32.mrb[0].mxu0
      %2069 = vmatprep.mubr.bf16.mxu0 0
      %2070 = vmatmul.mubr.bf16.gmra.mrb[0].mxu0 %v1822
      %v2071 = vpop.f32.mrb[0].mxu0
      %v2072 = vadd.f32 0.0, %v2071
      %v2073 = vpop.f32.mrb[0].mxu0
      %v2074 = vpop.f32.mrb[0].mxu0
      %v2075 = vadd.f32 0.0, %v2074
      %v2076 = vpop.f32.mrb[0].mxu0
      %2077 = vmatprep.mubr.bf16.mxu0 0
      %2078 = vmatmul.mubr.bf16.gmra.mrb[0].mxu0 %v1823
      %v2079 = vpop.f32.mrb[0].mxu0
      %v2080 = vadd.f32 0.0, %v2079
      %v2081 = vpop.f32.mrb[0].mxu0
      %v2082 = vpop.f32.mrb[0].mxu0
      %v2083 = vadd.f32 0.0, %v2082
      %v2084 = vpop.f32.mrb[0].mxu0
      %2085 = vmatprep.mubr.bf16.mxu0 0
      %2086 = vmatmul.mubr.bf16.gmra.mrb[0].mxu0 %v1824
      %v2087 = vpop.f32.mrb[0].mxu0
      %v2088 = vadd.f32 0.0, %v2087
      %v2089 = vpop.f32.mrb[0].mxu0
      %v2090 = vpop.f32.mrb[0].mxu0
      %v2091 = vadd.f32 0.0, %v2090
      %v2092 = vpop.f32.mrb[0].mxu0
      %2093 = vmatprep.mubr.bf16.mxu0 0
      %2094 = vmatmul.mubr.bf16.gmra.mrb[0].mxu0 %v1825
      %v2095 = vpop.f32.mrb[0].mxu0
      %v2096 = vadd.f32 0.0, %v2095
      %v2097 = vpop.f32.mrb[0].mxu0
      %v2098 = vpop.f32.mrb[0].mxu0
      %v2099 = vadd.f32 0.0, %v2098
      %v2100 = vpop.f32.mrb[0].mxu0
      %2101 = vmatprep.mubr.bf16.mxu0 0
      %2102 = vmatmul.mubr.bf16.gmra.mrb[0].mxu0 %v1826
      %v2103 = vpop.f32.mrb[0].mxu0
      %v2104 = vadd.f32 0.0, %v2103
      %v2105 = vpop.f32.mrb[0].mxu0
      %v2106 = vpop.f32.mrb[0].mxu0
      %v2107 = vadd.f32 0.0, %v2106
      %v2108 = vpop.f32.mrb[0].mxu0
      %2109 = vmatprep.mubr.bf16.mxu0 0
      %2110 = vmatmul.mubr.bf16.gmra.mrb[0].mxu0 %v1827
      %v2111 = vpop.f32.mrb[0].mxu0
      %v2112 = vadd.f32 0.0, %v2111
      %v2113 = vpop.f32.mrb[0].mxu0
      %v2114 = vpop.f32.mrb[0].mxu0
      %v2115 = vadd.f32 0.0, %v2114
      %v2116 = vpop.f32.mrb[0].mxu0
      %2117 = vmatprep.mubr.bf16.mxu0 0
      %2118 = vmatmul.mubr.bf16.gmra.mrb[0].mxu0 %v1828
      %v2119 = vpop.f32.mrb[0].mxu0
      %v2120 = vadd.f32 0.0, %v2119
      %v2121 = vpop.f32.mrb[0].mxu0
      %v2122 = vpop.f32.mrb[0].mxu0
      %v2123 = vadd.f32 0.0, %v2122
      %v2124 = vpop.f32.mrb[0].mxu0
      %2125 = vdwg.mxu0
      %v2126 = vadd.f32 %v1596, %v1936
      %v2127 = vadd.f32 %v1597, %v1939
      %v2128 = vadd.f32 %v1598, %v1944
      %v2129 = vadd.f32 %v1599, %v1947
      %v2130 = vadd.f32 %v1600, %v1952
      %v2131 = vadd.f32 %v1601, %v1955
      %v2132 = vadd.f32 %v1602, %v1960
      %v2133 = vadd.f32 %v1603, %v1963
      %v2134 = vadd.f32 %v1604, %v1968
      %v2135 = vadd.f32 %v1605, %v1971
      %v2136 = vadd.f32 %v1606, %v1976
      %v2137 = vadd.f32 %v1607, %v1979
      %v2138 = vadd.f32 %v1608, %v1984
      %v2139 = vadd.f32 %v1609, %v1987
      %v2140 = vadd.f32 %v1610, %v1992
      %v2141 = vadd.f32 %v1611, %v1995
      %v2142 = vadd.f32 %v1612, %v2000
      %v2143 = vadd.f32 %v1613, %v2003
      %v2144 = vadd.f32 %v1614, %v2008
      %v2145 = vadd.f32 %v1615, %v2011
      %v2146 = vadd.f32 %v1616, %v2016
      %v2147 = vadd.f32 %v1617, %v2019
      %v2148 = vadd.f32 %v1618, %v2024
      %v2149 = vadd.f32 %v1619, %v2027
      %v2150 = vadd.f32 %v1620, %v2032
      %v2151 = vadd.f32 %v1621, %v2035
      %v2152 = vadd.f32 %v1622, %v2040
      %v2153 = vadd.f32 %v1623, %v2043
      %v2154 = vadd.f32 %v1624, %v2048
      %v2155 = vadd.f32 %v1625, %v2051
      %v2156 = vadd.f32 %v1626, %v2056
      %v2157 = vadd.f32 %v1627, %v2059
      %v2158 = vadd.f32 %v1628, %v2064
      %v2159 = vadd.f32 %v1629, %v2067
      %v2160 = vadd.f32 %v1630, %v2072
      %v2161 = vadd.f32 %v1631, %v2075
      %v2162 = vadd.f32 %v1632, %v2080
      %v2163 = vadd.f32 %v1633, %v2083
      %v2164 = vadd.f32 %v1634, %v2088
      %v2165 = vadd.f32 %v1635, %v2091
      %v2166 = vadd.f32 %v1636, %v2096
      %v2167 = vadd.f32 %v1637, %v2099
      %v2168 = vadd.f32 %v1638, %v2104
      %v2169 = vadd.f32 %v1639, %v2107
      %v2170 = vadd.f32 %v1640, %v2112
      %v2171 = vadd.f32 %v1641, %v2115
      %v2172 = vadd.f32 %v1642, %v2120
      %v2173 = vadd.f32 %v1643, %v2123
      %v2174 = vld [vmem:[%s219 + $0xc] sm:$0xf]
      %v2175 = vld [vmem:[%s219 + $0x10] sm:$0xf]
      %v2176 = vld [vmem:[%s219 + $0x14] sm:$0xf]
      %v2177 = vld [vmem:[%s219 + $0x18] sm:$0xf]
      %v2178 = vld [vmem:[%s219 + $0x1c] sm:$0xf]
      %v2179 = vld [vmem:[%s219 + $0x20] sm:$0xf]
      %v2180 = vld [vmem:[%s219 + $0x24] sm:$0xf]
      %v2181 = vld [vmem:[%s219 + $0x28] sm:$0xf]
      %v2182 = vld [vmem:[%s219 + $0x2c] sm:$0xf]
      %v2183 = vld [vmem:[%s219 + $0x30] sm:$0xf]
      %v2184 = vld [vmem:[%s219 + $0x34] sm:$0xf]
      %v2185 = vld [vmem:[%s219 + $0x38] sm:$0xf]
      %v2186 = vld [vmem:[%s219 + $0x3c] sm:$0xf]
      %v2187 = vld [vmem:[%s219 + $0x40] sm:$0xf]
      %v2188 = vld [vmem:[%s219 + $0x44] sm:$0xf]
      %v2189 = vld [vmem:[%s219 + $0x48] sm:$0xf]
      %v2190 = vld [vmem:[%s219 + $0x4c] sm:$0xf]
      %v2191 = vld [vmem:[%s219 + $0x50] sm:$0xf]
      %v2192 = vld [vmem:[%s219 + $0x54] sm:$0xf]
      %v2193 = vld [vmem:[%s219 + $0x58] sm:$0xf]
      %v2194 = vld [vmem:[%s219 + $0x5c] sm:$0xf]
      %v2195 = vld [vmem:[%s219 + $0x60] sm:$0xf]
      %v2196 = vld [vmem:[%s219 + $0x64] sm:$0xf]
      %v2197 = vld [vmem:[%s219 + $0x68] sm:$0xf]
      %v2198 = vld [vmem:[%s219 + $0x6c] sm:$0xf]
      %v2199 = vld [vmem:[%s219 + $0x70] sm:$0xf]
      %v2200 = vld [vmem:[%s219 + $0x74] sm:$0xf]
      %v2201 = vld [vmem:[%s219 + $0x78] sm:$0xf]
      %v2202 = vld [vmem:[%s219 + $0x7c] sm:$0xf]
      %v2203 = vld [vmem:[%s219 + $0x80] sm:$0xf]
      %v2204 = vld [vmem:[%s219 + $0x84] sm:$0xf]
      %v2205 = vld [vmem:[%s219 + $0x88] sm:$0xf]
      %v2206 = vld [vmem:[%s219 + $0x8c] sm:$0xf]
      %v2207 = vld [vmem:[%s219 + $0x90] sm:$0xf]
      %v2208 = vld [vmem:[%s219 + $0x94] sm:$0xf]
      %v2209 = vld [vmem:[%s219 + $0x98] sm:$0xf]
      %v2210 = vld [vmem:[%s219 + $0x9c] sm:$0xf]
      %v2211 = vld [vmem:[%s219 + $0xa0] sm:$0xf]
      %v2212 = vld [vmem:[%s219 + $0xa4] sm:$0xf]
      %v2213 = vld [vmem:[%s219 + $0xa8] sm:$0xf]
      %v2214 = vld [vmem:[%s219 + $0xac] sm:$0xf]
      %v2215 = vld [vmem:[%s219 + $0xb0] sm:$0xf]
      %v2216 = vld [vmem:[%s219 + $0xb4] sm:$0xf]
      %v2217 = vld [vmem:[%s219 + $0xb8] sm:$0xf]
      %v2218 = vld [vmem:[%s219 + $0xbc] sm:$0xf]
      %v2219 = vld [vmem:[%s219 + $0xc0] sm:$0xf]
      %v2220 = vld [vmem:[%s219 + $0xc4] sm:$0xf]
      %v2221 = vld [vmem:[%s219 + $0xc8] sm:$0xf]
      %v2222 = vld [vmem:[%s219 + $0xcc] sm:$0x1]
      %s2223 = scalar_lea.vmem %s1, 256
      %v2224 = vld [vmem:[%s2223] sm:$0xf]
      %v2225 = vld [vmem:[%s2223 + $0x4] sm:$0xf]
      %v2226 = vld [vmem:[%s2223 + $0x8] sm:$0xf]
      %v2227 = vld [vmem:[%s2223 + $0xc] sm:$0xf]
      %v2228 = vld [vmem:[%s2223 + $0x10] sm:$0xf]
      %v2229 = vld [vmem:[%s2223 + $0x14] sm:$0xf]
      %v2230 = vld [vmem:[%s2223 + $0x18] sm:$0xf]
      %v2231 = vld [vmem:[%s2223 + $0x1c] sm:$0xf]
      %v2232 = vld [vmem:[%s2223 + $0x20] sm:$0xf]
      %v2233 = vld [vmem:[%s2223 + $0x24] sm:$0xf]
      %v2234 = vld [vmem:[%s2223 + $0x28] sm:$0xf]
      %v2235 = vld [vmem:[%s2223 + $0x2c] sm:$0xf]
      %v2236 = vld [vmem:[%s2223 + $0x30] sm:$0xf]
      %v2237 = vld [vmem:[%s2223 + $0x34] sm:$0xf]
      %v2238 = vld [vmem:[%s2223 + $0x38] sm:$0xf]
      %v2239 = vld [vmem:[%s2223 + $0x3c] sm:$0xf]
      %v2289 = vunpack.c.l.b16 %v2174
      %v2290 = vunpack.c.l.b16 %v2175
      %v2291 = vunpack.c.l.b16 %v2176
      %v2292 = vunpack.c.l.b16 %v2177
      %v2293 = vunpack.c.l.b16 %v2178
      %v2294 = vunpack.c.l.b16 %v2179
      %v2295 = vunpack.c.l.b16 %v2180
      %v2296 = vunpack.c.l.b16 %v2181
      %v2297 = vunpack.c.l.b16 %v2182
      %v2298 = vunpack.c.l.b16 %v2183
      %v2299 = vunpack.c.l.b16 %v2184
      %v2300 = vunpack.c.l.b16 %v2185
      %v2301 = vunpack.c.l.b16 %v2186
      %v2302 = vunpack.c.l.b16 %v2187
      %v2303 = vunpack.c.l.b16 %v2188
      %v2304 = vunpack.c.l.b16 %v2189
      %v2305 = vunpack.c.l.b16 %v2190
      %v2306 = vunpack.c.l.b16 %v2191
      %v2307 = vunpack.c.l.b16 %v2192
      %v2308 = vunpack.c.l.b16 %v2193
      %v2309 = vunpack.c.l.b16 %v2194
      %v2310 = vunpack.c.l.b16 %v2195
      %v2311 = vunpack.c.l.b16 %v2196
      %v2312 = vunpack.c.l.b16 %v2197
      %v2313 = vunpack.c.l.b16 %v2198
      %v2314 = vunpack.c.l.b16 %v2199
      %v2315 = vunpack.c.l.b16 %v2200
      %v2316 = vunpack.c.l.b16 %v2201
      %v2317 = vunpack.c.l.b16 %v2202
      %v2318 = vunpack.c.l.b16 %v2203
      %v2319 = vunpack.c.l.b16 %v2204
      %v2320 = vunpack.c.l.b16 %v2205
      %v2321 = vunpack.c.l.b16 %v2206
      %v2322 = vunpack.c.l.b16 %v2207
      %v2323 = vunpack.c.l.b16 %v2208
      %v2324 = vunpack.c.l.b16 %v2209
      %v2325 = vunpack.c.l.b16 %v2210
      %v2326 = vunpack.c.l.b16 %v2211
      %v2327 = vunpack.c.l.b16 %v2212
      %v2328 = vunpack.c.l.b16 %v2213
      %v2329 = vunpack.c.l.b16 %v2214
      %v2330 = vunpack.c.l.b16 %v2215
      %v2331 = vunpack.c.l.b16 %v2216
      %v2332 = vunpack.c.l.b16 %v2217
      %v2333 = vunpack.c.l.b16 %v2218
      %v2334 = vunpack.c.l.b16 %v2219
      %v2335 = vunpack.c.l.b16 %v2220
      %v2336 = vunpack.c.l.b16 %v2221
      %v2337 = vunpack.c.l.b16 %v2222
      %v2338 = vpack.c.b16 %v2290, %v2289
      %v2339 = vpack.c.b16 %v2292, %v2291
      %v2340 = vpack.c.b16 %v2294, %v2293
      %v2341 = vpack.c.b16 %v2296, %v2295
      %v2342 = vpack.c.b16 %v2298, %v2297
      %v2343 = vpack.c.b16 %v2300, %v2299
      %v2344 = vpack.c.b16 %v2302, %v2301
      %v2345 = vpack.c.b16 %v2304, %v2303
      %v2346 = vpack.c.b16 %v2306, %v2305
      %v2347 = vpack.c.b16 %v2308, %v2307
      %v2348 = vpack.c.b16 %v2310, %v2309
      %v2349 = vpack.c.b16 %v2312, %v2311
      %v2350 = vpack.c.b16 %v2314, %v2313
      %v2351 = vpack.c.b16 %v2316, %v2315
      %v2352 = vpack.c.b16 %v2318, %v2317
      %v2353 = vpack.c.b16 %v2320, %v2319
      %v2354 = vpack.c.b16 %v2322, %v2321
      %v2355 = vpack.c.b16 %v2324, %v2323
      %v2356 = vpack.c.b16 %v2326, %v2325
      %v2357 = vpack.c.b16 %v2328, %v2327
      %v2358 = vpack.c.b16 %v2330, %v2329
      %v2359 = vpack.c.b16 %v2332, %v2331
      %v2360 = vpack.c.b16 %v2334, %v2333
      %v2361 = vpack.c.b16 %v2336, %v2335
      %v2362 = vpack.c.b16 %v2337, %v2337
      %v2364 = vshrl.u32 %v2338, 16
      %v2366 = vshll.u32 %v2338, 16
      %v2368 = vrot.slane %v2366, 1
      %v2369 = vor.u32 %v2364, %v2368
      %v2371 = vshll.u32 %v2339, 16
      %v2373 = vrot.slane %v2371, 1
      %v2374 = vsel %vm437, %v2369, %v2373
      %v2375 = vshrl.u32 %v2339, 16
      %v2377 = vor.u32 %v2375, %v2373
      %v2379 = vshll.u32 %v2340, 16
      %v2381 = vrot.slane %v2379, 1
      %v2382 = vsel %vm437, %v2377, %v2381
      %v2383 = vshrl.u32 %v2340, 16
      %v2385 = vor.u32 %v2383, %v2381
      %v2387 = vshll.u32 %v2341, 16
      %v2389 = vrot.slane %v2387, 1
      %v2390 = vsel %vm437, %v2385, %v2389
      %v2391 = vshrl.u32 %v2341, 16
      %v2393 = vor.u32 %v2391, %v2389
      %v2395 = vshll.u32 %v2342, 16
      %v2397 = vrot.slane %v2395, 1
      %v2398 = vsel %vm437, %v2393, %v2397
      %v2399 = vshrl.u32 %v2342, 16
      %v2401 = vor.u32 %v2399, %v2397
      %v2403 = vshll.u32 %v2343, 16
      %v2405 = vrot.slane %v2403, 1
      %v2406 = vsel %vm437, %v2401, %v2405
      %v2407 = vshrl.u32 %v2343, 16
      %v2409 = vor.u32 %v2407, %v2405
      %v2411 = vshll.u32 %v2344, 16
      %v2413 = vrot.slane %v2411, 1
      %v2414 = vsel %vm437, %v2409, %v2413
      %v2415 = vshrl.u32 %v2344, 16
      %v2417 = vor.u32 %v2415, %v2413
      %v2419 = vshll.u32 %v2345, 16
      %v2421 = vrot.slane %v2419, 1
      %v2422 = vsel %vm437, %v2417, %v2421
      %v2423 = vshrl.u32 %v2345, 16
      %v2425 = vor.u32 %v2423, %v2421
      %v2427 = vshll.u32 %v2346, 16
      %v2429 = vrot.slane %v2427, 1
      %v2430 = vsel %vm437, %v2425, %v2429
      %v2431 = vshrl.u32 %v2346, 16
      %v2433 = vor.u32 %v2431, %v2429
      %v2435 = vshll.u32 %v2347, 16
      %v2437 = vrot.slane %v2435, 1
      %v2438 = vsel %vm437, %v2433, %v2437
      %v2439 = vshrl.u32 %v2347, 16
      %v2441 = vor.u32 %v2439, %v2437
      %v2443 = vshll.u32 %v2348, 16
      %v2445 = vrot.slane %v2443, 1
      %v2446 = vsel %vm437, %v2441, %v2445
      %v2447 = vshrl.u32 %v2348, 16
      %v2449 = vor.u32 %v2447, %v2445
      %v2451 = vshll.u32 %v2349, 16
      %v2453 = vrot.slane %v2451, 1
      %v2454 = vsel %vm437, %v2449, %v2453
      %v2455 = vshrl.u32 %v2349, 16
      %v2457 = vor.u32 %v2455, %v2453
      %v2459 = vshll.u32 %v2350, 16
      %v2461 = vrot.slane %v2459, 1
      %v2462 = vsel %vm437, %v2457, %v2461
      %v2463 = vshrl.u32 %v2350, 16
      %v2465 = vor.u32 %v2463, %v2461
      %v2467 = vshll.u32 %v2351, 16
      %v2469 = vrot.slane %v2467, 1
      %v2470 = vsel %vm437, %v2465, %v2469
      %v2471 = vshrl.u32 %v2351, 16
      %v2473 = vor.u32 %v2471, %v2469
      %v2475 = vshll.u32 %v2352, 16
      %v2477 = vrot.slane %v2475, 1
      %v2478 = vsel %vm437, %v2473, %v2477
      %v2479 = vshrl.u32 %v2352, 16
      %v2481 = vor.u32 %v2479, %v2477
      %v2483 = vshll.u32 %v2353, 16
      %v2485 = vrot.slane %v2483, 1
      %v2486 = vsel %vm437, %v2481, %v2485
      %v2487 = vshrl.u32 %v2353, 16
      %v2489 = vor.u32 %v2487, %v2485
      %v2491 = vshll.u32 %v2354, 16
      %v2493 = vrot.slane %v2491, 1
      %v2494 = vsel %vm437, %v2489, %v2493
      %v2495 = vshrl.u32 %v2354, 16
      %v2497 = vor.u32 %v2495, %v2493
      %v2499 = vshll.u32 %v2355, 16
      %v2501 = vrot.slane %v2499, 1
      %v2502 = vsel %vm437, %v2497, %v2501
      %v2503 = vshrl.u32 %v2355, 16
      %v2505 = vor.u32 %v2503, %v2501
      %v2507 = vshll.u32 %v2356, 16
      %v2509 = vrot.slane %v2507, 1
      %v2510 = vsel %vm437, %v2505, %v2509
      %v2511 = vshrl.u32 %v2356, 16
      %v2513 = vor.u32 %v2511, %v2509
      %v2515 = vshll.u32 %v2357, 16
      %v2517 = vrot.slane %v2515, 1
      %v2518 = vsel %vm437, %v2513, %v2517
      %v2519 = vshrl.u32 %v2357, 16
      %v2521 = vor.u32 %v2519, %v2517
      %v2523 = vshll.u32 %v2358, 16
      %v2525 = vrot.slane %v2523, 1
      %v2526 = vsel %vm437, %v2521, %v2525
      %v2527 = vshrl.u32 %v2358, 16
      %v2529 = vor.u32 %v2527, %v2525
      %v2531 = vshll.u32 %v2359, 16
      %v2533 = vrot.slane %v2531, 1
      %v2534 = vsel %vm437, %v2529, %v2533
      %v2535 = vshrl.u32 %v2359, 16
      %v2537 = vor.u32 %v2535, %v2533
      %v2539 = vshll.u32 %v2360, 16
      %v2541 = vrot.slane %v2539, 1
      %v2542 = vsel %vm437, %v2537, %v2541
      %v2543 = vshrl.u32 %v2360, 16
      %v2545 = vor.u32 %v2543, %v2541
      %v2547 = vshll.u32 %v2361, 16
      %v2549 = vrot.slane %v2547, 1
      %v2550 = vsel %vm437, %v2545, %v2549
      %v2551 = vshrl.u32 %v2361, 16
      %v2553 = vor.u32 %v2551, %v2549
      %v2555 = vshll.u32 %v2362, 16
      %v2557 = vrot.slane %v2555, 1
      %v2558 = vsel %vm437, %v2553, %v2557
      %v2599 = vunpack.c.l.b16 %v2224
      %v2600 = vunpack.c.l.b16 %v2225
      %v2601 = vunpack.c.l.b16 %v2226
      %v2602 = vunpack.c.l.b16 %v2227
      %v2603 = vunpack.c.l.b16 %v2228
      %v2604 = vunpack.c.l.b16 %v2229
      %v2605 = vunpack.c.l.b16 %v2230
      %v2606 = vunpack.c.l.b16 %v2231
      %v2607 = vunpack.c.l.b16 %v2232
      %v2608 = vunpack.c.l.b16 %v2233
      %v2609 = vunpack.c.l.b16 %v2234
      %v2610 = vunpack.c.l.b16 %v2235
      %v2611 = vunpack.c.l.b16 %v2236
      %v2612 = vunpack.c.l.b16 %v2237
      %v2613 = vunpack.c.l.b16 %v2238
      %v2614 = vunpack.c.l.b16 %v2239
      %v2615 = vpack.c.b16 %v2600, %v2599
      %v2616 = vpack.c.b16 %v2602, %v2601
      %v2617 = vpack.c.b16 %v2604, %v2603
      %v2618 = vpack.c.b16 %v2606, %v2605
      %v2619 = vpack.c.b16 %v2608, %v2607
      %v2620 = vpack.c.b16 %v2610, %v2609
      %v2621 = vpack.c.b16 %v2612, %v2611
      %v2622 = vpack.c.b16 %v2614, %v2613
      %2631 = vmatprep.subr.bf16.mxu0 0
      %2632 = vmatpush1.bf16.msra.mxu0 %v2615
      %2633 = vmatprep.subr.bf16.mxu0 0
      %2634 = vmatpush1.bf16.msra.mxu0 %v2616
      %2635 = vmatprep.subr.bf16.mxu0 0
      %2636 = vmatpush1.bf16.msra.mxu0 %v2617
      %2637 = vmatprep.subr.bf16.mxu0 0
      %2638 = vmatpush1.bf16.msra.mxu0 %v2618
      %2639 = vmatprep.subr.bf16.mxu0 0
      %2640 = vmatpush1.bf16.msra.mxu0 %v2619
      %2641 = vmatprep.subr.bf16.mxu0 0
      %2642 = vmatpush1.bf16.msra.mxu0 %v2620
      %2643 = vmatprep.subr.bf16.mxu0 0
      %2644 = vmatpush1.bf16.msra.mxu0 %v2621
      %2645 = vmatprep.subr.bf16.mxu0 0
      %2646 = vmatpush1.bf16.msra.mxu0 %v2622
      %2647 = vmatprep.subr.bf16.mxu0 0
      %2648 = vmatpush1.bf16.msra.mxu0 0
      %2649 = vmatprep.subr.bf16.mxu0 0
      %2650 = vmatpush1.bf16.msra.mxu0 0
      %2651 = vmatprep.subr.bf16.mxu0 0
      %2652 = vmatpush1.bf16.msra.mxu0 0
      %2653 = vmatprep.subr.bf16.mxu0 0
      %2654 = vmatpush1.bf16.msra.mxu0 0
      %2655 = vmatprep.subr.bf16.mxu0 0
      %2656 = vmatpush1.bf16.msra.mxu0 0
      %2657 = vmatprep.subr.bf16.mxu0 0
      %2658 = vmatpush1.bf16.msra.mxu0 0
      %2659 = vmatprep.subr.bf16.mxu0 0
      %2660 = vmatpush1.bf16.msra.mxu0 0
      %2661 = vmatprep.subr.bf16.mxu0 0
      %2662 = vmatpush1.bf16.msra.mxu0 0
      %2663 = vmatprep.mubr.bf16.mxu0 0
      %2664 = vmatmul.mubr.bf16.gmra.mrb[0].mxu0 %v2374
      %v2665 = vpop.f32.mrb[0].mxu0
      %v2666 = vadd.f32 0.0, %v2665
      %v2667 = vpop.f32.mrb[0].mxu0
      %v2668 = vpop.f32.mrb[0].mxu0
      %v2669 = vadd.f32 0.0, %v2668
      %v2670 = vpop.f32.mrb[0].mxu0
      %2671 = vmatprep.mubr.bf16.mxu0 0
      %2672 = vmatmul.mubr.bf16.gmra.mrb[0].mxu0 %v2382
      %v2673 = vpop.f32.mrb[0].mxu0
      %v2674 = vadd.f32 0.0, %v2673
      %v2675 = vpop.f32.mrb[0].mxu0
      %v2676 = vpop.f32.mrb[0].mxu0
      %v2677 = vadd.f32 0.0, %v2676
      %v2678 = vpop.f32.mrb[0].mxu0
      %2679 = vmatprep.mubr.bf16.mxu0 0
      %2680 = vmatmul.mubr.bf16.gmra.mrb[0].mxu0 %v2390
      %v2681 = vpop.f32.mrb[0].mxu0
      %v2682 = vadd.f32 0.0, %v2681
      %v2683 = vpop.f32.mrb[0].mxu0
      %v2684 = vpop.f32.mrb[0].mxu0
      %v2685 = vadd.f32 0.0, %v2684
      %v2686 = vpop.f32.mrb[0].mxu0
      %2687 = vmatprep.mubr.bf16.mxu0 0
      %2688 = vmatmul.mubr.bf16.gmra.mrb[0].mxu0 %v2398
      %v2689 = vpop.f32.mrb[0].mxu0
      %v2690 = vadd.f32 0.0, %v2689
      %v2691 = vpop.f32.mrb[0].mxu0
      %v2692 = vpop.f32.mrb[0].mxu0
      %v2693 = vadd.f32 0.0, %v2692
      %v2694 = vpop.f32.mrb[0].mxu0
      %2695 = vmatprep.mubr.bf16.mxu0 0
      %2696 = vmatmul.mubr.bf16.gmra.mrb[0].mxu0 %v2406
      %v2697 = vpop.f32.mrb[0].mxu0
      %v2698 = vadd.f32 0.0, %v2697
      %v2699 = vpop.f32.mrb[0].mxu0
      %v2700 = vpop.f32.mrb[0].mxu0
      %v2701 = vadd.f32 0.0, %v2700
      %v2702 = vpop.f32.mrb[0].mxu0
      %2703 = vmatprep.mubr.bf16.mxu0 0
      %2704 = vmatmul.mubr.bf16.gmra.mrb[0].mxu0 %v2414
      %v2705 = vpop.f32.mrb[0].mxu0
      %v2706 = vadd.f32 0.0, %v2705
      %v2707 = vpop.f32.mrb[0].mxu0
      %v2708 = vpop.f32.mrb[0].mxu0
      %v2709 = vadd.f32 0.0, %v2708
      %v2710 = vpop.f32.mrb[0].mxu0
      %2711 = vmatprep.mubr.bf16.mxu0 0
      %2712 = vmatmul.mubr.bf16.gmra.mrb[0].mxu0 %v2422
      %v2713 = vpop.f32.mrb[0].mxu0
      %v2714 = vadd.f32 0.0, %v2713
      %v2715 = vpop.f32.mrb[0].mxu0
      %v2716 = vpop.f32.mrb[0].mxu0
      %v2717 = vadd.f32 0.0, %v2716
      %v2718 = vpop.f32.mrb[0].mxu0
      %2719 = vmatprep.mubr.bf16.mxu0 0
      %2720 = vmatmul.mubr.bf16.gmra.mrb[0].mxu0 %v2430
      %v2721 = vpop.f32.mrb[0].mxu0
      %v2722 = vadd.f32 0.0, %v2721
      %v2723 = vpop.f32.mrb[0].mxu0
      %v2724 = vpop.f32.mrb[0].mxu0
      %v2725 = vadd.f32 0.0, %v2724
      %v2726 = vpop.f32.mrb[0].mxu0
      %2727 = vmatprep.mubr.bf16.mxu0 0
      %2728 = vmatmul.mubr.bf16.gmra.mrb[0].mxu0 %v2438
      %v2729 = vpop.f32.mrb[0].mxu0
      %v2730 = vadd.f32 0.0, %v2729
      %v2731 = vpop.f32.mrb[0].mxu0
      %v2732 = vpop.f32.mrb[0].mxu0
      %v2733 = vadd.f32 0.0, %v2732
      %v2734 = vpop.f32.mrb[0].mxu0
      %2735 = vmatprep.mubr.bf16.mxu0 0
      %2736 = vmatmul.mubr.bf16.gmra.mrb[0].mxu0 %v2446
      %v2737 = vpop.f32.mrb[0].mxu0
      %v2738 = vadd.f32 0.0, %v2737
      %v2739 = vpop.f32.mrb[0].mxu0
      %v2740 = vpop.f32.mrb[0].mxu0
      %v2741 = vadd.f32 0.0, %v2740
      %v2742 = vpop.f32.mrb[0].mxu0
      %2743 = vmatprep.mubr.bf16.mxu0 0
      %2744 = vmatmul.mubr.bf16.gmra.mrb[0].mxu0 %v2454
      %v2745 = vpop.f32.mrb[0].mxu0
      %v2746 = vadd.f32 0.0, %v2745
      %v2747 = vpop.f32.mrb[0].mxu0
      %v2748 = vpop.f32.mrb[0].mxu0
      %v2749 = vadd.f32 0.0, %v2748
      %v2750 = vpop.f32.mrb[0].mxu0
      %2751 = vmatprep.mubr.bf16.mxu0 0
      %2752 = vmatmul.mubr.bf16.gmra.mrb[0].mxu0 %v2462
      %v2753 = vpop.f32.mrb[0].mxu0
      %v2754 = vadd.f32 0.0, %v2753
      %v2755 = vpop.f32.mrb[0].mxu0
      %v2756 = vpop.f32.mrb[0].mxu0
      %v2757 = vadd.f32 0.0, %v2756
      %v2758 = vpop.f32.mrb[0].mxu0
      %2759 = vmatprep.mubr.bf16.mxu0 0
      %2760 = vmatmul.mubr.bf16.gmra.mrb[0].mxu0 %v2470
      %v2761 = vpop.f32.mrb[0].mxu0
      %v2762 = vadd.f32 0.0, %v2761
      %v2763 = vpop.f32.mrb[0].mxu0
      %v2764 = vpop.f32.mrb[0].mxu0
      %v2765 = vadd.f32 0.0, %v2764
      %v2766 = vpop.f32.mrb[0].mxu0
      %2767 = vmatprep.mubr.bf16.mxu0 0
      %2768 = vmatmul.mubr.bf16.gmra.mrb[0].mxu0 %v2478
      %v2769 = vpop.f32.mrb[0].mxu0
      %v2770 = vadd.f32 0.0, %v2769
      %v2771 = vpop.f32.mrb[0].mxu0
      %v2772 = vpop.f32.mrb[0].mxu0
      %v2773 = vadd.f32 0.0, %v2772
      %v2774 = vpop.f32.mrb[0].mxu0
      %2775 = vmatprep.mubr.bf16.mxu0 0
      %2776 = vmatmul.mubr.bf16.gmra.mrb[0].mxu0 %v2486
      %v2777 = vpop.f32.mrb[0].mxu0
      %v2778 = vadd.f32 0.0, %v2777
      %v2779 = vpop.f32.mrb[0].mxu0
      %v2780 = vpop.f32.mrb[0].mxu0
      %v2781 = vadd.f32 0.0, %v2780
      %v2782 = vpop.f32.mrb[0].mxu0
      %2783 = vmatprep.mubr.bf16.mxu0 0
      %2784 = vmatmul.mubr.bf16.gmra.mrb[0].mxu0 %v2494
      %v2785 = vpop.f32.mrb[0].mxu0
      %v2786 = vadd.f32 0.0, %v2785
      %v2787 = vpop.f32.mrb[0].mxu0
      %v2788 = vpop.f32.mrb[0].mxu0
      %v2789 = vadd.f32 0.0, %v2788
      %v2790 = vpop.f32.mrb[0].mxu0
      %2791 = vmatprep.mubr.bf16.mxu0 0
      %2792 = vmatmul.mubr.bf16.gmra.mrb[0].mxu0 %v2502
      %v2793 = vpop.f32.mrb[0].mxu0
      %v2794 = vadd.f32 0.0, %v2793
      %v2795 = vpop.f32.mrb[0].mxu0
      %v2796 = vpop.f32.mrb[0].mxu0
      %v2797 = vadd.f32 0.0, %v2796
      %v2798 = vpop.f32.mrb[0].mxu0
      %2799 = vmatprep.mubr.bf16.mxu0 0
      %2800 = vmatmul.mubr.bf16.gmra.mrb[0].mxu0 %v2510
      %v2801 = vpop.f32.mrb[0].mxu0
      %v2802 = vadd.f32 0.0, %v2801
      %v2803 = vpop.f32.mrb[0].mxu0
      %v2804 = vpop.f32.mrb[0].mxu0
      %v2805 = vadd.f32 0.0, %v2804
      %v2806 = vpop.f32.mrb[0].mxu0
      %2807 = vmatprep.mubr.bf16.mxu0 0
      %2808 = vmatmul.mubr.bf16.gmra.mrb[0].mxu0 %v2518
      %v2809 = vpop.f32.mrb[0].mxu0
      %v2810 = vadd.f32 0.0, %v2809
      %v2811 = vpop.f32.mrb[0].mxu0
      %v2812 = vpop.f32.mrb[0].mxu0
      %v2813 = vadd.f32 0.0, %v2812
      %v2814 = vpop.f32.mrb[0].mxu0
      %2815 = vmatprep.mubr.bf16.mxu0 0
      %2816 = vmatmul.mubr.bf16.gmra.mrb[0].mxu0 %v2526
      %v2817 = vpop.f32.mrb[0].mxu0
      %v2818 = vadd.f32 0.0, %v2817
      %v2819 = vpop.f32.mrb[0].mxu0
      %v2820 = vpop.f32.mrb[0].mxu0
      %v2821 = vadd.f32 0.0, %v2820
      %v2822 = vpop.f32.mrb[0].mxu0
      %2823 = vmatprep.mubr.bf16.mxu0 0
      %2824 = vmatmul.mubr.bf16.gmra.mrb[0].mxu0 %v2534
      %v2825 = vpop.f32.mrb[0].mxu0
      %v2826 = vadd.f32 0.0, %v2825
      %v2827 = vpop.f32.mrb[0].mxu0
      %v2828 = vpop.f32.mrb[0].mxu0
      %v2829 = vadd.f32 0.0, %v2828
      %v2830 = vpop.f32.mrb[0].mxu0
      %2831 = vmatprep.mubr.bf16.mxu0 0
      %2832 = vmatmul.mubr.bf16.gmra.mrb[0].mxu0 %v2542
      %v2833 = vpop.f32.mrb[0].mxu0
      %v2834 = vadd.f32 0.0, %v2833
      %v2835 = vpop.f32.mrb[0].mxu0
      %v2836 = vpop.f32.mrb[0].mxu0
      %v2837 = vadd.f32 0.0, %v2836
      %v2838 = vpop.f32.mrb[0].mxu0
      %2839 = vmatprep.mubr.bf16.mxu0 0
      %2840 = vmatmul.mubr.bf16.gmra.mrb[0].mxu0 %v2550
      %v2841 = vpop.f32.mrb[0].mxu0
      %v2842 = vadd.f32 0.0, %v2841
      %v2843 = vpop.f32.mrb[0].mxu0
      %v2844 = vpop.f32.mrb[0].mxu0
      %v2845 = vadd.f32 0.0, %v2844
      %v2846 = vpop.f32.mrb[0].mxu0
      %2847 = vmatprep.mubr.bf16.mxu0 0
      %2848 = vmatmul.mubr.bf16.gmra.mrb[0].mxu0 %v2558
      %v2849 = vpop.f32.mrb[0].mxu0
      %v2850 = vadd.f32 0.0, %v2849
      %v2851 = vpop.f32.mrb[0].mxu0
      %v2852 = vpop.f32.mrb[0].mxu0
      %v2853 = vadd.f32 0.0, %v2852
      %v2854 = vpop.f32.mrb[0].mxu0
      %2855 = vdwg.mxu0
      %v2856 = vadd.f32 %v2126, %v2666
      %v2857 = vadd.f32 %v2127, %v2669
      %v2858 = vadd.f32 %v2128, %v2674
      %v2859 = vadd.f32 %v2129, %v2677
      %v2860 = vadd.f32 %v2130, %v2682
      %v2861 = vadd.f32 %v2131, %v2685
      %v2862 = vadd.f32 %v2132, %v2690
      %v2863 = vadd.f32 %v2133, %v2693
      %v2864 = vadd.f32 %v2134, %v2698
      %v2865 = vadd.f32 %v2135, %v2701
      %v2866 = vadd.f32 %v2136, %v2706
      %v2867 = vadd.f32 %v2137, %v2709
      %v2868 = vadd.f32 %v2138, %v2714
      %v2869 = vadd.f32 %v2139, %v2717
      %v2870 = vadd.f32 %v2140, %v2722
      %v2871 = vadd.f32 %v2141, %v2725
      %v2872 = vadd.f32 %v2142, %v2730
      %v2873 = vadd.f32 %v2143, %v2733
      %v2874 = vadd.f32 %v2144, %v2738
      %v2875 = vadd.f32 %v2145, %v2741
      %v2876 = vadd.f32 %v2146, %v2746
      %v2877 = vadd.f32 %v2147, %v2749
      %v2878 = vadd.f32 %v2148, %v2754
      %v2879 = vadd.f32 %v2149, %v2757
      %v2880 = vadd.f32 %v2150, %v2762
      %v2881 = vadd.f32 %v2151, %v2765
      %v2882 = vadd.f32 %v2152, %v2770
      %v2883 = vadd.f32 %v2153, %v2773
      %v2884 = vadd.f32 %v2154, %v2778
      %v2885 = vadd.f32 %v2155, %v2781
      %v2886 = vadd.f32 %v2156, %v2786
      %v2887 = vadd.f32 %v2157, %v2789
      %v2888 = vadd.f32 %v2158, %v2794
      %v2889 = vadd.f32 %v2159, %v2797
      %v2890 = vadd.f32 %v2160, %v2802
      %v2891 = vadd.f32 %v2161, %v2805
      %v2892 = vadd.f32 %v2162, %v2810
      %v2893 = vadd.f32 %v2163, %v2813
      %v2894 = vadd.f32 %v2164, %v2818
      %v2895 = vadd.f32 %v2165, %v2821
      %v2896 = vadd.f32 %v2166, %v2826
      %v2897 = vadd.f32 %v2167, %v2829
      %v2898 = vadd.f32 %v2168, %v2834
      %v2899 = vadd.f32 %v2169, %v2837
      %v2900 = vadd.f32 %v2170, %v2842
      %v2901 = vadd.f32 %v2171, %v2845
      %v2902 = vadd.f32 %v2172, %v2850
      %v2903 = vadd.f32 %v2173, %v2853
      %v2904 = vld [vmem:[%s219 + $0xc] sm:$0xe]
      %s2905 = scalar_lea.vmem %s1, 320
      %v2906 = vld [vmem:[%s2905] sm:$0xf]
      %v2907 = vld [vmem:[%s2905 + $0x4] sm:$0xf]
      %v2908 = vld [vmem:[%s2905 + $0x8] sm:$0xf]
      %v2909 = vld [vmem:[%s2905 + $0xc] sm:$0xf]
      %v2910 = vld [vmem:[%s2905 + $0x10] sm:$0xf]
      %v2911 = vld [vmem:[%s2905 + $0x14] sm:$0xf]
      %v2912 = vld [vmem:[%s2905 + $0x18] sm:$0xf]
      %v2913 = vld [vmem:[%s2905 + $0x1c] sm:$0xf]
      %v2914 = vld [vmem:[%s2905 + $0x20] sm:$0xf]
      %v2915 = vld [vmem:[%s2905 + $0x24] sm:$0xf]
      %v2916 = vld [vmem:[%s2905 + $0x28] sm:$0xf]
      %v2917 = vld [vmem:[%s2905 + $0x2c] sm:$0xf]
      %v2918 = vld [vmem:[%s2905 + $0x30] sm:$0xf]
      %v2919 = vld [vmem:[%s2905 + $0x34] sm:$0xf]
      %v2920 = vld [vmem:[%s2905 + $0x38] sm:$0xf]
      %v2921 = vld [vmem:[%s2905 + $0x3c] sm:$0xf]
      %v2923 = vunpack.c.l.b16 %v2904
      %v2924 = vpack.c.b16 %v2290, %v2923
      %v2925 = vrot.slane %v2924, 1
      %v2926 = vrot.slane %v2339, 1
      %v2927 = vsel %vm1249, %v2925, %v2926
      %v2928 = vrot.slane %v2340, 1
      %v2929 = vsel %vm1249, %v2926, %v2928
      %v2930 = vrot.slane %v2341, 1
      %v2931 = vsel %vm1249, %v2928, %v2930
      %v2932 = vrot.slane %v2342, 1
      %v2933 = vsel %vm1249, %v2930, %v2932
      %v2934 = vrot.slane %v2343, 1
      %v2935 = vsel %vm1249, %v2932, %v2934
      %v2936 = vrot.slane %v2344, 1
      %v2937 = vsel %vm1249, %v2934, %v2936
      %v2938 = vrot.slane %v2345, 1
      %v2939 = vsel %vm1249, %v2936, %v2938
      %v2940 = vrot.slane %v2346, 1
      %v2941 = vsel %vm1249, %v2938, %v2940
      %v2942 = vrot.slane %v2347, 1
      %v2943 = vsel %vm1249, %v2940, %v2942
      %v2944 = vrot.slane %v2348, 1
      %v2945 = vsel %vm1249, %v2942, %v2944
      %v2946 = vrot.slane %v2349, 1
      %v2947 = vsel %vm1249, %v2944, %v2946
      %v2948 = vrot.slane %v2350, 1
      %v2949 = vsel %vm1249, %v2946, %v2948
      %v2950 = vrot.slane %v2351, 1
      %v2951 = vsel %vm1249, %v2948, %v2950
      %v2952 = vrot.slane %v2352, 1
      %v2953 = vsel %vm1249, %v2950, %v2952
      %v2954 = vrot.slane %v2353, 1
      %v2955 = vsel %vm1249, %v2952, %v2954
      %v2956 = vrot.slane %v2354, 1
      %v2957 = vsel %vm1249, %v2954, %v2956
      %v2958 = vrot.slane %v2355, 1
      %v2959 = vsel %vm1249, %v2956, %v2958
      %v2960 = vrot.slane %v2356, 1
      %v2961 = vsel %vm1249, %v2958, %v2960
      %v2962 = vrot.slane %v2357, 1
      %v2963 = vsel %vm1249, %v2960, %v2962
      %v2964 = vrot.slane %v2358, 1
      %v2965 = vsel %vm1249, %v2962, %v2964
      %v2966 = vrot.slane %v2359, 1
      %v2967 = vsel %vm1249, %v2964, %v2966
      %v2968 = vrot.slane %v2360, 1
      %v2969 = vsel %vm1249, %v2966, %v2968
      %v2970 = vrot.slane %v2361, 1
      %v2971 = vsel %vm1249, %v2968, %v2970
      %v2972 = vrot.slane %v2362, 1
      %v2973 = vsel %vm1249, %v2970, %v2972
      %v3014 = vunpack.c.l.b16 %v2906
      %v3015 = vunpack.c.l.b16 %v2907
      %v3016 = vunpack.c.l.b16 %v2908
      %v3017 = vunpack.c.l.b16 %v2909
      %v3018 = vunpack.c.l.b16 %v2910
      %v3019 = vunpack.c.l.b16 %v2911
      %v3020 = vunpack.c.l.b16 %v2912
      %v3021 = vunpack.c.l.b16 %v2913
      %v3022 = vunpack.c.l.b16 %v2914
      %v3023 = vunpack.c.l.b16 %v2915
      %v3024 = vunpack.c.l.b16 %v2916
      %v3025 = vunpack.c.l.b16 %v2917
      %v3026 = vunpack.c.l.b16 %v2918
      %v3027 = vunpack.c.l.b16 %v2919
      %v3028 = vunpack.c.l.b16 %v2920
      %v3029 = vunpack.c.l.b16 %v2921
      %v3030 = vpack.c.b16 %v3015, %v3014
      %v3031 = vpack.c.b16 %v3017, %v3016
      %v3032 = vpack.c.b16 %v3019, %v3018
      %v3033 = vpack.c.b16 %v3021, %v3020
      %v3034 = vpack.c.b16 %v3023, %v3022
      %v3035 = vpack.c.b16 %v3025, %v3024
      %v3036 = vpack.c.b16 %v3027, %v3026
      %v3037 = vpack.c.b16 %v3029, %v3028
      %3046 = vmatprep.subr.bf16.mxu0 0
      %3047 = vmatpush1.bf16.msra.mxu0 %v3030
      %3048 = vmatprep.subr.bf16.mxu0 0
      %3049 = vmatpush1.bf16.msra.mxu0 %v3031
      %3050 = vmatprep.subr.bf16.mxu0 0
      %3051 = vmatpush1.bf16.msra.mxu0 %v3032
      %3052 = vmatprep.subr.bf16.mxu0 0
      %3053 = vmatpush1.bf16.msra.mxu0 %v3033
      %3054 = vmatprep.subr.bf16.mxu0 0
      %3055 = vmatpush1.bf16.msra.mxu0 %v3034
      %3056 = vmatprep.subr.bf16.mxu0 0
      %3057 = vmatpush1.bf16.msra.mxu0 %v3035
      %3058 = vmatprep.subr.bf16.mxu0 0
      %3059 = vmatpush1.bf16.msra.mxu0 %v3036
      %3060 = vmatprep.subr.bf16.mxu0 0
      %3061 = vmatpush1.bf16.msra.mxu0 %v3037
      %3062 = vmatprep.subr.bf16.mxu0 0
      %3063 = vmatpush1.bf16.msra.mxu0 0
      %3064 = vmatprep.subr.bf16.mxu0 0
      %3065 = vmatpush1.bf16.msra.mxu0 0
      %3066 = vmatprep.subr.bf16.mxu0 0
      %3067 = vmatpush1.bf16.msra.mxu0 0
      %3068 = vmatprep.subr.bf16.mxu0 0
      %3069 = vmatpush1.bf16.msra.mxu0 0
      %3070 = vmatprep.subr.bf16.mxu0 0
      %3071 = vmatpush1.bf16.msra.mxu0 0
      %3072 = vmatprep.subr.bf16.mxu0 0
      %3073 = vmatpush1.bf16.msra.mxu0 0
      %3074 = vmatprep.subr.bf16.mxu0 0
      %3075 = vmatpush1.bf16.msra.mxu0 0
      %3076 = vmatprep.subr.bf16.mxu0 0
      %3077 = vmatpush1.bf16.msra.mxu0 0
      %3078 = vmatprep.mubr.bf16.mxu0 0
      %3079 = vmatmul.mubr.bf16.gmra.mrb[0].mxu0 %v2927
      %v3080 = vpop.f32.mrb[0].mxu0
      %v3081 = vadd.f32 0.0, %v3080
      %v3082 = vpop.f32.mrb[0].mxu0
      %v3083 = vpop.f32.mrb[0].mxu0
      %v3084 = vadd.f32 0.0, %v3083
      %v3085 = vpop.f32.mrb[0].mxu0
      %3086 = vmatprep.mubr.bf16.mxu0 0
      %3087 = vmatmul.mubr.bf16.gmra.mrb[0].mxu0 %v2929
      %v3088 = vpop.f32.mrb[0].mxu0
      %v3089 = vadd.f32 0.0, %v3088
      %v3090 = vpop.f32.mrb[0].mxu0
      %v3091 = vpop.f32.mrb[0].mxu0
      %v3092 = vadd.f32 0.0, %v3091
      %v3093 = vpop.f32.mrb[0].mxu0
      %3094 = vmatprep.mubr.bf16.mxu0 0
      %3095 = vmatmul.mubr.bf16.gmra.mrb[0].mxu0 %v2931
      %v3096 = vpop.f32.mrb[0].mxu0
      %v3097 = vadd.f32 0.0, %v3096
      %v3098 = vpop.f32.mrb[0].mxu0
      %v3099 = vpop.f32.mrb[0].mxu0
      %v3100 = vadd.f32 0.0, %v3099
      %v3101 = vpop.f32.mrb[0].mxu0
      %3102 = vmatprep.mubr.bf16.mxu0 0
      %3103 = vmatmul.mubr.bf16.gmra.mrb[0].mxu0 %v2933
      %v3104 = vpop.f32.mrb[0].mxu0
      %v3105 = vadd.f32 0.0, %v3104
      %v3106 = vpop.f32.mrb[0].mxu0
      %v3107 = vpop.f32.mrb[0].mxu0
      %v3108 = vadd.f32 0.0, %v3107
      %v3109 = vpop.f32.mrb[0].mxu0
      %3110 = vmatprep.mubr.bf16.mxu0 0
      %3111 = vmatmul.mubr.bf16.gmra.mrb[0].mxu0 %v2935
      %v3112 = vpop.f32.mrb[0].mxu0
      %v3113 = vadd.f32 0.0, %v3112
      %v3114 = vpop.f32.mrb[0].mxu0
      %v3115 = vpop.f32.mrb[0].mxu0
      %v3116 = vadd.f32 0.0, %v3115
      %v3117 = vpop.f32.mrb[0].mxu0
      %3118 = vmatprep.mubr.bf16.mxu0 0
      %3119 = vmatmul.mubr.bf16.gmra.mrb[0].mxu0 %v2937
      %v3120 = vpop.f32.mrb[0].mxu0
      %v3121 = vadd.f32 0.0, %v3120
      %v3122 = vpop.f32.mrb[0].mxu0
      %v3123 = vpop.f32.mrb[0].mxu0
      %v3124 = vadd.f32 0.0, %v3123
      %v3125 = vpop.f32.mrb[0].mxu0
      %3126 = vmatprep.mubr.bf16.mxu0 0
      %3127 = vmatmul.mubr.bf16.gmra.mrb[0].mxu0 %v2939
      %v3128 = vpop.f32.mrb[0].mxu0
      %v3129 = vadd.f32 0.0, %v3128
      %v3130 = vpop.f32.mrb[0].mxu0
      %v3131 = vpop.f32.mrb[0].mxu0
      %v3132 = vadd.f32 0.0, %v3131
      %v3133 = vpop.f32.mrb[0].mxu0
      %3134 = vmatprep.mubr.bf16.mxu0 0
      %3135 = vmatmul.mubr.bf16.gmra.mrb[0].mxu0 %v2941
      %v3136 = vpop.f32.mrb[0].mxu0
      %v3137 = vadd.f32 0.0, %v3136
      %v3138 = vpop.f32.mrb[0].mxu0
      %v3139 = vpop.f32.mrb[0].mxu0
      %v3140 = vadd.f32 0.0, %v3139
      %v3141 = vpop.f32.mrb[0].mxu0
      %3142 = vmatprep.mubr.bf16.mxu0 0
      %3143 = vmatmul.mubr.bf16.gmra.mrb[0].mxu0 %v2943
      %v3144 = vpop.f32.mrb[0].mxu0
      %v3145 = vadd.f32 0.0, %v3144
      %v3146 = vpop.f32.mrb[0].mxu0
      %v3147 = vpop.f32.mrb[0].mxu0
      %v3148 = vadd.f32 0.0, %v3147
      %v3149 = vpop.f32.mrb[0].mxu0
      %3150 = vmatprep.mubr.bf16.mxu0 0
      %3151 = vmatmul.mubr.bf16.gmra.mrb[0].mxu0 %v2945
      %v3152 = vpop.f32.mrb[0].mxu0
      %v3153 = vadd.f32 0.0, %v3152
      %v3154 = vpop.f32.mrb[0].mxu0
      %v3155 = vpop.f32.mrb[0].mxu0
      %v3156 = vadd.f32 0.0, %v3155
      %v3157 = vpop.f32.mrb[0].mxu0
      %3158 = vmatprep.mubr.bf16.mxu0 0
      %3159 = vmatmul.mubr.bf16.gmra.mrb[0].mxu0 %v2947
      %v3160 = vpop.f32.mrb[0].mxu0
      %v3161 = vadd.f32 0.0, %v3160
      %v3162 = vpop.f32.mrb[0].mxu0
      %v3163 = vpop.f32.mrb[0].mxu0
      %v3164 = vadd.f32 0.0, %v3163
      %v3165 = vpop.f32.mrb[0].mxu0
      %3166 = vmatprep.mubr.bf16.mxu0 0
      %3167 = vmatmul.mubr.bf16.gmra.mrb[0].mxu0 %v2949
      %v3168 = vpop.f32.mrb[0].mxu0
      %v3169 = vadd.f32 0.0, %v3168
      %v3170 = vpop.f32.mrb[0].mxu0
      %v3171 = vpop.f32.mrb[0].mxu0
      %v3172 = vadd.f32 0.0, %v3171
      %v3173 = vpop.f32.mrb[0].mxu0
      %3174 = vmatprep.mubr.bf16.mxu0 0
      %3175 = vmatmul.mubr.bf16.gmra.mrb[0].mxu0 %v2951
      %v3176 = vpop.f32.mrb[0].mxu0
      %v3177 = vadd.f32 0.0, %v3176
      %v3178 = vpop.f32.mrb[0].mxu0
      %v3179 = vpop.f32.mrb[0].mxu0
      %v3180 = vadd.f32 0.0, %v3179
      %v3181 = vpop.f32.mrb[0].mxu0
      %3182 = vmatprep.mubr.bf16.mxu0 0
      %3183 = vmatmul.mubr.bf16.gmra.mrb[0].mxu0 %v2953
      %v3184 = vpop.f32.mrb[0].mxu0
      %v3185 = vadd.f32 0.0, %v3184
      %v3186 = vpop.f32.mrb[0].mxu0
      %v3187 = vpop.f32.mrb[0].mxu0
      %v3188 = vadd.f32 0.0, %v3187
      %v3189 = vpop.f32.mrb[0].mxu0
      %3190 = vmatprep.mubr.bf16.mxu0 0
      %3191 = vmatmul.mubr.bf16.gmra.mrb[0].mxu0 %v2955
      %v3192 = vpop.f32.mrb[0].mxu0
      %v3193 = vadd.f32 0.0, %v3192
      %v3194 = vpop.f32.mrb[0].mxu0
      %v3195 = vpop.f32.mrb[0].mxu0
      %v3196 = vadd.f32 0.0, %v3195
      %v3197 = vpop.f32.mrb[0].mxu0
      %3198 = vmatprep.mubr.bf16.mxu0 0
      %3199 = vmatmul.mubr.bf16.gmra.mrb[0].mxu0 %v2957
      %v3200 = vpop.f32.mrb[0].mxu0
      %v3201 = vadd.f32 0.0, %v3200
      %v3202 = vpop.f32.mrb[0].mxu0
      %v3203 = vpop.f32.mrb[0].mxu0
      %v3204 = vadd.f32 0.0, %v3203
      %v3205 = vpop.f32.mrb[0].mxu0
      %3206 = vmatprep.mubr.bf16.mxu0 0
      %3207 = vmatmul.mubr.bf16.gmra.mrb[0].mxu0 %v2959
      %v3208 = vpop.f32.mrb[0].mxu0
      %v3209 = vadd.f32 0.0, %v3208
      %v3210 = vpop.f32.mrb[0].mxu0
      %v3211 = vpop.f32.mrb[0].mxu0
      %v3212 = vadd.f32 0.0, %v3211
      %v3213 = vpop.f32.mrb[0].mxu0
      %3214 = vmatprep.mubr.bf16.mxu0 0
      %3215 = vmatmul.mubr.bf16.gmra.mrb[0].mxu0 %v2961
      %v3216 = vpop.f32.mrb[0].mxu0
      %v3217 = vadd.f32 0.0, %v3216
      %v3218 = vpop.f32.mrb[0].mxu0
      %v3219 = vpop.f32.mrb[0].mxu0
      %v3220 = vadd.f32 0.0, %v3219
      %v3221 = vpop.f32.mrb[0].mxu0
      %3222 = vmatprep.mubr.bf16.mxu0 0
      %3223 = vmatmul.mubr.bf16.gmra.mrb[0].mxu0 %v2963
      %v3224 = vpop.f32.mrb[0].mxu0
      %v3225 = vadd.f32 0.0, %v3224
      %v3226 = vpop.f32.mrb[0].mxu0
      %v3227 = vpop.f32.mrb[0].mxu0
      %v3228 = vadd.f32 0.0, %v3227
      %v3229 = vpop.f32.mrb[0].mxu0
      %3230 = vmatprep.mubr.bf16.mxu0 0
      %3231 = vmatmul.mubr.bf16.gmra.mrb[0].mxu0 %v2965
      %v3232 = vpop.f32.mrb[0].mxu0
      %v3233 = vadd.f32 0.0, %v3232
      %v3234 = vpop.f32.mrb[0].mxu0
      %v3235 = vpop.f32.mrb[0].mxu0
      %v3236 = vadd.f32 0.0, %v3235
      %v3237 = vpop.f32.mrb[0].mxu0
      %3238 = vmatprep.mubr.bf16.mxu0 0
      %3239 = vmatmul.mubr.bf16.gmra.mrb[0].mxu0 %v2967
      %v3240 = vpop.f32.mrb[0].mxu0
      %v3241 = vadd.f32 0.0, %v3240
      %v3242 = vpop.f32.mrb[0].mxu0
      %v3243 = vpop.f32.mrb[0].mxu0
      %v3244 = vadd.f32 0.0, %v3243
      %v3245 = vpop.f32.mrb[0].mxu0
      %3246 = vmatprep.mubr.bf16.mxu0 0
      %3247 = vmatmul.mubr.bf16.gmra.mrb[0].mxu0 %v2969
      %v3248 = vpop.f32.mrb[0].mxu0
      %v3249 = vadd.f32 0.0, %v3248
      %v3250 = vpop.f32.mrb[0].mxu0
      %v3251 = vpop.f32.mrb[0].mxu0
      %v3252 = vadd.f32 0.0, %v3251
      %v3253 = vpop.f32.mrb[0].mxu0
      %3254 = vmatprep.mubr.bf16.mxu0 0
      %3255 = vmatmul.mubr.bf16.gmra.mrb[0].mxu0 %v2971
      %v3256 = vpop.f32.mrb[0].mxu0
      %v3257 = vadd.f32 0.0, %v3256
      %v3258 = vpop.f32.mrb[0].mxu0
      %v3259 = vpop.f32.mrb[0].mxu0
      %v3260 = vadd.f32 0.0, %v3259
      %v3261 = vpop.f32.mrb[0].mxu0
      %3262 = vmatprep.mubr.bf16.mxu0 0
      %3263 = vmatmul.mubr.bf16.gmra.mrb[0].mxu0 %v2973
      %v3264 = vpop.f32.mrb[0].mxu0
      %v3265 = vadd.f32 0.0, %v3264
      %v3266 = vpop.f32.mrb[0].mxu0
      %v3267 = vpop.f32.mrb[0].mxu0
      %v3268 = vadd.f32 0.0, %v3267
      %v3269 = vpop.f32.mrb[0].mxu0
      %3270 = vdwg.mxu0
      %v3271 = vadd.f32 %v2856, %v3081
      %v3272 = vadd.f32 %v2857, %v3084
      %v3273 = vadd.f32 %v2858, %v3089
      %v3274 = vadd.f32 %v2859, %v3092
      %v3275 = vadd.f32 %v2860, %v3097
      %v3276 = vadd.f32 %v2861, %v3100
      %v3277 = vadd.f32 %v2862, %v3105
      %v3278 = vadd.f32 %v2863, %v3108
      %v3279 = vadd.f32 %v2864, %v3113
      %v3280 = vadd.f32 %v2865, %v3116
      %v3281 = vadd.f32 %v2866, %v3121
      %v3282 = vadd.f32 %v2867, %v3124
      %v3283 = vadd.f32 %v2868, %v3129
      %v3284 = vadd.f32 %v2869, %v3132
      %v3285 = vadd.f32 %v2870, %v3137
      %v3286 = vadd.f32 %v2871, %v3140
      %v3287 = vadd.f32 %v2872, %v3145
      %v3288 = vadd.f32 %v2873, %v3148
      %v3289 = vadd.f32 %v2874, %v3153
      %v3290 = vadd.f32 %v2875, %v3156
      %v3291 = vadd.f32 %v2876, %v3161
      %v3292 = vadd.f32 %v2877, %v3164
      %v3293 = vadd.f32 %v2878, %v3169
      %v3294 = vadd.f32 %v2879, %v3172
      %v3295 = vadd.f32 %v2880, %v3177
      %v3296 = vadd.f32 %v2881, %v3180
      %v3297 = vadd.f32 %v2882, %v3185
      %v3298 = vadd.f32 %v2883, %v3188
      %v3299 = vadd.f32 %v2884, %v3193
      %v3300 = vadd.f32 %v2885, %v3196
      %v3301 = vadd.f32 %v2886, %v3201
      %v3302 = vadd.f32 %v2887, %v3204
      %v3303 = vadd.f32 %v2888, %v3209
      %v3304 = vadd.f32 %v2889, %v3212
      %v3305 = vadd.f32 %v2890, %v3217
      %v3306 = vadd.f32 %v2891, %v3220
      %v3307 = vadd.f32 %v2892, %v3225
      %v3308 = vadd.f32 %v2893, %v3228
      %v3309 = vadd.f32 %v2894, %v3233
      %v3310 = vadd.f32 %v2895, %v3236
      %v3311 = vadd.f32 %v2896, %v3241
      %v3312 = vadd.f32 %v2897, %v3244
      %v3313 = vadd.f32 %v2898, %v3249
      %v3314 = vadd.f32 %v2899, %v3252
      %v3315 = vadd.f32 %v2900, %v3257
      %v3316 = vadd.f32 %v2901, %v3260
      %v3317 = vadd.f32 %v2902, %v3265
      %v3318 = vadd.f32 %v2903, %v3268
      %v3319 = vld [vmem:[%s219 + $0x18] sm:$0xf]
      %v3320 = vld [vmem:[%s219 + $0x1c] sm:$0xf]
      %v3321 = vld [vmem:[%s219 + $0x20] sm:$0xf]
      %v3322 = vld [vmem:[%s219 + $0x24] sm:$0xf]
      %v3323 = vld [vmem:[%s219 + $0x28] sm:$0xf]
      %v3324 = vld [vmem:[%s219 + $0x2c] sm:$0xf]
      %v3325 = vld [vmem:[%s219 + $0x30] sm:$0xf]
      %v3326 = vld [vmem:[%s219 + $0x34] sm:$0xf]
      %v3327 = vld [vmem:[%s219 + $0x38] sm:$0xf]
      %v3328 = vld [vmem:[%s219 + $0x3c] sm:$0xf]
      %v3329 = vld [vmem:[%s219 + $0x40] sm:$0xf]
      %v3330 = vld [vmem:[%s219 + $0x44] sm:$0xf]
      %v3331 = vld [vmem:[%s219 + $0x48] sm:$0xf]
      %v3332 = vld [vmem:[%s219 + $0x4c] sm:$0xf]
      %v3333 = vld [vmem:[%s219 + $0x50] sm:$0xf]
      %v3334 = vld [vmem:[%s219 + $0x54] sm:$0xf]
      %v3335 = vld [vmem:[%s219 + $0x58] sm:$0xf]
      %v3336 = vld [vmem:[%s219 + $0x5c] sm:$0xf]
      %v3337 = vld [vmem:[%s219 + $0x60] sm:$0xf]
      %v3338 = vld [vmem:[%s219 + $0x64] sm:$0xf]
      %v3339 = vld [vmem:[%s219 + $0x68] sm:$0xf]
      %v3340 = vld [vmem:[%s219 + $0x6c] sm:$0xf]
      %v3341 = vld [vmem:[%s219 + $0x70] sm:$0xf]
      %v3342 = vld [vmem:[%s219 + $0x74] sm:$0xf]
      %v3343 = vld [vmem:[%s219 + $0x78] sm:$0xf]
      %v3344 = vld [vmem:[%s219 + $0x7c] sm:$0xf]
      %v3345 = vld [vmem:[%s219 + $0x80] sm:$0xf]
      %v3346 = vld [vmem:[%s219 + $0x84] sm:$0xf]
      %v3347 = vld [vmem:[%s219 + $0x88] sm:$0xf]
      %v3348 = vld [vmem:[%s219 + $0x8c] sm:$0xf]
      %v3349 = vld [vmem:[%s219 + $0x90] sm:$0xf]
      %v3350 = vld [vmem:[%s219 + $0x94] sm:$0xf]
      %v3351 = vld [vmem:[%s219 + $0x98] sm:$0xf]
      %v3352 = vld [vmem:[%s219 + $0x9c] sm:$0xf]
      %v3353 = vld [vmem:[%s219 + $0xa0] sm:$0xf]
      %v3354 = vld [vmem:[%s219 + $0xa4] sm:$0xf]
      %v3355 = vld [vmem:[%s219 + $0xa8] sm:$0xf]
      %v3356 = vld [vmem:[%s219 + $0xac] sm:$0xf]
      %v3357 = vld [vmem:[%s219 + $0xb0] sm:$0xf]
      %v3358 = vld [vmem:[%s219 + $0xb4] sm:$0xf]
      %v3359 = vld [vmem:[%s219 + $0xb8] sm:$0xf]
      %v3360 = vld [vmem:[%s219 + $0xbc] sm:$0xf]
      %v3361 = vld [vmem:[%s219 + $0xc0] sm:$0xf]
      %v3362 = vld [vmem:[%s219 + $0xc4] sm:$0xf]
      %v3363 = vld [vmem:[%s219 + $0xc8] sm:$0xf]
      %v3364 = vld [vmem:[%s219 + $0xcc] sm:$0xf]
      %v3365 = vld [vmem:[%s219 + $0xd0] sm:$0xf]
      %v3366 = vld [vmem:[%s219 + $0xd4] sm:$0xf]
      %s3367 = scalar_lea.vmem %s1, 384
      %v3368 = vld [vmem:[%s3367] sm:$0xf]
      %v3369 = vld [vmem:[%s3367 + $0x4] sm:$0xf]
      %v3370 = vld [vmem:[%s3367 + $0x8] sm:$0xf]
      %v3371 = vld [vmem:[%s3367 + $0xc] sm:$0xf]
      %v3372 = vld [vmem:[%s3367 + $0x10] sm:$0xf]
      %v3373 = vld [vmem:[%s3367 + $0x14] sm:$0xf]
      %v3374 = vld [vmem:[%s3367 + $0x18] sm:$0xf]
      %v3375 = vld [vmem:[%s3367 + $0x1c] sm:$0xf]
      %v3376 = vld [vmem:[%s3367 + $0x20] sm:$0xf]
      %v3377 = vld [vmem:[%s3367 + $0x24] sm:$0xf]
      %v3378 = vld [vmem:[%s3367 + $0x28] sm:$0xf]
      %v3379 = vld [vmem:[%s3367 + $0x2c] sm:$0xf]
      %v3380 = vld [vmem:[%s3367 + $0x30] sm:$0xf]
      %v3381 = vld [vmem:[%s3367 + $0x34] sm:$0xf]
      %v3382 = vld [vmem:[%s3367 + $0x38] sm:$0xf]
      %v3383 = vld [vmem:[%s3367 + $0x3c] sm:$0xf]
      %v3432 = vunpack.c.l.b16 %v3319
      %v3433 = vunpack.c.l.b16 %v3320
      %v3434 = vunpack.c.l.b16 %v3321
      %v3435 = vunpack.c.l.b16 %v3322
      %v3436 = vunpack.c.l.b16 %v3323
      %v3437 = vunpack.c.l.b16 %v3324
      %v3438 = vunpack.c.l.b16 %v3325
      %v3439 = vunpack.c.l.b16 %v3326
      %v3440 = vunpack.c.l.b16 %v3327
      %v3441 = vunpack.c.l.b16 %v3328
      %v3442 = vunpack.c.l.b16 %v3329
      %v3443 = vunpack.c.l.b16 %v3330
      %v3444 = vunpack.c.l.b16 %v3331
      %v3445 = vunpack.c.l.b16 %v3332
      %v3446 = vunpack.c.l.b16 %v3333
      %v3447 = vunpack.c.l.b16 %v3334
      %v3448 = vunpack.c.l.b16 %v3335
      %v3449 = vunpack.c.l.b16 %v3336
      %v3450 = vunpack.c.l.b16 %v3337
      %v3451 = vunpack.c.l.b16 %v3338
      %v3452 = vunpack.c.l.b16 %v3339
      %v3453 = vunpack.c.l.b16 %v3340
      %v3454 = vunpack.c.l.b16 %v3341
      %v3455 = vunpack.c.l.b16 %v3342
      %v3456 = vunpack.c.l.b16 %v3343
      %v3457 = vunpack.c.l.b16 %v3344
      %v3458 = vunpack.c.l.b16 %v3345
      %v3459 = vunpack.c.l.b16 %v3346
      %v3460 = vunpack.c.l.b16 %v3347
      %v3461 = vunpack.c.l.b16 %v3348
      %v3462 = vunpack.c.l.b16 %v3349
      %v3463 = vunpack.c.l.b16 %v3350
      %v3464 = vunpack.c.l.b16 %v3351
      %v3465 = vunpack.c.l.b16 %v3352
      %v3466 = vunpack.c.l.b16 %v3353
      %v3467 = vunpack.c.l.b16 %v3354
      %v3468 = vunpack.c.l.b16 %v3355
      %v3469 = vunpack.c.l.b16 %v3356
      %v3470 = vunpack.c.l.b16 %v3357
      %v3471 = vunpack.c.l.b16 %v3358
      %v3472 = vunpack.c.l.b16 %v3359
      %v3473 = vunpack.c.l.b16 %v3360
      %v3474 = vunpack.c.l.b16 %v3361
      %v3475 = vunpack.c.l.b16 %v3362
      %v3476 = vunpack.c.l.b16 %v3363
      %v3477 = vunpack.c.l.b16 %v3364
      %v3478 = vunpack.c.l.b16 %v3365
      %v3479 = vunpack.c.l.b16 %v3366
      %v3480 = vpack.c.b16 %v3433, %v3432
      %v3481 = vpack.c.b16 %v3435, %v3434
      %v3482 = vpack.c.b16 %v3437, %v3436
      %v3483 = vpack.c.b16 %v3439, %v3438
      %v3484 = vpack.c.b16 %v3441, %v3440
      %v3485 = vpack.c.b16 %v3443, %v3442
      %v3486 = vpack.c.b16 %v3445, %v3444
      %v3487 = vpack.c.b16 %v3447, %v3446
      %v3488 = vpack.c.b16 %v3449, %v3448
      %v3489 = vpack.c.b16 %v3451, %v3450
      %v3490 = vpack.c.b16 %v3453, %v3452
      %v3491 = vpack.c.b16 %v3455, %v3454
      %v3492 = vpack.c.b16 %v3457, %v3456
      %v3493 = vpack.c.b16 %v3459, %v3458
      %v3494 = vpack.c.b16 %v3461, %v3460
      %v3495 = vpack.c.b16 %v3463, %v3462
      %v3496 = vpack.c.b16 %v3465, %v3464
      %v3497 = vpack.c.b16 %v3467, %v3466
      %v3498 = vpack.c.b16 %v3469, %v3468
      %v3499 = vpack.c.b16 %v3471, %v3470
      %v3500 = vpack.c.b16 %v3473, %v3472
      %v3501 = vpack.c.b16 %v3475, %v3474
      %v3502 = vpack.c.b16 %v3477, %v3476
      %v3503 = vpack.c.b16 %v3479, %v3478
      %v3544 = vunpack.c.l.b16 %v3368
      %v3545 = vunpack.c.l.b16 %v3369
      %v3546 = vunpack.c.l.b16 %v3370
      %v3547 = vunpack.c.l.b16 %v3371
      %v3548 = vunpack.c.l.b16 %v3372
      %v3549 = vunpack.c.l.b16 %v3373
      %v3550 = vunpack.c.l.b16 %v3374
      %v3551 = vunpack.c.l.b16 %v3375
      %v3552 = vunpack.c.l.b16 %v3376
      %v3553 = vunpack.c.l.b16 %v3377
      %v3554 = vunpack.c.l.b16 %v3378
      %v3555 = vunpack.c.l.b16 %v3379
      %v3556 = vunpack.c.l.b16 %v3380
      %v3557 = vunpack.c.l.b16 %v3381
      %v3558 = vunpack.c.l.b16 %v3382
      %v3559 = vunpack.c.l.b16 %v3383
      %v3560 = vpack.c.b16 %v3545, %v3544
      %v3561 = vpack.c.b16 %v3547, %v3546
      %v3562 = vpack.c.b16 %v3549, %v3548
      %v3563 = vpack.c.b16 %v3551, %v3550
      %v3564 = vpack.c.b16 %v3553, %v3552
      %v3565 = vpack.c.b16 %v3555, %v3554
      %v3566 = vpack.c.b16 %v3557, %v3556
      %v3567 = vpack.c.b16 %v3559, %v3558
      %3576 = vmatprep.subr.bf16.mxu0 0
      %3577 = vmatpush1.bf16.msra.mxu0 %v3560
      %3578 = vmatprep.subr.bf16.mxu0 0
      %3579 = vmatpush1.bf16.msra.mxu0 %v3561
      %3580 = vmatprep.subr.bf16.mxu0 0
      %3581 = vmatpush1.bf16.msra.mxu0 %v3562
      %3582 = vmatprep.subr.bf16.mxu0 0
      %3583 = vmatpush1.bf16.msra.mxu0 %v3563
      %3584 = vmatprep.subr.bf16.mxu0 0
      %3585 = vmatpush1.bf16.msra.mxu0 %v3564
      %3586 = vmatprep.subr.bf16.mxu0 0
      %3587 = vmatpush1.bf16.msra.mxu0 %v3565
      %3588 = vmatprep.subr.bf16.mxu0 0
      %3589 = vmatpush1.bf16.msra.mxu0 %v3566
      %3590 = vmatprep.subr.bf16.mxu0 0
      %3591 = vmatpush1.bf16.msra.mxu0 %v3567
      %3592 = vmatprep.subr.bf16.mxu0 0
      %3593 = vmatpush1.bf16.msra.mxu0 0
      %3594 = vmatprep.subr.bf16.mxu0 0
      %3595 = vmatpush1.bf16.msra.mxu0 0
      %3596 = vmatprep.subr.bf16.mxu0 0
      %3597 = vmatpush1.bf16.msra.mxu0 0
      %3598 = vmatprep.subr.bf16.mxu0 0
      %3599 = vmatpush1.bf16.msra.mxu0 0
      %3600 = vmatprep.subr.bf16.mxu0 0
      %3601 = vmatpush1.bf16.msra.mxu0 0
      %3602 = vmatprep.subr.bf16.mxu0 0
      %3603 = vmatpush1.bf16.msra.mxu0 0
      %3604 = vmatprep.subr.bf16.mxu0 0
      %3605 = vmatpush1.bf16.msra.mxu0 0
      %3606 = vmatprep.subr.bf16.mxu0 0
      %3607 = vmatpush1.bf16.msra.mxu0 0
      %3608 = vmatprep.mubr.bf16.mxu0 0
      %3609 = vmatmul.mubr.bf16.gmra.mrb[0].mxu0 %v3480
      %v3610 = vpop.f32.mrb[0].mxu0
      %v3611 = vadd.f32 0.0, %v3610
      %v3612 = vpop.f32.mrb[0].mxu0
      %v3613 = vpop.f32.mrb[0].mxu0
      %v3614 = vadd.f32 0.0, %v3613
      %v3615 = vpop.f32.mrb[0].mxu0
      %3616 = vmatprep.mubr.bf16.mxu0 0
      %3617 = vmatmul.mubr.bf16.gmra.mrb[0].mxu0 %v3481
      %v3618 = vpop.f32.mrb[0].mxu0
      %v3619 = vadd.f32 0.0, %v3618
      %v3620 = vpop.f32.mrb[0].mxu0
      %v3621 = vpop.f32.mrb[0].mxu0
      %v3622 = vadd.f32 0.0, %v3621
      %v3623 = vpop.f32.mrb[0].mxu0
      %3624 = vmatprep.mubr.bf16.mxu0 0
      %3625 = vmatmul.mubr.bf16.gmra.mrb[0].mxu0 %v3482
      %v3626 = vpop.f32.mrb[0].mxu0
      %v3627 = vadd.f32 0.0, %v3626
      %v3628 = vpop.f32.mrb[0].mxu0
      %v3629 = vpop.f32.mrb[0].mxu0
      %v3630 = vadd.f32 0.0, %v3629
      %v3631 = vpop.f32.mrb[0].mxu0
      %3632 = vmatprep.mubr.bf16.mxu0 0
      %3633 = vmatmul.mubr.bf16.gmra.mrb[0].mxu0 %v3483
      %v3634 = vpop.f32.mrb[0].mxu0
      %v3635 = vadd.f32 0.0, %v3634
      %v3636 = vpop.f32.mrb[0].mxu0
      %v3637 = vpop.f32.mrb[0].mxu0
      %v3638 = vadd.f32 0.0, %v3637
      %v3639 = vpop.f32.mrb[0].mxu0
      %3640 = vmatprep.mubr.bf16.mxu0 0
      %3641 = vmatmul.mubr.bf16.gmra.mrb[0].mxu0 %v3484
      %v3642 = vpop.f32.mrb[0].mxu0
      %v3643 = vadd.f32 0.0, %v3642
      %v3644 = vpop.f32.mrb[0].mxu0
      %v3645 = vpop.f32.mrb[0].mxu0
      %v3646 = vadd.f32 0.0, %v3645
      %v3647 = vpop.f32.mrb[0].mxu0
      %3648 = vmatprep.mubr.bf16.mxu0 0
      %3649 = vmatmul.mubr.bf16.gmra.mrb[0].mxu0 %v3485
      %v3650 = vpop.f32.mrb[0].mxu0
      %v3651 = vadd.f32 0.0, %v3650
      %v3652 = vpop.f32.mrb[0].mxu0
      %v3653 = vpop.f32.mrb[0].mxu0
      %v3654 = vadd.f32 0.0, %v3653
      %v3655 = vpop.f32.mrb[0].mxu0
      %3656 = vmatprep.mubr.bf16.mxu0 0
      %3657 = vmatmul.mubr.bf16.gmra.mrb[0].mxu0 %v3486
      %v3658 = vpop.f32.mrb[0].mxu0
      %v3659 = vadd.f32 0.0, %v3658
      %v3660 = vpop.f32.mrb[0].mxu0
      %v3661 = vpop.f32.mrb[0].mxu0
      %v3662 = vadd.f32 0.0, %v3661
      %v3663 = vpop.f32.mrb[0].mxu0
      %3664 = vmatprep.mubr.bf16.mxu0 0
      %3665 = vmatmul.mubr.bf16.gmra.mrb[0].mxu0 %v3487
      %v3666 = vpop.f32.mrb[0].mxu0
      %v3667 = vadd.f32 0.0, %v3666
      %v3668 = vpop.f32.mrb[0].mxu0
      %v3669 = vpop.f32.mrb[0].mxu0
      %v3670 = vadd.f32 0.0, %v3669
      %v3671 = vpop.f32.mrb[0].mxu0
      %3672 = vmatprep.mubr.bf16.mxu0 0
      %3673 = vmatmul.mubr.bf16.gmra.mrb[0].mxu0 %v3488
      %v3674 = vpop.f32.mrb[0].mxu0
      %v3675 = vadd.f32 0.0, %v3674
      %v3676 = vpop.f32.mrb[0].mxu0
      %v3677 = vpop.f32.mrb[0].mxu0
      %v3678 = vadd.f32 0.0, %v3677
      %v3679 = vpop.f32.mrb[0].mxu0
      %3680 = vmatprep.mubr.bf16.mxu0 0
      %3681 = vmatmul.mubr.bf16.gmra.mrb[0].mxu0 %v3489
      %v3682 = vpop.f32.mrb[0].mxu0
      %v3683 = vadd.f32 0.0, %v3682
      %v3684 = vpop.f32.mrb[0].mxu0
      %v3685 = vpop.f32.mrb[0].mxu0
      %v3686 = vadd.f32 0.0, %v3685
      %v3687 = vpop.f32.mrb[0].mxu0
      %3688 = vmatprep.mubr.bf16.mxu0 0
      %3689 = vmatmul.mubr.bf16.gmra.mrb[0].mxu0 %v3490
      %v3690 = vpop.f32.mrb[0].mxu0
      %v3691 = vadd.f32 0.0, %v3690
      %v3692 = vpop.f32.mrb[0].mxu0
      %v3693 = vpop.f32.mrb[0].mxu0
      %v3694 = vadd.f32 0.0, %v3693
      %v3695 = vpop.f32.mrb[0].mxu0
      %3696 = vmatprep.mubr.bf16.mxu0 0
      %3697 = vmatmul.mubr.bf16.gmra.mrb[0].mxu0 %v3491
      %v3698 = vpop.f32.mrb[0].mxu0
      %v3699 = vadd.f32 0.0, %v3698
      %v3700 = vpop.f32.mrb[0].mxu0
      %v3701 = vpop.f32.mrb[0].mxu0
      %v3702 = vadd.f32 0.0, %v3701
      %v3703 = vpop.f32.mrb[0].mxu0
      %3704 = vmatprep.mubr.bf16.mxu0 0
      %3705 = vmatmul.mubr.bf16.gmra.mrb[0].mxu0 %v3492
      %v3706 = vpop.f32.mrb[0].mxu0
      %v3707 = vadd.f32 0.0, %v3706
      %v3708 = vpop.f32.mrb[0].mxu0
      %v3709 = vpop.f32.mrb[0].mxu0
      %v3710 = vadd.f32 0.0, %v3709
      %v3711 = vpop.f32.mrb[0].mxu0
      %3712 = vmatprep.mubr.bf16.mxu0 0
      %3713 = vmatmul.mubr.bf16.gmra.mrb[0].mxu0 %v3493
      %v3714 = vpop.f32.mrb[0].mxu0
      %v3715 = vadd.f32 0.0, %v3714
      %v3716 = vpop.f32.mrb[0].mxu0
      %v3717 = vpop.f32.mrb[0].mxu0
      %v3718 = vadd.f32 0.0, %v3717
      %v3719 = vpop.f32.mrb[0].mxu0
      %3720 = vmatprep.mubr.bf16.mxu0 0
      %3721 = vmatmul.mubr.bf16.gmra.mrb[0].mxu0 %v3494
      %v3722 = vpop.f32.mrb[0].mxu0
      %v3723 = vadd.f32 0.0, %v3722
      %v3724 = vpop.f32.mrb[0].mxu0
      %v3725 = vpop.f32.mrb[0].mxu0
      %v3726 = vadd.f32 0.0, %v3725
      %v3727 = vpop.f32.mrb[0].mxu0
      %3728 = vmatprep.mubr.bf16.mxu0 0
      %3729 = vmatmul.mubr.bf16.gmra.mrb[0].mxu0 %v3495
      %v3730 = vpop.f32.mrb[0].mxu0
      %v3731 = vadd.f32 0.0, %v3730
      %v3732 = vpop.f32.mrb[0].mxu0
      %v3733 = vpop.f32.mrb[0].mxu0
      %v3734 = vadd.f32 0.0, %v3733
      %v3735 = vpop.f32.mrb[0].mxu0
      %3736 = vmatprep.mubr.bf16.mxu0 0
      %3737 = vmatmul.mubr.bf16.gmra.mrb[0].mxu0 %v3496
      %v3738 = vpop.f32.mrb[0].mxu0
      %v3739 = vadd.f32 0.0, %v3738
      %v3740 = vpop.f32.mrb[0].mxu0
      %v3741 = vpop.f32.mrb[0].mxu0
      %v3742 = vadd.f32 0.0, %v3741
      %v3743 = vpop.f32.mrb[0].mxu0
      %3744 = vmatprep.mubr.bf16.mxu0 0
      %3745 = vmatmul.mubr.bf16.gmra.mrb[0].mxu0 %v3497
      %v3746 = vpop.f32.mrb[0].mxu0
      %v3747 = vadd.f32 0.0, %v3746
      %v3748 = vpop.f32.mrb[0].mxu0
      %v3749 = vpop.f32.mrb[0].mxu0
      %v3750 = vadd.f32 0.0, %v3749
      %v3751 = vpop.f32.mrb[0].mxu0
      %3752 = vmatprep.mubr.bf16.mxu0 0
      %3753 = vmatmul.mubr.bf16.gmra.mrb[0].mxu0 %v3498
      %v3754 = vpop.f32.mrb[0].mxu0
      %v3755 = vadd.f32 0.0, %v3754
      %v3756 = vpop.f32.mrb[0].mxu0
      %v3757 = vpop.f32.mrb[0].mxu0
      %v3758 = vadd.f32 0.0, %v3757
      %v3759 = vpop.f32.mrb[0].mxu0
      %3760 = vmatprep.mubr.bf16.mxu0 0
      %3761 = vmatmul.mubr.bf16.gmra.mrb[0].mxu0 %v3499
      %v3762 = vpop.f32.mrb[0].mxu0
      %v3763 = vadd.f32 0.0, %v3762
      %v3764 = vpop.f32.mrb[0].mxu0
      %v3765 = vpop.f32.mrb[0].mxu0
      %v3766 = vadd.f32 0.0, %v3765
      %v3767 = vpop.f32.mrb[0].mxu0
      %3768 = vmatprep.mubr.bf16.mxu0 0
      %3769 = vmatmul.mubr.bf16.gmra.mrb[0].mxu0 %v3500
      %v3770 = vpop.f32.mrb[0].mxu0
      %v3771 = vadd.f32 0.0, %v3770
      %v3772 = vpop.f32.mrb[0].mxu0
      %v3773 = vpop.f32.mrb[0].mxu0
      %v3774 = vadd.f32 0.0, %v3773
      %v3775 = vpop.f32.mrb[0].mxu0
      %3776 = vmatprep.mubr.bf16.mxu0 0
      %3777 = vmatmul.mubr.bf16.gmra.mrb[0].mxu0 %v3501
      %v3778 = vpop.f32.mrb[0].mxu0
      %v3779 = vadd.f32 0.0, %v3778
      %v3780 = vpop.f32.mrb[0].mxu0
      %v3781 = vpop.f32.mrb[0].mxu0
      %v3782 = vadd.f32 0.0, %v3781
      %v3783 = vpop.f32.mrb[0].mxu0
      %3784 = vmatprep.mubr.bf16.mxu0 0
      %3785 = vmatmul.mubr.bf16.gmra.mrb[0].mxu0 %v3502
      %v3786 = vpop.f32.mrb[0].mxu0
      %v3787 = vadd.f32 0.0, %v3786
      %v3788 = vpop.f32.mrb[0].mxu0
      %v3789 = vpop.f32.mrb[0].mxu0
      %v3790 = vadd.f32 0.0, %v3789
      %v3791 = vpop.f32.mrb[0].mxu0
      %3792 = vmatprep.mubr.bf16.mxu0 0
      %3793 = vmatmul.mubr.bf16.gmra.mrb[0].mxu0 %v3503
      %v3794 = vpop.f32.mrb[0].mxu0
      %v3795 = vadd.f32 0.0, %v3794
      %v3796 = vpop.f32.mrb[0].mxu0
      %v3797 = vpop.f32.mrb[0].mxu0
      %v3798 = vadd.f32 0.0, %v3797
      %v3799 = vpop.f32.mrb[0].mxu0
      %3800 = vdwg.mxu0
      %v3801 = vadd.f32 %v3271, %v3611
      %v3802 = vadd.f32 %v3272, %v3614
      %v3803 = vadd.f32 %v3273, %v3619
      %v3804 = vadd.f32 %v3274, %v3622
      %v3805 = vadd.f32 %v3275, %v3627
      %v3806 = vadd.f32 %v3276, %v3630
      %v3807 = vadd.f32 %v3277, %v3635
      %v3808 = vadd.f32 %v3278, %v3638
      %v3809 = vadd.f32 %v3279, %v3643
      %v3810 = vadd.f32 %v3280, %v3646
      %v3811 = vadd.f32 %v3281, %v3651
      %v3812 = vadd.f32 %v3282, %v3654
      %v3813 = vadd.f32 %v3283, %v3659
      %v3814 = vadd.f32 %v3284, %v3662
      %v3815 = vadd.f32 %v3285, %v3667
      %v3816 = vadd.f32 %v3286, %v3670
      %v3817 = vadd.f32 %v3287, %v3675
      %v3818 = vadd.f32 %v3288, %v3678
      %v3819 = vadd.f32 %v3289, %v3683
      %v3820 = vadd.f32 %v3290, %v3686
      %v3821 = vadd.f32 %v3291, %v3691
      %v3822 = vadd.f32 %v3292, %v3694
      %v3823 = vadd.f32 %v3293, %v3699
      %v3824 = vadd.f32 %v3294, %v3702
      %v3825 = vadd.f32 %v3295, %v3707
      %v3826 = vadd.f32 %v3296, %v3710
      %v3827 = vadd.f32 %v3297, %v3715
      %v3828 = vadd.f32 %v3298, %v3718
      %v3829 = vadd.f32 %v3299, %v3723
      %v3830 = vadd.f32 %v3300, %v3726
      %v3831 = vadd.f32 %v3301, %v3731
      %v3832 = vadd.f32 %v3302, %v3734
      %v3833 = vadd.f32 %v3303, %v3739
      %v3834 = vadd.f32 %v3304, %v3742
      %v3835 = vadd.f32 %v3305, %v3747
      %v3836 = vadd.f32 %v3306, %v3750
      %v3837 = vadd.f32 %v3307, %v3755
      %v3838 = vadd.f32 %v3308, %v3758
      %v3839 = vadd.f32 %v3309, %v3763
      %v3840 = vadd.f32 %v3310, %v3766
      %v3841 = vadd.f32 %v3311, %v3771
      %v3842 = vadd.f32 %v3312, %v3774
      %v3843 = vadd.f32 %v3313, %v3779
      %v3844 = vadd.f32 %v3314, %v3782
      %v3845 = vadd.f32 %v3315, %v3787
      %v3846 = vadd.f32 %v3316, %v3790
      %v3847 = vadd.f32 %v3317, %v3795
      %v3848 = vadd.f32 %v3318, %v3798
      %v3849 = vld [vmem:[%s219 + $0x18] sm:$0xf]
      %v3850 = vld [vmem:[%s219 + $0x1c] sm:$0xf]
      %v3851 = vld [vmem:[%s219 + $0x20] sm:$0xf]
      %v3852 = vld [vmem:[%s219 + $0x24] sm:$0xf]
      %v3853 = vld [vmem:[%s219 + $0x28] sm:$0xf]
      %v3854 = vld [vmem:[%s219 + $0x2c] sm:$0xf]
      %v3855 = vld [vmem:[%s219 + $0x30] sm:$0xf]
      %v3856 = vld [vmem:[%s219 + $0x34] sm:$0xf]
      %v3857 = vld [vmem:[%s219 + $0x38] sm:$0xf]
      %v3858 = vld [vmem:[%s219 + $0x3c] sm:$0xf]
      %v3859 = vld [vmem:[%s219 + $0x40] sm:$0xf]
      %v3860 = vld [vmem:[%s219 + $0x44] sm:$0xf]
      %v3861 = vld [vmem:[%s219 + $0x48] sm:$0xf]
      %v3862 = vld [vmem:[%s219 + $0x4c] sm:$0xf]
      %v3863 = vld [vmem:[%s219 + $0x50] sm:$0xf]
      %v3864 = vld [vmem:[%s219 + $0x54] sm:$0xf]
      %v3865 = vld [vmem:[%s219 + $0x58] sm:$0xf]
      %v3866 = vld [vmem:[%s219 + $0x5c] sm:$0xf]
      %v3867 = vld [vmem:[%s219 + $0x60] sm:$0xf]
      %v3868 = vld [vmem:[%s219 + $0x64] sm:$0xf]
      %v3869 = vld [vmem:[%s219 + $0x68] sm:$0xf]
      %v3870 = vld [vmem:[%s219 + $0x6c] sm:$0xf]
      %v3871 = vld [vmem:[%s219 + $0x70] sm:$0xf]
      %v3872 = vld [vmem:[%s219 + $0x74] sm:$0xf]
      %v3873 = vld [vmem:[%s219 + $0x78] sm:$0xf]
      %v3874 = vld [vmem:[%s219 + $0x7c] sm:$0xf]
      %v3875 = vld [vmem:[%s219 + $0x80] sm:$0xf]
      %v3876 = vld [vmem:[%s219 + $0x84] sm:$0xf]
      %v3877 = vld [vmem:[%s219 + $0x88] sm:$0xf]
      %v3878 = vld [vmem:[%s219 + $0x8c] sm:$0xf]
      %v3879 = vld [vmem:[%s219 + $0x90] sm:$0xf]
      %v3880 = vld [vmem:[%s219 + $0x94] sm:$0xf]
      %v3881 = vld [vmem:[%s219 + $0x98] sm:$0xf]
      %v3882 = vld [vmem:[%s219 + $0x9c] sm:$0xf]
      %v3883 = vld [vmem:[%s219 + $0xa0] sm:$0xf]
      %v3884 = vld [vmem:[%s219 + $0xa4] sm:$0xf]
      %v3885 = vld [vmem:[%s219 + $0xa8] sm:$0xf]
      %v3886 = vld [vmem:[%s219 + $0xac] sm:$0xf]
      %v3887 = vld [vmem:[%s219 + $0xb0] sm:$0xf]
      %v3888 = vld [vmem:[%s219 + $0xb4] sm:$0xf]
      %v3889 = vld [vmem:[%s219 + $0xb8] sm:$0xf]
      %v3890 = vld [vmem:[%s219 + $0xbc] sm:$0xf]
      %v3891 = vld [vmem:[%s219 + $0xc0] sm:$0xf]
      %v3892 = vld [vmem:[%s219 + $0xc4] sm:$0xf]
      %v3893 = vld [vmem:[%s219 + $0xc8] sm:$0xf]
      %v3894 = vld [vmem:[%s219 + $0xcc] sm:$0xf]
      %v3895 = vld [vmem:[%s219 + $0xd0] sm:$0xf]
      %v3896 = vld [vmem:[%s219 + $0xd4] sm:$0xf]
      %v3897 = vld [vmem:[%s219 + $0xd8] sm:$0x1]
      %s3898 = scalar_lea.vmem %s1, 448
      %v3899 = vld [vmem:[%s3898] sm:$0xf]
      %v3900 = vld [vmem:[%s3898 + $0x4] sm:$0xf]
      %v3901 = vld [vmem:[%s3898 + $0x8] sm:$0xf]
      %v3902 = vld [vmem:[%s3898 + $0xc] sm:$0xf]
      %v3903 = vld [vmem:[%s3898 + $0x10] sm:$0xf]
      %v3904 = vld [vmem:[%s3898 + $0x14] sm:$0xf]
      %v3905 = vld [vmem:[%s3898 + $0x18] sm:$0xf]
      %v3906 = vld [vmem:[%s3898 + $0x1c] sm:$0xf]
      %v3907 = vld [vmem:[%s3898 + $0x20] sm:$0xf]
      %v3908 = vld [vmem:[%s3898 + $0x24] sm:$0xf]
      %v3909 = vld [vmem:[%s3898 + $0x28] sm:$0xf]
      %v3910 = vld [vmem:[%s3898 + $0x2c] sm:$0xf]
      %v3911 = vld [vmem:[%s3898 + $0x30] sm:$0xf]
      %v3912 = vld [vmem:[%s3898 + $0x34] sm:$0xf]
      %v3913 = vld [vmem:[%s3898 + $0x38] sm:$0xf]
      %v3914 = vld [vmem:[%s3898 + $0x3c] sm:$0xf]
      %v3964 = vunpack.c.l.b16 %v3849
      %v3965 = vunpack.c.l.b16 %v3850
      %v3966 = vunpack.c.l.b16 %v3851
      %v3967 = vunpack.c.l.b16 %v3852
      %v3968 = vunpack.c.l.b16 %v3853
      %v3969 = vunpack.c.l.b16 %v3854
      %v3970 = vunpack.c.l.b16 %v3855
      %v3971 = vunpack.c.l.b16 %v3856
      %v3972 = vunpack.c.l.b16 %v3857
      %v3973 = vunpack.c.l.b16 %v3858
      %v3974 = vunpack.c.l.b16 %v3859
      %v3975 = vunpack.c.l.b16 %v3860
      %v3976 = vunpack.c.l.b16 %v3861
      %v3977 = vunpack.c.l.b16 %v3862
      %v3978 = vunpack.c.l.b16 %v3863
      %v3979 = vunpack.c.l.b16 %v3864
      %v3980 = vunpack.c.l.b16 %v3865
      %v3981 = vunpack.c.l.b16 %v3866
      %v3982 = vunpack.c.l.b16 %v3867
      %v3983 = vunpack.c.l.b16 %v3868
      %v3984 = vunpack.c.l.b16 %v3869
      %v3985 = vunpack.c.l.b16 %v3870
      %v3986 = vunpack.c.l.b16 %v3871
      %v3987 = vunpack.c.l.b16 %v3872
      %v3988 = vunpack.c.l.b16 %v3873
      %v3989 = vunpack.c.l.b16 %v3874
      %v3990 = vunpack.c.l.b16 %v3875
      %v3991 = vunpack.c.l.b16 %v3876
      %v3992 = vunpack.c.l.b16 %v3877
      %v3993 = vunpack.c.l.b16 %v3878
      %v3994 = vunpack.c.l.b16 %v3879
      %v3995 = vunpack.c.l.b16 %v3880
      %v3996 = vunpack.c.l.b16 %v3881
      %v3997 = vunpack.c.l.b16 %v3882
      %v3998 = vunpack.c.l.b16 %v3883
      %v3999 = vunpack.c.l.b16 %v3884
      %v4000 = vunpack.c.l.b16 %v3885
      %v4001 = vunpack.c.l.b16 %v3886
      %v4002 = vunpack.c.l.b16 %v3887
      %v4003 = vunpack.c.l.b16 %v3888
      %v4004 = vunpack.c.l.b16 %v3889
      %v4005 = vunpack.c.l.b16 %v3890
      %v4006 = vunpack.c.l.b16 %v3891
      %v4007 = vunpack.c.l.b16 %v3892
      %v4008 = vunpack.c.l.b16 %v3893
      %v4009 = vunpack.c.l.b16 %v3894
      %v4010 = vunpack.c.l.b16 %v3895
      %v4011 = vunpack.c.l.b16 %v3896
      %v4012 = vunpack.c.l.b16 %v3897
      %v4013 = vpack.c.b16 %v3965, %v3964
      %v4014 = vpack.c.b16 %v3967, %v3966
      %v4015 = vpack.c.b16 %v3969, %v3968
      %v4016 = vpack.c.b16 %v3971, %v3970
      %v4017 = vpack.c.b16 %v3973, %v3972
      %v4018 = vpack.c.b16 %v3975, %v3974
      %v4019 = vpack.c.b16 %v3977, %v3976
      %v4020 = vpack.c.b16 %v3979, %v3978
      %v4021 = vpack.c.b16 %v3981, %v3980
      %v4022 = vpack.c.b16 %v3983, %v3982
      %v4023 = vpack.c.b16 %v3985, %v3984
      %v4024 = vpack.c.b16 %v3987, %v3986
      %v4025 = vpack.c.b16 %v3989, %v3988
      %v4026 = vpack.c.b16 %v3991, %v3990
      %v4027 = vpack.c.b16 %v3993, %v3992
      %v4028 = vpack.c.b16 %v3995, %v3994
      %v4029 = vpack.c.b16 %v3997, %v3996
      %v4030 = vpack.c.b16 %v3999, %v3998
      %v4031 = vpack.c.b16 %v4001, %v4000
      %v4032 = vpack.c.b16 %v4003, %v4002
      %v4033 = vpack.c.b16 %v4005, %v4004
      %v4034 = vpack.c.b16 %v4007, %v4006
      %v4035 = vpack.c.b16 %v4009, %v4008
      %v4036 = vpack.c.b16 %v4011, %v4010
      %v4037 = vpack.c.b16 %v4012, %v4012
      %v4039 = vshrl.u32 %v4013, 16
      %v4041 = vshll.u32 %v4013, 16
      %v4043 = vrot.slane %v4041, 1
      %v4044 = vor.u32 %v4039, %v4043
      %v4046 = vshll.u32 %v4014, 16
      %v4048 = vrot.slane %v4046, 1
      %v4049 = vsel %vm437, %v4044, %v4048
      %v4050 = vshrl.u32 %v4014, 16
      %v4052 = vor.u32 %v4050, %v4048
      %v4054 = vshll.u32 %v4015, 16
      %v4056 = vrot.slane %v4054, 1
      %v4057 = vsel %vm437, %v4052, %v4056
      %v4058 = vshrl.u32 %v4015, 16
      %v4060 = vor.u32 %v4058, %v4056
      %v4062 = vshll.u32 %v4016, 16
      %v4064 = vrot.slane %v4062, 1
      %v4065 = vsel %vm437, %v4060, %v4064
      %v4066 = vshrl.u32 %v4016, 16
      %v4068 = vor.u32 %v4066, %v4064
      %v4070 = vshll.u32 %v4017, 16
      %v4072 = vrot.slane %v4070, 1
      %v4073 = vsel %vm437, %v4068, %v4072
      %v4074 = vshrl.u32 %v4017, 16
      %v4076 = vor.u32 %v4074, %v4072
      %v4078 = vshll.u32 %v4018, 16
      %v4080 = vrot.slane %v4078, 1
      %v4081 = vsel %vm437, %v4076, %v4080
      %v4082 = vshrl.u32 %v4018, 16
      %v4084 = vor.u32 %v4082, %v4080
      %v4086 = vshll.u32 %v4019, 16
      %v4088 = vrot.slane %v4086, 1
      %v4089 = vsel %vm437, %v4084, %v4088
      %v4090 = vshrl.u32 %v4019, 16
      %v4092 = vor.u32 %v4090, %v4088
      %v4094 = vshll.u32 %v4020, 16
      %v4096 = vrot.slane %v4094, 1
      %v4097 = vsel %vm437, %v4092, %v4096
      %v4098 = vshrl.u32 %v4020, 16
      %v4100 = vor.u32 %v4098, %v4096
      %v4102 = vshll.u32 %v4021, 16
      %v4104 = vrot.slane %v4102, 1
      %v4105 = vsel %vm437, %v4100, %v4104
      %v4106 = vshrl.u32 %v4021, 16
      %v4108 = vor.u32 %v4106, %v4104
      %v4110 = vshll.u32 %v4022, 16
      %v4112 = vrot.slane %v4110, 1
      %v4113 = vsel %vm437, %v4108, %v4112
      %v4114 = vshrl.u32 %v4022, 16
      %v4116 = vor.u32 %v4114, %v4112
      %v4118 = vshll.u32 %v4023, 16
      %v4120 = vrot.slane %v4118, 1
      %v4121 = vsel %vm437, %v4116, %v4120
      %v4122 = vshrl.u32 %v4023, 16
      %v4124 = vor.u32 %v4122, %v4120
      %v4126 = vshll.u32 %v4024, 16
      %v4128 = vrot.slane %v4126, 1
      %v4129 = vsel %vm437, %v4124, %v4128
      %v4130 = vshrl.u32 %v4024, 16
      %v4132 = vor.u32 %v4130, %v4128
      %v4134 = vshll.u32 %v4025, 16
      %v4136 = vrot.slane %v4134, 1
      %v4137 = vsel %vm437, %v4132, %v4136
      %v4138 = vshrl.u32 %v4025, 16
      %v4140 = vor.u32 %v4138, %v4136
      %v4142 = vshll.u32 %v4026, 16
      %v4144 = vrot.slane %v4142, 1
      %v4145 = vsel %vm437, %v4140, %v4144
      %v4146 = vshrl.u32 %v4026, 16
      %v4148 = vor.u32 %v4146, %v4144
      %v4150 = vshll.u32 %v4027, 16
      %v4152 = vrot.slane %v4150, 1
      %v4153 = vsel %vm437, %v4148, %v4152
      %v4154 = vshrl.u32 %v4027, 16
      %v4156 = vor.u32 %v4154, %v4152
      %v4158 = vshll.u32 %v4028, 16
      %v4160 = vrot.slane %v4158, 1
      %v4161 = vsel %vm437, %v4156, %v4160
      %v4162 = vshrl.u32 %v4028, 16
      %v4164 = vor.u32 %v4162, %v4160
      %v4166 = vshll.u32 %v4029, 16
      %v4168 = vrot.slane %v4166, 1
      %v4169 = vsel %vm437, %v4164, %v4168
      %v4170 = vshrl.u32 %v4029, 16
      %v4172 = vor.u32 %v4170, %v4168
      %v4174 = vshll.u32 %v4030, 16
      %v4176 = vrot.slane %v4174, 1
      %v4177 = vsel %vm437, %v4172, %v4176
      %v4178 = vshrl.u32 %v4030, 16
      %v4180 = vor.u32 %v4178, %v4176
      %v4182 = vshll.u32 %v4031, 16
      %v4184 = vrot.slane %v4182, 1
      %v4185 = vsel %vm437, %v4180, %v4184
      %v4186 = vshrl.u32 %v4031, 16
      %v4188 = vor.u32 %v4186, %v4184
      %v4190 = vshll.u32 %v4032, 16
      %v4192 = vrot.slane %v4190, 1
      %v4193 = vsel %vm437, %v4188, %v4192
      %v4194 = vshrl.u32 %v4032, 16
      %v4196 = vor.u32 %v4194, %v4192
      %v4198 = vshll.u32 %v4033, 16
      %v4200 = vrot.slane %v4198, 1
      %v4201 = vsel %vm437, %v4196, %v4200
      %v4202 = vshrl.u32 %v4033, 16
      %v4204 = vor.u32 %v4202, %v4200
      %v4206 = vshll.u32 %v4034, 16
      %v4208 = vrot.slane %v4206, 1
      %v4209 = vsel %vm437, %v4204, %v4208
      %v4210 = vshrl.u32 %v4034, 16
      %v4212 = vor.u32 %v4210, %v4208
      %v4214 = vshll.u32 %v4035, 16
      %v4216 = vrot.slane %v4214, 1
      %v4217 = vsel %vm437, %v4212, %v4216
      %v4218 = vshrl.u32 %v4035, 16
      %v4220 = vor.u32 %v4218, %v4216
      %v4222 = vshll.u32 %v4036, 16
      %v4224 = vrot.slane %v4222, 1
      %v4225 = vsel %vm437, %v4220, %v4224
      %v4226 = vshrl.u32 %v4036, 16
      %v4228 = vor.u32 %v4226, %v4224
      %v4230 = vshll.u32 %v4037, 16
      %v4232 = vrot.slane %v4230, 1
      %v4233 = vsel %vm437, %v4228, %v4232
      %v4274 = vunpack.c.l.b16 %v3899
      %v4275 = vunpack.c.l.b16 %v3900
      %v4276 = vunpack.c.l.b16 %v3901
      %v4277 = vunpack.c.l.b16 %v3902
      %v4278 = vunpack.c.l.b16 %v3903
      %v4279 = vunpack.c.l.b16 %v3904
      %v4280 = vunpack.c.l.b16 %v3905
      %v4281 = vunpack.c.l.b16 %v3906
      %v4282 = vunpack.c.l.b16 %v3907
      %v4283 = vunpack.c.l.b16 %v3908
      %v4284 = vunpack.c.l.b16 %v3909
      %v4285 = vunpack.c.l.b16 %v3910
      %v4286 = vunpack.c.l.b16 %v3911
      %v4287 = vunpack.c.l.b16 %v3912
      %v4288 = vunpack.c.l.b16 %v3913
      %v4289 = vunpack.c.l.b16 %v3914
      %v4290 = vpack.c.b16 %v4275, %v4274
      %v4291 = vpack.c.b16 %v4277, %v4276
      %v4292 = vpack.c.b16 %v4279, %v4278
      %v4293 = vpack.c.b16 %v4281, %v4280
      %v4294 = vpack.c.b16 %v4283, %v4282
      %v4295 = vpack.c.b16 %v4285, %v4284
      %v4296 = vpack.c.b16 %v4287, %v4286
      %v4297 = vpack.c.b16 %v4289, %v4288
      %4306 = vmatprep.subr.bf16.mxu0 0
      %4307 = vmatpush1.bf16.msra.mxu0 %v4290
      %4308 = vmatprep.subr.bf16.mxu0 0
      %4309 = vmatpush1.bf16.msra.mxu0 %v4291
      %4310 = vmatprep.subr.bf16.mxu0 0
      %4311 = vmatpush1.bf16.msra.mxu0 %v4292
      %4312 = vmatprep.subr.bf16.mxu0 0
      %4313 = vmatpush1.bf16.msra.mxu0 %v4293
      %4314 = vmatprep.subr.bf16.mxu0 0
      %4315 = vmatpush1.bf16.msra.mxu0 %v4294
      %4316 = vmatprep.subr.bf16.mxu0 0
      %4317 = vmatpush1.bf16.msra.mxu0 %v4295
      %4318 = vmatprep.subr.bf16.mxu0 0
      %4319 = vmatpush1.bf16.msra.mxu0 %v4296
      %4320 = vmatprep.subr.bf16.mxu0 0
      %4321 = vmatpush1.bf16.msra.mxu0 %v4297
      %4322 = vmatprep.subr.bf16.mxu0 0
      %4323 = vmatpush1.bf16.msra.mxu0 0
      %4324 = vmatprep.subr.bf16.mxu0 0
      %4325 = vmatpush1.bf16.msra.mxu0 0
      %4326 = vmatprep.subr.bf16.mxu0 0
      %4327 = vmatpush1.bf16.msra.mxu0 0
      %4328 = vmatprep.subr.bf16.mxu0 0
      %4329 = vmatpush1.bf16.msra.mxu0 0
      %4330 = vmatprep.subr.bf16.mxu0 0
      %4331 = vmatpush1.bf16.msra.mxu0 0
      %4332 = vmatprep.subr.bf16.mxu0 0
      %4333 = vmatpush1.bf16.msra.mxu0 0
      %4334 = vmatprep.subr.bf16.mxu0 0
      %4335 = vmatpush1.bf16.msra.mxu0 0
      %4336 = vmatprep.subr.bf16.mxu0 0
      %4337 = vmatpush1.bf16.msra.mxu0 0
      %4338 = vmatprep.mubr.bf16.mxu0 0
      %4339 = vmatmul.mubr.bf16.gmra.mrb[0].mxu0 %v4049
      %v4340 = vpop.f32.mrb[0].mxu0
      %v4341 = vadd.f32 0.0, %v4340
      %v4342 = vpop.f32.mrb[0].mxu0
      %v4343 = vpop.f32.mrb[0].mxu0
      %v4344 = vadd.f32 0.0, %v4343
      %v4345 = vpop.f32.mrb[0].mxu0
      %4346 = vmatprep.mubr.bf16.mxu0 0
      %4347 = vmatmul.mubr.bf16.gmra.mrb[0].mxu0 %v4057
      %v4348 = vpop.f32.mrb[0].mxu0
      %v4349 = vadd.f32 0.0, %v4348
      %v4350 = vpop.f32.mrb[0].mxu0
      %v4351 = vpop.f32.mrb[0].mxu0
      %v4352 = vadd.f32 0.0, %v4351
      %v4353 = vpop.f32.mrb[0].mxu0
      %4354 = vmatprep.mubr.bf16.mxu0 0
      %4355 = vmatmul.mubr.bf16.gmra.mrb[0].mxu0 %v4065
      %v4356 = vpop.f32.mrb[0].mxu0
      %v4357 = vadd.f32 0.0, %v4356
      %v4358 = vpop.f32.mrb[0].mxu0
      %v4359 = vpop.f32.mrb[0].mxu0
      %v4360 = vadd.f32 0.0, %v4359
      %v4361 = vpop.f32.mrb[0].mxu0
      %4362 = vmatprep.mubr.bf16.mxu0 0
      %4363 = vmatmul.mubr.bf16.gmra.mrb[0].mxu0 %v4073
      %v4364 = vpop.f32.mrb[0].mxu0
      %v4365 = vadd.f32 0.0, %v4364
      %v4366 = vpop.f32.mrb[0].mxu0
      %v4367 = vpop.f32.mrb[0].mxu0
      %v4368 = vadd.f32 0.0, %v4367
      %v4369 = vpop.f32.mrb[0].mxu0
      %4370 = vmatprep.mubr.bf16.mxu0 0
      %4371 = vmatmul.mubr.bf16.gmra.mrb[0].mxu0 %v4081
      %v4372 = vpop.f32.mrb[0].mxu0
      %v4373 = vadd.f32 0.0, %v4372
      %v4374 = vpop.f32.mrb[0].mxu0
      %v4375 = vpop.f32.mrb[0].mxu0
      %v4376 = vadd.f32 0.0, %v4375
      %v4377 = vpop.f32.mrb[0].mxu0
      %4378 = vmatprep.mubr.bf16.mxu0 0
      %4379 = vmatmul.mubr.bf16.gmra.mrb[0].mxu0 %v4089
      %v4380 = vpop.f32.mrb[0].mxu0
      %v4381 = vadd.f32 0.0, %v4380
      %v4382 = vpop.f32.mrb[0].mxu0
      %v4383 = vpop.f32.mrb[0].mxu0
      %v4384 = vadd.f32 0.0, %v4383
      %v4385 = vpop.f32.mrb[0].mxu0
      %4386 = vmatprep.mubr.bf16.mxu0 0
      %4387 = vmatmul.mubr.bf16.gmra.mrb[0].mxu0 %v4097
      %v4388 = vpop.f32.mrb[0].mxu0
      %v4389 = vadd.f32 0.0, %v4388
      %v4390 = vpop.f32.mrb[0].mxu0
      %v4391 = vpop.f32.mrb[0].mxu0
      %v4392 = vadd.f32 0.0, %v4391
      %v4393 = vpop.f32.mrb[0].mxu0
      %4394 = vmatprep.mubr.bf16.mxu0 0
      %4395 = vmatmul.mubr.bf16.gmra.mrb[0].mxu0 %v4105
      %v4396 = vpop.f32.mrb[0].mxu0
      %v4397 = vadd.f32 0.0, %v4396
      %v4398 = vpop.f32.mrb[0].mxu0
      %v4399 = vpop.f32.mrb[0].mxu0
      %v4400 = vadd.f32 0.0, %v4399
      %v4401 = vpop.f32.mrb[0].mxu0
      %4402 = vmatprep.mubr.bf16.mxu0 0
      %4403 = vmatmul.mubr.bf16.gmra.mrb[0].mxu0 %v4113
      %v4404 = vpop.f32.mrb[0].mxu0
      %v4405 = vadd.f32 0.0, %v4404
      %v4406 = vpop.f32.mrb[0].mxu0
      %v4407 = vpop.f32.mrb[0].mxu0
      %v4408 = vadd.f32 0.0, %v4407
      %v4409 = vpop.f32.mrb[0].mxu0
      %4410 = vmatprep.mubr.bf16.mxu0 0
      %4411 = vmatmul.mubr.bf16.gmra.mrb[0].mxu0 %v4121
      %v4412 = vpop.f32.mrb[0].mxu0
      %v4413 = vadd.f32 0.0, %v4412
      %v4414 = vpop.f32.mrb[0].mxu0
      %v4415 = vpop.f32.mrb[0].mxu0
      %v4416 = vadd.f32 0.0, %v4415
      %v4417 = vpop.f32.mrb[0].mxu0
      %4418 = vmatprep.mubr.bf16.mxu0 0
      %4419 = vmatmul.mubr.bf16.gmra.mrb[0].mxu0 %v4129
      %v4420 = vpop.f32.mrb[0].mxu0
      %v4421 = vadd.f32 0.0, %v4420
      %v4422 = vpop.f32.mrb[0].mxu0
      %v4423 = vpop.f32.mrb[0].mxu0
      %v4424 = vadd.f32 0.0, %v4423
      %v4425 = vpop.f32.mrb[0].mxu0
      %4426 = vmatprep.mubr.bf16.mxu0 0
      %4427 = vmatmul.mubr.bf16.gmra.mrb[0].mxu0 %v4137
      %v4428 = vpop.f32.mrb[0].mxu0
      %v4429 = vadd.f32 0.0, %v4428
      %v4430 = vpop.f32.mrb[0].mxu0
      %v4431 = vpop.f32.mrb[0].mxu0
      %v4432 = vadd.f32 0.0, %v4431
      %v4433 = vpop.f32.mrb[0].mxu0
      %4434 = vmatprep.mubr.bf16.mxu0 0
      %4435 = vmatmul.mubr.bf16.gmra.mrb[0].mxu0 %v4145
      %v4436 = vpop.f32.mrb[0].mxu0
      %v4437 = vadd.f32 0.0, %v4436
      %v4438 = vpop.f32.mrb[0].mxu0
      %v4439 = vpop.f32.mrb[0].mxu0
      %v4440 = vadd.f32 0.0, %v4439
      %v4441 = vpop.f32.mrb[0].mxu0
      %4442 = vmatprep.mubr.bf16.mxu0 0
      %4443 = vmatmul.mubr.bf16.gmra.mrb[0].mxu0 %v4153
      %v4444 = vpop.f32.mrb[0].mxu0
      %v4445 = vadd.f32 0.0, %v4444
      %v4446 = vpop.f32.mrb[0].mxu0
      %v4447 = vpop.f32.mrb[0].mxu0
      %v4448 = vadd.f32 0.0, %v4447
      %v4449 = vpop.f32.mrb[0].mxu0
      %4450 = vmatprep.mubr.bf16.mxu0 0
      %4451 = vmatmul.mubr.bf16.gmra.mrb[0].mxu0 %v4161
      %v4452 = vpop.f32.mrb[0].mxu0
      %v4453 = vadd.f32 0.0, %v4452
      %v4454 = vpop.f32.mrb[0].mxu0
      %v4455 = vpop.f32.mrb[0].mxu0
      %v4456 = vadd.f32 0.0, %v4455
      %v4457 = vpop.f32.mrb[0].mxu0
      %4458 = vmatprep.mubr.bf16.mxu0 0
      %4459 = vmatmul.mubr.bf16.gmra.mrb[0].mxu0 %v4169
      %v4460 = vpop.f32.mrb[0].mxu0
      %v4461 = vadd.f32 0.0, %v4460
      %v4462 = vpop.f32.mrb[0].mxu0
      %v4463 = vpop.f32.mrb[0].mxu0
      %v4464 = vadd.f32 0.0, %v4463
      %v4465 = vpop.f32.mrb[0].mxu0
      %4466 = vmatprep.mubr.bf16.mxu0 0
      %4467 = vmatmul.mubr.bf16.gmra.mrb[0].mxu0 %v4177
      %v4468 = vpop.f32.mrb[0].mxu0
      %v4469 = vadd.f32 0.0, %v4468
      %v4470 = vpop.f32.mrb[0].mxu0
      %v4471 = vpop.f32.mrb[0].mxu0
      %v4472 = vadd.f32 0.0, %v4471
      %v4473 = vpop.f32.mrb[0].mxu0
      %4474 = vmatprep.mubr.bf16.mxu0 0
      %4475 = vmatmul.mubr.bf16.gmra.mrb[0].mxu0 %v4185
      %v4476 = vpop.f32.mrb[0].mxu0
      %v4477 = vadd.f32 0.0, %v4476
      %v4478 = vpop.f32.mrb[0].mxu0
      %v4479 = vpop.f32.mrb[0].mxu0
      %v4480 = vadd.f32 0.0, %v4479
      %v4481 = vpop.f32.mrb[0].mxu0
      %4482 = vmatprep.mubr.bf16.mxu0 0
      %4483 = vmatmul.mubr.bf16.gmra.mrb[0].mxu0 %v4193
      %v4484 = vpop.f32.mrb[0].mxu0
      %v4485 = vadd.f32 0.0, %v4484
      %v4486 = vpop.f32.mrb[0].mxu0
      %v4487 = vpop.f32.mrb[0].mxu0
      %v4488 = vadd.f32 0.0, %v4487
      %v4489 = vpop.f32.mrb[0].mxu0
      %4490 = vmatprep.mubr.bf16.mxu0 0
      %4491 = vmatmul.mubr.bf16.gmra.mrb[0].mxu0 %v4201
      %v4492 = vpop.f32.mrb[0].mxu0
      %v4493 = vadd.f32 0.0, %v4492
      %v4494 = vpop.f32.mrb[0].mxu0
      %v4495 = vpop.f32.mrb[0].mxu0
      %v4496 = vadd.f32 0.0, %v4495
      %v4497 = vpop.f32.mrb[0].mxu0
      %4498 = vmatprep.mubr.bf16.mxu0 0
      %4499 = vmatmul.mubr.bf16.gmra.mrb[0].mxu0 %v4209
      %v4500 = vpop.f32.mrb[0].mxu0
      %v4501 = vadd.f32 0.0, %v4500
      %v4502 = vpop.f32.mrb[0].mxu0
      %v4503 = vpop.f32.mrb[0].mxu0
      %v4504 = vadd.f32 0.0, %v4503
      %v4505 = vpop.f32.mrb[0].mxu0
      %4506 = vmatprep.mubr.bf16.mxu0 0
      %4507 = vmatmul.mubr.bf16.gmra.mrb[0].mxu0 %v4217
      %v4508 = vpop.f32.mrb[0].mxu0
      %v4509 = vadd.f32 0.0, %v4508
      %v4510 = vpop.f32.mrb[0].mxu0
      %v4511 = vpop.f32.mrb[0].mxu0
      %v4512 = vadd.f32 0.0, %v4511
      %v4513 = vpop.f32.mrb[0].mxu0
      %4514 = vmatprep.mubr.bf16.mxu0 0
      %4515 = vmatmul.mubr.bf16.gmra.mrb[0].mxu0 %v4225
      %v4516 = vpop.f32.mrb[0].mxu0
      %v4517 = vadd.f32 0.0, %v4516
      %v4518 = vpop.f32.mrb[0].mxu0
      %v4519 = vpop.f32.mrb[0].mxu0
      %v4520 = vadd.f32 0.0, %v4519
      %v4521 = vpop.f32.mrb[0].mxu0
      %4522 = vmatprep.mubr.bf16.mxu0 0
      %4523 = vmatmul.mubr.bf16.gmra.mrb[0].mxu0 %v4233
      %v4524 = vpop.f32.mrb[0].mxu0
      %v4525 = vadd.f32 0.0, %v4524
      %v4526 = vpop.f32.mrb[0].mxu0
      %v4527 = vpop.f32.mrb[0].mxu0
      %v4528 = vadd.f32 0.0, %v4527
      %v4529 = vpop.f32.mrb[0].mxu0
      %4530 = vdwg.mxu0
      %v4531 = vadd.f32 %v3801, %v4341
      %v4532 = vadd.f32 %v3802, %v4344
      %v4533 = vadd.f32 %v3803, %v4349
      %v4534 = vadd.f32 %v3804, %v4352
      %v4535 = vadd.f32 %v3805, %v4357
      %v4536 = vadd.f32 %v3806, %v4360
      %v4537 = vadd.f32 %v3807, %v4365
      %v4538 = vadd.f32 %v3808, %v4368
      %v4539 = vadd.f32 %v3809, %v4373
      %v4540 = vadd.f32 %v3810, %v4376
      %v4541 = vadd.f32 %v3811, %v4381
      %v4542 = vadd.f32 %v3812, %v4384
      %v4543 = vadd.f32 %v3813, %v4389
      %v4544 = vadd.f32 %v3814, %v4392
      %v4545 = vadd.f32 %v3815, %v4397
      %v4546 = vadd.f32 %v3816, %v4400
      %v4547 = vadd.f32 %v3817, %v4405
      %v4548 = vadd.f32 %v3818, %v4408
      %v4549 = vadd.f32 %v3819, %v4413
      %v4550 = vadd.f32 %v3820, %v4416
      %v4551 = vadd.f32 %v3821, %v4421
      %v4552 = vadd.f32 %v3822, %v4424
      %v4553 = vadd.f32 %v3823, %v4429
      %v4554 = vadd.f32 %v3824, %v4432
      %v4555 = vadd.f32 %v3825, %v4437
      %v4556 = vadd.f32 %v3826, %v4440
      %v4557 = vadd.f32 %v3827, %v4445
      %v4558 = vadd.f32 %v3828, %v4448
      %v4559 = vadd.f32 %v3829, %v4453
      %v4560 = vadd.f32 %v3830, %v4456
      %v4561 = vadd.f32 %v3831, %v4461
      %v4562 = vadd.f32 %v3832, %v4464
      %v4563 = vadd.f32 %v3833, %v4469
      %v4564 = vadd.f32 %v3834, %v4472
      %v4565 = vadd.f32 %v3835, %v4477
      %v4566 = vadd.f32 %v3836, %v4480
      %v4567 = vadd.f32 %v3837, %v4485
      %v4568 = vadd.f32 %v3838, %v4488
      %v4569 = vadd.f32 %v3839, %v4493
      %v4570 = vadd.f32 %v3840, %v4496
      %v4571 = vadd.f32 %v3841, %v4501
      %v4572 = vadd.f32 %v3842, %v4504
      %v4573 = vadd.f32 %v3843, %v4509
      %v4574 = vadd.f32 %v3844, %v4512
      %v4575 = vadd.f32 %v3845, %v4517
      %v4576 = vadd.f32 %v3846, %v4520
      %v4577 = vadd.f32 %v3847, %v4525
      %v4578 = vadd.f32 %v3848, %v4528
      %v4579 = vld [vmem:[%s219 + $0x18] sm:$0xe]
      %s4580 = scalar_lea.vmem %s1, 512
      %v4581 = vld [vmem:[%s4580] sm:$0xf]
      %v4582 = vld [vmem:[%s4580 + $0x4] sm:$0xf]
      %v4583 = vld [vmem:[%s4580 + $0x8] sm:$0xf]
      %v4584 = vld [vmem:[%s4580 + $0xc] sm:$0xf]
      %v4585 = vld [vmem:[%s4580 + $0x10] sm:$0xf]
      %v4586 = vld [vmem:[%s4580 + $0x14] sm:$0xf]
      %v4587 = vld [vmem:[%s4580 + $0x18] sm:$0xf]
      %v4588 = vld [vmem:[%s4580 + $0x1c] sm:$0xf]
      %v4589 = vld [vmem:[%s4580 + $0x20] sm:$0xf]
      %v4590 = vld [vmem:[%s4580 + $0x24] sm:$0xf]
      %v4591 = vld [vmem:[%s4580 + $0x28] sm:$0xf]
      %v4592 = vld [vmem:[%s4580 + $0x2c] sm:$0xf]
      %v4593 = vld [vmem:[%s4580 + $0x30] sm:$0xf]
      %v4594 = vld [vmem:[%s4580 + $0x34] sm:$0xf]
      %v4595 = vld [vmem:[%s4580 + $0x38] sm:$0xf]
      %v4596 = vld [vmem:[%s4580 + $0x3c] sm:$0xf]
      %v4598 = vunpack.c.l.b16 %v4579
      %v4599 = vpack.c.b16 %v3965, %v4598
      %v4600 = vrot.slane %v4599, 1
      %v4601 = vrot.slane %v4014, 1
      %v4602 = vsel %vm1249, %v4600, %v4601
      %v4603 = vrot.slane %v4015, 1
      %v4604 = vsel %vm1249, %v4601, %v4603
      %v4605 = vrot.slane %v4016, 1
      %v4606 = vsel %vm1249, %v4603, %v4605
      %v4607 = vrot.slane %v4017, 1
      %v4608 = vsel %vm1249, %v4605, %v4607
      %v4609 = vrot.slane %v4018, 1
      %v4610 = vsel %vm1249, %v4607, %v4609
      %v4611 = vrot.slane %v4019, 1
      %v4612 = vsel %vm1249, %v4609, %v4611
      %v4613 = vrot.slane %v4020, 1
      %v4614 = vsel %vm1249, %v4611, %v4613
      %v4615 = vrot.slane %v4021, 1
      %v4616 = vsel %vm1249, %v4613, %v4615
      %v4617 = vrot.slane %v4022, 1
      %v4618 = vsel %vm1249, %v4615, %v4617
      %v4619 = vrot.slane %v4023, 1
      %v4620 = vsel %vm1249, %v4617, %v4619
      %v4621 = vrot.slane %v4024, 1
      %v4622 = vsel %vm1249, %v4619, %v4621
      %v4623 = vrot.slane %v4025, 1
      %v4624 = vsel %vm1249, %v4621, %v4623
      %v4625 = vrot.slane %v4026, 1
      %v4626 = vsel %vm1249, %v4623, %v4625
      %v4627 = vrot.slane %v4027, 1
      %v4628 = vsel %vm1249, %v4625, %v4627
      %v4629 = vrot.slane %v4028, 1
      %v4630 = vsel %vm1249, %v4627, %v4629
      %v4631 = vrot.slane %v4029, 1
      %v4632 = vsel %vm1249, %v4629, %v4631
      %v4633 = vrot.slane %v4030, 1
      %v4634 = vsel %vm1249, %v4631, %v4633
      %v4635 = vrot.slane %v4031, 1
      %v4636 = vsel %vm1249, %v4633, %v4635
      %v4637 = vrot.slane %v4032, 1
      %v4638 = vsel %vm1249, %v4635, %v4637
      %v4639 = vrot.slane %v4033, 1
      %v4640 = vsel %vm1249, %v4637, %v4639
      %v4641 = vrot.slane %v4034, 1
      %v4642 = vsel %vm1249, %v4639, %v4641
      %v4643 = vrot.slane %v4035, 1
      %v4644 = vsel %vm1249, %v4641, %v4643
      %v4645 = vrot.slane %v4036, 1
      %v4646 = vsel %vm1249, %v4643, %v4645
      %v4647 = vrot.slane %v4037, 1
      %v4648 = vsel %vm1249, %v4645, %v4647
      %v4689 = vunpack.c.l.b16 %v4581
      %v4690 = vunpack.c.l.b16 %v4582
      %v4691 = vunpack.c.l.b16 %v4583
      %v4692 = vunpack.c.l.b16 %v4584
      %v4693 = vunpack.c.l.b16 %v4585
      %v4694 = vunpack.c.l.b16 %v4586
      %v4695 = vunpack.c.l.b16 %v4587
      %v4696 = vunpack.c.l.b16 %v4588
      %v4697 = vunpack.c.l.b16 %v4589
      %v4698 = vunpack.c.l.b16 %v4590
      %v4699 = vunpack.c.l.b16 %v4591
      %v4700 = vunpack.c.l.b16 %v4592
      %v4701 = vunpack.c.l.b16 %v4593
      %v4702 = vunpack.c.l.b16 %v4594
      %v4703 = vunpack.c.l.b16 %v4595
      %v4704 = vunpack.c.l.b16 %v4596
      %v4705 = vpack.c.b16 %v4690, %v4689
      %v4706 = vpack.c.b16 %v4692, %v4691
      %v4707 = vpack.c.b16 %v4694, %v4693
      %v4708 = vpack.c.b16 %v4696, %v4695
      %v4709 = vpack.c.b16 %v4698, %v4697
      %v4710 = vpack.c.b16 %v4700, %v4699
      %v4711 = vpack.c.b16 %v4702, %v4701
      %v4712 = vpack.c.b16 %v4704, %v4703
      %4721 = vmatprep.subr.bf16.mxu0 0
      %4722 = vmatpush1.bf16.msra.mxu0 %v4705
      %4723 = vmatprep.subr.bf16.mxu0 0
      %4724 = vmatpush1.bf16.msra.mxu0 %v4706
      %4725 = vmatprep.subr.bf16.mxu0 0
      %4726 = vmatpush1.bf16.msra.mxu0 %v4707
      %4727 = vmatprep.subr.bf16.mxu0 0
      %4728 = vmatpush1.bf16.msra.mxu0 %v4708
      %4729 = vmatprep.subr.bf16.mxu0 0
      %4730 = vmatpush1.bf16.msra.mxu0 %v4709
      %4731 = vmatprep.subr.bf16.mxu0 0
      %4732 = vmatpush1.bf16.msra.mxu0 %v4710
      %4733 = vmatprep.subr.bf16.mxu0 0
      %4734 = vmatpush1.bf16.msra.mxu0 %v4711
      %4735 = vmatprep.subr.bf16.mxu0 0
      %4736 = vmatpush1.bf16.msra.mxu0 %v4712
      %4737 = vmatprep.subr.bf16.mxu0 0
      %4738 = vmatpush1.bf16.msra.mxu0 0
      %4739 = vmatprep.subr.bf16.mxu0 0
      %4740 = vmatpush1.bf16.msra.mxu0 0
      %4741 = vmatprep.subr.bf16.mxu0 0
      %4742 = vmatpush1.bf16.msra.mxu0 0
      %4743 = vmatprep.subr.bf16.mxu0 0
      %4744 = vmatpush1.bf16.msra.mxu0 0
      %4745 = vmatprep.subr.bf16.mxu0 0
      %4746 = vmatpush1.bf16.msra.mxu0 0
      %4747 = vmatprep.subr.bf16.mxu0 0
      %4748 = vmatpush1.bf16.msra.mxu0 0
      %4749 = vmatprep.subr.bf16.mxu0 0
      %4750 = vmatpush1.bf16.msra.mxu0 0
      %4751 = vmatprep.subr.bf16.mxu0 0
      %4752 = vmatpush1.bf16.msra.mxu0 0
      %4753 = vmatprep.mubr.bf16.mxu0 0
      %4754 = vmatmul.mubr.bf16.gmra.mrb[0].mxu0 %v4602
      %v4755 = vpop.f32.mrb[0].mxu0
      %v4756 = vadd.f32 0.0, %v4755
      %v4757 = vpop.f32.mrb[0].mxu0
      %v4758 = vpop.f32.mrb[0].mxu0
      %v4759 = vadd.f32 0.0, %v4758
      %v4760 = vpop.f32.mrb[0].mxu0
      %4761 = vmatprep.mubr.bf16.mxu0 0
      %4762 = vmatmul.mubr.bf16.gmra.mrb[0].mxu0 %v4604
      %v4763 = vpop.f32.mrb[0].mxu0
      %v4764 = vadd.f32 0.0, %v4763
      %v4765 = vpop.f32.mrb[0].mxu0
      %v4766 = vpop.f32.mrb[0].mxu0
      %v4767 = vadd.f32 0.0, %v4766
      %v4768 = vpop.f32.mrb[0].mxu0
      %4769 = vmatprep.mubr.bf16.mxu0 0
      %4770 = vmatmul.mubr.bf16.gmra.mrb[0].mxu0 %v4606
      %v4771 = vpop.f32.mrb[0].mxu0
      %v4772 = vadd.f32 0.0, %v4771
      %v4773 = vpop.f32.mrb[0].mxu0
      %v4774 = vpop.f32.mrb[0].mxu0
      %v4775 = vadd.f32 0.0, %v4774
      %v4776 = vpop.f32.mrb[0].mxu0
      %4777 = vmatprep.mubr.bf16.mxu0 0
      %4778 = vmatmul.mubr.bf16.gmra.mrb[0].mxu0 %v4608
      %v4779 = vpop.f32.mrb[0].mxu0
      %v4780 = vadd.f32 0.0, %v4779
      %v4781 = vpop.f32.mrb[0].mxu0
      %v4782 = vpop.f32.mrb[0].mxu0
      %v4783 = vadd.f32 0.0, %v4782
      %v4784 = vpop.f32.mrb[0].mxu0
      %4785 = vmatprep.mubr.bf16.mxu0 0
      %4786 = vmatmul.mubr.bf16.gmra.mrb[0].mxu0 %v4610
      %v4787 = vpop.f32.mrb[0].mxu0
      %v4788 = vadd.f32 0.0, %v4787
      %v4789 = vpop.f32.mrb[0].mxu0
      %v4790 = vpop.f32.mrb[0].mxu0
      %v4791 = vadd.f32 0.0, %v4790
      %v4792 = vpop.f32.mrb[0].mxu0
      %4793 = vmatprep.mubr.bf16.mxu0 0
      %4794 = vmatmul.mubr.bf16.gmra.mrb[0].mxu0 %v4612
      %v4795 = vpop.f32.mrb[0].mxu0
      %v4796 = vadd.f32 0.0, %v4795
      %v4797 = vpop.f32.mrb[0].mxu0
      %v4798 = vpop.f32.mrb[0].mxu0
      %v4799 = vadd.f32 0.0, %v4798
      %v4800 = vpop.f32.mrb[0].mxu0
      %4801 = vmatprep.mubr.bf16.mxu0 0
      %4802 = vmatmul.mubr.bf16.gmra.mrb[0].mxu0 %v4614
      %v4803 = vpop.f32.mrb[0].mxu0
      %v4804 = vadd.f32 0.0, %v4803
      %v4805 = vpop.f32.mrb[0].mxu0
      %v4806 = vpop.f32.mrb[0].mxu0
      %v4807 = vadd.f32 0.0, %v4806
      %v4808 = vpop.f32.mrb[0].mxu0
      %4809 = vmatprep.mubr.bf16.mxu0 0
      %4810 = vmatmul.mubr.bf16.gmra.mrb[0].mxu0 %v4616
      %v4811 = vpop.f32.mrb[0].mxu0
      %v4812 = vadd.f32 0.0, %v4811
      %v4813 = vpop.f32.mrb[0].mxu0
      %v4814 = vpop.f32.mrb[0].mxu0
      %v4815 = vadd.f32 0.0, %v4814
      %v4816 = vpop.f32.mrb[0].mxu0
      %4817 = vmatprep.mubr.bf16.mxu0 0
      %4818 = vmatmul.mubr.bf16.gmra.mrb[0].mxu0 %v4618
      %v4819 = vpop.f32.mrb[0].mxu0
      %v4820 = vadd.f32 0.0, %v4819
      %v4821 = vpop.f32.mrb[0].mxu0
      %v4822 = vpop.f32.mrb[0].mxu0
      %v4823 = vadd.f32 0.0, %v4822
      %v4824 = vpop.f32.mrb[0].mxu0
      %4825 = vmatprep.mubr.bf16.mxu0 0
      %4826 = vmatmul.mubr.bf16.gmra.mrb[0].mxu0 %v4620
      %v4827 = vpop.f32.mrb[0].mxu0
      %v4828 = vadd.f32 0.0, %v4827
      %v4829 = vpop.f32.mrb[0].mxu0
      %v4830 = vpop.f32.mrb[0].mxu0
      %v4831 = vadd.f32 0.0, %v4830
      %v4832 = vpop.f32.mrb[0].mxu0
      %4833 = vmatprep.mubr.bf16.mxu0 0
      %4834 = vmatmul.mubr.bf16.gmra.mrb[0].mxu0 %v4622
      %v4835 = vpop.f32.mrb[0].mxu0
      %v4836 = vadd.f32 0.0, %v4835
      %v4837 = vpop.f32.mrb[0].mxu0
      %v4838 = vpop.f32.mrb[0].mxu0
      %v4839 = vadd.f32 0.0, %v4838
      %v4840 = vpop.f32.mrb[0].mxu0
      %4841 = vmatprep.mubr.bf16.mxu0 0
      %4842 = vmatmul.mubr.bf16.gmra.mrb[0].mxu0 %v4624
      %v4843 = vpop.f32.mrb[0].mxu0
      %v4844 = vadd.f32 0.0, %v4843
      %v4845 = vpop.f32.mrb[0].mxu0
      %v4846 = vpop.f32.mrb[0].mxu0
      %v4847 = vadd.f32 0.0, %v4846
      %v4848 = vpop.f32.mrb[0].mxu0
      %4849 = vmatprep.mubr.bf16.mxu0 0
      %4850 = vmatmul.mubr.bf16.gmra.mrb[0].mxu0 %v4626
      %v4851 = vpop.f32.mrb[0].mxu0
      %v4852 = vadd.f32 0.0, %v4851
      %v4853 = vpop.f32.mrb[0].mxu0
      %v4854 = vpop.f32.mrb[0].mxu0
      %v4855 = vadd.f32 0.0, %v4854
      %v4856 = vpop.f32.mrb[0].mxu0
      %4857 = vmatprep.mubr.bf16.mxu0 0
      %4858 = vmatmul.mubr.bf16.gmra.mrb[0].mxu0 %v4628
      %v4859 = vpop.f32.mrb[0].mxu0
      %v4860 = vadd.f32 0.0, %v4859
      %v4861 = vpop.f32.mrb[0].mxu0
      %v4862 = vpop.f32.mrb[0].mxu0
      %v4863 = vadd.f32 0.0, %v4862
      %v4864 = vpop.f32.mrb[0].mxu0
      %4865 = vmatprep.mubr.bf16.mxu0 0
      %4866 = vmatmul.mubr.bf16.gmra.mrb[0].mxu0 %v4630
      %v4867 = vpop.f32.mrb[0].mxu0
      %v4868 = vadd.f32 0.0, %v4867
      %v4869 = vpop.f32.mrb[0].mxu0
      %v4870 = vpop.f32.mrb[0].mxu0
      %v4871 = vadd.f32 0.0, %v4870
      %v4872 = vpop.f32.mrb[0].mxu0
      %4873 = vmatprep.mubr.bf16.mxu0 0
      %4874 = vmatmul.mubr.bf16.gmra.mrb[0].mxu0 %v4632
      %v4875 = vpop.f32.mrb[0].mxu0
      %v4876 = vadd.f32 0.0, %v4875
      %v4877 = vpop.f32.mrb[0].mxu0
      %v4878 = vpop.f32.mrb[0].mxu0
      %v4879 = vadd.f32 0.0, %v4878
      %v4880 = vpop.f32.mrb[0].mxu0
      %4881 = vmatprep.mubr.bf16.mxu0 0
      %4882 = vmatmul.mubr.bf16.gmra.mrb[0].mxu0 %v4634
      %v4883 = vpop.f32.mrb[0].mxu0
      %v4884 = vadd.f32 0.0, %v4883
      %v4885 = vpop.f32.mrb[0].mxu0
      %v4886 = vpop.f32.mrb[0].mxu0
      %v4887 = vadd.f32 0.0, %v4886
      %v4888 = vpop.f32.mrb[0].mxu0
      %4889 = vmatprep.mubr.bf16.mxu0 0
      %4890 = vmatmul.mubr.bf16.gmra.mrb[0].mxu0 %v4636
      %v4891 = vpop.f32.mrb[0].mxu0
      %v4892 = vadd.f32 0.0, %v4891
      %v4893 = vpop.f32.mrb[0].mxu0
      %v4894 = vpop.f32.mrb[0].mxu0
      %v4895 = vadd.f32 0.0, %v4894
      %v4896 = vpop.f32.mrb[0].mxu0
      %4897 = vmatprep.mubr.bf16.mxu0 0
      %4898 = vmatmul.mubr.bf16.gmra.mrb[0].mxu0 %v4638
      %v4899 = vpop.f32.mrb[0].mxu0
      %v4900 = vadd.f32 0.0, %v4899
      %v4901 = vpop.f32.mrb[0].mxu0
      %v4902 = vpop.f32.mrb[0].mxu0
      %v4903 = vadd.f32 0.0, %v4902
      %v4904 = vpop.f32.mrb[0].mxu0
      %4905 = vmatprep.mubr.bf16.mxu0 0
      %4906 = vmatmul.mubr.bf16.gmra.mrb[0].mxu0 %v4640
      %v4907 = vpop.f32.mrb[0].mxu0
      %v4908 = vadd.f32 0.0, %v4907
      %v4909 = vpop.f32.mrb[0].mxu0
      %v4910 = vpop.f32.mrb[0].mxu0
      %v4911 = vadd.f32 0.0, %v4910
      %v4912 = vpop.f32.mrb[0].mxu0
      %4913 = vmatprep.mubr.bf16.mxu0 0
      %4914 = vmatmul.mubr.bf16.gmra.mrb[0].mxu0 %v4642
      %v4915 = vpop.f32.mrb[0].mxu0
      %v4916 = vadd.f32 0.0, %v4915
      %v4917 = vpop.f32.mrb[0].mxu0
      %v4918 = vpop.f32.mrb[0].mxu0
      %v4919 = vadd.f32 0.0, %v4918
      %v4920 = vpop.f32.mrb[0].mxu0
      %4921 = vmatprep.mubr.bf16.mxu0 0
      %4922 = vmatmul.mubr.bf16.gmra.mrb[0].mxu0 %v4644
      %v4923 = vpop.f32.mrb[0].mxu0
      %v4924 = vadd.f32 0.0, %v4923
      %v4925 = vpop.f32.mrb[0].mxu0
      %v4926 = vpop.f32.mrb[0].mxu0
      %v4927 = vadd.f32 0.0, %v4926
      %v4928 = vpop.f32.mrb[0].mxu0
      %4929 = vmatprep.mubr.bf16.mxu0 0
      %4930 = vmatmul.mubr.bf16.gmra.mrb[0].mxu0 %v4646
      %v4931 = vpop.f32.mrb[0].mxu0
      %v4932 = vadd.f32 0.0, %v4931
      %v4933 = vpop.f32.mrb[0].mxu0
      %v4934 = vpop.f32.mrb[0].mxu0
      %v4935 = vadd.f32 0.0, %v4934
      %v4936 = vpop.f32.mrb[0].mxu0
      %4937 = vmatprep.mubr.bf16.mxu0 0
      %4938 = vmatmul.mubr.bf16.gmra.mrb[0].mxu0 %v4648
      %v4939 = vpop.f32.mrb[0].mxu0
      %v4940 = vadd.f32 0.0, %v4939
      %v4941 = vpop.f32.mrb[0].mxu0
      %v4942 = vpop.f32.mrb[0].mxu0
      %v4943 = vadd.f32 0.0, %v4942
      %v4944 = vpop.f32.mrb[0].mxu0
      %4945 = vdwg.mxu0
      %v4946 = vadd.f32 %v4531, %v4756
      %v4947 = vadd.f32 %v4532, %v4759
      %v4948 = vadd.f32 %v4533, %v4764
      %v4949 = vadd.f32 %v4534, %v4767
      %v4950 = vadd.f32 %v4535, %v4772
      %v4951 = vadd.f32 %v4536, %v4775
      %v4952 = vadd.f32 %v4537, %v4780
      %v4953 = vadd.f32 %v4538, %v4783
      %v4954 = vadd.f32 %v4539, %v4788
      %v4955 = vadd.f32 %v4540, %v4791
      %v4956 = vadd.f32 %v4541, %v4796
      %v4957 = vadd.f32 %v4542, %v4799
      %v4958 = vadd.f32 %v4543, %v4804
      %v4959 = vadd.f32 %v4544, %v4807
      %v4960 = vadd.f32 %v4545, %v4812
      %v4961 = vadd.f32 %v4546, %v4815
      %v4962 = vadd.f32 %v4547, %v4820
      %v4963 = vadd.f32 %v4548, %v4823
      %v4964 = vadd.f32 %v4549, %v4828
      %v4965 = vadd.f32 %v4550, %v4831
      %v4966 = vadd.f32 %v4551, %v4836
      %v4967 = vadd.f32 %v4552, %v4839
      %v4968 = vadd.f32 %v4553, %v4844
      %v4969 = vadd.f32 %v4554, %v4847
      %v4970 = vadd.f32 %v4555, %v4852
      %v4971 = vadd.f32 %v4556, %v4855
      %v4972 = vadd.f32 %v4557, %v4860
      %v4973 = vadd.f32 %v4558, %v4863
      %v4974 = vadd.f32 %v4559, %v4868
      %v4975 = vadd.f32 %v4560, %v4871
      %v4976 = vadd.f32 %v4561, %v4876
      %v4977 = vadd.f32 %v4562, %v4879
      %v4978 = vadd.f32 %v4563, %v4884
      %v4979 = vadd.f32 %v4564, %v4887
      %v4980 = vadd.f32 %v4565, %v4892
      %v4981 = vadd.f32 %v4566, %v4895
      %v4982 = vadd.f32 %v4567, %v4900
      %v4983 = vadd.f32 %v4568, %v4903
      %v4984 = vadd.f32 %v4569, %v4908
      %v4985 = vadd.f32 %v4570, %v4911
      %v4986 = vadd.f32 %v4571, %v4916
      %v4987 = vadd.f32 %v4572, %v4919
      %v4988 = vadd.f32 %v4573, %v4924
      %v4989 = vadd.f32 %v4574, %v4927
      %v4990 = vadd.f32 %v4575, %v4932
      %v4991 = vadd.f32 %v4576, %v4935
      %v4992 = vadd.f32 %v4577, %v4940
      %v4993 = vadd.f32 %v4578, %v4943
      %v4994 = vld [vmem:[%s2] sm:$0x1]
      %v4996 = vlaneseq
      %v4997 = vshrl.u32 %v4996, 7
      %v4998 = vsub.s32 0, %v4997
      %v4999 = vrot.slane %v4994, %v4998
      %v5001 = vadd.f32 %v4946, %v4999
      %v5002 = vadd.f32 %v4947, %v4999
      %v5003 = vadd.f32 %v4948, %v4999
      %v5004 = vadd.f32 %v4949, %v4999
      %v5005 = vadd.f32 %v4950, %v4999
      %v5006 = vadd.f32 %v4951, %v4999
      %v5007 = vadd.f32 %v4952, %v4999
      %v5008 = vadd.f32 %v4953, %v4999
      %v5009 = vadd.f32 %v4954, %v4999
      %v5010 = vadd.f32 %v4955, %v4999
      %v5011 = vadd.f32 %v4956, %v4999
      %v5012 = vadd.f32 %v4957, %v4999
      %v5013 = vadd.f32 %v4958, %v4999
      %v5014 = vadd.f32 %v4959, %v4999
      %v5015 = vadd.f32 %v4960, %v4999
      %v5016 = vadd.f32 %v4961, %v4999
      %v5017 = vadd.f32 %v4962, %v4999
      %v5018 = vadd.f32 %v4963, %v4999
      %v5019 = vadd.f32 %v4964, %v4999
      %v5020 = vadd.f32 %v4965, %v4999
      %v5021 = vadd.f32 %v4966, %v4999
      %v5022 = vadd.f32 %v4967, %v4999
      %v5023 = vadd.f32 %v4968, %v4999
      %v5024 = vadd.f32 %v4969, %v4999
      %v5025 = vadd.f32 %v4970, %v4999
      %v5026 = vadd.f32 %v4971, %v4999
      %v5027 = vadd.f32 %v4972, %v4999
      %v5028 = vadd.f32 %v4973, %v4999
      %v5029 = vadd.f32 %v4974, %v4999
      %v5030 = vadd.f32 %v4975, %v4999
      %v5031 = vadd.f32 %v4976, %v4999
      %v5032 = vadd.f32 %v4977, %v4999
      %v5033 = vadd.f32 %v4978, %v4999
      %v5034 = vadd.f32 %v4979, %v4999
      %v5035 = vadd.f32 %v4980, %v4999
      %v5036 = vadd.f32 %v4981, %v4999
      %v5037 = vadd.f32 %v4982, %v4999
      %v5038 = vadd.f32 %v4983, %v4999
      %v5039 = vadd.f32 %v4984, %v4999
      %v5040 = vadd.f32 %v4985, %v4999
      %v5041 = vadd.f32 %v4986, %v4999
      %v5042 = vadd.f32 %v4987, %v4999
      %v5043 = vadd.f32 %v4988, %v4999
      %v5044 = vadd.f32 %v4989, %v4999
      %v5045 = vadd.f32 %v4990, %v4999
      %v5046 = vadd.f32 %v4991, %v4999
      %v5047 = vadd.f32 %v4992, %v4999
      %v5048 = vadd.f32 %v4993, %v4999
      %v5049 = vmax.f32 %v5001, 0.0
      %v5050 = vmax.f32 %v5002, 0.0
      %v5051 = vmax.f32 %v5003, 0.0
      %v5052 = vmax.f32 %v5004, 0.0
      %v5053 = vmax.f32 %v5005, 0.0
      %v5054 = vmax.f32 %v5006, 0.0
      %v5055 = vmax.f32 %v5007, 0.0
      %v5056 = vmax.f32 %v5008, 0.0
      %v5057 = vmax.f32 %v5009, 0.0
      %v5058 = vmax.f32 %v5010, 0.0
      %v5059 = vmax.f32 %v5011, 0.0
      %v5060 = vmax.f32 %v5012, 0.0
      %v5061 = vmax.f32 %v5013, 0.0
      %v5062 = vmax.f32 %v5014, 0.0
      %v5063 = vmax.f32 %v5015, 0.0
      %v5064 = vmax.f32 %v5016, 0.0
      %v5065 = vmax.f32 %v5017, 0.0
      %v5066 = vmax.f32 %v5018, 0.0
      %v5067 = vmax.f32 %v5019, 0.0
      %v5068 = vmax.f32 %v5020, 0.0
      %v5069 = vmax.f32 %v5021, 0.0
      %v5070 = vmax.f32 %v5022, 0.0
      %v5071 = vmax.f32 %v5023, 0.0
      %v5072 = vmax.f32 %v5024, 0.0
      %v5073 = vmax.f32 %v5025, 0.0
      %v5074 = vmax.f32 %v5026, 0.0
      %v5075 = vmax.f32 %v5027, 0.0
      %v5076 = vmax.f32 %v5028, 0.0
      %v5077 = vmax.f32 %v5029, 0.0
      %v5078 = vmax.f32 %v5030, 0.0
      %v5079 = vmax.f32 %v5031, 0.0
      %v5080 = vmax.f32 %v5032, 0.0
      %v5081 = vmax.f32 %v5033, 0.0
      %v5082 = vmax.f32 %v5034, 0.0
      %v5083 = vmax.f32 %v5035, 0.0
      %v5084 = vmax.f32 %v5036, 0.0
      %v5085 = vmax.f32 %v5037, 0.0
      %v5086 = vmax.f32 %v5038, 0.0
      %v5087 = vmax.f32 %v5039, 0.0
      %v5088 = vmax.f32 %v5040, 0.0
      %v5089 = vmax.f32 %v5041, 0.0
      %v5090 = vmax.f32 %v5042, 0.0
      %v5091 = vmax.f32 %v5043, 0.0
      %v5092 = vmax.f32 %v5044, 0.0
      %v5093 = vmax.f32 %v5045, 0.0
      %v5094 = vmax.f32 %v5046, 0.0
      %v5095 = vmax.f32 %v5047, 0.0
      %v5096 = vmax.f32 %v5048, 0.0
      %v5097 = vlaneseq
      %v5098 = vshrl.u32 %v5097, 7
      %v5099 = vadd.s32 %v5098, 8
      %v5100 = vadd.s32 %v5098, 16
      %v5101 = vadd.s32 %v5098, 24
      %v5102 = vadd.s32 %v5098, 32
      %v5103 = vadd.s32 %v5098, 40
      %v5104 = vadd.s32 %v5098, 48
      %v5105 = vadd.s32 %v5098, 56
      %v5106 = vadd.s32 %v5098, 64
      %v5107 = vadd.s32 %v5098, 72
      %v5108 = vadd.s32 %v5098, 80
      %v5109 = vadd.s32 %v5098, 88
      %v5110 = vadd.s32 %v5098, 96
      %v5111 = vadd.s32 %v5098, 104
      %v5112 = vadd.s32 %v5098, 112
      %v5113 = vadd.s32 %v5098, 120
      %v5114 = vadd.s32 %v5098, 128
      %v5115 = vadd.s32 %v5098, 136
      %v5116 = vadd.s32 %v5098, 144
      %v5117 = vadd.s32 %v5098, 152
      %v5118 = vadd.s32 %v5098, 160
      %v5119 = vadd.s32 %v5098, 168
      %v5120 = vadd.s32 %v5098, 176
      %v5121 = vadd.s32 %v5098, 184
      %v5122 = vadd.s32 %v5098, 192
      %v5123 = vadd.s32 %v5098, 200
      %v5124 = vadd.s32 %v5098, 208
      %v5125 = vadd.s32 %v5098, 216
      %v5126 = vadd.s32 %v5098, 224
      %v5127 = vadd.s32 %v5098, 232
      %v5128 = vadd.s32 %v5098, 240
      %v5129 = vadd.s32 %v5098, 248
      %v5130 = vadd.s32 %v5098, 256
      %v5131 = vadd.s32 %v5098, 264
      %v5132 = vadd.s32 %v5098, 272
      %v5133 = vadd.s32 %v5098, 280
      %v5134 = vadd.s32 %v5098, 288
      %v5135 = vadd.s32 %v5098, 296
      %v5136 = vadd.s32 %v5098, 304
      %v5137 = vadd.s32 %v5098, 312
      %v5138 = vadd.s32 %v5098, 320
      %v5139 = vadd.s32 %v5098, 328
      %v5140 = vadd.s32 %v5098, 336
      %v5141 = vadd.s32 %v5098, 344
      %v5142 = vadd.s32 %v5098, 352
      %v5143 = vadd.s32 %v5098, 360
      %v5144 = vadd.s32 %v5098, 368
      %v5145 = vadd.s32 %v5098, 376
      %vm5146 = vcmp.lt.s32.totalorder %v5098, 0
      %v5147 = vsub.s32 0, %v5098
      %v5148 = vsel %vm5146, %v5147, %v5098
      %v5149 = vmul.u32.u64.compose %v5148, 2863311531
      %v5150 = vextract.low.u32 %v5149
      %v5151 = vextract.high.u32 %v5149
      %v5152 = vshrl.u32 %v5151, 4
      %v5153 = vmul.u32 %v5152, 24
      %v5154 = vsub.s32 %v5148, %v5153
      %v5155 = vsub.s32 0, %v5154
      %v5156 = vsel %vm5146, %v5155, %v5154
      %vm5157 = vcmp.lt.s32.totalorder %v5099, 0
      %v5158 = vsub.s32 0, %v5099
      %v5159 = vsel %vm5157, %v5158, %v5099
      %v5160 = vmul.u32.u64.compose %v5159, 2863311531
      %v5161 = vextract.low.u32 %v5160
      %v5162 = vextract.high.u32 %v5160
      %v5163 = vshrl.u32 %v5162, 4
      %v5164 = vmul.u32 %v5163, 24
      %v5165 = vsub.s32 %v5159, %v5164
      %v5166 = vsub.s32 0, %v5165
      %v5167 = vsel %vm5157, %v5166, %v5165
      %vm5168 = vcmp.lt.s32.totalorder %v5100, 0
      %v5169 = vsub.s32 0, %v5100
      %v5170 = vsel %vm5168, %v5169, %v5100
      %v5171 = vmul.u32.u64.compose %v5170, 2863311531
      %v5172 = vextract.low.u32 %v5171
      %v5173 = vextract.high.u32 %v5171
      %v5174 = vshrl.u32 %v5173, 4
      %v5175 = vmul.u32 %v5174, 24
      %v5176 = vsub.s32 %v5170, %v5175
      %v5177 = vsub.s32 0, %v5176
      %v5178 = vsel %vm5168, %v5177, %v5176
      %vm5179 = vcmp.lt.s32.totalorder %v5101, 0
      %v5180 = vsub.s32 0, %v5101
      %v5181 = vsel %vm5179, %v5180, %v5101
      %v5182 = vmul.u32.u64.compose %v5181, 2863311531
      %v5183 = vextract.low.u32 %v5182
      %v5184 = vextract.high.u32 %v5182
      %v5185 = vshrl.u32 %v5184, 4
      %v5186 = vmul.u32 %v5185, 24
      %v5187 = vsub.s32 %v5181, %v5186
      %v5188 = vsub.s32 0, %v5187
      %v5189 = vsel %vm5179, %v5188, %v5187
      %vm5190 = vcmp.lt.s32.totalorder %v5102, 0
      %v5191 = vsub.s32 0, %v5102
      %v5192 = vsel %vm5190, %v5191, %v5102
      %v5193 = vmul.u32.u64.compose %v5192, 2863311531
      %v5194 = vextract.low.u32 %v5193
      %v5195 = vextract.high.u32 %v5193
      %v5196 = vshrl.u32 %v5195, 4
      %v5197 = vmul.u32 %v5196, 24
      %v5198 = vsub.s32 %v5192, %v5197
      %v5199 = vsub.s32 0, %v5198
      %v5200 = vsel %vm5190, %v5199, %v5198
      %vm5201 = vcmp.lt.s32.totalorder %v5103, 0
      %v5202 = vsub.s32 0, %v5103
      %v5203 = vsel %vm5201, %v5202, %v5103
      %v5204 = vmul.u32.u64.compose %v5203, 2863311531
      %v5205 = vextract.low.u32 %v5204
      %v5206 = vextract.high.u32 %v5204
      %v5207 = vshrl.u32 %v5206, 4
      %v5208 = vmul.u32 %v5207, 24
      %v5209 = vsub.s32 %v5203, %v5208
      %v5210 = vsub.s32 0, %v5209
      %v5211 = vsel %vm5201, %v5210, %v5209
      %vm5212 = vcmp.lt.s32.totalorder %v5104, 0
      %v5213 = vsub.s32 0, %v5104
      %v5214 = vsel %vm5212, %v5213, %v5104
      %v5215 = vmul.u32.u64.compose %v5214, 2863311531
      %v5216 = vextract.low.u32 %v5215
      %v5217 = vextract.high.u32 %v5215
      %v5218 = vshrl.u32 %v5217, 4
      %v5219 = vmul.u32 %v5218, 24
      %v5220 = vsub.s32 %v5214, %v5219
      %v5221 = vsub.s32 0, %v5220
      %v5222 = vsel %vm5212, %v5221, %v5220
      %vm5223 = vcmp.lt.s32.totalorder %v5105, 0
      %v5224 = vsub.s32 0, %v5105
      %v5225 = vsel %vm5223, %v5224, %v5105
      %v5226 = vmul.u32.u64.compose %v5225, 2863311531
      %v5227 = vextract.low.u32 %v5226
      %v5228 = vextract.high.u32 %v5226
      %v5229 = vshrl.u32 %v5228, 4
      %v5230 = vmul.u32 %v5229, 24
      %v5231 = vsub.s32 %v5225, %v5230
      %v5232 = vsub.s32 0, %v5231
      %v5233 = vsel %vm5223, %v5232, %v5231
      %vm5234 = vcmp.lt.s32.totalorder %v5106, 0
      %v5235 = vsub.s32 0, %v5106
      %v5236 = vsel %vm5234, %v5235, %v5106
      %v5237 = vmul.u32.u64.compose %v5236, 2863311531
      %v5238 = vextract.low.u32 %v5237
      %v5239 = vextract.high.u32 %v5237
      %v5240 = vshrl.u32 %v5239, 4
      %v5241 = vmul.u32 %v5240, 24
      %v5242 = vsub.s32 %v5236, %v5241
      %v5243 = vsub.s32 0, %v5242
      %v5244 = vsel %vm5234, %v5243, %v5242
      %vm5245 = vcmp.lt.s32.totalorder %v5107, 0
      %v5246 = vsub.s32 0, %v5107
      %v5247 = vsel %vm5245, %v5246, %v5107
      %v5248 = vmul.u32.u64.compose %v5247, 2863311531
      %v5249 = vextract.low.u32 %v5248
      %v5250 = vextract.high.u32 %v5248
      %v5251 = vshrl.u32 %v5250, 4
      %v5252 = vmul.u32 %v5251, 24
      %v5253 = vsub.s32 %v5247, %v5252
      %v5254 = vsub.s32 0, %v5253
      %v5255 = vsel %vm5245, %v5254, %v5253
      %vm5256 = vcmp.lt.s32.totalorder %v5108, 0
      %v5257 = vsub.s32 0, %v5108
      %v5258 = vsel %vm5256, %v5257, %v5108
      %v5259 = vmul.u32.u64.compose %v5258, 2863311531
      %v5260 = vextract.low.u32 %v5259
      %v5261 = vextract.high.u32 %v5259
      %v5262 = vshrl.u32 %v5261, 4
      %v5263 = vmul.u32 %v5262, 24
      %v5264 = vsub.s32 %v5258, %v5263
      %v5265 = vsub.s32 0, %v5264
      %v5266 = vsel %vm5256, %v5265, %v5264
      %vm5267 = vcmp.lt.s32.totalorder %v5109, 0
      %v5268 = vsub.s32 0, %v5109
      %v5269 = vsel %vm5267, %v5268, %v5109
      %v5270 = vmul.u32.u64.compose %v5269, 2863311531
      %v5271 = vextract.low.u32 %v5270
      %v5272 = vextract.high.u32 %v5270
      %v5273 = vshrl.u32 %v5272, 4
      %v5274 = vmul.u32 %v5273, 24
      %v5275 = vsub.s32 %v5269, %v5274
      %v5276 = vsub.s32 0, %v5275
      %v5277 = vsel %vm5267, %v5276, %v5275
      %vm5278 = vcmp.lt.s32.totalorder %v5110, 0
      %v5279 = vsub.s32 0, %v5110
      %v5280 = vsel %vm5278, %v5279, %v5110
      %v5281 = vmul.u32.u64.compose %v5280, 2863311531
      %v5282 = vextract.low.u32 %v5281
      %v5283 = vextract.high.u32 %v5281
      %v5284 = vshrl.u32 %v5283, 4
      %v5285 = vmul.u32 %v5284, 24
      %v5286 = vsub.s32 %v5280, %v5285
      %v5287 = vsub.s32 0, %v5286
      %v5288 = vsel %vm5278, %v5287, %v5286
      %vm5289 = vcmp.lt.s32.totalorder %v5111, 0
      %v5290 = vsub.s32 0, %v5111
      %v5291 = vsel %vm5289, %v5290, %v5111
      %v5292 = vmul.u32.u64.compose %v5291, 2863311531
      %v5293 = vextract.low.u32 %v5292
      %v5294 = vextract.high.u32 %v5292
      %v5295 = vshrl.u32 %v5294, 4
      %v5296 = vmul.u32 %v5295, 24
      %v5297 = vsub.s32 %v5291, %v5296
      %v5298 = vsub.s32 0, %v5297
      %v5299 = vsel %vm5289, %v5298, %v5297
      %vm5300 = vcmp.lt.s32.totalorder %v5112, 0
      %v5301 = vsub.s32 0, %v5112
      %v5302 = vsel %vm5300, %v5301, %v5112
      %v5303 = vmul.u32.u64.compose %v5302, 2863311531
      %v5304 = vextract.low.u32 %v5303
      %v5305 = vextract.high.u32 %v5303
      %v5306 = vshrl.u32 %v5305, 4
      %v5307 = vmul.u32 %v5306, 24
      %v5308 = vsub.s32 %v5302, %v5307
      %v5309 = vsub.s32 0, %v5308
      %v5310 = vsel %vm5300, %v5309, %v5308
      %vm5311 = vcmp.lt.s32.totalorder %v5113, 0
      %v5312 = vsub.s32 0, %v5113
      %v5313 = vsel %vm5311, %v5312, %v5113
      %v5314 = vmul.u32.u64.compose %v5313, 2863311531
      %v5315 = vextract.low.u32 %v5314
      %v5316 = vextract.high.u32 %v5314
      %v5317 = vshrl.u32 %v5316, 4
      %v5318 = vmul.u32 %v5317, 24
      %v5319 = vsub.s32 %v5313, %v5318
      %v5320 = vsub.s32 0, %v5319
      %v5321 = vsel %vm5311, %v5320, %v5319
      %vm5322 = vcmp.lt.s32.totalorder %v5114, 0
      %v5323 = vsub.s32 0, %v5114
      %v5324 = vsel %vm5322, %v5323, %v5114
      %v5325 = vmul.u32.u64.compose %v5324, 2863311531
      %v5326 = vextract.low.u32 %v5325
      %v5327 = vextract.high.u32 %v5325
      %v5328 = vshrl.u32 %v5327, 4
      %v5329 = vmul.u32 %v5328, 24
      %v5330 = vsub.s32 %v5324, %v5329
      %v5331 = vsub.s32 0, %v5330
      %v5332 = vsel %vm5322, %v5331, %v5330
      %vm5333 = vcmp.lt.s32.totalorder %v5115, 0
      %v5334 = vsub.s32 0, %v5115
      %v5335 = vsel %vm5333, %v5334, %v5115
      %v5336 = vmul.u32.u64.compose %v5335, 2863311531
      %v5337 = vextract.low.u32 %v5336
      %v5338 = vextract.high.u32 %v5336
      %v5339 = vshrl.u32 %v5338, 4
      %v5340 = vmul.u32 %v5339, 24
      %v5341 = vsub.s32 %v5335, %v5340
      %v5342 = vsub.s32 0, %v5341
      %v5343 = vsel %vm5333, %v5342, %v5341
      %vm5344 = vcmp.lt.s32.totalorder %v5116, 0
      %v5345 = vsub.s32 0, %v5116
      %v5346 = vsel %vm5344, %v5345, %v5116
      %v5347 = vmul.u32.u64.compose %v5346, 2863311531
      %v5348 = vextract.low.u32 %v5347
      %v5349 = vextract.high.u32 %v5347
      %v5350 = vshrl.u32 %v5349, 4
      %v5351 = vmul.u32 %v5350, 24
      %v5352 = vsub.s32 %v5346, %v5351
      %v5353 = vsub.s32 0, %v5352
      %v5354 = vsel %vm5344, %v5353, %v5352
      %vm5355 = vcmp.lt.s32.totalorder %v5117, 0
      %v5356 = vsub.s32 0, %v5117
      %v5357 = vsel %vm5355, %v5356, %v5117
      %v5358 = vmul.u32.u64.compose %v5357, 2863311531
      %v5359 = vextract.low.u32 %v5358
      %v5360 = vextract.high.u32 %v5358
      %v5361 = vshrl.u32 %v5360, 4
      %v5362 = vmul.u32 %v5361, 24
      %v5363 = vsub.s32 %v5357, %v5362
      %v5364 = vsub.s32 0, %v5363
      %v5365 = vsel %vm5355, %v5364, %v5363
      %vm5366 = vcmp.lt.s32.totalorder %v5118, 0
      %v5367 = vsub.s32 0, %v5118
      %v5368 = vsel %vm5366, %v5367, %v5118
      %v5369 = vmul.u32.u64.compose %v5368, 2863311531
      %v5370 = vextract.low.u32 %v5369
      %v5371 = vextract.high.u32 %v5369
      %v5372 = vshrl.u32 %v5371, 4
      %v5373 = vmul.u32 %v5372, 24
      %v5374 = vsub.s32 %v5368, %v5373
      %v5375 = vsub.s32 0, %v5374
      %v5376 = vsel %vm5366, %v5375, %v5374
      %vm5377 = vcmp.lt.s32.totalorder %v5119, 0
      %v5378 = vsub.s32 0, %v5119
      %v5379 = vsel %vm5377, %v5378, %v5119
      %v5380 = vmul.u32.u64.compose %v5379, 2863311531
      %v5381 = vextract.low.u32 %v5380
      %v5382 = vextract.high.u32 %v5380
      %v5383 = vshrl.u32 %v5382, 4
      %v5384 = vmul.u32 %v5383, 24
      %v5385 = vsub.s32 %v5379, %v5384
      %v5386 = vsub.s32 0, %v5385
      %v5387 = vsel %vm5377, %v5386, %v5385
      %vm5388 = vcmp.lt.s32.totalorder %v5120, 0
      %v5389 = vsub.s32 0, %v5120
      %v5390 = vsel %vm5388, %v5389, %v5120
      %v5391 = vmul.u32.u64.compose %v5390, 2863311531
      %v5392 = vextract.low.u32 %v5391
      %v5393 = vextract.high.u32 %v5391
      %v5394 = vshrl.u32 %v5393, 4
      %v5395 = vmul.u32 %v5394, 24
      %v5396 = vsub.s32 %v5390, %v5395
      %v5397 = vsub.s32 0, %v5396
      %v5398 = vsel %vm5388, %v5397, %v5396
      %vm5399 = vcmp.lt.s32.totalorder %v5121, 0
      %v5400 = vsub.s32 0, %v5121
      %v5401 = vsel %vm5399, %v5400, %v5121
      %v5402 = vmul.u32.u64.compose %v5401, 2863311531
      %v5403 = vextract.low.u32 %v5402
      %v5404 = vextract.high.u32 %v5402
      %v5405 = vshrl.u32 %v5404, 4
      %v5406 = vmul.u32 %v5405, 24
      %v5407 = vsub.s32 %v5401, %v5406
      %v5408 = vsub.s32 0, %v5407
      %v5409 = vsel %vm5399, %v5408, %v5407
      %vm5410 = vcmp.lt.s32.totalorder %v5122, 0
      %v5411 = vsub.s32 0, %v5122
      %v5412 = vsel %vm5410, %v5411, %v5122
      %v5413 = vmul.u32.u64.compose %v5412, 2863311531
      %v5414 = vextract.low.u32 %v5413
      %v5415 = vextract.high.u32 %v5413
      %v5416 = vshrl.u32 %v5415, 4
      %v5417 = vmul.u32 %v5416, 24
      %v5418 = vsub.s32 %v5412, %v5417
      %v5419 = vsub.s32 0, %v5418
      %v5420 = vsel %vm5410, %v5419, %v5418
      %vm5421 = vcmp.lt.s32.totalorder %v5123, 0
      %v5422 = vsub.s32 0, %v5123
      %v5423 = vsel %vm5421, %v5422, %v5123
      %v5424 = vmul.u32.u64.compose %v5423, 2863311531
      %v5425 = vextract.low.u32 %v5424
      %v5426 = vextract.high.u32 %v5424
      %v5427 = vshrl.u32 %v5426, 4
      %v5428 = vmul.u32 %v5427, 24
      %v5429 = vsub.s32 %v5423, %v5428
      %v5430 = vsub.s32 0, %v5429
      %v5431 = vsel %vm5421, %v5430, %v5429
      %vm5432 = vcmp.lt.s32.totalorder %v5124, 0
      %v5433 = vsub.s32 0, %v5124
      %v5434 = vsel %vm5432, %v5433, %v5124
      %v5435 = vmul.u32.u64.compose %v5434, 2863311531
      %v5436 = vextract.low.u32 %v5435
      %v5437 = vextract.high.u32 %v5435
      %v5438 = vshrl.u32 %v5437, 4
      %v5439 = vmul.u32 %v5438, 24
      %v5440 = vsub.s32 %v5434, %v5439
      %v5441 = vsub.s32 0, %v5440
      %v5442 = vsel %vm5432, %v5441, %v5440
      %vm5443 = vcmp.lt.s32.totalorder %v5125, 0
      %v5444 = vsub.s32 0, %v5125
      %v5445 = vsel %vm5443, %v5444, %v5125
      %v5446 = vmul.u32.u64.compose %v5445, 2863311531
      %v5447 = vextract.low.u32 %v5446
      %v5448 = vextract.high.u32 %v5446
      %v5449 = vshrl.u32 %v5448, 4
      %v5450 = vmul.u32 %v5449, 24
      %v5451 = vsub.s32 %v5445, %v5450
      %v5452 = vsub.s32 0, %v5451
      %v5453 = vsel %vm5443, %v5452, %v5451
      %vm5454 = vcmp.lt.s32.totalorder %v5126, 0
      %v5455 = vsub.s32 0, %v5126
      %v5456 = vsel %vm5454, %v5455, %v5126
      %v5457 = vmul.u32.u64.compose %v5456, 2863311531
      %v5458 = vextract.low.u32 %v5457
      %v5459 = vextract.high.u32 %v5457
      %v5460 = vshrl.u32 %v5459, 4
      %v5461 = vmul.u32 %v5460, 24
      %v5462 = vsub.s32 %v5456, %v5461
      %v5463 = vsub.s32 0, %v5462
      %v5464 = vsel %vm5454, %v5463, %v5462
      %vm5465 = vcmp.lt.s32.totalorder %v5127, 0
      %v5466 = vsub.s32 0, %v5127
      %v5467 = vsel %vm5465, %v5466, %v5127
      %v5468 = vmul.u32.u64.compose %v5467, 2863311531
      %v5469 = vextract.low.u32 %v5468
      %v5470 = vextract.high.u32 %v5468
      %v5471 = vshrl.u32 %v5470, 4
      %v5472 = vmul.u32 %v5471, 24
      %v5473 = vsub.s32 %v5467, %v5472
      %v5474 = vsub.s32 0, %v5473
      %v5475 = vsel %vm5465, %v5474, %v5473
      %vm5476 = vcmp.lt.s32.totalorder %v5128, 0
      %v5477 = vsub.s32 0, %v5128
      %v5478 = vsel %vm5476, %v5477, %v5128
      %v5479 = vmul.u32.u64.compose %v5478, 2863311531
      %v5480 = vextract.low.u32 %v5479
      %v5481 = vextract.high.u32 %v5479
      %v5482 = vshrl.u32 %v5481, 4
      %v5483 = vmul.u32 %v5482, 24
      %v5484 = vsub.s32 %v5478, %v5483
      %v5485 = vsub.s32 0, %v5484
      %v5486 = vsel %vm5476, %v5485, %v5484
      %vm5487 = vcmp.lt.s32.totalorder %v5129, 0
      %v5488 = vsub.s32 0, %v5129
      %v5489 = vsel %vm5487, %v5488, %v5129
      %v5490 = vmul.u32.u64.compose %v5489, 2863311531
      %v5491 = vextract.low.u32 %v5490
      %v5492 = vextract.high.u32 %v5490
      %v5493 = vshrl.u32 %v5492, 4
      %v5494 = vmul.u32 %v5493, 24
      %v5495 = vsub.s32 %v5489, %v5494
      %v5496 = vsub.s32 0, %v5495
      %v5497 = vsel %vm5487, %v5496, %v5495
      %vm5498 = vcmp.lt.s32.totalorder %v5130, 0
      %v5499 = vsub.s32 0, %v5130
      %v5500 = vsel %vm5498, %v5499, %v5130
      %v5501 = vmul.u32.u64.compose %v5500, 2863311531
      %v5502 = vextract.low.u32 %v5501
      %v5503 = vextract.high.u32 %v5501
      %v5504 = vshrl.u32 %v5503, 4
      %v5505 = vmul.u32 %v5504, 24
      %v5506 = vsub.s32 %v5500, %v5505
      %v5507 = vsub.s32 0, %v5506
      %v5508 = vsel %vm5498, %v5507, %v5506
      %vm5509 = vcmp.lt.s32.totalorder %v5131, 0
      %v5510 = vsub.s32 0, %v5131
      %v5511 = vsel %vm5509, %v5510, %v5131
      %v5512 = vmul.u32.u64.compose %v5511, 2863311531
      %v5513 = vextract.low.u32 %v5512
      %v5514 = vextract.high.u32 %v5512
      %v5515 = vshrl.u32 %v5514, 4
      %v5516 = vmul.u32 %v5515, 24
      %v5517 = vsub.s32 %v5511, %v5516
      %v5518 = vsub.s32 0, %v5517
      %v5519 = vsel %vm5509, %v5518, %v5517
      %vm5520 = vcmp.lt.s32.totalorder %v5132, 0
      %v5521 = vsub.s32 0, %v5132
      %v5522 = vsel %vm5520, %v5521, %v5132
      %v5523 = vmul.u32.u64.compose %v5522, 2863311531
      %v5524 = vextract.low.u32 %v5523
      %v5525 = vextract.high.u32 %v5523
      %v5526 = vshrl.u32 %v5525, 4
      %v5527 = vmul.u32 %v5526, 24
      %v5528 = vsub.s32 %v5522, %v5527
      %v5529 = vsub.s32 0, %v5528
      %v5530 = vsel %vm5520, %v5529, %v5528
      %vm5531 = vcmp.lt.s32.totalorder %v5133, 0
      %v5532 = vsub.s32 0, %v5133
      %v5533 = vsel %vm5531, %v5532, %v5133
      %v5534 = vmul.u32.u64.compose %v5533, 2863311531
      %v5535 = vextract.low.u32 %v5534
      %v5536 = vextract.high.u32 %v5534
      %v5537 = vshrl.u32 %v5536, 4
      %v5538 = vmul.u32 %v5537, 24
      %v5539 = vsub.s32 %v5533, %v5538
      %v5540 = vsub.s32 0, %v5539
      %v5541 = vsel %vm5531, %v5540, %v5539
      %vm5542 = vcmp.lt.s32.totalorder %v5134, 0
      %v5543 = vsub.s32 0, %v5134
      %v5544 = vsel %vm5542, %v5543, %v5134
      %v5545 = vmul.u32.u64.compose %v5544, 2863311531
      %v5546 = vextract.low.u32 %v5545
      %v5547 = vextract.high.u32 %v5545
      %v5548 = vshrl.u32 %v5547, 4
      %v5549 = vmul.u32 %v5548, 24
      %v5550 = vsub.s32 %v5544, %v5549
      %v5551 = vsub.s32 0, %v5550
      %v5552 = vsel %vm5542, %v5551, %v5550
      %vm5553 = vcmp.lt.s32.totalorder %v5135, 0
      %v5554 = vsub.s32 0, %v5135
      %v5555 = vsel %vm5553, %v5554, %v5135
      %v5556 = vmul.u32.u64.compose %v5555, 2863311531
      %v5557 = vextract.low.u32 %v5556
      %v5558 = vextract.high.u32 %v5556
      %v5559 = vshrl.u32 %v5558, 4
      %v5560 = vmul.u32 %v5559, 24
      %v5561 = vsub.s32 %v5555, %v5560
      %v5562 = vsub.s32 0, %v5561
      %v5563 = vsel %vm5553, %v5562, %v5561
      %vm5564 = vcmp.lt.s32.totalorder %v5136, 0
      %v5565 = vsub.s32 0, %v5136
      %v5566 = vsel %vm5564, %v5565, %v5136
      %v5567 = vmul.u32.u64.compose %v5566, 2863311531
      %v5568 = vextract.low.u32 %v5567
      %v5569 = vextract.high.u32 %v5567
      %v5570 = vshrl.u32 %v5569, 4
      %v5571 = vmul.u32 %v5570, 24
      %v5572 = vsub.s32 %v5566, %v5571
      %v5573 = vsub.s32 0, %v5572
      %v5574 = vsel %vm5564, %v5573, %v5572
      %vm5575 = vcmp.lt.s32.totalorder %v5137, 0
      %v5576 = vsub.s32 0, %v5137
      %v5577 = vsel %vm5575, %v5576, %v5137
      %v5578 = vmul.u32.u64.compose %v5577, 2863311531
      %v5579 = vextract.low.u32 %v5578
      %v5580 = vextract.high.u32 %v5578
      %v5581 = vshrl.u32 %v5580, 4
      %v5582 = vmul.u32 %v5581, 24
      %v5583 = vsub.s32 %v5577, %v5582
      %v5584 = vsub.s32 0, %v5583
      %v5585 = vsel %vm5575, %v5584, %v5583
      %vm5586 = vcmp.lt.s32.totalorder %v5138, 0
      %v5587 = vsub.s32 0, %v5138
      %v5588 = vsel %vm5586, %v5587, %v5138
      %v5589 = vmul.u32.u64.compose %v5588, 2863311531
      %v5590 = vextract.low.u32 %v5589
      %v5591 = vextract.high.u32 %v5589
      %v5592 = vshrl.u32 %v5591, 4
      %v5593 = vmul.u32 %v5592, 24
      %v5594 = vsub.s32 %v5588, %v5593
      %v5595 = vsub.s32 0, %v5594
      %v5596 = vsel %vm5586, %v5595, %v5594
      %vm5597 = vcmp.lt.s32.totalorder %v5139, 0
      %v5598 = vsub.s32 0, %v5139
      %v5599 = vsel %vm5597, %v5598, %v5139
      %v5600 = vmul.u32.u64.compose %v5599, 2863311531
      %v5601 = vextract.low.u32 %v5600
      %v5602 = vextract.high.u32 %v5600
      %v5603 = vshrl.u32 %v5602, 4
      %v5604 = vmul.u32 %v5603, 24
      %v5605 = vsub.s32 %v5599, %v5604
      %v5606 = vsub.s32 0, %v5605
      %v5607 = vsel %vm5597, %v5606, %v5605
      %vm5608 = vcmp.lt.s32.totalorder %v5140, 0
      %v5609 = vsub.s32 0, %v5140
      %v5610 = vsel %vm5608, %v5609, %v5140
      %v5611 = vmul.u32.u64.compose %v5610, 2863311531
      %v5612 = vextract.low.u32 %v5611
      %v5613 = vextract.high.u32 %v5611
      %v5614 = vshrl.u32 %v5613, 4
      %v5615 = vmul.u32 %v5614, 24
      %v5616 = vsub.s32 %v5610, %v5615
      %v5617 = vsub.s32 0, %v5616
      %v5618 = vsel %vm5608, %v5617, %v5616
      %vm5619 = vcmp.lt.s32.totalorder %v5141, 0
      %v5620 = vsub.s32 0, %v5141
      %v5621 = vsel %vm5619, %v5620, %v5141
      %v5622 = vmul.u32.u64.compose %v5621, 2863311531
      %v5623 = vextract.low.u32 %v5622
      %v5624 = vextract.high.u32 %v5622
      %v5625 = vshrl.u32 %v5624, 4
      %v5626 = vmul.u32 %v5625, 24
      %v5627 = vsub.s32 %v5621, %v5626
      %v5628 = vsub.s32 0, %v5627
      %v5629 = vsel %vm5619, %v5628, %v5627
      %vm5630 = vcmp.lt.s32.totalorder %v5142, 0
      %v5631 = vsub.s32 0, %v5142
      %v5632 = vsel %vm5630, %v5631, %v5142
      %v5633 = vmul.u32.u64.compose %v5632, 2863311531
      %v5634 = vextract.low.u32 %v5633
      %v5635 = vextract.high.u32 %v5633
      %v5636 = vshrl.u32 %v5635, 4
      %v5637 = vmul.u32 %v5636, 24
      %v5638 = vsub.s32 %v5632, %v5637
      %v5639 = vsub.s32 0, %v5638
      %v5640 = vsel %vm5630, %v5639, %v5638
      %vm5641 = vcmp.lt.s32.totalorder %v5143, 0
      %v5642 = vsub.s32 0, %v5143
      %v5643 = vsel %vm5641, %v5642, %v5143
      %v5644 = vmul.u32.u64.compose %v5643, 2863311531
      %v5645 = vextract.low.u32 %v5644
      %v5646 = vextract.high.u32 %v5644
      %v5647 = vshrl.u32 %v5646, 4
      %v5648 = vmul.u32 %v5647, 24
      %v5649 = vsub.s32 %v5643, %v5648
      %v5650 = vsub.s32 0, %v5649
      %v5651 = vsel %vm5641, %v5650, %v5649
      %vm5652 = vcmp.lt.s32.totalorder %v5144, 0
      %v5653 = vsub.s32 0, %v5144
      %v5654 = vsel %vm5652, %v5653, %v5144
      %v5655 = vmul.u32.u64.compose %v5654, 2863311531
      %v5656 = vextract.low.u32 %v5655
      %v5657 = vextract.high.u32 %v5655
      %v5658 = vshrl.u32 %v5657, 4
      %v5659 = vmul.u32 %v5658, 24
      %v5660 = vsub.s32 %v5654, %v5659
      %v5661 = vsub.s32 0, %v5660
      %v5662 = vsel %vm5652, %v5661, %v5660
      %vm5663 = vcmp.lt.s32.totalorder %v5145, 0
      %v5664 = vsub.s32 0, %v5145
      %v5665 = vsel %vm5663, %v5664, %v5145
      %v5666 = vmul.u32.u64.compose %v5665, 2863311531
      %v5667 = vextract.low.u32 %v5666
      %v5668 = vextract.high.u32 %v5666
      %v5669 = vshrl.u32 %v5668, 4
      %v5670 = vmul.u32 %v5669, 24
      %v5671 = vsub.s32 %v5665, %v5670
      %v5672 = vsub.s32 0, %v5671
      %v5673 = vsel %vm5663, %v5672, %v5671
      %vm5674 = vcmp.ne.s32.totalorder %v5156, 0
      %vm5675 = vcmp.ne.s32.totalorder %v5167, 0
      %vm5676 = vcmp.ne.s32.totalorder %v5178, 0
      %vm5677 = vcmp.ne.s32.totalorder %v5189, 0
      %vm5678 = vcmp.ne.s32.totalorder %v5200, 0
      %vm5679 = vcmp.ne.s32.totalorder %v5211, 0
      %vm5680 = vcmp.ne.s32.totalorder %v5222, 0
      %vm5681 = vcmp.ne.s32.totalorder %v5233, 0
      %vm5682 = vcmp.ne.s32.totalorder %v5244, 0
      %vm5683 = vcmp.ne.s32.totalorder %v5255, 0
      %vm5684 = vcmp.ne.s32.totalorder %v5266, 0
      %vm5685 = vcmp.ne.s32.totalorder %v5277, 0
      %vm5686 = vcmp.ne.s32.totalorder %v5288, 0
      %vm5687 = vcmp.ne.s32.totalorder %v5299, 0
      %vm5688 = vcmp.ne.s32.totalorder %v5310, 0
      %vm5689 = vcmp.ne.s32.totalorder %v5321, 0
      %vm5690 = vcmp.ne.s32.totalorder %v5332, 0
      %vm5691 = vcmp.ne.s32.totalorder %v5343, 0
      %vm5692 = vcmp.ne.s32.totalorder %v5354, 0
      %vm5693 = vcmp.ne.s32.totalorder %v5365, 0
      %vm5694 = vcmp.ne.s32.totalorder %v5376, 0
      %vm5695 = vcmp.ne.s32.totalorder %v5387, 0
      %vm5696 = vcmp.ne.s32.totalorder %v5398, 0
      %vm5697 = vcmp.ne.s32.totalorder %v5409, 0
      %vm5698 = vcmp.ne.s32.totalorder %v5420, 0
      %vm5699 = vcmp.ne.s32.totalorder %v5431, 0
      %vm5700 = vcmp.ne.s32.totalorder %v5442, 0
      %vm5701 = vcmp.ne.s32.totalorder %v5453, 0
      %vm5702 = vcmp.ne.s32.totalorder %v5464, 0
      %vm5703 = vcmp.ne.s32.totalorder %v5475, 0
      %vm5704 = vcmp.ne.s32.totalorder %v5486, 0
      %vm5705 = vcmp.ne.s32.totalorder %v5497, 0
      %vm5706 = vcmp.ne.s32.totalorder %v5508, 0
      %vm5707 = vcmp.ne.s32.totalorder %v5519, 0
      %vm5708 = vcmp.ne.s32.totalorder %v5530, 0
      %vm5709 = vcmp.ne.s32.totalorder %v5541, 0
      %vm5710 = vcmp.ne.s32.totalorder %v5552, 0
      %vm5711 = vcmp.ne.s32.totalorder %v5563, 0
      %vm5712 = vcmp.ne.s32.totalorder %v5574, 0
      %vm5713 = vcmp.ne.s32.totalorder %v5585, 0
      %vm5714 = vcmp.ne.s32.totalorder %v5596, 0
      %vm5715 = vcmp.ne.s32.totalorder %v5607, 0
      %vm5716 = vcmp.ne.s32.totalorder %v5618, 0
      %vm5717 = vcmp.ne.s32.totalorder %v5629, 0
      %vm5718 = vcmp.ne.s32.totalorder %v5640, 0
      %vm5719 = vcmp.ne.s32.totalorder %v5651, 0
      %vm5720 = vcmp.ne.s32.totalorder %v5662, 0
      %vm5721 = vcmp.ne.s32.totalorder %v5673, 0
      %vm5722 = vcmp.lt.s32.totalorder %v5156, 0
      %vm5723 = vcmp.lt.s32.totalorder %v5167, 0
      %vm5724 = vcmp.lt.s32.totalorder %v5178, 0
      %vm5725 = vcmp.lt.s32.totalorder %v5189, 0
      %vm5726 = vcmp.lt.s32.totalorder %v5200, 0
      %vm5727 = vcmp.lt.s32.totalorder %v5211, 0
      %vm5728 = vcmp.lt.s32.totalorder %v5222, 0
      %vm5729 = vcmp.lt.s32.totalorder %v5233, 0
      %vm5730 = vcmp.lt.s32.totalorder %v5244, 0
      %vm5731 = vcmp.lt.s32.totalorder %v5255, 0
      %vm5732 = vcmp.lt.s32.totalorder %v5266, 0
      %vm5733 = vcmp.lt.s32.totalorder %v5277, 0
      %vm5734 = vcmp.lt.s32.totalorder %v5288, 0
      %vm5735 = vcmp.lt.s32.totalorder %v5299, 0
      %vm5736 = vcmp.lt.s32.totalorder %v5310, 0
      %vm5737 = vcmp.lt.s32.totalorder %v5321, 0
      %vm5738 = vcmp.lt.s32.totalorder %v5332, 0
      %vm5739 = vcmp.lt.s32.totalorder %v5343, 0
      %vm5740 = vcmp.lt.s32.totalorder %v5354, 0
      %vm5741 = vcmp.lt.s32.totalorder %v5365, 0
      %vm5742 = vcmp.lt.s32.totalorder %v5376, 0
      %vm5743 = vcmp.lt.s32.totalorder %v5387, 0
      %vm5744 = vcmp.lt.s32.totalorder %v5398, 0
      %vm5745 = vcmp.lt.s32.totalorder %v5409, 0
      %vm5746 = vcmp.lt.s32.totalorder %v5420, 0
      %vm5747 = vcmp.lt.s32.totalorder %v5431, 0
      %vm5748 = vcmp.lt.s32.totalorder %v5442, 0
      %vm5749 = vcmp.lt.s32.totalorder %v5453, 0
      %vm5750 = vcmp.lt.s32.totalorder %v5464, 0
      %vm5751 = vcmp.lt.s32.totalorder %v5475, 0
      %vm5752 = vcmp.lt.s32.totalorder %v5486, 0
      %vm5753 = vcmp.lt.s32.totalorder %v5497, 0
      %vm5754 = vcmp.lt.s32.totalorder %v5508, 0
      %vm5755 = vcmp.lt.s32.totalorder %v5519, 0
      %vm5756 = vcmp.lt.s32.totalorder %v5530, 0
      %vm5757 = vcmp.lt.s32.totalorder %v5541, 0
      %vm5758 = vcmp.lt.s32.totalorder %v5552, 0
      %vm5759 = vcmp.lt.s32.totalorder %v5563, 0
      %vm5760 = vcmp.lt.s32.totalorder %v5574, 0
      %vm5761 = vcmp.lt.s32.totalorder %v5585, 0
      %vm5762 = vcmp.lt.s32.totalorder %v5596, 0
      %vm5763 = vcmp.lt.s32.totalorder %v5607, 0
      %vm5764 = vcmp.lt.s32.totalorder %v5618, 0
      %vm5765 = vcmp.lt.s32.totalorder %v5629, 0
      %vm5766 = vcmp.lt.s32.totalorder %v5640, 0
      %vm5767 = vcmp.lt.s32.totalorder %v5651, 0
      %vm5768 = vcmp.lt.s32.totalorder %v5662, 0
      %vm5769 = vcmp.lt.s32.totalorder %v5673, 0
      %vm5770 = vmand %vm5722, %vm5674
      %vm5771 = vmand %vm5723, %vm5675
      %vm5772 = vmand %vm5724, %vm5676
      %vm5773 = vmand %vm5725, %vm5677
      %vm5774 = vmand %vm5726, %vm5678
      %vm5775 = vmand %vm5727, %vm5679
      %vm5776 = vmand %vm5728, %vm5680
      %vm5777 = vmand %vm5729, %vm5681
      %vm5778 = vmand %vm5730, %vm5682
      %vm5779 = vmand %vm5731, %vm5683
      %vm5780 = vmand %vm5732, %vm5684
      %vm5781 = vmand %vm5733, %vm5685
      %vm5782 = vmand %vm5734, %vm5686
      %vm5783 = vmand %vm5735, %vm5687
      %vm5784 = vmand %vm5736, %vm5688
      %vm5785 = vmand %vm5737, %vm5689
      %vm5786 = vmand %vm5738, %vm5690
      %vm5787 = vmand %vm5739, %vm5691
      %vm5788 = vmand %vm5740, %vm5692
      %vm5789 = vmand %vm5741, %vm5693
      %vm5790 = vmand %vm5742, %vm5694
      %vm5791 = vmand %vm5743, %vm5695
      %vm5792 = vmand %vm5744, %vm5696
      %vm5793 = vmand %vm5745, %vm5697
      %vm5794 = vmand %vm5746, %vm5698
      %vm5795 = vmand %vm5747, %vm5699
      %vm5796 = vmand %vm5748, %vm5700
      %vm5797 = vmand %vm5749, %vm5701
      %vm5798 = vmand %vm5750, %vm5702
      %vm5799 = vmand %vm5751, %vm5703
      %vm5800 = vmand %vm5752, %vm5704
      %vm5801 = vmand %vm5753, %vm5705
      %vm5802 = vmand %vm5754, %vm5706
      %vm5803 = vmand %vm5755, %vm5707
      %vm5804 = vmand %vm5756, %vm5708
      %vm5805 = vmand %vm5757, %vm5709
      %vm5806 = vmand %vm5758, %vm5710
      %vm5807 = vmand %vm5759, %vm5711
      %vm5808 = vmand %vm5760, %vm5712
      %vm5809 = vmand %vm5761, %vm5713
      %vm5810 = vmand %vm5762, %vm5714
      %vm5811 = vmand %vm5763, %vm5715
      %vm5812 = vmand %vm5764, %vm5716
      %vm5813 = vmand %vm5765, %vm5717
      %vm5814 = vmand %vm5766, %vm5718
      %vm5815 = vmand %vm5767, %vm5719
      %vm5816 = vmand %vm5768, %vm5720
      %vm5817 = vmand %vm5769, %vm5721
      %v5818 = vadd.s32 %v5156, 24
      %v5819 = vadd.s32 %v5167, 24
      %v5820 = vadd.s32 %v5178, 24
      %v5821 = vadd.s32 %v5189, 24
      %v5822 = vadd.s32 %v5200, 24
      %v5823 = vadd.s32 %v5211, 24
      %v5824 = vadd.s32 %v5222, 24
      %v5825 = vadd.s32 %v5233, 24
      %v5826 = vadd.s32 %v5244, 24
      %v5827 = vadd.s32 %v5255, 24
      %v5828 = vadd.s32 %v5266, 24
      %v5829 = vadd.s32 %v5277, 24
      %v5830 = vadd.s32 %v5288, 24
      %v5831 = vadd.s32 %v5299, 24
      %v5832 = vadd.s32 %v5310, 24
      %v5833 = vadd.s32 %v5321, 24
      %v5834 = vadd.s32 %v5332, 24
      %v5835 = vadd.s32 %v5343, 24
      %v5836 = vadd.s32 %v5354, 24
      %v5837 = vadd.s32 %v5365, 24
      %v5838 = vadd.s32 %v5376, 24
      %v5839 = vadd.s32 %v5387, 24
      %v5840 = vadd.s32 %v5398, 24
      %v5841 = vadd.s32 %v5409, 24
      %v5842 = vadd.s32 %v5420, 24
      %v5843 = vadd.s32 %v5431, 24
      %v5844 = vadd.s32 %v5442, 24
      %v5845 = vadd.s32 %v5453, 24
      %v5846 = vadd.s32 %v5464, 24
      %v5847 = vadd.s32 %v5475, 24
      %v5848 = vadd.s32 %v5486, 24
      %v5849 = vadd.s32 %v5497, 24
      %v5850 = vadd.s32 %v5508, 24
      %v5851 = vadd.s32 %v5519, 24
      %v5852 = vadd.s32 %v5530, 24
      %v5853 = vadd.s32 %v5541, 24
      %v5854 = vadd.s32 %v5552, 24
      %v5855 = vadd.s32 %v5563, 24
      %v5856 = vadd.s32 %v5574, 24
      %v5857 = vadd.s32 %v5585, 24
      %v5858 = vadd.s32 %v5596, 24
      %v5859 = vadd.s32 %v5607, 24
      %v5860 = vadd.s32 %v5618, 24
      %v5861 = vadd.s32 %v5629, 24
      %v5862 = vadd.s32 %v5640, 24
      %v5863 = vadd.s32 %v5651, 24
      %v5864 = vadd.s32 %v5662, 24
      %v5865 = vadd.s32 %v5673, 24
      %v5866 = vsel %vm5770, %v5818, %v5156
      %v5867 = vsel %vm5771, %v5819, %v5167
      %v5868 = vsel %vm5772, %v5820, %v5178
      %v5869 = vsel %vm5773, %v5821, %v5189
      %v5870 = vsel %vm5774, %v5822, %v5200
      %v5871 = vsel %vm5775, %v5823, %v5211
      %v5872 = vsel %vm5776, %v5824, %v5222
      %v5873 = vsel %vm5777, %v5825, %v5233
      %v5874 = vsel %vm5778, %v5826, %v5244
      %v5875 = vsel %vm5779, %v5827, %v5255
      %v5876 = vsel %vm5780, %v5828, %v5266
      %v5877 = vsel %vm5781, %v5829, %v5277
      %v5878 = vsel %vm5782, %v5830, %v5288
      %v5879 = vsel %vm5783, %v5831, %v5299
      %v5880 = vsel %vm5784, %v5832, %v5310
      %v5881 = vsel %vm5785, %v5833, %v5321
      %v5882 = vsel %vm5786, %v5834, %v5332
      %v5883 = vsel %vm5787, %v5835, %v5343
      %v5884 = vsel %vm5788, %v5836, %v5354
      %v5885 = vsel %vm5789, %v5837, %v5365
      %v5886 = vsel %vm5790, %v5838, %v5376
      %v5887 = vsel %vm5791, %v5839, %v5387
      %v5888 = vsel %vm5792, %v5840, %v5398
      %v5889 = vsel %vm5793, %v5841, %v5409
      %v5890 = vsel %vm5794, %v5842, %v5420
      %v5891 = vsel %vm5795, %v5843, %v5431
      %v5892 = vsel %vm5796, %v5844, %v5442
      %v5893 = vsel %vm5797, %v5845, %v5453
      %v5894 = vsel %vm5798, %v5846, %v5464
      %v5895 = vsel %vm5799, %v5847, %v5475
      %v5896 = vsel %vm5800, %v5848, %v5486
      %v5897 = vsel %vm5801, %v5849, %v5497
      %v5898 = vsel %vm5802, %v5850, %v5508
      %v5899 = vsel %vm5803, %v5851, %v5519
      %v5900 = vsel %vm5804, %v5852, %v5530
      %v5901 = vsel %vm5805, %v5853, %v5541
      %v5902 = vsel %vm5806, %v5854, %v5552
      %v5903 = vsel %vm5807, %v5855, %v5563
      %v5904 = vsel %vm5808, %v5856, %v5574
      %v5905 = vsel %vm5809, %v5857, %v5585
      %v5906 = vsel %vm5810, %v5858, %v5596
      %v5907 = vsel %vm5811, %v5859, %v5607
      %v5908 = vsel %vm5812, %v5860, %v5618
      %v5909 = vsel %vm5813, %v5861, %v5629
      %v5910 = vsel %vm5814, %v5862, %v5640
      %v5911 = vsel %vm5815, %v5863, %v5651
      %v5912 = vsel %vm5816, %v5864, %v5662
      %v5913 = vsel %vm5817, %v5865, %v5673
      %vm5914 = vcmp.lt.s32.totalorder %v5866, 16
      %vm5915 = vcmp.lt.s32.totalorder %v5867, 16
      %vm5916 = vcmp.lt.s32.totalorder %v5868, 16
      %vm5917 = vcmp.lt.s32.totalorder %v5869, 16
      %vm5918 = vcmp.lt.s32.totalorder %v5870, 16
      %vm5919 = vcmp.lt.s32.totalorder %v5871, 16
      %vm5920 = vcmp.lt.s32.totalorder %v5872, 16
      %vm5921 = vcmp.lt.s32.totalorder %v5873, 16
      %vm5922 = vcmp.lt.s32.totalorder %v5874, 16
      %vm5923 = vcmp.lt.s32.totalorder %v5875, 16
      %vm5924 = vcmp.lt.s32.totalorder %v5876, 16
      %vm5925 = vcmp.lt.s32.totalorder %v5877, 16
      %vm5926 = vcmp.lt.s32.totalorder %v5878, 16
      %vm5927 = vcmp.lt.s32.totalorder %v5879, 16
      %vm5928 = vcmp.lt.s32.totalorder %v5880, 16
      %vm5929 = vcmp.lt.s32.totalorder %v5881, 16
      %vm5930 = vcmp.lt.s32.totalorder %v5882, 16
      %vm5931 = vcmp.lt.s32.totalorder %v5883, 16
      %vm5932 = vcmp.lt.s32.totalorder %v5884, 16
      %vm5933 = vcmp.lt.s32.totalorder %v5885, 16
      %vm5934 = vcmp.lt.s32.totalorder %v5886, 16
      %vm5935 = vcmp.lt.s32.totalorder %v5887, 16
      %vm5936 = vcmp.lt.s32.totalorder %v5888, 16
      %vm5937 = vcmp.lt.s32.totalorder %v5889, 16
      %vm5938 = vcmp.lt.s32.totalorder %v5890, 16
      %vm5939 = vcmp.lt.s32.totalorder %v5891, 16
      %vm5940 = vcmp.lt.s32.totalorder %v5892, 16
      %vm5941 = vcmp.lt.s32.totalorder %v5893, 16
      %vm5942 = vcmp.lt.s32.totalorder %v5894, 16
      %vm5943 = vcmp.lt.s32.totalorder %v5895, 16
      %vm5944 = vcmp.lt.s32.totalorder %v5896, 16
      %vm5945 = vcmp.lt.s32.totalorder %v5897, 16
      %vm5946 = vcmp.lt.s32.totalorder %v5898, 16
      %vm5947 = vcmp.lt.s32.totalorder %v5899, 16
      %vm5948 = vcmp.lt.s32.totalorder %v5900, 16
      %vm5949 = vcmp.lt.s32.totalorder %v5901, 16
      %vm5950 = vcmp.lt.s32.totalorder %v5902, 16
      %vm5951 = vcmp.lt.s32.totalorder %v5903, 16
      %vm5952 = vcmp.lt.s32.totalorder %v5904, 16
      %vm5953 = vcmp.lt.s32.totalorder %v5905, 16
      %vm5954 = vcmp.lt.s32.totalorder %v5906, 16
      %vm5955 = vcmp.lt.s32.totalorder %v5907, 16
      %vm5956 = vcmp.lt.s32.totalorder %v5908, 16
      %vm5957 = vcmp.lt.s32.totalorder %v5909, 16
      %vm5958 = vcmp.lt.s32.totalorder %v5910, 16
      %vm5959 = vcmp.lt.s32.totalorder %v5911, 16
      %vm5960 = vcmp.lt.s32.totalorder %v5912, 16
      %vm5961 = vcmp.lt.s32.totalorder %v5913, 16
      %v5962 = vsel %vm5914, 1, 0
      %v5963 = vsel %vm5915, 1, 0
      %v5964 = vsel %vm5916, 1, 0
      %v5965 = vsel %vm5917, 1, 0
      %v5966 = vsel %vm5918, 1, 0
      %v5967 = vsel %vm5919, 1, 0
      %v5968 = vsel %vm5920, 1, 0
      %v5969 = vsel %vm5921, 1, 0
      %v5970 = vsel %vm5922, 1, 0
      %v5971 = vsel %vm5923, 1, 0
      %v5972 = vsel %vm5924, 1, 0
      %v5973 = vsel %vm5925, 1, 0
      %v5974 = vsel %vm5926, 1, 0
      %v5975 = vsel %vm5927, 1, 0
      %v5976 = vsel %vm5928, 1, 0
      %v5977 = vsel %vm5929, 1, 0
      %v5978 = vsel %vm5930, 1, 0
      %v5979 = vsel %vm5931, 1, 0
      %v5980 = vsel %vm5932, 1, 0
      %v5981 = vsel %vm5933, 1, 0
      %v5982 = vsel %vm5934, 1, 0
      %v5983 = vsel %vm5935, 1, 0
      %v5984 = vsel %vm5936, 1, 0
      %v5985 = vsel %vm5937, 1, 0
      %v5986 = vsel %vm5938, 1, 0
      %v5987 = vsel %vm5939, 1, 0
      %v5988 = vsel %vm5940, 1, 0
      %v5989 = vsel %vm5941, 1, 0
      %v5990 = vsel %vm5942, 1, 0
      %v5991 = vsel %vm5943, 1, 0
      %v5992 = vsel %vm5944, 1, 0
      %v5993 = vsel %vm5945, 1, 0
      %v5994 = vsel %vm5946, 1, 0
      %v5995 = vsel %vm5947, 1, 0
      %v5996 = vsel %vm5948, 1, 0
      %v5997 = vsel %vm5949, 1, 0
      %v5998 = vsel %vm5950, 1, 0
      %v5999 = vsel %vm5951, 1, 0
      %v6000 = vsel %vm5952, 1, 0
      %v6001 = vsel %vm5953, 1, 0
      %v6002 = vsel %vm5954, 1, 0
      %v6003 = vsel %vm5955, 1, 0
      %v6004 = vsel %vm5956, 1, 0
      %v6005 = vsel %vm5957, 1, 0
      %v6006 = vsel %vm5958, 1, 0
      %v6007 = vsel %vm5959, 1, 0
      %v6008 = vsel %vm5960, 1, 0
      %v6009 = vsel %vm5961, 1, 0
      %vm6010 = vcmp.eq.s32.totalorder %v5962, 1
      %vm6011 = vcmp.eq.s32.totalorder %v5963, 1
      %vm6012 = vcmp.eq.s32.totalorder %v5964, 1
      %vm6013 = vcmp.eq.s32.totalorder %v5965, 1
      %vm6014 = vcmp.eq.s32.totalorder %v5966, 1
      %vm6015 = vcmp.eq.s32.totalorder %v5967, 1
      %vm6016 = vcmp.eq.s32.totalorder %v5968, 1
      %vm6017 = vcmp.eq.s32.totalorder %v5969, 1
      %vm6018 = vcmp.eq.s32.totalorder %v5970, 1
      %vm6019 = vcmp.eq.s32.totalorder %v5971, 1
      %vm6020 = vcmp.eq.s32.totalorder %v5972, 1
      %vm6021 = vcmp.eq.s32.totalorder %v5973, 1
      %vm6022 = vcmp.eq.s32.totalorder %v5974, 1
      %vm6023 = vcmp.eq.s32.totalorder %v5975, 1
      %vm6024 = vcmp.eq.s32.totalorder %v5976, 1
      %vm6025 = vcmp.eq.s32.totalorder %v5977, 1
      %vm6026 = vcmp.eq.s32.totalorder %v5978, 1
      %vm6027 = vcmp.eq.s32.totalorder %v5979, 1
      %vm6028 = vcmp.eq.s32.totalorder %v5980, 1
      %vm6029 = vcmp.eq.s32.totalorder %v5981, 1
      %vm6030 = vcmp.eq.s32.totalorder %v5982, 1
      %vm6031 = vcmp.eq.s32.totalorder %v5983, 1
      %vm6032 = vcmp.eq.s32.totalorder %v5984, 1
      %vm6033 = vcmp.eq.s32.totalorder %v5985, 1
      %vm6034 = vcmp.eq.s32.totalorder %v5986, 1
      %vm6035 = vcmp.eq.s32.totalorder %v5987, 1
      %vm6036 = vcmp.eq.s32.totalorder %v5988, 1
      %vm6037 = vcmp.eq.s32.totalorder %v5989, 1
      %vm6038 = vcmp.eq.s32.totalorder %v5990, 1
      %vm6039 = vcmp.eq.s32.totalorder %v5991, 1
      %vm6040 = vcmp.eq.s32.totalorder %v5992, 1
      %vm6041 = vcmp.eq.s32.totalorder %v5993, 1
      %vm6042 = vcmp.eq.s32.totalorder %v5994, 1
      %vm6043 = vcmp.eq.s32.totalorder %v5995, 1
      %vm6044 = vcmp.eq.s32.totalorder %v5996, 1
      %vm6045 = vcmp.eq.s32.totalorder %v5997, 1
      %vm6046 = vcmp.eq.s32.totalorder %v5998, 1
      %vm6047 = vcmp.eq.s32.totalorder %v5999, 1
      %vm6048 = vcmp.eq.s32.totalorder %v6000, 1
      %vm6049 = vcmp.eq.s32.totalorder %v6001, 1
      %vm6050 = vcmp.eq.s32.totalorder %v6002, 1
      %vm6051 = vcmp.eq.s32.totalorder %v6003, 1
      %vm6052 = vcmp.eq.s32.totalorder %v6004, 1
      %vm6053 = vcmp.eq.s32.totalorder %v6005, 1
      %vm6054 = vcmp.eq.s32.totalorder %v6006, 1
      %vm6055 = vcmp.eq.s32.totalorder %v6007, 1
      %vm6056 = vcmp.eq.s32.totalorder %v6008, 1
      %vm6057 = vcmp.eq.s32.totalorder %v6009, 1
      %v6058 = vsel %vm6010, %v5049, 0.0
      %v6059 = vsel %vm6011, %v5050, 0.0
      %v6060 = vsel %vm6012, %v5051, 0.0
      %v6061 = vsel %vm6013, %v5052, 0.0
      %v6062 = vsel %vm6014, %v5053, 0.0
      %v6063 = vsel %vm6015, %v5054, 0.0
      %v6064 = vsel %vm6016, %v5055, 0.0
      %v6065 = vsel %vm6017, %v5056, 0.0
      %v6066 = vsel %vm6018, %v5057, 0.0
      %v6067 = vsel %vm6019, %v5058, 0.0
      %v6068 = vsel %vm6020, %v5059, 0.0
      %v6069 = vsel %vm6021, %v5060, 0.0
      %v6070 = vsel %vm6022, %v5061, 0.0
      %v6071 = vsel %vm6023, %v5062, 0.0
      %v6072 = vsel %vm6024, %v5063, 0.0
      %v6073 = vsel %vm6025, %v5064, 0.0
      %v6074 = vsel %vm6026, %v5065, 0.0
      %v6075 = vsel %vm6027, %v5066, 0.0
      %v6076 = vsel %vm6028, %v5067, 0.0
      %v6077 = vsel %vm6029, %v5068, 0.0
      %v6078 = vsel %vm6030, %v5069, 0.0
      %v6079 = vsel %vm6031, %v5070, 0.0
      %v6080 = vsel %vm6032, %v5071, 0.0
      %v6081 = vsel %vm6033, %v5072, 0.0
      %v6082 = vsel %vm6034, %v5073, 0.0
      %v6083 = vsel %vm6035, %v5074, 0.0
      %v6084 = vsel %vm6036, %v5075, 0.0
      %v6085 = vsel %vm6037, %v5076, 0.0
      %v6086 = vsel %vm6038, %v5077, 0.0
      %v6087 = vsel %vm6039, %v5078, 0.0
      %v6088 = vsel %vm6040, %v5079, 0.0
      %v6089 = vsel %vm6041, %v5080, 0.0
      %v6090 = vsel %vm6042, %v5081, 0.0
      %v6091 = vsel %vm6043, %v5082, 0.0
      %v6092 = vsel %vm6044, %v5083, 0.0
      %v6093 = vsel %vm6045, %v5084, 0.0
      %v6094 = vsel %vm6046, %v5085, 0.0
      %v6095 = vsel %vm6047, %v5086, 0.0
      %v6096 = vsel %vm6048, %v5087, 0.0
      %v6097 = vsel %vm6049, %v5088, 0.0
      %v6098 = vsel %vm6050, %v5089, 0.0
      %v6099 = vsel %vm6051, %v5090, 0.0
      %v6100 = vsel %vm6052, %v5091, 0.0
      %v6101 = vsel %vm6053, %v5092, 0.0
      %v6102 = vsel %vm6054, %v5093, 0.0
      %v6103 = vsel %vm6055, %v5094, 0.0
      %v6104 = vsel %vm6056, %v5095, 0.0
      %v6105 = vsel %vm6057, %v5096, 0.0
      %v6106 = vpack.c.bf16 %v6059, %v6058
      %v6107 = vpack.c.bf16 %v6061, %v6060
      %v6108 = vpack.c.bf16 %v6063, %v6062
      %v6109 = vpack.c.bf16 %v6065, %v6064
      %v6110 = vpack.c.bf16 %v6067, %v6066
      %v6111 = vpack.c.bf16 %v6069, %v6068
      %v6112 = vpack.c.bf16 %v6071, %v6070
      %v6113 = vpack.c.bf16 %v6073, %v6072
      %v6114 = vpack.c.bf16 %v6075, %v6074
      %v6115 = vpack.c.bf16 %v6077, %v6076
      %v6116 = vpack.c.bf16 %v6079, %v6078
      %v6117 = vpack.c.bf16 %v6081, %v6080
      %v6118 = vpack.c.bf16 %v6083, %v6082
      %v6119 = vpack.c.bf16 %v6085, %v6084
      %v6120 = vpack.c.bf16 %v6087, %v6086
      %v6121 = vpack.c.bf16 %v6089, %v6088
      %v6122 = vpack.c.bf16 %v6091, %v6090
      %v6123 = vpack.c.bf16 %v6093, %v6092
      %v6124 = vpack.c.bf16 %v6095, %v6094
      %v6125 = vpack.c.bf16 %v6097, %v6096
      %v6126 = vpack.c.bf16 %v6099, %v6098
      %v6127 = vpack.c.bf16 %v6101, %v6100
      %v6128 = vpack.c.bf16 %v6103, %v6102
      %v6129 = vpack.c.bf16 %v6105, %v6104
      %6130 = vst [vmem:[#allocation2 + $0x18] sm:$0xff] %v6106
      %6131 = vst [vmem:[#allocation2 + $0x20] sm:$0xff] %v6107
      %6132 = vst [vmem:[#allocation2 + $0x28] sm:$0xff] %v6108
      %6133 = vst [vmem:[#allocation2 + $0x30] sm:$0xff] %v6109
      %6134 = vst [vmem:[#allocation2 + $0x38] sm:$0xff] %v6110
      %6135 = vst [vmem:[#allocation2 + $0x40] sm:$0xff] %v6111
      %6136 = vst [vmem:[#allocation2 + $0x48] sm:$0xff] %v6112
      %6137 = vst [vmem:[#allocation2 + $0x50] sm:$0xff] %v6113
      %6138 = vst [vmem:[#allocation2 + $0x58] sm:$0xff] %v6114
      %6139 = vst [vmem:[#allocation2 + $0x60] sm:$0xff] %v6115
      %6140 = vst [vmem:[#allocation2 + $0x68] sm:$0xff] %v6116
      %6141 = vst [vmem:[#allocation2 + $0x70] sm:$0xff] %v6117
      %6142 = vst [vmem:[#allocation2 + $0x78] sm:$0xff] %v6118
      %6143 = vst [vmem:[#allocation2 + $0x80] sm:$0xff] %v6119
      %6144 = vst [vmem:[#allocation2 + $0x88] sm:$0xff] %v6120
      %6145 = vst [vmem:[#allocation2 + $0x90] sm:$0xff] %v6121
      %6146 = vst [vmem:[#allocation2 + $0x98] sm:$0xff] %v6122
      %6147 = vst [vmem:[#allocation2 + $0xa0] sm:$0xff] %v6123
      %6148 = vst [vmem:[#allocation2 + $0xa8] sm:$0xff] %v6124
      %6149 = vst [vmem:[#allocation2 + $0xb0] sm:$0xff] %v6125
      %6150 = vst [vmem:[#allocation2 + $0xb8] sm:$0xff] %v6126
      %6151 = vst [vmem:[#allocation2 + $0xc0] sm:$0xff] %v6127
      %6152 = vst [vmem:[#allocation2 + $0xc8] sm:$0xff] %v6128
      %6153 = vst [vmem:[#allocation2 + $0xd0] sm:$0xff] %v6129
      %v6154 = vld [vmem:[#allocation2 + $0x8] sm:$0xf8]
      %v6155 = vld [vmem:[#allocation2 + $0x10] sm:$0xff]
      %v6156 = vld [vmem:[#allocation2 + $0x18] sm:$0xff]
      %v6157 = vld [vmem:[#allocation2 + $0x20] sm:$0xff]
      %v6158 = vld [vmem:[#allocation2 + $0x28] sm:$0xff]
      %v6159 = vld [vmem:[#allocation2 + $0x30] sm:$0xff]
      %v6160 = vld [vmem:[#allocation2 + $0x38] sm:$0xff]
      %v6161 = vld [vmem:[#allocation2 + $0x40] sm:$0xff]
      %v6162 = vld [vmem:[#allocation2 + $0x48] sm:$0xff]
      %v6163 = vld [vmem:[#allocation2 + $0x50] sm:$0xff]
      %v6164 = vld [vmem:[#allocation2 + $0x58] sm:$0xff]
      %v6165 = vld [vmem:[#allocation2 + $0x60] sm:$0xff]
      %v6166 = vld [vmem:[#allocation2 + $0x68] sm:$0xff]
      %v6167 = vld [vmem:[#allocation2 + $0x70] sm:$0xff]
      %v6168 = vld [vmem:[#allocation2 + $0x78] sm:$0xff]
      %v6169 = vld [vmem:[#allocation2 + $0x80] sm:$0xff]
      %v6170 = vld [vmem:[#allocation2 + $0x88] sm:$0xff]
      %v6171 = vld [vmem:[#allocation2 + $0x90] sm:$0xff]
      %v6172 = vld [vmem:[#allocation2 + $0x98] sm:$0xff]
      %v6173 = vld [vmem:[#allocation2 + $0xa0] sm:$0xff]
      %v6174 = vld [vmem:[#allocation2 + $0xa8] sm:$0xff]
      %v6175 = vld [vmem:[#allocation2 + $0xb0] sm:$0xff]
      %v6176 = vld [vmem:[#allocation2 + $0xb8] sm:$0xff]
      %v6177 = vld [vmem:[#allocation2 + $0xc0] sm:$0xff]
      %v6178 = vld [vmem:[#allocation2 + $0xc8] sm:$0xf]
      %v6179 = vld [vmem:[%s3] sm:$0xf]
      %v6180 = vld [vmem:[%s3 + $0x4] sm:$0xf]
      %v6181 = vld [vmem:[%s3 + $0x8] sm:$0xf]
      %v6182 = vld [vmem:[%s3 + $0xc] sm:$0xf]
      %v6183 = vld [vmem:[%s3 + $0x10] sm:$0xf]
      %v6184 = vld [vmem:[%s3 + $0x14] sm:$0xf]
      %v6185 = vld [vmem:[%s3 + $0x18] sm:$0xf]
      %v6186 = vld [vmem:[%s3 + $0x1c] sm:$0xf]
      %v6187 = vld [vmem:[%s3 + $0x20] sm:$0xf]
      %v6188 = vld [vmem:[%s3 + $0x24] sm:$0xf]
      %v6189 = vld [vmem:[%s3 + $0x28] sm:$0xf]
      %v6190 = vld [vmem:[%s3 + $0x2c] sm:$0xf]
      %v6191 = vld [vmem:[%s3 + $0x30] sm:$0xf]
      %v6192 = vld [vmem:[%s3 + $0x34] sm:$0xf]
      %v6193 = vld [vmem:[%s3 + $0x38] sm:$0xf]
      %v6194 = vld [vmem:[%s3 + $0x3c] sm:$0xf]
      %v6195 = vld [vmem:[#allocation2 + $0x8] sm:$0xf0]
      %s6196 = scalar_lea.vmem %s3, 64
      %v6197 = vld [vmem:[%s6196] sm:$0xf]
      %v6198 = vld [vmem:[%s6196 + $0x4] sm:$0xf]
      %v6199 = vld [vmem:[%s6196 + $0x8] sm:$0xf]
      %v6200 = vld [vmem:[%s6196 + $0xc] sm:$0xf]
      %v6201 = vld [vmem:[%s6196 + $0x10] sm:$0xf]
      %v6202 = vld [vmem:[%s6196 + $0x14] sm:$0xf]
      %v6203 = vld [vmem:[%s6196 + $0x18] sm:$0xf]
      %v6204 = vld [vmem:[%s6196 + $0x1c] sm:$0xf]
      %v6205 = vld [vmem:[%s6196 + $0x20] sm:$0xf]
      %v6206 = vld [vmem:[%s6196 + $0x24] sm:$0xf]
      %v6207 = vld [vmem:[%s6196 + $0x28] sm:$0xf]
      %v6208 = vld [vmem:[%s6196 + $0x2c] sm:$0xf]
      %v6209 = vld [vmem:[%s6196 + $0x30] sm:$0xf]
      %v6210 = vld [vmem:[%s6196 + $0x34] sm:$0xf]
      %v6211 = vld [vmem:[%s6196 + $0x38] sm:$0xf]
      %v6212 = vld [vmem:[%s6196 + $0x3c] sm:$0xf]
      %vm6238 = vcmask 1043456
      %v6239 = vrot.slane %v6195, 4
      %v6240 = vrot.slane %v6155, 4
      %v6241 = vsel %vm6238, %v6239, %v6240
      %v6242 = vrot.slane %v6156, 4
      %v6243 = vsel %vm6238, %v6240, %v6242
      %v6244 = vrot.slane %v6157, 4
      %v6245 = vsel %vm6238, %v6242, %v6244
      %v6246 = vrot.slane %v6158, 4
      %v6247 = vsel %vm6238, %v6244, %v6246
      %v6248 = vrot.slane %v6159, 4
      %v6249 = vsel %vm6238, %v6246, %v6248
      %v6250 = vrot.slane %v6160, 4
      %v6251 = vsel %vm6238, %v6248, %v6250
      %v6252 = vrot.slane %v6161, 4
      %v6253 = vsel %vm6238, %v6250, %v6252
      %v6254 = vrot.slane %v6162, 4
      %v6255 = vsel %vm6238, %v6252, %v6254
      %v6256 = vrot.slane %v6163, 4
      %v6257 = vsel %vm6238, %v6254, %v6256
      %v6258 = vrot.slane %v6164, 4
      %v6259 = vsel %vm6238, %v6256, %v6258
      %v6260 = vrot.slane %v6165, 4
      %v6261 = vsel %vm6238, %v6258, %v6260
      %v6262 = vrot.slane %v6166, 4
      %v6263 = vsel %vm6238, %v6260, %v6262
      %v6264 = vrot.slane %v6167, 4
      %v6265 = vsel %vm6238, %v6262, %v6264
      %v6266 = vrot.slane %v6168, 4
      %v6267 = vsel %vm6238, %v6264, %v6266
      %v6268 = vrot.slane %v6169, 4
      %v6269 = vsel %vm6238, %v6266, %v6268
      %v6270 = vrot.slane %v6170, 4
      %v6271 = vsel %vm6238, %v6268, %v6270
      %v6272 = vrot.slane %v6171, 4
      %v6273 = vsel %vm6238, %v6270, %v6272
      %v6274 = vrot.slane %v6172, 4
      %v6275 = vsel %vm6238, %v6272, %v6274
      %v6276 = vrot.slane %v6173, 4
      %v6277 = vsel %vm6238, %v6274, %v6276
      %v6278 = vrot.slane %v6174, 4
      %v6279 = vsel %vm6238, %v6276, %v6278
      %v6280 = vrot.slane %v6175, 4
      %v6281 = vsel %vm6238, %v6278, %v6280
      %v6282 = vrot.slane %v6176, 4
      %v6283 = vsel %vm6238, %v6280, %v6282
      %v6284 = vrot.slane %v6177, 4
      %v6285 = vsel %vm6238, %v6282, %v6284
      %v6286 = vrot.slane %v6178, 4
      %v6287 = vsel %vm6238, %v6284, %v6286
      %v6328 = vunpack.c.l.b16 %v6197
      %v6329 = vunpack.c.l.b16 %v6198
      %v6330 = vunpack.c.l.b16 %v6199
      %v6331 = vunpack.c.l.b16 %v6200
      %v6332 = vunpack.c.l.b16 %v6201
      %v6333 = vunpack.c.l.b16 %v6202
      %v6334 = vunpack.c.l.b16 %v6203
      %v6335 = vunpack.c.l.b16 %v6204
      %v6336 = vunpack.c.l.b16 %v6205
      %v6337 = vunpack.c.l.b16 %v6206
      %v6338 = vunpack.c.l.b16 %v6207
      %v6339 = vunpack.c.l.b16 %v6208
      %v6340 = vunpack.c.l.b16 %v6209
      %v6341 = vunpack.c.l.b16 %v6210
      %v6342 = vunpack.c.l.b16 %v6211
      %v6343 = vunpack.c.l.b16 %v6212
      %v6344 = vpack.c.b16 %v6329, %v6328
      %v6345 = vpack.c.b16 %v6331, %v6330
      %v6346 = vpack.c.b16 %v6333, %v6332
      %v6347 = vpack.c.b16 %v6335, %v6334
      %v6348 = vpack.c.b16 %v6337, %v6336
      %v6349 = vpack.c.b16 %v6339, %v6338
      %v6350 = vpack.c.b16 %v6341, %v6340
      %v6351 = vpack.c.b16 %v6343, %v6342
      %6360 = vmatprep.subr.bf16.mxu0 0
      %6361 = vmatpush1.bf16.msra.mxu0 %v6344
      %6362 = vmatprep.subr.bf16.mxu0 0
      %6363 = vmatpush1.bf16.msra.mxu0 %v6345
      %6364 = vmatprep.subr.bf16.mxu0 0
      %6365 = vmatpush1.bf16.msra.mxu0 %v6346
      %6366 = vmatprep.subr.bf16.mxu0 0
      %6367 = vmatpush1.bf16.msra.mxu0 %v6347
      %6368 = vmatprep.subr.bf16.mxu0 0
      %6369 = vmatpush1.bf16.msra.mxu0 %v6348
      %6370 = vmatprep.subr.bf16.mxu0 0
      %6371 = vmatpush1.bf16.msra.mxu0 %v6349
      %6372 = vmatprep.subr.bf16.mxu0 0
      %6373 = vmatpush1.bf16.msra.mxu0 %v6350
      %6374 = vmatprep.subr.bf16.mxu0 0
      %6375 = vmatpush1.bf16.msra.mxu0 %v6351
      %6376 = vmatprep.subr.bf16.mxu0 0
      %6377 = vmatpush1.bf16.msra.mxu0 0
      %6378 = vmatprep.subr.bf16.mxu0 0
      %6379 = vmatpush1.bf16.msra.mxu0 0
      %6380 = vmatprep.subr.bf16.mxu0 0
      %6381 = vmatpush1.bf16.msra.mxu0 0
      %6382 = vmatprep.subr.bf16.mxu0 0
      %6383 = vmatpush1.bf16.msra.mxu0 0
      %6384 = vmatprep.subr.bf16.mxu0 0
      %6385 = vmatpush1.bf16.msra.mxu0 0
      %6386 = vmatprep.subr.bf16.mxu0 0
      %6387 = vmatpush1.bf16.msra.mxu0 0
      %6388 = vmatprep.subr.bf16.mxu0 0
      %6389 = vmatpush1.bf16.msra.mxu0 0
      %6390 = vmatprep.subr.bf16.mxu0 0
      %6391 = vmatpush1.bf16.msra.mxu0 0
      %6392 = vmatprep.mubr.bf16.mxu0 0
      %6393 = vmatmul.mubr.bf16.gmra.mrb[0].mxu0 %v6241
      %v6394 = vpop.f32.mrb[0].mxu0
      %v6395 = vadd.f32 0.0, %v6394
      %v6396 = vpop.f32.mrb[0].mxu0
      %v6397 = vpop.f32.mrb[0].mxu0
      %v6398 = vadd.f32 0.0, %v6397
      %v6399 = vpop.f32.mrb[0].mxu0
      %6400 = vmatprep.mubr.bf16.mxu0 0
      %6401 = vmatmul.mubr.bf16.gmra.mrb[0].mxu0 %v6243
      %v6402 = vpop.f32.mrb[0].mxu0
      %v6403 = vadd.f32 0.0, %v6402
      %v6404 = vpop.f32.mrb[0].mxu0
      %v6405 = vpop.f32.mrb[0].mxu0
      %v6406 = vadd.f32 0.0, %v6405
      %v6407 = vpop.f32.mrb[0].mxu0
      %6408 = vmatprep.mubr.bf16.mxu0 0
      %6409 = vmatmul.mubr.bf16.gmra.mrb[0].mxu0 %v6245
      %v6410 = vpop.f32.mrb[0].mxu0
      %v6411 = vadd.f32 0.0, %v6410
      %v6412 = vpop.f32.mrb[0].mxu0
      %v6413 = vpop.f32.mrb[0].mxu0
      %v6414 = vadd.f32 0.0, %v6413
      %v6415 = vpop.f32.mrb[0].mxu0
      %6416 = vmatprep.mubr.bf16.mxu0 0
      %6417 = vmatmul.mubr.bf16.gmra.mrb[0].mxu0 %v6247
      %v6418 = vpop.f32.mrb[0].mxu0
      %v6419 = vadd.f32 0.0, %v6418
      %v6420 = vpop.f32.mrb[0].mxu0
      %v6421 = vpop.f32.mrb[0].mxu0
      %v6422 = vadd.f32 0.0, %v6421
      %v6423 = vpop.f32.mrb[0].mxu0
      %6424 = vmatprep.mubr.bf16.mxu0 0
      %6425 = vmatmul.mubr.bf16.gmra.mrb[0].mxu0 %v6249
      %v6426 = vpop.f32.mrb[0].mxu0
      %v6427 = vadd.f32 0.0, %v6426
      %v6428 = vpop.f32.mrb[0].mxu0
      %v6429 = vpop.f32.mrb[0].mxu0
      %v6430 = vadd.f32 0.0, %v6429
      %v6431 = vpop.f32.mrb[0].mxu0
      %6432 = vmatprep.mubr.bf16.mxu0 0
      %6433 = vmatmul.mubr.bf16.gmra.mrb[0].mxu0 %v6251
      %v6434 = vpop.f32.mrb[0].mxu0
      %v6435 = vadd.f32 0.0, %v6434
      %v6436 = vpop.f32.mrb[0].mxu0
      %v6437 = vpop.f32.mrb[0].mxu0
      %v6438 = vadd.f32 0.0, %v6437
      %v6439 = vpop.f32.mrb[0].mxu0
      %6440 = vmatprep.mubr.bf16.mxu0 0
      %6441 = vmatmul.mubr.bf16.gmra.mrb[0].mxu0 %v6253
      %v6442 = vpop.f32.mrb[0].mxu0
      %v6443 = vadd.f32 0.0, %v6442
      %v6444 = vpop.f32.mrb[0].mxu0
      %v6445 = vpop.f32.mrb[0].mxu0
      %v6446 = vadd.f32 0.0, %v6445
      %v6447 = vpop.f32.mrb[0].mxu0
      %6448 = vmatprep.mubr.bf16.mxu0 0
      %6449 = vmatmul.mubr.bf16.gmra.mrb[0].mxu0 %v6255
      %v6450 = vpop.f32.mrb[0].mxu0
      %v6451 = vadd.f32 0.0, %v6450
      %v6452 = vpop.f32.mrb[0].mxu0
      %v6453 = vpop.f32.mrb[0].mxu0
      %v6454 = vadd.f32 0.0, %v6453
      %v6455 = vpop.f32.mrb[0].mxu0
      %6456 = vmatprep.mubr.bf16.mxu0 0
      %6457 = vmatmul.mubr.bf16.gmra.mrb[0].mxu0 %v6257
      %v6458 = vpop.f32.mrb[0].mxu0
      %v6459 = vadd.f32 0.0, %v6458
      %v6460 = vpop.f32.mrb[0].mxu0
      %v6461 = vpop.f32.mrb[0].mxu0
      %v6462 = vadd.f32 0.0, %v6461
      %v6463 = vpop.f32.mrb[0].mxu0
      %6464 = vmatprep.mubr.bf16.mxu0 0
      %6465 = vmatmul.mubr.bf16.gmra.mrb[0].mxu0 %v6259
      %v6466 = vpop.f32.mrb[0].mxu0
      %v6467 = vadd.f32 0.0, %v6466
      %v6468 = vpop.f32.mrb[0].mxu0
      %v6469 = vpop.f32.mrb[0].mxu0
      %v6470 = vadd.f32 0.0, %v6469
      %v6471 = vpop.f32.mrb[0].mxu0
      %6472 = vmatprep.mubr.bf16.mxu0 0
      %6473 = vmatmul.mubr.bf16.gmra.mrb[0].mxu0 %v6261
      %v6474 = vpop.f32.mrb[0].mxu0
      %v6475 = vadd.f32 0.0, %v6474
      %v6476 = vpop.f32.mrb[0].mxu0
      %v6477 = vpop.f32.mrb[0].mxu0
      %v6478 = vadd.f32 0.0, %v6477
      %v6479 = vpop.f32.mrb[0].mxu0
      %6480 = vmatprep.mubr.bf16.mxu0 0
      %6481 = vmatmul.mubr.bf16.gmra.mrb[0].mxu0 %v6263
      %v6482 = vpop.f32.mrb[0].mxu0
      %v6483 = vadd.f32 0.0, %v6482
      %v6484 = vpop.f32.mrb[0].mxu0
      %v6485 = vpop.f32.mrb[0].mxu0
      %v6486 = vadd.f32 0.0, %v6485
      %v6487 = vpop.f32.mrb[0].mxu0
      %6488 = vmatprep.mubr.bf16.mxu0 0
      %6489 = vmatmul.mubr.bf16.gmra.mrb[0].mxu0 %v6265
      %v6490 = vpop.f32.mrb[0].mxu0
      %v6491 = vadd.f32 0.0, %v6490
      %v6492 = vpop.f32.mrb[0].mxu0
      %v6493 = vpop.f32.mrb[0].mxu0
      %v6494 = vadd.f32 0.0, %v6493
      %v6495 = vpop.f32.mrb[0].mxu0
      %6496 = vmatprep.mubr.bf16.mxu0 0
      %6497 = vmatmul.mubr.bf16.gmra.mrb[0].mxu0 %v6267
      %v6498 = vpop.f32.mrb[0].mxu0
      %v6499 = vadd.f32 0.0, %v6498
      %v6500 = vpop.f32.mrb[0].mxu0
      %v6501 = vpop.f32.mrb[0].mxu0
      %v6502 = vadd.f32 0.0, %v6501
      %v6503 = vpop.f32.mrb[0].mxu0
      %6504 = vmatprep.mubr.bf16.mxu0 0
      %6505 = vmatmul.mubr.bf16.gmra.mrb[0].mxu0 %v6269
      %v6506 = vpop.f32.mrb[0].mxu0
      %v6507 = vadd.f32 0.0, %v6506
      %v6508 = vpop.f32.mrb[0].mxu0
      %v6509 = vpop.f32.mrb[0].mxu0
      %v6510 = vadd.f32 0.0, %v6509
      %v6511 = vpop.f32.mrb[0].mxu0
      %6512 = vmatprep.mubr.bf16.mxu0 0
      %6513 = vmatmul.mubr.bf16.gmra.mrb[0].mxu0 %v6271
      %v6514 = vpop.f32.mrb[0].mxu0
      %v6515 = vadd.f32 0.0, %v6514
      %v6516 = vpop.f32.mrb[0].mxu0
      %v6517 = vpop.f32.mrb[0].mxu0
      %v6518 = vadd.f32 0.0, %v6517
      %v6519 = vpop.f32.mrb[0].mxu0
      %6520 = vmatprep.mubr.bf16.mxu0 0
      %6521 = vmatmul.mubr.bf16.gmra.mrb[0].mxu0 %v6273
      %v6522 = vpop.f32.mrb[0].mxu0
      %v6523 = vadd.f32 0.0, %v6522
      %v6524 = vpop.f32.mrb[0].mxu0
      %v6525 = vpop.f32.mrb[0].mxu0
      %v6526 = vadd.f32 0.0, %v6525
      %v6527 = vpop.f32.mrb[0].mxu0
      %6528 = vmatprep.mubr.bf16.mxu0 0
      %6529 = vmatmul.mubr.bf16.gmra.mrb[0].mxu0 %v6275
      %v6530 = vpop.f32.mrb[0].mxu0
      %v6531 = vadd.f32 0.0, %v6530
      %v6532 = vpop.f32.mrb[0].mxu0
      %v6533 = vpop.f32.mrb[0].mxu0
      %v6534 = vadd.f32 0.0, %v6533
      %v6535 = vpop.f32.mrb[0].mxu0
      %6536 = vmatprep.mubr.bf16.mxu0 0
      %6537 = vmatmul.mubr.bf16.gmra.mrb[0].mxu0 %v6277
      %v6538 = vpop.f32.mrb[0].mxu0
      %v6539 = vadd.f32 0.0, %v6538
      %v6540 = vpop.f32.mrb[0].mxu0
      %v6541 = vpop.f32.mrb[0].mxu0
      %v6542 = vadd.f32 0.0, %v6541
      %v6543 = vpop.f32.mrb[0].mxu0
      %6544 = vmatprep.mubr.bf16.mxu0 0
      %6545 = vmatmul.mubr.bf16.gmra.mrb[0].mxu0 %v6279
      %v6546 = vpop.f32.mrb[0].mxu0
      %v6547 = vadd.f32 0.0, %v6546
      %v6548 = vpop.f32.mrb[0].mxu0
      %v6549 = vpop.f32.mrb[0].mxu0
      %v6550 = vadd.f32 0.0, %v6549
      %v6551 = vpop.f32.mrb[0].mxu0
      %6552 = vmatprep.mubr.bf16.mxu0 0
      %6553 = vmatmul.mubr.bf16.gmra.mrb[0].mxu0 %v6281
      %v6554 = vpop.f32.mrb[0].mxu0
      %v6555 = vadd.f32 0.0, %v6554
      %v6556 = vpop.f32.mrb[0].mxu0
      %v6557 = vpop.f32.mrb[0].mxu0
      %v6558 = vadd.f32 0.0, %v6557
      %v6559 = vpop.f32.mrb[0].mxu0
      %6560 = vmatprep.mubr.bf16.mxu0 0
      %6561 = vmatmul.mubr.bf16.gmra.mrb[0].mxu0 %v6283
      %v6562 = vpop.f32.mrb[0].mxu0
      %v6563 = vadd.f32 0.0, %v6562
      %v6564 = vpop.f32.mrb[0].mxu0
      %v6565 = vpop.f32.mrb[0].mxu0
      %v6566 = vadd.f32 0.0, %v6565
      %v6567 = vpop.f32.mrb[0].mxu0
      %6568 = vmatprep.mubr.bf16.mxu0 0
      %6569 = vmatmul.mubr.bf16.gmra.mrb[0].mxu0 %v6285
      %v6570 = vpop.f32.mrb[0].mxu0
      %v6571 = vadd.f32 0.0, %v6570
      %v6572 = vpop.f32.mrb[0].mxu0
      %v6573 = vpop.f32.mrb[0].mxu0
      %v6574 = vadd.f32 0.0, %v6573
      %v6575 = vpop.f32.mrb[0].mxu0
      %6576 = vmatprep.mubr.bf16.mxu0 0
      %6577 = vmatmul.mubr.bf16.gmra.mrb[0].mxu0 %v6287
      %v6578 = vpop.f32.mrb[0].mxu0
      %v6579 = vadd.f32 0.0, %v6578
      %v6580 = vpop.f32.mrb[0].mxu0
      %v6581 = vpop.f32.mrb[0].mxu0
      %v6582 = vadd.f32 0.0, %v6581
      %v6583 = vpop.f32.mrb[0].mxu0
      %6584 = vdwg.mxu0
      %vm6585 = vsmask.f32 4352
      %v6587 = vshrl.u32 %v6154, 16
      %v6589 = vrot.slane %v6587, 3
      %v6590 = vshll.u32 %v6154, 16
      %v6592 = vrot.slane %v6590, 4
      %v6593 = vor.u32 %v6589, %v6592
      %v6595 = vshrl.u32 %v6155, 16
      %v6597 = vrot.slane %v6595, 3
      %v6598 = vshll.u32 %v6155, 16
      %v6600 = vrot.slane %v6598, 4
      %v6601 = vor.u32 %v6597, %v6600
      %v6602 = vsel %vm6585, %v6593, %v6601
      %v6604 = vshrl.u32 %v6156, 16
      %v6606 = vrot.slane %v6604, 3
      %v6607 = vshll.u32 %v6156, 16
      %v6609 = vrot.slane %v6607, 4
      %v6610 = vor.u32 %v6606, %v6609
      %v6611 = vsel %vm6585, %v6601, %v6610
      %v6613 = vshrl.u32 %v6157, 16
      %v6615 = vrot.slane %v6613, 3
      %v6616 = vshll.u32 %v6157, 16
      %v6618 = vrot.slane %v6616, 4
      %v6619 = vor.u32 %v6615, %v6618
      %v6620 = vsel %vm6585, %v6610, %v6619
      %v6622 = vshrl.u32 %v6158, 16
      %v6624 = vrot.slane %v6622, 3
      %v6625 = vshll.u32 %v6158, 16
      %v6627 = vrot.slane %v6625, 4
      %v6628 = vor.u32 %v6624, %v6627
      %v6629 = vsel %vm6585, %v6619, %v6628
      %v6631 = vshrl.u32 %v6159, 16
      %v6633 = vrot.slane %v6631, 3
      %v6634 = vshll.u32 %v6159, 16
      %v6636 = vrot.slane %v6634, 4
      %v6637 = vor.u32 %v6633, %v6636
      %v6638 = vsel %vm6585, %v6628, %v6637
      %v6640 = vshrl.u32 %v6160, 16
      %v6642 = vrot.slane %v6640, 3
      %v6643 = vshll.u32 %v6160, 16
      %v6645 = vrot.slane %v6643, 4
      %v6646 = vor.u32 %v6642, %v6645
      %v6647 = vsel %vm6585, %v6637, %v6646
      %v6649 = vshrl.u32 %v6161, 16
      %v6651 = vrot.slane %v6649, 3
      %v6652 = vshll.u32 %v6161, 16
      %v6654 = vrot.slane %v6652, 4
      %v6655 = vor.u32 %v6651, %v6654
      %v6656 = vsel %vm6585, %v6646, %v6655
      %v6658 = vshrl.u32 %v6162, 16
      %v6660 = vrot.slane %v6658, 3
      %v6661 = vshll.u32 %v6162, 16
      %v6663 = vrot.slane %v6661, 4
      %v6664 = vor.u32 %v6660, %v6663
      %v6665 = vsel %vm6585, %v6655, %v6664
      %v6667 = vshrl.u32 %v6163, 16
      %v6669 = vrot.slane %v6667, 3
      %v6670 = vshll.u32 %v6163, 16
      %v6672 = vrot.slane %v6670, 4
      %v6673 = vor.u32 %v6669, %v6672
      %v6674 = vsel %vm6585, %v6664, %v6673
      %v6676 = vshrl.u32 %v6164, 16
      %v6678 = vrot.slane %v6676, 3
      %v6679 = vshll.u32 %v6164, 16
      %v6681 = vrot.slane %v6679, 4
      %v6682 = vor.u32 %v6678, %v6681
      %v6683 = vsel %vm6585, %v6673, %v6682
      %v6685 = vshrl.u32 %v6165, 16
      %v6687 = vrot.slane %v6685, 3
      %v6688 = vshll.u32 %v6165, 16
      %v6690 = vrot.slane %v6688, 4
      %v6691 = vor.u32 %v6687, %v6690
      %v6692 = vsel %vm6585, %v6682, %v6691
      %v6694 = vshrl.u32 %v6166, 16
      %v6696 = vrot.slane %v6694, 3
      %v6697 = vshll.u32 %v6166, 16
      %v6699 = vrot.slane %v6697, 4
      %v6700 = vor.u32 %v6696, %v6699
      %v6701 = vsel %vm6585, %v6691, %v6700
      %v6703 = vshrl.u32 %v6167, 16
      %v6705 = vrot.slane %v6703, 3
      %v6706 = vshll.u32 %v6167, 16
      %v6708 = vrot.slane %v6706, 4
      %v6709 = vor.u32 %v6705, %v6708
      %v6710 = vsel %vm6585, %v6700, %v6709
      %v6712 = vshrl.u32 %v6168, 16
      %v6714 = vrot.slane %v6712, 3
      %v6715 = vshll.u32 %v6168, 16
      %v6717 = vrot.slane %v6715, 4
      %v6718 = vor.u32 %v6714, %v6717
      %v6719 = vsel %vm6585, %v6709, %v6718
      %v6721 = vshrl.u32 %v6169, 16
      %v6723 = vrot.slane %v6721, 3
      %v6724 = vshll.u32 %v6169, 16
      %v6726 = vrot.slane %v6724, 4
      %v6727 = vor.u32 %v6723, %v6726
      %v6728 = vsel %vm6585, %v6718, %v6727
      %v6730 = vshrl.u32 %v6170, 16
      %v6732 = vrot.slane %v6730, 3
      %v6733 = vshll.u32 %v6170, 16
      %v6735 = vrot.slane %v6733, 4
      %v6736 = vor.u32 %v6732, %v6735
      %v6737 = vsel %vm6585, %v6727, %v6736
      %v6739 = vshrl.u32 %v6171, 16
      %v6741 = vrot.slane %v6739, 3
      %v6742 = vshll.u32 %v6171, 16
      %v6744 = vrot.slane %v6742, 4
      %v6745 = vor.u32 %v6741, %v6744
      %v6746 = vsel %vm6585, %v6736, %v6745
      %v6748 = vshrl.u32 %v6172, 16
      %v6750 = vrot.slane %v6748, 3
      %v6751 = vshll.u32 %v6172, 16
      %v6753 = vrot.slane %v6751, 4
      %v6754 = vor.u32 %v6750, %v6753
      %v6755 = vsel %vm6585, %v6745, %v6754
      %v6757 = vshrl.u32 %v6173, 16
      %v6759 = vrot.slane %v6757, 3
      %v6760 = vshll.u32 %v6173, 16
      %v6762 = vrot.slane %v6760, 4
      %v6763 = vor.u32 %v6759, %v6762
      %v6764 = vsel %vm6585, %v6754, %v6763
      %v6766 = vshrl.u32 %v6174, 16
      %v6768 = vrot.slane %v6766, 3
      %v6769 = vshll.u32 %v6174, 16
      %v6771 = vrot.slane %v6769, 4
      %v6772 = vor.u32 %v6768, %v6771
      %v6773 = vsel %vm6585, %v6763, %v6772
      %v6775 = vshrl.u32 %v6175, 16
      %v6777 = vrot.slane %v6775, 3
      %v6778 = vshll.u32 %v6175, 16
      %v6780 = vrot.slane %v6778, 4
      %v6781 = vor.u32 %v6777, %v6780
      %v6782 = vsel %vm6585, %v6772, %v6781
      %v6784 = vshrl.u32 %v6176, 16
      %v6786 = vrot.slane %v6784, 3
      %v6787 = vshll.u32 %v6176, 16
      %v6789 = vrot.slane %v6787, 4
      %v6790 = vor.u32 %v6786, %v6789
      %v6791 = vsel %vm6585, %v6781, %v6790
      %v6793 = vshrl.u32 %v6177, 16
      %v6795 = vrot.slane %v6793, 3
      %v6796 = vshll.u32 %v6177, 16
      %v6798 = vrot.slane %v6796, 4
      %v6799 = vor.u32 %v6795, %v6798
      %v6800 = vsel %vm6585, %v6790, %v6799
      %v6802 = vshrl.u32 %v6178, 16
      %v6804 = vrot.slane %v6802, 3
      %v6805 = vshll.u32 %v6178, 16
      %v6807 = vrot.slane %v6805, 4
      %v6808 = vor.u32 %v6804, %v6807
      %v6809 = vsel %vm6585, %v6799, %v6808
      %v6850 = vunpack.c.l.b16 %v6179
      %v6851 = vunpack.c.l.b16 %v6180
      %v6852 = vunpack.c.l.b16 %v6181
      %v6853 = vunpack.c.l.b16 %v6182
      %v6854 = vunpack.c.l.b16 %v6183
      %v6855 = vunpack.c.l.b16 %v6184
      %v6856 = vunpack.c.l.b16 %v6185
      %v6857 = vunpack.c.l.b16 %v6186
      %v6858 = vunpack.c.l.b16 %v6187
      %v6859 = vunpack.c.l.b16 %v6188
      %v6860 = vunpack.c.l.b16 %v6189
      %v6861 = vunpack.c.l.b16 %v6190
      %v6862 = vunpack.c.l.b16 %v6191
      %v6863 = vunpack.c.l.b16 %v6192
      %v6864 = vunpack.c.l.b16 %v6193
      %v6865 = vunpack.c.l.b16 %v6194
      %v6866 = vpack.c.b16 %v6851, %v6850
      %v6867 = vpack.c.b16 %v6853, %v6852
      %v6868 = vpack.c.b16 %v6855, %v6854
      %v6869 = vpack.c.b16 %v6857, %v6856
      %v6870 = vpack.c.b16 %v6859, %v6858
      %v6871 = vpack.c.b16 %v6861, %v6860
      %v6872 = vpack.c.b16 %v6863, %v6862
      %v6873 = vpack.c.b16 %v6865, %v6864
      %6882 = vmatprep.subr.bf16.mxu0 0
      %6883 = vmatpush1.bf16.msra.mxu0 %v6866
      %6884 = vmatprep.subr.bf16.mxu0 0
      %6885 = vmatpush1.bf16.msra.mxu0 %v6867
      %6886 = vmatprep.subr.bf16.mxu0 0
      %6887 = vmatpush1.bf16.msra.mxu0 %v6868
      %6888 = vmatprep.subr.bf16.mxu0 0
      %6889 = vmatpush1.bf16.msra.mxu0 %v6869
      %6890 = vmatprep.subr.bf16.mxu0 0
      %6891 = vmatpush1.bf16.msra.mxu0 %v6870
      %6892 = vmatprep.subr.bf16.mxu0 0
      %6893 = vmatpush1.bf16.msra.mxu0 %v6871
      %6894 = vmatprep.subr.bf16.mxu0 0
      %6895 = vmatpush1.bf16.msra.mxu0 %v6872
      %6896 = vmatprep.subr.bf16.mxu0 0
      %6897 = vmatpush1.bf16.msra.mxu0 %v6873
      %6898 = vmatprep.subr.bf16.mxu0 0
      %6899 = vmatpush1.bf16.msra.mxu0 0
      %6900 = vmatprep.subr.bf16.mxu0 0
      %6901 = vmatpush1.bf16.msra.mxu0 0
      %6902 = vmatprep.subr.bf16.mxu0 0
      %6903 = vmatpush1.bf16.msra.mxu0 0
      %6904 = vmatprep.subr.bf16.mxu0 0
      %6905 = vmatpush1.bf16.msra.mxu0 0
      %6906 = vmatprep.subr.bf16.mxu0 0
      %6907 = vmatpush1.bf16.msra.mxu0 0
      %6908 = vmatprep.subr.bf16.mxu0 0
      %6909 = vmatpush1.bf16.msra.mxu0 0
      %6910 = vmatprep.subr.bf16.mxu0 0
      %6911 = vmatpush1.bf16.msra.mxu0 0
      %6912 = vmatprep.subr.bf16.mxu0 0
      %6913 = vmatpush1.bf16.msra.mxu0 0
      %6914 = vmatprep.mubr.bf16.mxu0 0
      %6915 = vmatmul.mubr.bf16.gmra.mrb[0].mxu0 %v6602
      %v6916 = vpop.f32.mrb[0].mxu0
      %v6917 = vadd.f32 %v6395, %v6916
      %v6918 = vpop.f32.mrb[0].mxu0
      %v6919 = vpop.f32.mrb[0].mxu0
      %v6920 = vadd.f32 %v6398, %v6919
      %v6921 = vpop.f32.mrb[0].mxu0
      %6922 = vmatprep.mubr.bf16.mxu0 0
      %6923 = vmatmul.mubr.bf16.gmra.mrb[0].mxu0 %v6611
      %v6924 = vpop.f32.mrb[0].mxu0
      %v6925 = vadd.f32 %v6403, %v6924
      %v6926 = vpop.f32.mrb[0].mxu0
      %v6927 = vpop.f32.mrb[0].mxu0
      %v6928 = vadd.f32 %v6406, %v6927
      %v6929 = vpop.f32.mrb[0].mxu0
      %6930 = vmatprep.mubr.bf16.mxu0 0
      %6931 = vmatmul.mubr.bf16.gmra.mrb[0].mxu0 %v6620
      %v6932 = vpop.f32.mrb[0].mxu0
      %v6933 = vadd.f32 %v6411, %v6932
      %v6934 = vpop.f32.mrb[0].mxu0
      %v6935 = vpop.f32.mrb[0].mxu0
      %v6936 = vadd.f32 %v6414, %v6935
      %v6937 = vpop.f32.mrb[0].mxu0
      %6938 = vmatprep.mubr.bf16.mxu0 0
      %6939 = vmatmul.mubr.bf16.gmra.mrb[0].mxu0 %v6629
      %v6940 = vpop.f32.mrb[0].mxu0
      %v6941 = vadd.f32 %v6419, %v6940
      %v6942 = vpop.f32.mrb[0].mxu0
      %v6943 = vpop.f32.mrb[0].mxu0
      %v6944 = vadd.f32 %v6422, %v6943
      %v6945 = vpop.f32.mrb[0].mxu0
      %6946 = vmatprep.mubr.bf16.mxu0 0
      %6947 = vmatmul.mubr.bf16.gmra.mrb[0].mxu0 %v6638
      %v6948 = vpop.f32.mrb[0].mxu0
      %v6949 = vadd.f32 %v6427, %v6948
      %v6950 = vpop.f32.mrb[0].mxu0
      %v6951 = vpop.f32.mrb[0].mxu0
      %v6952 = vadd.f32 %v6430, %v6951
      %v6953 = vpop.f32.mrb[0].mxu0
      %6954 = vmatprep.mubr.bf16.mxu0 0
      %6955 = vmatmul.mubr.bf16.gmra.mrb[0].mxu0 %v6647
      %v6956 = vpop.f32.mrb[0].mxu0
      %v6957 = vadd.f32 %v6435, %v6956
      %v6958 = vpop.f32.mrb[0].mxu0
      %v6959 = vpop.f32.mrb[0].mxu0
      %v6960 = vadd.f32 %v6438, %v6959
      %v6961 = vpop.f32.mrb[0].mxu0
      %6962 = vmatprep.mubr.bf16.mxu0 0
      %6963 = vmatmul.mubr.bf16.gmra.mrb[0].mxu0 %v6656
      %v6964 = vpop.f32.mrb[0].mxu0
      %v6965 = vadd.f32 %v6443, %v6964
      %v6966 = vpop.f32.mrb[0].mxu0
      %v6967 = vpop.f32.mrb[0].mxu0
      %v6968 = vadd.f32 %v6446, %v6967
      %v6969 = vpop.f32.mrb[0].mxu0
      %6970 = vmatprep.mubr.bf16.mxu0 0
      %6971 = vmatmul.mubr.bf16.gmra.mrb[0].mxu0 %v6665
      %v6972 = vpop.f32.mrb[0].mxu0
      %v6973 = vadd.f32 %v6451, %v6972
      %v6974 = vpop.f32.mrb[0].mxu0
      %v6975 = vpop.f32.mrb[0].mxu0
      %v6976 = vadd.f32 %v6454, %v6975
      %v6977 = vpop.f32.mrb[0].mxu0
      %6978 = vmatprep.mubr.bf16.mxu0 0
      %6979 = vmatmul.mubr.bf16.gmra.mrb[0].mxu0 %v6674
      %v6980 = vpop.f32.mrb[0].mxu0
      %v6981 = vadd.f32 %v6459, %v6980
      %v6982 = vpop.f32.mrb[0].mxu0
      %v6983 = vpop.f32.mrb[0].mxu0
      %v6984 = vadd.f32 %v6462, %v6983
      %v6985 = vpop.f32.mrb[0].mxu0
      %6986 = vmatprep.mubr.bf16.mxu0 0
      %6987 = vmatmul.mubr.bf16.gmra.mrb[0].mxu0 %v6683
      %v6988 = vpop.f32.mrb[0].mxu0
      %v6989 = vadd.f32 %v6467, %v6988
      %v6990 = vpop.f32.mrb[0].mxu0
      %v6991 = vpop.f32.mrb[0].mxu0
      %v6992 = vadd.f32 %v6470, %v6991
      %v6993 = vpop.f32.mrb[0].mxu0
      %6994 = vmatprep.mubr.bf16.mxu0 0
      %6995 = vmatmul.mubr.bf16.gmra.mrb[0].mxu0 %v6692
      %v6996 = vpop.f32.mrb[0].mxu0
      %v6997 = vadd.f32 %v6475, %v6996
      %v6998 = vpop.f32.mrb[0].mxu0
      %v6999 = vpop.f32.mrb[0].mxu0
      %v7000 = vadd.f32 %v6478, %v6999
      %v7001 = vpop.f32.mrb[0].mxu0
      %7002 = vmatprep.mubr.bf16.mxu0 0
      %7003 = vmatmul.mubr.bf16.gmra.mrb[0].mxu0 %v6701
      %v7004 = vpop.f32.mrb[0].mxu0
      %v7005 = vadd.f32 %v6483, %v7004
      %v7006 = vpop.f32.mrb[0].mxu0
      %v7007 = vpop.f32.mrb[0].mxu0
      %v7008 = vadd.f32 %v6486, %v7007
      %v7009 = vpop.f32.mrb[0].mxu0
      %7010 = vmatprep.mubr.bf16.mxu0 0
      %7011 = vmatmul.mubr.bf16.gmra.mrb[0].mxu0 %v6710
      %v7012 = vpop.f32.mrb[0].mxu0
      %v7013 = vadd.f32 %v6491, %v7012
      %v7014 = vpop.f32.mrb[0].mxu0
      %v7015 = vpop.f32.mrb[0].mxu0
      %v7016 = vadd.f32 %v6494, %v7015
      %v7017 = vpop.f32.mrb[0].mxu0
      %7018 = vmatprep.mubr.bf16.mxu0 0
      %7019 = vmatmul.mubr.bf16.gmra.mrb[0].mxu0 %v6719
      %v7020 = vpop.f32.mrb[0].mxu0
      %v7021 = vadd.f32 %v6499, %v7020
      %v7022 = vpop.f32.mrb[0].mxu0
      %v7023 = vpop.f32.mrb[0].mxu0
      %v7024 = vadd.f32 %v6502, %v7023
      %v7025 = vpop.f32.mrb[0].mxu0
      %7026 = vmatprep.mubr.bf16.mxu0 0
      %7027 = vmatmul.mubr.bf16.gmra.mrb[0].mxu0 %v6728
      %v7028 = vpop.f32.mrb[0].mxu0
      %v7029 = vadd.f32 %v6507, %v7028
      %v7030 = vpop.f32.mrb[0].mxu0
      %v7031 = vpop.f32.mrb[0].mxu0
      %v7032 = vadd.f32 %v6510, %v7031
      %v7033 = vpop.f32.mrb[0].mxu0
      %7034 = vmatprep.mubr.bf16.mxu0 0
      %7035 = vmatmul.mubr.bf16.gmra.mrb[0].mxu0 %v6737
      %v7036 = vpop.f32.mrb[0].mxu0
      %v7037 = vadd.f32 %v6515, %v7036
      %v7038 = vpop.f32.mrb[0].mxu0
      %v7039 = vpop.f32.mrb[0].mxu0
      %v7040 = vadd.f32 %v6518, %v7039
      %v7041 = vpop.f32.mrb[0].mxu0
      %7042 = vmatprep.mubr.bf16.mxu0 0
      %7043 = vmatmul.mubr.bf16.gmra.mrb[0].mxu0 %v6746
      %v7044 = vpop.f32.mrb[0].mxu0
      %v7045 = vadd.f32 %v6523, %v7044
      %v7046 = vpop.f32.mrb[0].mxu0
      %v7047 = vpop.f32.mrb[0].mxu0
      %v7048 = vadd.f32 %v6526, %v7047
      %v7049 = vpop.f32.mrb[0].mxu0
      %7050 = vmatprep.mubr.bf16.mxu0 0
      %7051 = vmatmul.mubr.bf16.gmra.mrb[0].mxu0 %v6755
      %v7052 = vpop.f32.mrb[0].mxu0
      %v7053 = vadd.f32 %v6531, %v7052
      %v7054 = vpop.f32.mrb[0].mxu0
      %v7055 = vpop.f32.mrb[0].mxu0
      %v7056 = vadd.f32 %v6534, %v7055
      %v7057 = vpop.f32.mrb[0].mxu0
      %7058 = vmatprep.mubr.bf16.mxu0 0
      %7059 = vmatmul.mubr.bf16.gmra.mrb[0].mxu0 %v6764
      %v7060 = vpop.f32.mrb[0].mxu0
      %v7061 = vadd.f32 %v6539, %v7060
      %v7062 = vpop.f32.mrb[0].mxu0
      %v7063 = vpop.f32.mrb[0].mxu0
      %v7064 = vadd.f32 %v6542, %v7063
      %v7065 = vpop.f32.mrb[0].mxu0
      %7066 = vmatprep.mubr.bf16.mxu0 0
      %7067 = vmatmul.mubr.bf16.gmra.mrb[0].mxu0 %v6773
      %v7068 = vpop.f32.mrb[0].mxu0
      %v7069 = vadd.f32 %v6547, %v7068
      %v7070 = vpop.f32.mrb[0].mxu0
      %v7071 = vpop.f32.mrb[0].mxu0
      %v7072 = vadd.f32 %v6550, %v7071
      %v7073 = vpop.f32.mrb[0].mxu0
      %7074 = vmatprep.mubr.bf16.mxu0 0
      %7075 = vmatmul.mubr.bf16.gmra.mrb[0].mxu0 %v6782
      %v7076 = vpop.f32.mrb[0].mxu0
      %v7077 = vadd.f32 %v6555, %v7076
      %v7078 = vpop.f32.mrb[0].mxu0
      %v7079 = vpop.f32.mrb[0].mxu0
      %v7080 = vadd.f32 %v6558, %v7079
      %v7081 = vpop.f32.mrb[0].mxu0
      %7082 = vmatprep.mubr.bf16.mxu0 0
      %7083 = vmatmul.mubr.bf16.gmra.mrb[0].mxu0 %v6791
      %v7084 = vpop.f32.mrb[0].mxu0
      %v7085 = vadd.f32 %v6563, %v7084
      %v7086 = vpop.f32.mrb[0].mxu0
      %v7087 = vpop.f32.mrb[0].mxu0
      %v7088 = vadd.f32 %v6566, %v7087
      %v7089 = vpop.f32.mrb[0].mxu0
      %7090 = vmatprep.mubr.bf16.mxu0 0
      %7091 = vmatmul.mubr.bf16.gmra.mrb[0].mxu0 %v6800
      %v7092 = vpop.f32.mrb[0].mxu0
      %v7093 = vadd.f32 %v6571, %v7092
      %v7094 = vpop.f32.mrb[0].mxu0
      %v7095 = vpop.f32.mrb[0].mxu0
      %v7096 = vadd.f32 %v6574, %v7095
      %v7097 = vpop.f32.mrb[0].mxu0
      %7098 = vmatprep.mubr.bf16.mxu0 0
      %7099 = vmatmul.mubr.bf16.gmra.mrb[0].mxu0 %v6809
      %v7100 = vpop.f32.mrb[0].mxu0
      %v7101 = vadd.f32 %v6579, %v7100
      %v7102 = vpop.f32.mrb[0].mxu0
      %v7103 = vpop.f32.mrb[0].mxu0
      %v7104 = vadd.f32 %v6582, %v7103
      %v7105 = vpop.f32.mrb[0].mxu0
      %7106 = vdwg.mxu0
      %v7107 = vld [vmem:[#allocation2 + $0xc8] sm:$0x1f]
      %s7108 = scalar_lea.vmem %s3, 128
      %v7109 = vld [vmem:[%s7108] sm:$0xf]
      %v7110 = vld [vmem:[%s7108 + $0x4] sm:$0xf]
      %v7111 = vld [vmem:[%s7108 + $0x8] sm:$0xf]
      %v7112 = vld [vmem:[%s7108 + $0xc] sm:$0xf]
      %v7113 = vld [vmem:[%s7108 + $0x10] sm:$0xf]
      %v7114 = vld [vmem:[%s7108 + $0x14] sm:$0xf]
      %v7115 = vld [vmem:[%s7108 + $0x18] sm:$0xf]
      %v7116 = vld [vmem:[%s7108 + $0x1c] sm:$0xf]
      %v7117 = vld [vmem:[%s7108 + $0x20] sm:$0xf]
      %v7118 = vld [vmem:[%s7108 + $0x24] sm:$0xf]
      %v7119 = vld [vmem:[%s7108 + $0x28] sm:$0xf]
      %v7120 = vld [vmem:[%s7108 + $0x2c] sm:$0xf]
      %v7121 = vld [vmem:[%s7108 + $0x30] sm:$0xf]
      %v7122 = vld [vmem:[%s7108 + $0x34] sm:$0xf]
      %v7123 = vld [vmem:[%s7108 + $0x38] sm:$0xf]
      %v7124 = vld [vmem:[%s7108 + $0x3c] sm:$0xf]
      %vm7125 = vsmask.f32 3328
      %v7127 = vshrl.u32 %v6195, 16
      %v7129 = vrot.slane %v7127, 4
      %v7130 = vshll.u32 %v6195, 16
      %v7132 = vrot.slane %v7130, 5
      %v7133 = vor.u32 %v7129, %v7132
      %v7134 = vrot.slane %v6595, 4
      %v7135 = vrot.slane %v6598, 5
      %v7136 = vor.u32 %v7134, %v7135
      %v7137 = vsel %vm7125, %v7133, %v7136
      %v7138 = vrot.slane %v6604, 4
      %v7139 = vrot.slane %v6607, 5
      %v7140 = vor.u32 %v7138, %v7139
      %v7141 = vsel %vm7125, %v7136, %v7140
      %v7142 = vrot.slane %v6613, 4
      %v7143 = vrot.slane %v6616, 5
      %v7144 = vor.u32 %v7142, %v7143
      %v7145 = vsel %vm7125, %v7140, %v7144
      %v7146 = vrot.slane %v6622, 4
      %v7147 = vrot.slane %v6625, 5
      %v7148 = vor.u32 %v7146, %v7147
      %v7149 = vsel %vm7125, %v7144, %v7148
      %v7150 = vrot.slane %v6631, 4
      %v7151 = vrot.slane %v6634, 5
      %v7152 = vor.u32 %v7150, %v7151
      %v7153 = vsel %vm7125, %v7148, %v7152
      %v7154 = vrot.slane %v6640, 4
      %v7155 = vrot.slane %v6643, 5
      %v7156 = vor.u32 %v7154, %v7155
      %v7157 = vsel %vm7125, %v7152, %v7156
      %v7158 = vrot.slane %v6649, 4
      %v7159 = vrot.slane %v6652, 5
      %v7160 = vor.u32 %v7158, %v7159
      %v7161 = vsel %vm7125, %v7156, %v7160
      %v7162 = vrot.slane %v6658, 4
      %v7163 = vrot.slane %v6661, 5
      %v7164 = vor.u32 %v7162, %v7163
      %v7165 = vsel %vm7125, %v7160, %v7164
      %v7166 = vrot.slane %v6667, 4
      %v7167 = vrot.slane %v6670, 5
      %v7168 = vor.u32 %v7166, %v7167
      %v7169 = vsel %vm7125, %v7164, %v7168
      %v7170 = vrot.slane %v6676, 4
      %v7171 = vrot.slane %v6679, 5
      %v7172 = vor.u32 %v7170, %v7171
      %v7173 = vsel %vm7125, %v7168, %v7172
      %v7174 = vrot.slane %v6685, 4
      %v7175 = vrot.slane %v6688, 5
      %v7176 = vor.u32 %v7174, %v7175
      %v7177 = vsel %vm7125, %v7172, %v7176
      %v7178 = vrot.slane %v6694, 4
      %v7179 = vrot.slane %v6697, 5
      %v7180 = vor.u32 %v7178, %v7179
      %v7181 = vsel %vm7125, %v7176, %v7180
      %v7182 = vrot.slane %v6703, 4
      %v7183 = vrot.slane %v6706, 5
      %v7184 = vor.u32 %v7182, %v7183
      %v7185 = vsel %vm7125, %v7180, %v7184
      %v7186 = vrot.slane %v6712, 4
      %v7187 = vrot.slane %v6715, 5
      %v7188 = vor.u32 %v7186, %v7187
      %v7189 = vsel %vm7125, %v7184, %v7188
      %v7190 = vrot.slane %v6721, 4
      %v7191 = vrot.slane %v6724, 5
      %v7192 = vor.u32 %v7190, %v7191
      %v7193 = vsel %vm7125, %v7188, %v7192
      %v7194 = vrot.slane %v6730, 4
      %v7195 = vrot.slane %v6733, 5
      %v7196 = vor.u32 %v7194, %v7195
      %v7197 = vsel %vm7125, %v7192, %v7196
      %v7198 = vrot.slane %v6739, 4
      %v7199 = vrot.slane %v6742, 5
      %v7200 = vor.u32 %v7198, %v7199
      %v7201 = vsel %vm7125, %v7196, %v7200
      %v7202 = vrot.slane %v6748, 4
      %v7203 = vrot.slane %v6751, 5
      %v7204 = vor.u32 %v7202, %v7203
      %v7205 = vsel %vm7125, %v7200, %v7204
      %v7206 = vrot.slane %v6757, 4
      %v7207 = vrot.slane %v6760, 5
      %v7208 = vor.u32 %v7206, %v7207
      %v7209 = vsel %vm7125, %v7204, %v7208
      %v7210 = vrot.slane %v6766, 4
      %v7211 = vrot.slane %v6769, 5
      %v7212 = vor.u32 %v7210, %v7211
      %v7213 = vsel %vm7125, %v7208, %v7212
      %v7214 = vrot.slane %v6775, 4
      %v7215 = vrot.slane %v6778, 5
      %v7216 = vor.u32 %v7214, %v7215
      %v7217 = vsel %vm7125, %v7212, %v7216
      %v7218 = vrot.slane %v6784, 4
      %v7219 = vrot.slane %v6787, 5
      %v7220 = vor.u32 %v7218, %v7219
      %v7221 = vsel %vm7125, %v7216, %v7220
      %v7222 = vrot.slane %v6793, 4
      %v7223 = vrot.slane %v6796, 5
      %v7224 = vor.u32 %v7222, %v7223
      %v7225 = vsel %vm7125, %v7220, %v7224
      %v7227 = vshrl.u32 %v7107, 16
      %v7229 = vrot.slane %v7227, 4
      %v7230 = vshll.u32 %v7107, 16
      %v7232 = vrot.slane %v7230, 5
      %v7233 = vor.u32 %v7229, %v7232
      %v7234 = vsel %vm7125, %v7224, %v7233
      %v7275 = vunpack.c.l.b16 %v7109
      %v7276 = vunpack.c.l.b16 %v7110
      %v7277 = vunpack.c.l.b16 %v7111
      %v7278 = vunpack.c.l.b16 %v7112
      %v7279 = vunpack.c.l.b16 %v7113
      %v7280 = vunpack.c.l.b16 %v7114
      %v7281 = vunpack.c.l.b16 %v7115
      %v7282 = vunpack.c.l.b16 %v7116
      %v7283 = vunpack.c.l.b16 %v7117
      %v7284 = vunpack.c.l.b16 %v7118
      %v7285 = vunpack.c.l.b16 %v7119
      %v7286 = vunpack.c.l.b16 %v7120
      %v7287 = vunpack.c.l.b16 %v7121
      %v7288 = vunpack.c.l.b16 %v7122
      %v7289 = vunpack.c.l.b16 %v7123
      %v7290 = vunpack.c.l.b16 %v7124
      %v7291 = vpack.c.b16 %v7276, %v7275
      %v7292 = vpack.c.b16 %v7278, %v7277
      %v7293 = vpack.c.b16 %v7280, %v7279
      %v7294 = vpack.c.b16 %v7282, %v7281
      %v7295 = vpack.c.b16 %v7284, %v7283
      %v7296 = vpack.c.b16 %v7286, %v7285
      %v7297 = vpack.c.b16 %v7288, %v7287
      %v7298 = vpack.c.b16 %v7290, %v7289
      %7307 = vmatprep.subr.bf16.mxu0 0
      %7308 = vmatpush1.bf16.msra.mxu0 %v7291
      %7309 = vmatprep.subr.bf16.mxu0 0
      %7310 = vmatpush1.bf16.msra.mxu0 %v7292
      %7311 = vmatprep.subr.bf16.mxu0 0
      %7312 = vmatpush1.bf16.msra.mxu0 %v7293
      %7313 = vmatprep.subr.bf16.mxu0 0
      %7314 = vmatpush1.bf16.msra.mxu0 %v7294
      %7315 = vmatprep.subr.bf16.mxu0 0
      %7316 = vmatpush1.bf16.msra.mxu0 %v7295
      %7317 = vmatprep.subr.bf16.mxu0 0
      %7318 = vmatpush1.bf16.msra.mxu0 %v7296
      %7319 = vmatprep.subr.bf16.mxu0 0
      %7320 = vmatpush1.bf16.msra.mxu0 %v7297
      %7321 = vmatprep.subr.bf16.mxu0 0
      %7322 = vmatpush1.bf16.msra.mxu0 %v7298
      %7323 = vmatprep.subr.bf16.mxu0 0
      %7324 = vmatpush1.bf16.msra.mxu0 0
      %7325 = vmatprep.subr.bf16.mxu0 0
      %7326 = vmatpush1.bf16.msra.mxu0 0
      %7327 = vmatprep.subr.bf16.mxu0 0
      %7328 = vmatpush1.bf16.msra.mxu0 0
      %7329 = vmatprep.subr.bf16.mxu0 0
      %7330 = vmatpush1.bf16.msra.mxu0 0
      %7331 = vmatprep.subr.bf16.mxu0 0
      %7332 = vmatpush1.bf16.msra.mxu0 0
      %7333 = vmatprep.subr.bf16.mxu0 0
      %7334 = vmatpush1.bf16.msra.mxu0 0
      %7335 = vmatprep.subr.bf16.mxu0 0
      %7336 = vmatpush1.bf16.msra.mxu0 0
      %7337 = vmatprep.subr.bf16.mxu0 0
      %7338 = vmatpush1.bf16.msra.mxu0 0
      %7339 = vmatprep.mubr.bf16.mxu0 0
      %7340 = vmatmul.mubr.bf16.gmra.mrb[0].mxu0 %v7137
      %v7341 = vpop.f32.mrb[0].mxu0
      %v7342 = vadd.f32 0.0, %v7341
      %v7343 = vpop.f32.mrb[0].mxu0
      %v7344 = vpop.f32.mrb[0].mxu0
      %v7345 = vadd.f32 0.0, %v7344
      %v7346 = vpop.f32.mrb[0].mxu0
      %7347 = vmatprep.mubr.bf16.mxu0 0
      %7348 = vmatmul.mubr.bf16.gmra.mrb[0].mxu0 %v7141
      %v7349 = vpop.f32.mrb[0].mxu0
      %v7350 = vadd.f32 0.0, %v7349
      %v7351 = vpop.f32.mrb[0].mxu0
      %v7352 = vpop.f32.mrb[0].mxu0
      %v7353 = vadd.f32 0.0, %v7352
      %v7354 = vpop.f32.mrb[0].mxu0
      %7355 = vmatprep.mubr.bf16.mxu0 0
      %7356 = vmatmul.mubr.bf16.gmra.mrb[0].mxu0 %v7145
      %v7357 = vpop.f32.mrb[0].mxu0
      %v7358 = vadd.f32 0.0, %v7357
      %v7359 = vpop.f32.mrb[0].mxu0
      %v7360 = vpop.f32.mrb[0].mxu0
      %v7361 = vadd.f32 0.0, %v7360
      %v7362 = vpop.f32.mrb[0].mxu0
      %7363 = vmatprep.mubr.bf16.mxu0 0
      %7364 = vmatmul.mubr.bf16.gmra.mrb[0].mxu0 %v7149
      %v7365 = vpop.f32.mrb[0].mxu0
      %v7366 = vadd.f32 0.0, %v7365
      %v7367 = vpop.f32.mrb[0].mxu0
      %v7368 = vpop.f32.mrb[0].mxu0
      %v7369 = vadd.f32 0.0, %v7368
      %v7370 = vpop.f32.mrb[0].mxu0
      %7371 = vmatprep.mubr.bf16.mxu0 0
      %7372 = vmatmul.mubr.bf16.gmra.mrb[0].mxu0 %v7153
      %v7373 = vpop.f32.mrb[0].mxu0
      %v7374 = vadd.f32 0.0, %v7373
      %v7375 = vpop.f32.mrb[0].mxu0
      %v7376 = vpop.f32.mrb[0].mxu0
      %v7377 = vadd.f32 0.0, %v7376
      %v7378 = vpop.f32.mrb[0].mxu0
      %7379 = vmatprep.mubr.bf16.mxu0 0
      %7380 = vmatmul.mubr.bf16.gmra.mrb[0].mxu0 %v7157
      %v7381 = vpop.f32.mrb[0].mxu0
      %v7382 = vadd.f32 0.0, %v7381
      %v7383 = vpop.f32.mrb[0].mxu0
      %v7384 = vpop.f32.mrb[0].mxu0
      %v7385 = vadd.f32 0.0, %v7384
      %v7386 = vpop.f32.mrb[0].mxu0
      %7387 = vmatprep.mubr.bf16.mxu0 0
      %7388 = vmatmul.mubr.bf16.gmra.mrb[0].mxu0 %v7161
      %v7389 = vpop.f32.mrb[0].mxu0
      %v7390 = vadd.f32 0.0, %v7389
      %v7391 = vpop.f32.mrb[0].mxu0
      %v7392 = vpop.f32.mrb[0].mxu0
      %v7393 = vadd.f32 0.0, %v7392
      %v7394 = vpop.f32.mrb[0].mxu0
      %7395 = vmatprep.mubr.bf16.mxu0 0
      %7396 = vmatmul.mubr.bf16.gmra.mrb[0].mxu0 %v7165
      %v7397 = vpop.f32.mrb[0].mxu0
      %v7398 = vadd.f32 0.0, %v7397
      %v7399 = vpop.f32.mrb[0].mxu0
      %v7400 = vpop.f32.mrb[0].mxu0
      %v7401 = vadd.f32 0.0, %v7400
      %v7402 = vpop.f32.mrb[0].mxu0
      %7403 = vmatprep.mubr.bf16.mxu0 0
      %7404 = vmatmul.mubr.bf16.gmra.mrb[0].mxu0 %v7169
      %v7405 = vpop.f32.mrb[0].mxu0
      %v7406 = vadd.f32 0.0, %v7405
      %v7407 = vpop.f32.mrb[0].mxu0
      %v7408 = vpop.f32.mrb[0].mxu0
      %v7409 = vadd.f32 0.0, %v7408
      %v7410 = vpop.f32.mrb[0].mxu0
      %7411 = vmatprep.mubr.bf16.mxu0 0
      %7412 = vmatmul.mubr.bf16.gmra.mrb[0].mxu0 %v7173
      %v7413 = vpop.f32.mrb[0].mxu0
      %v7414 = vadd.f32 0.0, %v7413
      %v7415 = vpop.f32.mrb[0].mxu0
      %v7416 = vpop.f32.mrb[0].mxu0
      %v7417 = vadd.f32 0.0, %v7416
      %v7418 = vpop.f32.mrb[0].mxu0
      %7419 = vmatprep.mubr.bf16.mxu0 0
      %7420 = vmatmul.mubr.bf16.gmra.mrb[0].mxu0 %v7177
      %v7421 = vpop.f32.mrb[0].mxu0
      %v7422 = vadd.f32 0.0, %v7421
      %v7423 = vpop.f32.mrb[0].mxu0
      %v7424 = vpop.f32.mrb[0].mxu0
      %v7425 = vadd.f32 0.0, %v7424
      %v7426 = vpop.f32.mrb[0].mxu0
      %7427 = vmatprep.mubr.bf16.mxu0 0
      %7428 = vmatmul.mubr.bf16.gmra.mrb[0].mxu0 %v7181
      %v7429 = vpop.f32.mrb[0].mxu0
      %v7430 = vadd.f32 0.0, %v7429
      %v7431 = vpop.f32.mrb[0].mxu0
      %v7432 = vpop.f32.mrb[0].mxu0
      %v7433 = vadd.f32 0.0, %v7432
      %v7434 = vpop.f32.mrb[0].mxu0
      %7435 = vmatprep.mubr.bf16.mxu0 0
      %7436 = vmatmul.mubr.bf16.gmra.mrb[0].mxu0 %v7185
      %v7437 = vpop.f32.mrb[0].mxu0
      %v7438 = vadd.f32 0.0, %v7437
      %v7439 = vpop.f32.mrb[0].mxu0
      %v7440 = vpop.f32.mrb[0].mxu0
      %v7441 = vadd.f32 0.0, %v7440
      %v7442 = vpop.f32.mrb[0].mxu0
      %7443 = vmatprep.mubr.bf16.mxu0 0
      %7444 = vmatmul.mubr.bf16.gmra.mrb[0].mxu0 %v7189
      %v7445 = vpop.f32.mrb[0].mxu0
      %v7446 = vadd.f32 0.0, %v7445
      %v7447 = vpop.f32.mrb[0].mxu0
      %v7448 = vpop.f32.mrb[0].mxu0
      %v7449 = vadd.f32 0.0, %v7448
      %v7450 = vpop.f32.mrb[0].mxu0
      %7451 = vmatprep.mubr.bf16.mxu0 0
      %7452 = vmatmul.mubr.bf16.gmra.mrb[0].mxu0 %v7193
      %v7453 = vpop.f32.mrb[0].mxu0
      %v7454 = vadd.f32 0.0, %v7453
      %v7455 = vpop.f32.mrb[0].mxu0
      %v7456 = vpop.f32.mrb[0].mxu0
      %v7457 = vadd.f32 0.0, %v7456
      %v7458 = vpop.f32.mrb[0].mxu0
      %7459 = vmatprep.mubr.bf16.mxu0 0
      %7460 = vmatmul.mubr.bf16.gmra.mrb[0].mxu0 %v7197
      %v7461 = vpop.f32.mrb[0].mxu0
      %v7462 = vadd.f32 0.0, %v7461
      %v7463 = vpop.f32.mrb[0].mxu0
      %v7464 = vpop.f32.mrb[0].mxu0
      %v7465 = vadd.f32 0.0, %v7464
      %v7466 = vpop.f32.mrb[0].mxu0
      %7467 = vmatprep.mubr.bf16.mxu0 0
      %7468 = vmatmul.mubr.bf16.gmra.mrb[0].mxu0 %v7201
      %v7469 = vpop.f32.mrb[0].mxu0
      %v7470 = vadd.f32 0.0, %v7469
      %v7471 = vpop.f32.mrb[0].mxu0
      %v7472 = vpop.f32.mrb[0].mxu0
      %v7473 = vadd.f32 0.0, %v7472
      %v7474 = vpop.f32.mrb[0].mxu0
      %7475 = vmatprep.mubr.bf16.mxu0 0
      %7476 = vmatmul.mubr.bf16.gmra.mrb[0].mxu0 %v7205
      %v7477 = vpop.f32.mrb[0].mxu0
      %v7478 = vadd.f32 0.0, %v7477
      %v7479 = vpop.f32.mrb[0].mxu0
      %v7480 = vpop.f32.mrb[0].mxu0
      %v7481 = vadd.f32 0.0, %v7480
      %v7482 = vpop.f32.mrb[0].mxu0
      %7483 = vmatprep.mubr.bf16.mxu0 0
      %7484 = vmatmul.mubr.bf16.gmra.mrb[0].mxu0 %v7209
      %v7485 = vpop.f32.mrb[0].mxu0
      %v7486 = vadd.f32 0.0, %v7485
      %v7487 = vpop.f32.mrb[0].mxu0
      %v7488 = vpop.f32.mrb[0].mxu0
      %v7489 = vadd.f32 0.0, %v7488
      %v7490 = vpop.f32.mrb[0].mxu0
      %7491 = vmatprep.mubr.bf16.mxu0 0
      %7492 = vmatmul.mubr.bf16.gmra.mrb[0].mxu0 %v7213
      %v7493 = vpop.f32.mrb[0].mxu0
      %v7494 = vadd.f32 0.0, %v7493
      %v7495 = vpop.f32.mrb[0].mxu0
      %v7496 = vpop.f32.mrb[0].mxu0
      %v7497 = vadd.f32 0.0, %v7496
      %v7498 = vpop.f32.mrb[0].mxu0
      %7499 = vmatprep.mubr.bf16.mxu0 0
      %7500 = vmatmul.mubr.bf16.gmra.mrb[0].mxu0 %v7217
      %v7501 = vpop.f32.mrb[0].mxu0
      %v7502 = vadd.f32 0.0, %v7501
      %v7503 = vpop.f32.mrb[0].mxu0
      %v7504 = vpop.f32.mrb[0].mxu0
      %v7505 = vadd.f32 0.0, %v7504
      %v7506 = vpop.f32.mrb[0].mxu0
      %7507 = vmatprep.mubr.bf16.mxu0 0
      %7508 = vmatmul.mubr.bf16.gmra.mrb[0].mxu0 %v7221
      %v7509 = vpop.f32.mrb[0].mxu0
      %v7510 = vadd.f32 0.0, %v7509
      %v7511 = vpop.f32.mrb[0].mxu0
      %v7512 = vpop.f32.mrb[0].mxu0
      %v7513 = vadd.f32 0.0, %v7512
      %v7514 = vpop.f32.mrb[0].mxu0
      %7515 = vmatprep.mubr.bf16.mxu0 0
      %7516 = vmatmul.mubr.bf16.gmra.mrb[0].mxu0 %v7225
      %v7517 = vpop.f32.mrb[0].mxu0
      %v7518 = vadd.f32 0.0, %v7517
      %v7519 = vpop.f32.mrb[0].mxu0
      %v7520 = vpop.f32.mrb[0].mxu0
      %v7521 = vadd.f32 0.0, %v7520
      %v7522 = vpop.f32.mrb[0].mxu0
      %7523 = vmatprep.mubr.bf16.mxu0 0
      %7524 = vmatmul.mubr.bf16.gmra.mrb[0].mxu0 %v7234
      %v7525 = vpop.f32.mrb[0].mxu0
      %v7526 = vadd.f32 0.0, %v7525
      %v7527 = vpop.f32.mrb[0].mxu0
      %v7528 = vpop.f32.mrb[0].mxu0
      %v7529 = vadd.f32 0.0, %v7528
      %v7530 = vpop.f32.mrb[0].mxu0
      %7531 = vdwg.mxu0
      %v7532 = vadd.f32 %v6917, %v7342
      %v7533 = vadd.f32 %v6920, %v7345
      %v7534 = vadd.f32 %v6925, %v7350
      %v7535 = vadd.f32 %v6928, %v7353
      %v7536 = vadd.f32 %v6933, %v7358
      %v7537 = vadd.f32 %v6936, %v7361
      %v7538 = vadd.f32 %v6941, %v7366
      %v7539 = vadd.f32 %v6944, %v7369
      %v7540 = vadd.f32 %v6949, %v7374
      %v7541 = vadd.f32 %v6952, %v7377
      %v7542 = vadd.f32 %v6957, %v7382
      %v7543 = vadd.f32 %v6960, %v7385
      %v7544 = vadd.f32 %v6965, %v7390
      %v7545 = vadd.f32 %v6968, %v7393
      %v7546 = vadd.f32 %v6973, %v7398
      %v7547 = vadd.f32 %v6976, %v7401
      %v7548 = vadd.f32 %v6981, %v7406
      %v7549 = vadd.f32 %v6984, %v7409
      %v7550 = vadd.f32 %v6989, %v7414
      %v7551 = vadd.f32 %v6992, %v7417
      %v7552 = vadd.f32 %v6997, %v7422
      %v7553 = vadd.f32 %v7000, %v7425
      %v7554 = vadd.f32 %v7005, %v7430
      %v7555 = vadd.f32 %v7008, %v7433
      %v7556 = vadd.f32 %v7013, %v7438
      %v7557 = vadd.f32 %v7016, %v7441
      %v7558 = vadd.f32 %v7021, %v7446
      %v7559 = vadd.f32 %v7024, %v7449
      %v7560 = vadd.f32 %v7029, %v7454
      %v7561 = vadd.f32 %v7032, %v7457
      %v7562 = vadd.f32 %v7037, %v7462
      %v7563 = vadd.f32 %v7040, %v7465
      %v7564 = vadd.f32 %v7045, %v7470
      %v7565 = vadd.f32 %v7048, %v7473
      %v7566 = vadd.f32 %v7053, %v7478
      %v7567 = vadd.f32 %v7056, %v7481
      %v7568 = vadd.f32 %v7061, %v7486
      %v7569 = vadd.f32 %v7064, %v7489
      %v7570 = vadd.f32 %v7069, %v7494
      %v7571 = vadd.f32 %v7072, %v7497
      %v7572 = vadd.f32 %v7077, %v7502
      %v7573 = vadd.f32 %v7080, %v7505
      %v7574 = vadd.f32 %v7085, %v7510
      %v7575 = vadd.f32 %v7088, %v7513
      %v7576 = vadd.f32 %v7093, %v7518
      %v7577 = vadd.f32 %v7096, %v7521
      %v7578 = vadd.f32 %v7101, %v7526
      %v7579 = vadd.f32 %v7104, %v7529
      %v7580 = vld [vmem:[#allocation2 + $0x10] sm:$0x80]
      %v7581 = vld [vmem:[#allocation2 + $0x18] sm:$0xff]
      %v7582 = vld [vmem:[#allocation2 + $0x20] sm:$0xff]
      %v7583 = vld [vmem:[#allocation2 + $0x28] sm:$0xff]
      %v7584 = vld [vmem:[#allocation2 + $0x30] sm:$0xff]
      %v7585 = vld [vmem:[#allocation2 + $0x38] sm:$0xff]
      %v7586 = vld [vmem:[#allocation2 + $0x40] sm:$0xff]
      %v7587 = vld [vmem:[#allocation2 + $0x48] sm:$0xff]
      %v7588 = vld [vmem:[#allocation2 + $0x50] sm:$0xff]
      %v7589 = vld [vmem:[#allocation2 + $0x58] sm:$0xff]
      %v7590 = vld [vmem:[#allocation2 + $0x60] sm:$0xff]
      %v7591 = vld [vmem:[#allocation2 + $0x68] sm:$0xff]
      %v7592 = vld [vmem:[#allocation2 + $0x70] sm:$0xff]
      %v7593 = vld [vmem:[#allocation2 + $0x78] sm:$0xff]
      %v7594 = vld [vmem:[#allocation2 + $0x80] sm:$0xff]
      %v7595 = vld [vmem:[#allocation2 + $0x88] sm:$0xff]
      %v7596 = vld [vmem:[#allocation2 + $0x90] sm:$0xff]
      %v7597 = vld [vmem:[#allocation2 + $0x98] sm:$0xff]
      %v7598 = vld [vmem:[#allocation2 + $0xa0] sm:$0xff]
      %v7599 = vld [vmem:[#allocation2 + $0xa8] sm:$0xff]
      %v7600 = vld [vmem:[#allocation2 + $0xb0] sm:$0xff]
      %v7601 = vld [vmem:[#allocation2 + $0xb8] sm:$0xff]
      %v7602 = vld [vmem:[#allocation2 + $0xc0] sm:$0xff]
      %v7603 = vld [vmem:[#allocation2 + $0xc8] sm:$0xff]
      %v7604 = vld [vmem:[#allocation2 + $0xd0] sm:$0xff]
      %s7605 = scalar_lea.vmem %s3, 192
      %v7606 = vld [vmem:[%s7605] sm:$0xf]
      %v7607 = vld [vmem:[%s7605 + $0x4] sm:$0xf]
      %v7608 = vld [vmem:[%s7605 + $0x8] sm:$0xf]
      %v7609 = vld [vmem:[%s7605 + $0xc] sm:$0xf]
      %v7610 = vld [vmem:[%s7605 + $0x10] sm:$0xf]
      %v7611 = vld [vmem:[%s7605 + $0x14] sm:$0xf]
      %v7612 = vld [vmem:[%s7605 + $0x18] sm:$0xf]
      %v7613 = vld [vmem:[%s7605 + $0x1c] sm:$0xf]
      %v7614 = vld [vmem:[%s7605 + $0x20] sm:$0xf]
      %v7615 = vld [vmem:[%s7605 + $0x24] sm:$0xf]
      %v7616 = vld [vmem:[%s7605 + $0x28] sm:$0xf]
      %v7617 = vld [vmem:[%s7605 + $0x2c] sm:$0xf]
      %v7618 = vld [vmem:[%s7605 + $0x30] sm:$0xf]
      %v7619 = vld [vmem:[%s7605 + $0x34] sm:$0xf]
      %v7620 = vld [vmem:[%s7605 + $0x38] sm:$0xf]
      %v7621 = vld [vmem:[%s7605 + $0x3c] sm:$0xf]
      %vm7622 = vsmask.f32 256
      %v7624 = vshrl.u32 %v7580, 16
      %v7626 = vrot.slane %v7624, 7
      %v7628 = vshrl.u32 %v7581, 16
      %v7630 = vrot.slane %v7628, 7
      %v7631 = vshll.u32 %v7581, 16
      %v7633 = vor.u32 %v7630, %v7631
      %v7634 = vsel %vm7622, %v7626, %v7633
      %v7636 = vshrl.u32 %v7582, 16
      %v7638 = vrot.slane %v7636, 7
      %v7639 = vshll.u32 %v7582, 16
      %v7641 = vor.u32 %v7638, %v7639
      %v7642 = vsel %vm7622, %v7630, %v7641
      %v7644 = vshrl.u32 %v7583, 16
      %v7646 = vrot.slane %v7644, 7
      %v7647 = vshll.u32 %v7583, 16
      %v7649 = vor.u32 %v7646, %v7647
      %v7650 = vsel %vm7622, %v7638, %v7649
      %v7652 = vshrl.u32 %v7584, 16
      %v7654 = vrot.slane %v7652, 7
      %v7655 = vshll.u32 %v7584, 16
      %v7657 = vor.u32 %v7654, %v7655
      %v7658 = vsel %vm7622, %v7646, %v7657
      %v7660 = vshrl.u32 %v7585, 16
      %v7662 = vrot.slane %v7660, 7
      %v7663 = vshll.u32 %v7585, 16
      %v7665 = vor.u32 %v7662, %v7663
      %v7666 = vsel %vm7622, %v7654, %v7665
      %v7668 = vshrl.u32 %v7586, 16
      %v7670 = vrot.slane %v7668, 7
      %v7671 = vshll.u32 %v7586, 16
      %v7673 = vor.u32 %v7670, %v7671
      %v7674 = vsel %vm7622, %v7662, %v7673
      %v7676 = vshrl.u32 %v7587, 16
      %v7678 = vrot.slane %v7676, 7
      %v7679 = vshll.u32 %v7587, 16
      %v7681 = vor.u32 %v7678, %v7679
      %v7682 = vsel %vm7622, %v7670, %v7681
      %v7684 = vshrl.u32 %v7588, 16
      %v7686 = vrot.slane %v7684, 7
      %v7687 = vshll.u32 %v7588, 16
      %v7689 = vor.u32 %v7686, %v7687
      %v7690 = vsel %vm7622, %v7678, %v7689
      %v7692 = vshrl.u32 %v7589, 16
      %v7694 = vrot.slane %v7692, 7
      %v7695 = vshll.u32 %v7589, 16
      %v7697 = vor.u32 %v7694, %v7695
      %v7698 = vsel %vm7622, %v7686, %v7697
      %v7700 = vshrl.u32 %v7590, 16
      %v7702 = vrot.slane %v7700, 7
      %v7703 = vshll.u32 %v7590, 16
      %v7705 = vor.u32 %v7702, %v7703
      %v7706 = vsel %vm7622, %v7694, %v7705
      %v7708 = vshrl.u32 %v7591, 16
      %v7710 = vrot.slane %v7708, 7
      %v7711 = vshll.u32 %v7591, 16
      %v7713 = vor.u32 %v7710, %v7711
      %v7714 = vsel %vm7622, %v7702, %v7713
      %v7716 = vshrl.u32 %v7592, 16
      %v7718 = vrot.slane %v7716, 7
      %v7719 = vshll.u32 %v7592, 16
      %v7721 = vor.u32 %v7718, %v7719
      %v7722 = vsel %vm7622, %v7710, %v7721
      %v7724 = vshrl.u32 %v7593, 16
      %v7726 = vrot.slane %v7724, 7
      %v7727 = vshll.u32 %v7593, 16
      %v7729 = vor.u32 %v7726, %v7727
      %v7730 = vsel %vm7622, %v7718, %v7729
      %v7732 = vshrl.u32 %v7594, 16
      %v7734 = vrot.slane %v7732, 7
      %v7735 = vshll.u32 %v7594, 16
      %v7737 = vor.u32 %v7734, %v7735
      %v7738 = vsel %vm7622, %v7726, %v7737
      %v7740 = vshrl.u32 %v7595, 16
      %v7742 = vrot.slane %v7740, 7
      %v7743 = vshll.u32 %v7595, 16
      %v7745 = vor.u32 %v7742, %v7743
      %v7746 = vsel %vm7622, %v7734, %v7745
      %v7748 = vshrl.u32 %v7596, 16
      %v7750 = vrot.slane %v7748, 7
      %v7751 = vshll.u32 %v7596, 16
      %v7753 = vor.u32 %v7750, %v7751
      %v7754 = vsel %vm7622, %v7742, %v7753
      %v7756 = vshrl.u32 %v7597, 16
      %v7758 = vrot.slane %v7756, 7
      %v7759 = vshll.u32 %v7597, 16
      %v7761 = vor.u32 %v7758, %v7759
      %v7762 = vsel %vm7622, %v7750, %v7761
      %v7764 = vshrl.u32 %v7598, 16
      %v7766 = vrot.slane %v7764, 7
      %v7767 = vshll.u32 %v7598, 16
      %v7769 = vor.u32 %v7766, %v7767
      %v7770 = vsel %vm7622, %v7758, %v7769
      %v7772 = vshrl.u32 %v7599, 16
      %v7774 = vrot.slane %v7772, 7
      %v7775 = vshll.u32 %v7599, 16
      %v7777 = vor.u32 %v7774, %v7775
      %v7778 = vsel %vm7622, %v7766, %v7777
      %v7780 = vshrl.u32 %v7600, 16
      %v7782 = vrot.slane %v7780, 7
      %v7783 = vshll.u32 %v7600, 16
      %v7785 = vor.u32 %v7782, %v7783
      %v7786 = vsel %vm7622, %v7774, %v7785
      %v7788 = vshrl.u32 %v7601, 16
      %v7790 = vrot.slane %v7788, 7
      %v7791 = vshll.u32 %v7601, 16
      %v7793 = vor.u32 %v7790, %v7791
      %v7794 = vsel %vm7622, %v7782, %v7793
      %v7796 = vshrl.u32 %v7602, 16
      %v7798 = vrot.slane %v7796, 7
      %v7799 = vshll.u32 %v7602, 16
      %v7801 = vor.u32 %v7798, %v7799
      %v7802 = vsel %vm7622, %v7790, %v7801
      %v7804 = vshrl.u32 %v7603, 16
      %v7806 = vrot.slane %v7804, 7
      %v7807 = vshll.u32 %v7603, 16
      %v7809 = vor.u32 %v7806, %v7807
      %v7810 = vsel %vm7622, %v7798, %v7809
      %v7812 = vshrl.u32 %v7604, 16
      %v7814 = vrot.slane %v7812, 7
      %v7815 = vshll.u32 %v7604, 16
      %v7817 = vor.u32 %v7814, %v7815
      %v7818 = vsel %vm7622, %v7806, %v7817
      %v7859 = vunpack.c.l.b16 %v7606
      %v7860 = vunpack.c.l.b16 %v7607
      %v7861 = vunpack.c.l.b16 %v7608
      %v7862 = vunpack.c.l.b16 %v7609
      %v7863 = vunpack.c.l.b16 %v7610
      %v7864 = vunpack.c.l.b16 %v7611
      %v7865 = vunpack.c.l.b16 %v7612
      %v7866 = vunpack.c.l.b16 %v7613
      %v7867 = vunpack.c.l.b16 %v7614
      %v7868 = vunpack.c.l.b16 %v7615
      %v7869 = vunpack.c.l.b16 %v7616
      %v7870 = vunpack.c.l.b16 %v7617
      %v7871 = vunpack.c.l.b16 %v7618
      %v7872 = vunpack.c.l.b16 %v7619
      %v7873 = vunpack.c.l.b16 %v7620
      %v7874 = vunpack.c.l.b16 %v7621
      %v7875 = vpack.c.b16 %v7860, %v7859
      %v7876 = vpack.c.b16 %v7862, %v7861
      %v7877 = vpack.c.b16 %v7864, %v7863
      %v7878 = vpack.c.b16 %v7866, %v7865
      %v7879 = vpack.c.b16 %v7868, %v7867
      %v7880 = vpack.c.b16 %v7870, %v7869
      %v7881 = vpack.c.b16 %v7872, %v7871
      %v7882 = vpack.c.b16 %v7874, %v7873
      %7891 = vmatprep.subr.bf16.mxu0 0
      %7892 = vmatpush1.bf16.msra.mxu0 %v7875
      %7893 = vmatprep.subr.bf16.mxu0 0
      %7894 = vmatpush1.bf16.msra.mxu0 %v7876
      %7895 = vmatprep.subr.bf16.mxu0 0
      %7896 = vmatpush1.bf16.msra.mxu0 %v7877
      %7897 = vmatprep.subr.bf16.mxu0 0
      %7898 = vmatpush1.bf16.msra.mxu0 %v7878
      %7899 = vmatprep.subr.bf16.mxu0 0
      %7900 = vmatpush1.bf16.msra.mxu0 %v7879
      %7901 = vmatprep.subr.bf16.mxu0 0
      %7902 = vmatpush1.bf16.msra.mxu0 %v7880
      %7903 = vmatprep.subr.bf16.mxu0 0
      %7904 = vmatpush1.bf16.msra.mxu0 %v7881
      %7905 = vmatprep.subr.bf16.mxu0 0
      %7906 = vmatpush1.bf16.msra.mxu0 %v7882
      %7907 = vmatprep.subr.bf16.mxu0 0
      %7908 = vmatpush1.bf16.msra.mxu0 0
      %7909 = vmatprep.subr.bf16.mxu0 0
      %7910 = vmatpush1.bf16.msra.mxu0 0
      %7911 = vmatprep.subr.bf16.mxu0 0
      %7912 = vmatpush1.bf16.msra.mxu0 0
      %7913 = vmatprep.subr.bf16.mxu0 0
      %7914 = vmatpush1.bf16.msra.mxu0 0
      %7915 = vmatprep.subr.bf16.mxu0 0
      %7916 = vmatpush1.bf16.msra.mxu0 0
      %7917 = vmatprep.subr.bf16.mxu0 0
      %7918 = vmatpush1.bf16.msra.mxu0 0
      %7919 = vmatprep.subr.bf16.mxu0 0
      %7920 = vmatpush1.bf16.msra.mxu0 0
      %7921 = vmatprep.subr.bf16.mxu0 0
      %7922 = vmatpush1.bf16.msra.mxu0 0
      %7923 = vmatprep.mubr.bf16.mxu0 0
      %7924 = vmatmul.mubr.bf16.gmra.mrb[0].mxu0 %v7634
      %v7925 = vpop.f32.mrb[0].mxu0
      %v7926 = vadd.f32 0.0, %v7925
      %v7927 = vpop.f32.mrb[0].mxu0
      %v7928 = vpop.f32.mrb[0].mxu0
      %v7929 = vadd.f32 0.0, %v7928
      %v7930 = vpop.f32.mrb[0].mxu0
      %7931 = vmatprep.mubr.bf16.mxu0 0
      %7932 = vmatmul.mubr.bf16.gmra.mrb[0].mxu0 %v7642
      %v7933 = vpop.f32.mrb[0].mxu0
      %v7934 = vadd.f32 0.0, %v7933
      %v7935 = vpop.f32.mrb[0].mxu0
      %v7936 = vpop.f32.mrb[0].mxu0
      %v7937 = vadd.f32 0.0, %v7936
      %v7938 = vpop.f32.mrb[0].mxu0
      %7939 = vmatprep.mubr.bf16.mxu0 0
      %7940 = vmatmul.mubr.bf16.gmra.mrb[0].mxu0 %v7650
      %v7941 = vpop.f32.mrb[0].mxu0
      %v7942 = vadd.f32 0.0, %v7941
      %v7943 = vpop.f32.mrb[0].mxu0
      %v7944 = vpop.f32.mrb[0].mxu0
      %v7945 = vadd.f32 0.0, %v7944
      %v7946 = vpop.f32.mrb[0].mxu0
      %7947 = vmatprep.mubr.bf16.mxu0 0
      %7948 = vmatmul.mubr.bf16.gmra.mrb[0].mxu0 %v7658
      %v7949 = vpop.f32.mrb[0].mxu0
      %v7950 = vadd.f32 0.0, %v7949
      %v7951 = vpop.f32.mrb[0].mxu0
      %v7952 = vpop.f32.mrb[0].mxu0
      %v7953 = vadd.f32 0.0, %v7952
      %v7954 = vpop.f32.mrb[0].mxu0
      %7955 = vmatprep.mubr.bf16.mxu0 0
      %7956 = vmatmul.mubr.bf16.gmra.mrb[0].mxu0 %v7666
      %v7957 = vpop.f32.mrb[0].mxu0
      %v7958 = vadd.f32 0.0, %v7957
      %v7959 = vpop.f32.mrb[0].mxu0
      %v7960 = vpop.f32.mrb[0].mxu0
      %v7961 = vadd.f32 0.0, %v7960
      %v7962 = vpop.f32.mrb[0].mxu0
      %7963 = vmatprep.mubr.bf16.mxu0 0
      %7964 = vmatmul.mubr.bf16.gmra.mrb[0].mxu0 %v7674
      %v7965 = vpop.f32.mrb[0].mxu0
      %v7966 = vadd.f32 0.0, %v7965
      %v7967 = vpop.f32.mrb[0].mxu0
      %v7968 = vpop.f32.mrb[0].mxu0
      %v7969 = vadd.f32 0.0, %v7968
      %v7970 = vpop.f32.mrb[0].mxu0
      %7971 = vmatprep.mubr.bf16.mxu0 0
      %7972 = vmatmul.mubr.bf16.gmra.mrb[0].mxu0 %v7682
      %v7973 = vpop.f32.mrb[0].mxu0
      %v7974 = vadd.f32 0.0, %v7973
      %v7975 = vpop.f32.mrb[0].mxu0
      %v7976 = vpop.f32.mrb[0].mxu0
      %v7977 = vadd.f32 0.0, %v7976
      %v7978 = vpop.f32.mrb[0].mxu0
      %7979 = vmatprep.mubr.bf16.mxu0 0
      %7980 = vmatmul.mubr.bf16.gmra.mrb[0].mxu0 %v7690
      %v7981 = vpop.f32.mrb[0].mxu0
      %v7982 = vadd.f32 0.0, %v7981
      %v7983 = vpop.f32.mrb[0].mxu0
      %v7984 = vpop.f32.mrb[0].mxu0
      %v7985 = vadd.f32 0.0, %v7984
      %v7986 = vpop.f32.mrb[0].mxu0
      %7987 = vmatprep.mubr.bf16.mxu0 0
      %7988 = vmatmul.mubr.bf16.gmra.mrb[0].mxu0 %v7698
      %v7989 = vpop.f32.mrb[0].mxu0
      %v7990 = vadd.f32 0.0, %v7989
      %v7991 = vpop.f32.mrb[0].mxu0
      %v7992 = vpop.f32.mrb[0].mxu0
      %v7993 = vadd.f32 0.0, %v7992
      %v7994 = vpop.f32.mrb[0].mxu0
      %7995 = vmatprep.mubr.bf16.mxu0 0
      %7996 = vmatmul.mubr.bf16.gmra.mrb[0].mxu0 %v7706
      %v7997 = vpop.f32.mrb[0].mxu0
      %v7998 = vadd.f32 0.0, %v7997
      %v7999 = vpop.f32.mrb[0].mxu0
      %v8000 = vpop.f32.mrb[0].mxu0
      %v8001 = vadd.f32 0.0, %v8000
      %v8002 = vpop.f32.mrb[0].mxu0
      %8003 = vmatprep.mubr.bf16.mxu0 0
      %8004 = vmatmul.mubr.bf16.gmra.mrb[0].mxu0 %v7714
      %v8005 = vpop.f32.mrb[0].mxu0
      %v8006 = vadd.f32 0.0, %v8005
      %v8007 = vpop.f32.mrb[0].mxu0
      %v8008 = vpop.f32.mrb[0].mxu0
      %v8009 = vadd.f32 0.0, %v8008
      %v8010 = vpop.f32.mrb[0].mxu0
      %8011 = vmatprep.mubr.bf16.mxu0 0
      %8012 = vmatmul.mubr.bf16.gmra.mrb[0].mxu0 %v7722
      %v8013 = vpop.f32.mrb[0].mxu0
      %v8014 = vadd.f32 0.0, %v8013
      %v8015 = vpop.f32.mrb[0].mxu0
      %v8016 = vpop.f32.mrb[0].mxu0
      %v8017 = vadd.f32 0.0, %v8016
      %v8018 = vpop.f32.mrb[0].mxu0
      %8019 = vmatprep.mubr.bf16.mxu0 0
      %8020 = vmatmul.mubr.bf16.gmra.mrb[0].mxu0 %v7730
      %v8021 = vpop.f32.mrb[0].mxu0
      %v8022 = vadd.f32 0.0, %v8021
      %v8023 = vpop.f32.mrb[0].mxu0
      %v8024 = vpop.f32.mrb[0].mxu0
      %v8025 = vadd.f32 0.0, %v8024
      %v8026 = vpop.f32.mrb[0].mxu0
      %8027 = vmatprep.mubr.bf16.mxu0 0
      %8028 = vmatmul.mubr.bf16.gmra.mrb[0].mxu0 %v7738
      %v8029 = vpop.f32.mrb[0].mxu0
      %v8030 = vadd.f32 0.0, %v8029
      %v8031 = vpop.f32.mrb[0].mxu0
      %v8032 = vpop.f32.mrb[0].mxu0
      %v8033 = vadd.f32 0.0, %v8032
      %v8034 = vpop.f32.mrb[0].mxu0
      %8035 = vmatprep.mubr.bf16.mxu0 0
      %8036 = vmatmul.mubr.bf16.gmra.mrb[0].mxu0 %v7746
      %v8037 = vpop.f32.mrb[0].mxu0
      %v8038 = vadd.f32 0.0, %v8037
      %v8039 = vpop.f32.mrb[0].mxu0
      %v8040 = vpop.f32.mrb[0].mxu0
      %v8041 = vadd.f32 0.0, %v8040
      %v8042 = vpop.f32.mrb[0].mxu0
      %8043 = vmatprep.mubr.bf16.mxu0 0
      %8044 = vmatmul.mubr.bf16.gmra.mrb[0].mxu0 %v7754
      %v8045 = vpop.f32.mrb[0].mxu0
      %v8046 = vadd.f32 0.0, %v8045
      %v8047 = vpop.f32.mrb[0].mxu0
      %v8048 = vpop.f32.mrb[0].mxu0
      %v8049 = vadd.f32 0.0, %v8048
      %v8050 = vpop.f32.mrb[0].mxu0
      %8051 = vmatprep.mubr.bf16.mxu0 0
      %8052 = vmatmul.mubr.bf16.gmra.mrb[0].mxu0 %v7762
      %v8053 = vpop.f32.mrb[0].mxu0
      %v8054 = vadd.f32 0.0, %v8053
      %v8055 = vpop.f32.mrb[0].mxu0
      %v8056 = vpop.f32.mrb[0].mxu0
      %v8057 = vadd.f32 0.0, %v8056
      %v8058 = vpop.f32.mrb[0].mxu0
      %8059 = vmatprep.mubr.bf16.mxu0 0
      %8060 = vmatmul.mubr.bf16.gmra.mrb[0].mxu0 %v7770
      %v8061 = vpop.f32.mrb[0].mxu0
      %v8062 = vadd.f32 0.0, %v8061
      %v8063 = vpop.f32.mrb[0].mxu0
      %v8064 = vpop.f32.mrb[0].mxu0
      %v8065 = vadd.f32 0.0, %v8064
      %v8066 = vpop.f32.mrb[0].mxu0
      %8067 = vmatprep.mubr.bf16.mxu0 0
      %8068 = vmatmul.mubr.bf16.gmra.mrb[0].mxu0 %v7778
      %v8069 = vpop.f32.mrb[0].mxu0
      %v8070 = vadd.f32 0.0, %v8069
      %v8071 = vpop.f32.mrb[0].mxu0
      %v8072 = vpop.f32.mrb[0].mxu0
      %v8073 = vadd.f32 0.0, %v8072
      %v8074 = vpop.f32.mrb[0].mxu0
      %8075 = vmatprep.mubr.bf16.mxu0 0
      %8076 = vmatmul.mubr.bf16.gmra.mrb[0].mxu0 %v7786
      %v8077 = vpop.f32.mrb[0].mxu0
      %v8078 = vadd.f32 0.0, %v8077
      %v8079 = vpop.f32.mrb[0].mxu0
      %v8080 = vpop.f32.mrb[0].mxu0
      %v8081 = vadd.f32 0.0, %v8080
      %v8082 = vpop.f32.mrb[0].mxu0
      %8083 = vmatprep.mubr.bf16.mxu0 0
      %8084 = vmatmul.mubr.bf16.gmra.mrb[0].mxu0 %v7794
      %v8085 = vpop.f32.mrb[0].mxu0
      %v8086 = vadd.f32 0.0, %v8085
      %v8087 = vpop.f32.mrb[0].mxu0
      %v8088 = vpop.f32.mrb[0].mxu0
      %v8089 = vadd.f32 0.0, %v8088
      %v8090 = vpop.f32.mrb[0].mxu0
      %8091 = vmatprep.mubr.bf16.mxu0 0
      %8092 = vmatmul.mubr.bf16.gmra.mrb[0].mxu0 %v7802
      %v8093 = vpop.f32.mrb[0].mxu0
      %v8094 = vadd.f32 0.0, %v8093
      %v8095 = vpop.f32.mrb[0].mxu0
      %v8096 = vpop.f32.mrb[0].mxu0
      %v8097 = vadd.f32 0.0, %v8096
      %v8098 = vpop.f32.mrb[0].mxu0
      %8099 = vmatprep.mubr.bf16.mxu0 0
      %8100 = vmatmul.mubr.bf16.gmra.mrb[0].mxu0 %v7810
      %v8101 = vpop.f32.mrb[0].mxu0
      %v8102 = vadd.f32 0.0, %v8101
      %v8103 = vpop.f32.mrb[0].mxu0
      %v8104 = vpop.f32.mrb[0].mxu0
      %v8105 = vadd.f32 0.0, %v8104
      %v8106 = vpop.f32.mrb[0].mxu0
      %8107 = vmatprep.mubr.bf16.mxu0 0
      %8108 = vmatmul.mubr.bf16.gmra.mrb[0].mxu0 %v7818
      %v8109 = vpop.f32.mrb[0].mxu0
      %v8110 = vadd.f32 0.0, %v8109
      %v8111 = vpop.f32.mrb[0].mxu0
      %v8112 = vpop.f32.mrb[0].mxu0
      %v8113 = vadd.f32 0.0, %v8112
      %v8114 = vpop.f32.mrb[0].mxu0
      %8115 = vdwg.mxu0
      %v8116 = vadd.f32 %v7532, %v7926
      %v8117 = vadd.f32 %v7533, %v7929
      %v8118 = vadd.f32 %v7534, %v7934
      %v8119 = vadd.f32 %v7535, %v7937
      %v8120 = vadd.f32 %v7536, %v7942
      %v8121 = vadd.f32 %v7537, %v7945
      %v8122 = vadd.f32 %v7538, %v7950
      %v8123 = vadd.f32 %v7539, %v7953
      %v8124 = vadd.f32 %v7540, %v7958
      %v8125 = vadd.f32 %v7541, %v7961
      %v8126 = vadd.f32 %v7542, %v7966
      %v8127 = vadd.f32 %v7543, %v7969
      %v8128 = vadd.f32 %v7544, %v7974
      %v8129 = vadd.f32 %v7545, %v7977
      %v8130 = vadd.f32 %v7546, %v7982
      %v8131 = vadd.f32 %v7547, %v7985
      %v8132 = vadd.f32 %v7548, %v7990
      %v8133 = vadd.f32 %v7549, %v7993
      %v8134 = vadd.f32 %v7550, %v7998
      %v8135 = vadd.f32 %v7551, %v8001
      %v8136 = vadd.f32 %v7552, %v8006
      %v8137 = vadd.f32 %v7553, %v8009
      %v8138 = vadd.f32 %v7554, %v8014
      %v8139 = vadd.f32 %v7555, %v8017
      %v8140 = vadd.f32 %v7556, %v8022
      %v8141 = vadd.f32 %v7557, %v8025
      %v8142 = vadd.f32 %v7558, %v8030
      %v8143 = vadd.f32 %v7559, %v8033
      %v8144 = vadd.f32 %v7560, %v8038
      %v8145 = vadd.f32 %v7561, %v8041
      %v8146 = vadd.f32 %v7562, %v8046
      %v8147 = vadd.f32 %v7563, %v8049
      %v8148 = vadd.f32 %v7564, %v8054
      %v8149 = vadd.f32 %v7565, %v8057
      %v8150 = vadd.f32 %v7566, %v8062
      %v8151 = vadd.f32 %v7567, %v8065
      %v8152 = vadd.f32 %v7568, %v8070
      %v8153 = vadd.f32 %v7569, %v8073
      %v8154 = vadd.f32 %v7570, %v8078
      %v8155 = vadd.f32 %v7571, %v8081
      %v8156 = vadd.f32 %v7572, %v8086
      %v8157 = vadd.f32 %v7573, %v8089
      %v8158 = vadd.f32 %v7574, %v8094
      %v8159 = vadd.f32 %v7575, %v8097
      %v8160 = vadd.f32 %v7576, %v8102
      %v8161 = vadd.f32 %v7577, %v8105
      %v8162 = vadd.f32 %v7578, %v8110
      %v8163 = vadd.f32 %v7579, %v8113
      %s8164 = scalar_lea.vmem %s3, 256
      %v8165 = vld [vmem:[%s8164] sm:$0xf]
      %v8166 = vld [vmem:[%s8164 + $0x4] sm:$0xf]
      %v8167 = vld [vmem:[%s8164 + $0x8] sm:$0xf]
      %v8168 = vld [vmem:[%s8164 + $0xc] sm:$0xf]
      %v8169 = vld [vmem:[%s8164 + $0x10] sm:$0xf]
      %v8170 = vld [vmem:[%s8164 + $0x14] sm:$0xf]
      %v8171 = vld [vmem:[%s8164 + $0x18] sm:$0xf]
      %v8172 = vld [vmem:[%s8164 + $0x1c] sm:$0xf]
      %v8173 = vld [vmem:[%s8164 + $0x20] sm:$0xf]
      %v8174 = vld [vmem:[%s8164 + $0x24] sm:$0xf]
      %v8175 = vld [vmem:[%s8164 + $0x28] sm:$0xf]
      %v8176 = vld [vmem:[%s8164 + $0x2c] sm:$0xf]
      %v8177 = vld [vmem:[%s8164 + $0x30] sm:$0xf]
      %v8178 = vld [vmem:[%s8164 + $0x34] sm:$0xf]
      %v8179 = vld [vmem:[%s8164 + $0x38] sm:$0xf]
      %v8180 = vld [vmem:[%s8164 + $0x3c] sm:$0xf]
      %v8197 = vunpack.c.l.b16 %v8165
      %v8198 = vunpack.c.l.b16 %v8166
      %v8199 = vunpack.c.l.b16 %v8167
      %v8200 = vunpack.c.l.b16 %v8168
      %v8201 = vunpack.c.l.b16 %v8169
      %v8202 = vunpack.c.l.b16 %v8170
      %v8203 = vunpack.c.l.b16 %v8171
      %v8204 = vunpack.c.l.b16 %v8172
      %v8205 = vunpack.c.l.b16 %v8173
      %v8206 = vunpack.c.l.b16 %v8174
      %v8207 = vunpack.c.l.b16 %v8175
      %v8208 = vunpack.c.l.b16 %v8176
      %v8209 = vunpack.c.l.b16 %v8177
      %v8210 = vunpack.c.l.b16 %v8178
      %v8211 = vunpack.c.l.b16 %v8179
      %v8212 = vunpack.c.l.b16 %v8180
      %v8213 = vpack.c.b16 %v8198, %v8197
      %v8214 = vpack.c.b16 %v8200, %v8199
      %v8215 = vpack.c.b16 %v8202, %v8201
      %v8216 = vpack.c.b16 %v8204, %v8203
      %v8217 = vpack.c.b16 %v8206, %v8205
      %v8218 = vpack.c.b16 %v8208, %v8207
      %v8219 = vpack.c.b16 %v8210, %v8209
      %v8220 = vpack.c.b16 %v8212, %v8211
      %8229 = vmatprep.subr.bf16.mxu0 0
      %8230 = vmatpush1.bf16.msra.mxu0 %v8213
      %8231 = vmatprep.subr.bf16.mxu0 0
      %8232 = vmatpush1.bf16.msra.mxu0 %v8214
      %8233 = vmatprep.subr.bf16.mxu0 0
      %8234 = vmatpush1.bf16.msra.mxu0 %v8215
      %8235 = vmatprep.subr.bf16.mxu0 0
      %8236 = vmatpush1.bf16.msra.mxu0 %v8216
      %8237 = vmatprep.subr.bf16.mxu0 0
      %8238 = vmatpush1.bf16.msra.mxu0 %v8217
      %8239 = vmatprep.subr.bf16.mxu0 0
      %8240 = vmatpush1.bf16.msra.mxu0 %v8218
      %8241 = vmatprep.subr.bf16.mxu0 0
      %8242 = vmatpush1.bf16.msra.mxu0 %v8219
      %8243 = vmatprep.subr.bf16.mxu0 0
      %8244 = vmatpush1.bf16.msra.mxu0 %v8220
      %8245 = vmatprep.subr.bf16.mxu0 0
      %8246 = vmatpush1.bf16.msra.mxu0 0
      %8247 = vmatprep.subr.bf16.mxu0 0
      %8248 = vmatpush1.bf16.msra.mxu0 0
      %8249 = vmatprep.subr.bf16.mxu0 0
      %8250 = vmatpush1.bf16.msra.mxu0 0
      %8251 = vmatprep.subr.bf16.mxu0 0
      %8252 = vmatpush1.bf16.msra.mxu0 0
      %8253 = vmatprep.subr.bf16.mxu0 0
      %8254 = vmatpush1.bf16.msra.mxu0 0
      %8255 = vmatprep.subr.bf16.mxu0 0
      %8256 = vmatpush1.bf16.msra.mxu0 0
      %8257 = vmatprep.subr.bf16.mxu0 0
      %8258 = vmatpush1.bf16.msra.mxu0 0
      %8259 = vmatprep.subr.bf16.mxu0 0
      %8260 = vmatpush1.bf16.msra.mxu0 0
      %8261 = vmatprep.mubr.bf16.mxu0 0
      %8262 = vmatmul.mubr.bf16.gmra.mrb[0].mxu0 %v7581
      %v8263 = vpop.f32.mrb[0].mxu0
      %v8264 = vadd.f32 0.0, %v8263
      %v8265 = vpop.f32.mrb[0].mxu0
      %v8266 = vpop.f32.mrb[0].mxu0
      %v8267 = vadd.f32 0.0, %v8266
      %v8268 = vpop.f32.mrb[0].mxu0
      %8269 = vmatprep.mubr.bf16.mxu0 0
      %8270 = vmatmul.mubr.bf16.gmra.mrb[0].mxu0 %v7582
      %v8271 = vpop.f32.mrb[0].mxu0
      %v8272 = vadd.f32 0.0, %v8271
      %v8273 = vpop.f32.mrb[0].mxu0
      %v8274 = vpop.f32.mrb[0].mxu0
      %v8275 = vadd.f32 0.0, %v8274
      %v8276 = vpop.f32.mrb[0].mxu0
      %8277 = vmatprep.mubr.bf16.mxu0 0
      %8278 = vmatmul.mubr.bf16.gmra.mrb[0].mxu0 %v7583
      %v8279 = vpop.f32.mrb[0].mxu0
      %v8280 = vadd.f32 0.0, %v8279
      %v8281 = vpop.f32.mrb[0].mxu0
      %v8282 = vpop.f32.mrb[0].mxu0
      %v8283 = vadd.f32 0.0, %v8282
      %v8284 = vpop.f32.mrb[0].mxu0
      %8285 = vmatprep.mubr.bf16.mxu0 0
      %8286 = vmatmul.mubr.bf16.gmra.mrb[0].mxu0 %v7584
      %v8287 = vpop.f32.mrb[0].mxu0
      %v8288 = vadd.f32 0.0, %v8287
      %v8289 = vpop.f32.mrb[0].mxu0
      %v8290 = vpop.f32.mrb[0].mxu0
      %v8291 = vadd.f32 0.0, %v8290
      %v8292 = vpop.f32.mrb[0].mxu0
      %8293 = vmatprep.mubr.bf16.mxu0 0
      %8294 = vmatmul.mubr.bf16.gmra.mrb[0].mxu0 %v7585
      %v8295 = vpop.f32.mrb[0].mxu0
      %v8296 = vadd.f32 0.0, %v8295
      %v8297 = vpop.f32.mrb[0].mxu0
      %v8298 = vpop.f32.mrb[0].mxu0
      %v8299 = vadd.f32 0.0, %v8298
      %v8300 = vpop.f32.mrb[0].mxu0
      %8301 = vmatprep.mubr.bf16.mxu0 0
      %8302 = vmatmul.mubr.bf16.gmra.mrb[0].mxu0 %v7586
      %v8303 = vpop.f32.mrb[0].mxu0
      %v8304 = vadd.f32 0.0, %v8303
      %v8305 = vpop.f32.mrb[0].mxu0
      %v8306 = vpop.f32.mrb[0].mxu0
      %v8307 = vadd.f32 0.0, %v8306
      %v8308 = vpop.f32.mrb[0].mxu0
      %8309 = vmatprep.mubr.bf16.mxu0 0
      %8310 = vmatmul.mubr.bf16.gmra.mrb[0].mxu0 %v7587
      %v8311 = vpop.f32.mrb[0].mxu0
      %v8312 = vadd.f32 0.0, %v8311
      %v8313 = vpop.f32.mrb[0].mxu0
      %v8314 = vpop.f32.mrb[0].mxu0
      %v8315 = vadd.f32 0.0, %v8314
      %v8316 = vpop.f32.mrb[0].mxu0
      %8317 = vmatprep.mubr.bf16.mxu0 0
      %8318 = vmatmul.mubr.bf16.gmra.mrb[0].mxu0 %v7588
      %v8319 = vpop.f32.mrb[0].mxu0
      %v8320 = vadd.f32 0.0, %v8319
      %v8321 = vpop.f32.mrb[0].mxu0
      %v8322 = vpop.f32.mrb[0].mxu0
      %v8323 = vadd.f32 0.0, %v8322
      %v8324 = vpop.f32.mrb[0].mxu0
      %8325 = vmatprep.mubr.bf16.mxu0 0
      %8326 = vmatmul.mubr.bf16.gmra.mrb[0].mxu0 %v7589
      %v8327 = vpop.f32.mrb[0].mxu0
      %v8328 = vadd.f32 0.0, %v8327
      %v8329 = vpop.f32.mrb[0].mxu0
      %v8330 = vpop.f32.mrb[0].mxu0
      %v8331 = vadd.f32 0.0, %v8330
      %v8332 = vpop.f32.mrb[0].mxu0
      %8333 = vmatprep.mubr.bf16.mxu0 0
      %8334 = vmatmul.mubr.bf16.gmra.mrb[0].mxu0 %v7590
      %v8335 = vpop.f32.mrb[0].mxu0
      %v8336 = vadd.f32 0.0, %v8335
      %v8337 = vpop.f32.mrb[0].mxu0
      %v8338 = vpop.f32.mrb[0].mxu0
      %v8339 = vadd.f32 0.0, %v8338
      %v8340 = vpop.f32.mrb[0].mxu0
      %8341 = vmatprep.mubr.bf16.mxu0 0
      %8342 = vmatmul.mubr.bf16.gmra.mrb[0].mxu0 %v7591
      %v8343 = vpop.f32.mrb[0].mxu0
      %v8344 = vadd.f32 0.0, %v8343
      %v8345 = vpop.f32.mrb[0].mxu0
      %v8346 = vpop.f32.mrb[0].mxu0
      %v8347 = vadd.f32 0.0, %v8346
      %v8348 = vpop.f32.mrb[0].mxu0
      %8349 = vmatprep.mubr.bf16.mxu0 0
      %8350 = vmatmul.mubr.bf16.gmra.mrb[0].mxu0 %v7592
      %v8351 = vpop.f32.mrb[0].mxu0
      %v8352 = vadd.f32 0.0, %v8351
      %v8353 = vpop.f32.mrb[0].mxu0
      %v8354 = vpop.f32.mrb[0].mxu0
      %v8355 = vadd.f32 0.0, %v8354
      %v8356 = vpop.f32.mrb[0].mxu0
      %8357 = vmatprep.mubr.bf16.mxu0 0
      %8358 = vmatmul.mubr.bf16.gmra.mrb[0].mxu0 %v7593
      %v8359 = vpop.f32.mrb[0].mxu0
      %v8360 = vadd.f32 0.0, %v8359
      %v8361 = vpop.f32.mrb[0].mxu0
      %v8362 = vpop.f32.mrb[0].mxu0
      %v8363 = vadd.f32 0.0, %v8362
      %v8364 = vpop.f32.mrb[0].mxu0
      %8365 = vmatprep.mubr.bf16.mxu0 0
      %8366 = vmatmul.mubr.bf16.gmra.mrb[0].mxu0 %v7594
      %v8367 = vpop.f32.mrb[0].mxu0
      %v8368 = vadd.f32 0.0, %v8367
      %v8369 = vpop.f32.mrb[0].mxu0
      %v8370 = vpop.f32.mrb[0].mxu0
      %v8371 = vadd.f32 0.0, %v8370
      %v8372 = vpop.f32.mrb[0].mxu0
      %8373 = vmatprep.mubr.bf16.mxu0 0
      %8374 = vmatmul.mubr.bf16.gmra.mrb[0].mxu0 %v7595
      %v8375 = vpop.f32.mrb[0].mxu0
      %v8376 = vadd.f32 0.0, %v8375
      %v8377 = vpop.f32.mrb[0].mxu0
      %v8378 = vpop.f32.mrb[0].mxu0
      %v8379 = vadd.f32 0.0, %v8378
      %v8380 = vpop.f32.mrb[0].mxu0
      %8381 = vmatprep.mubr.bf16.mxu0 0
      %8382 = vmatmul.mubr.bf16.gmra.mrb[0].mxu0 %v7596
      %v8383 = vpop.f32.mrb[0].mxu0
      %v8384 = vadd.f32 0.0, %v8383
      %v8385 = vpop.f32.mrb[0].mxu0
      %v8386 = vpop.f32.mrb[0].mxu0
      %v8387 = vadd.f32 0.0, %v8386
      %v8388 = vpop.f32.mrb[0].mxu0
      %8389 = vmatprep.mubr.bf16.mxu0 0
      %8390 = vmatmul.mubr.bf16.gmra.mrb[0].mxu0 %v7597
      %v8391 = vpop.f32.mrb[0].mxu0
      %v8392 = vadd.f32 0.0, %v8391
      %v8393 = vpop.f32.mrb[0].mxu0
      %v8394 = vpop.f32.mrb[0].mxu0
      %v8395 = vadd.f32 0.0, %v8394
      %v8396 = vpop.f32.mrb[0].mxu0
      %8397 = vmatprep.mubr.bf16.mxu0 0
      %8398 = vmatmul.mubr.bf16.gmra.mrb[0].mxu0 %v7598
      %v8399 = vpop.f32.mrb[0].mxu0
      %v8400 = vadd.f32 0.0, %v8399
      %v8401 = vpop.f32.mrb[0].mxu0
      %v8402 = vpop.f32.mrb[0].mxu0
      %v8403 = vadd.f32 0.0, %v8402
      %v8404 = vpop.f32.mrb[0].mxu0
      %8405 = vmatprep.mubr.bf16.mxu0 0
      %8406 = vmatmul.mubr.bf16.gmra.mrb[0].mxu0 %v7599
      %v8407 = vpop.f32.mrb[0].mxu0
      %v8408 = vadd.f32 0.0, %v8407
      %v8409 = vpop.f32.mrb[0].mxu0
      %v8410 = vpop.f32.mrb[0].mxu0
      %v8411 = vadd.f32 0.0, %v8410
      %v8412 = vpop.f32.mrb[0].mxu0
      %8413 = vmatprep.mubr.bf16.mxu0 0
      %8414 = vmatmul.mubr.bf16.gmra.mrb[0].mxu0 %v7600
      %v8415 = vpop.f32.mrb[0].mxu0
      %v8416 = vadd.f32 0.0, %v8415
      %v8417 = vpop.f32.mrb[0].mxu0
      %v8418 = vpop.f32.mrb[0].mxu0
      %v8419 = vadd.f32 0.0, %v8418
      %v8420 = vpop.f32.mrb[0].mxu0
      %8421 = vmatprep.mubr.bf16.mxu0 0
      %8422 = vmatmul.mubr.bf16.gmra.mrb[0].mxu0 %v7601
      %v8423 = vpop.f32.mrb[0].mxu0
      %v8424 = vadd.f32 0.0, %v8423
      %v8425 = vpop.f32.mrb[0].mxu0
      %v8426 = vpop.f32.mrb[0].mxu0
      %v8427 = vadd.f32 0.0, %v8426
      %v8428 = vpop.f32.mrb[0].mxu0
      %8429 = vmatprep.mubr.bf16.mxu0 0
      %8430 = vmatmul.mubr.bf16.gmra.mrb[0].mxu0 %v7602
      %v8431 = vpop.f32.mrb[0].mxu0
      %v8432 = vadd.f32 0.0, %v8431
      %v8433 = vpop.f32.mrb[0].mxu0
      %v8434 = vpop.f32.mrb[0].mxu0
      %v8435 = vadd.f32 0.0, %v8434
      %v8436 = vpop.f32.mrb[0].mxu0
      %8437 = vmatprep.mubr.bf16.mxu0 0
      %8438 = vmatmul.mubr.bf16.gmra.mrb[0].mxu0 %v7603
      %v8439 = vpop.f32.mrb[0].mxu0
      %v8440 = vadd.f32 0.0, %v8439
      %v8441 = vpop.f32.mrb[0].mxu0
      %v8442 = vpop.f32.mrb[0].mxu0
      %v8443 = vadd.f32 0.0, %v8442
      %v8444 = vpop.f32.mrb[0].mxu0
      %8445 = vmatprep.mubr.bf16.mxu0 0
      %8446 = vmatmul.mubr.bf16.gmra.mrb[0].mxu0 %v7604
      %v8447 = vpop.f32.mrb[0].mxu0
      %v8448 = vadd.f32 0.0, %v8447
      %v8449 = vpop.f32.mrb[0].mxu0
      %v8450 = vpop.f32.mrb[0].mxu0
      %v8451 = vadd.f32 0.0, %v8450
      %v8452 = vpop.f32.mrb[0].mxu0
      %8453 = vdwg.mxu0
      %v8454 = vadd.f32 %v8116, %v8264
      %v8455 = vadd.f32 %v8117, %v8267
      %v8456 = vadd.f32 %v8118, %v8272
      %v8457 = vadd.f32 %v8119, %v8275
      %v8458 = vadd.f32 %v8120, %v8280
      %v8459 = vadd.f32 %v8121, %v8283
      %v8460 = vadd.f32 %v8122, %v8288
      %v8461 = vadd.f32 %v8123, %v8291
      %v8462 = vadd.f32 %v8124, %v8296
      %v8463 = vadd.f32 %v8125, %v8299
      %v8464 = vadd.f32 %v8126, %v8304
      %v8465 = vadd.f32 %v8127, %v8307
      %v8466 = vadd.f32 %v8128, %v8312
      %v8467 = vadd.f32 %v8129, %v8315
      %v8468 = vadd.f32 %v8130, %v8320
      %v8469 = vadd.f32 %v8131, %v8323
      %v8470 = vadd.f32 %v8132, %v8328
      %v8471 = vadd.f32 %v8133, %v8331
      %v8472 = vadd.f32 %v8134, %v8336
      %v8473 = vadd.f32 %v8135, %v8339
      %v8474 = vadd.f32 %v8136, %v8344
      %v8475 = vadd.f32 %v8137, %v8347
      %v8476 = vadd.f32 %v8138, %v8352
      %v8477 = vadd.f32 %v8139, %v8355
      %v8478 = vadd.f32 %v8140, %v8360
      %v8479 = vadd.f32 %v8141, %v8363
      %v8480 = vadd.f32 %v8142, %v8368
      %v8481 = vadd.f32 %v8143, %v8371
      %v8482 = vadd.f32 %v8144, %v8376
      %v8483 = vadd.f32 %v8145, %v8379
      %v8484 = vadd.f32 %v8146, %v8384
      %v8485 = vadd.f32 %v8147, %v8387
      %v8486 = vadd.f32 %v8148, %v8392
      %v8487 = vadd.f32 %v8149, %v8395
      %v8488 = vadd.f32 %v8150, %v8400
      %v8489 = vadd.f32 %v8151, %v8403
      %v8490 = vadd.f32 %v8152, %v8408
      %v8491 = vadd.f32 %v8153, %v8411
      %v8492 = vadd.f32 %v8154, %v8416
      %v8493 = vadd.f32 %v8155, %v8419
      %v8494 = vadd.f32 %v8156, %v8424
      %v8495 = vadd.f32 %v8157, %v8427
      %v8496 = vadd.f32 %v8158, %v8432
      %v8497 = vadd.f32 %v8159, %v8435
      %v8498 = vadd.f32 %v8160, %v8440
      %v8499 = vadd.f32 %v8161, %v8443
      %v8500 = vadd.f32 %v8162, %v8448
      %v8501 = vadd.f32 %v8163, %v8451
      %v8502 = vld [vmem:[#allocation2 + $0x18] sm:$0xff]
      %v8503 = vld [vmem:[#allocation2 + $0x20] sm:$0xff]
      %v8504 = vld [vmem:[#allocation2 + $0x28] sm:$0xff]
      %v8505 = vld [vmem:[#allocation2 + $0x30] sm:$0xff]
      %v8506 = vld [vmem:[#allocation2 + $0x38] sm:$0xff]
      %v8507 = vld [vmem:[#allocation2 + $0x40] sm:$0xff]
      %v8508 = vld [vmem:[#allocation2 + $0x48] sm:$0xff]
      %v8509 = vld [vmem:[#allocation2 + $0x50] sm:$0xff]
      %v8510 = vld [vmem:[#allocation2 + $0x58] sm:$0xff]
      %v8511 = vld [vmem:[#allocation2 + $0x60] sm:$0xff]
      %v8512 = vld [vmem:[#allocation2 + $0x68] sm:$0xff]
      %v8513 = vld [vmem:[#allocation2 + $0x70] sm:$0xff]
      %v8514 = vld [vmem:[#allocation2 + $0x78] sm:$0xff]
      %v8515 = vld [vmem:[#allocation2 + $0x80] sm:$0xff]
      %v8516 = vld [vmem:[#allocation2 + $0x88] sm:$0xff]
      %v8517 = vld [vmem:[#allocation2 + $0x90] sm:$0xff]
      %v8518 = vld [vmem:[#allocation2 + $0x98] sm:$0xff]
      %v8519 = vld [vmem:[#allocation2 + $0xa0] sm:$0xff]
      %v8520 = vld [vmem:[#allocation2 + $0xa8] sm:$0xff]
      %v8521 = vld [vmem:[#allocation2 + $0xb0] sm:$0xff]
      %v8522 = vld [vmem:[#allocation2 + $0xb8] sm:$0xff]
      %v8523 = vld [vmem:[#allocation2 + $0xc0] sm:$0xff]
      %v8524 = vld [vmem:[#allocation2 + $0xc8] sm:$0xff]
      %v8525 = vld [vmem:[#allocation2 + $0xd0] sm:$0xff]
      %v8526 = vld [vmem:[#allocation2 + $0xd8] sm:$0x1]
      %s8527 = scalar_lea.vmem %s3, 320
      %v8528 = vld [vmem:[%s8527] sm:$0xf]
      %v8529 = vld [vmem:[%s8527 + $0x4] sm:$0xf]
      %v8530 = vld [vmem:[%s8527 + $0x8] sm:$0xf]
      %v8531 = vld [vmem:[%s8527 + $0xc] sm:$0xf]
      %v8532 = vld [vmem:[%s8527 + $0x10] sm:$0xf]
      %v8533 = vld [vmem:[%s8527 + $0x14] sm:$0xf]
      %v8534 = vld [vmem:[%s8527 + $0x18] sm:$0xf]
      %v8535 = vld [vmem:[%s8527 + $0x1c] sm:$0xf]
      %v8536 = vld [vmem:[%s8527 + $0x20] sm:$0xf]
      %v8537 = vld [vmem:[%s8527 + $0x24] sm:$0xf]
      %v8538 = vld [vmem:[%s8527 + $0x28] sm:$0xf]
      %v8539 = vld [vmem:[%s8527 + $0x2c] sm:$0xf]
      %v8540 = vld [vmem:[%s8527 + $0x30] sm:$0xf]
      %v8541 = vld [vmem:[%s8527 + $0x34] sm:$0xf]
      %v8542 = vld [vmem:[%s8527 + $0x38] sm:$0xf]
      %v8543 = vld [vmem:[%s8527 + $0x3c] sm:$0xf]
      %v8545 = vshrl.u32 %v8502, 16
      %v8547 = vshll.u32 %v8502, 16
      %v8549 = vrot.slane %v8547, 1
      %v8550 = vor.u32 %v8545, %v8549
      %v8552 = vshll.u32 %v8503, 16
      %v8554 = vrot.slane %v8552, 1
      %v8555 = vsel %vm437, %v8550, %v8554
      %v8556 = vshrl.u32 %v8503, 16
      %v8558 = vor.u32 %v8556, %v8554
      %v8560 = vshll.u32 %v8504, 16
      %v8562 = vrot.slane %v8560, 1
      %v8563 = vsel %vm437, %v8558, %v8562
      %v8564 = vshrl.u32 %v8504, 16
      %v8566 = vor.u32 %v8564, %v8562
      %v8568 = vshll.u32 %v8505, 16
      %v8570 = vrot.slane %v8568, 1
      %v8571 = vsel %vm437, %v8566, %v8570
      %v8572 = vshrl.u32 %v8505, 16
      %v8574 = vor.u32 %v8572, %v8570
      %v8576 = vshll.u32 %v8506, 16
      %v8578 = vrot.slane %v8576, 1
      %v8579 = vsel %vm437, %v8574, %v8578
      %v8580 = vshrl.u32 %v8506, 16
      %v8582 = vor.u32 %v8580, %v8578
      %v8584 = vshll.u32 %v8507, 16
      %v8586 = vrot.slane %v8584, 1
      %v8587 = vsel %vm437, %v8582, %v8586
      %v8588 = vshrl.u32 %v8507, 16
      %v8590 = vor.u32 %v8588, %v8586
      %v8592 = vshll.u32 %v8508, 16
      %v8594 = vrot.slane %v8592, 1
      %v8595 = vsel %vm437, %v8590, %v8594
      %v8596 = vshrl.u32 %v8508, 16
      %v8598 = vor.u32 %v8596, %v8594
      %v8600 = vshll.u32 %v8509, 16
      %v8602 = vrot.slane %v8600, 1
      %v8603 = vsel %vm437, %v8598, %v8602
      %v8604 = vshrl.u32 %v8509, 16
      %v8606 = vor.u32 %v8604, %v8602
      %v8608 = vshll.u32 %v8510, 16
      %v8610 = vrot.slane %v8608, 1
      %v8611 = vsel %vm437, %v8606, %v8610
      %v8612 = vshrl.u32 %v8510, 16
      %v8614 = vor.u32 %v8612, %v8610
      %v8616 = vshll.u32 %v8511, 16
      %v8618 = vrot.slane %v8616, 1
      %v8619 = vsel %vm437, %v8614, %v8618
      %v8620 = vshrl.u32 %v8511, 16
      %v8622 = vor.u32 %v8620, %v8618
      %v8624 = vshll.u32 %v8512, 16
      %v8626 = vrot.slane %v8624, 1
      %v8627 = vsel %vm437, %v8622, %v8626
      %v8628 = vshrl.u32 %v8512, 16
      %v8630 = vor.u32 %v8628, %v8626
      %v8632 = vshll.u32 %v8513, 16
      %v8634 = vrot.slane %v8632, 1
      %v8635 = vsel %vm437, %v8630, %v8634
      %v8636 = vshrl.u32 %v8513, 16
      %v8638 = vor.u32 %v8636, %v8634
      %v8640 = vshll.u32 %v8514, 16
      %v8642 = vrot.slane %v8640, 1
      %v8643 = vsel %vm437, %v8638, %v8642
      %v8644 = vshrl.u32 %v8514, 16
      %v8646 = vor.u32 %v8644, %v8642
      %v8648 = vshll.u32 %v8515, 16
      %v8650 = vrot.slane %v8648, 1
      %v8651 = vsel %vm437, %v8646, %v8650
      %v8652 = vshrl.u32 %v8515, 16
      %v8654 = vor.u32 %v8652, %v8650
      %v8656 = vshll.u32 %v8516, 16
      %v8658 = vrot.slane %v8656, 1
      %v8659 = vsel %vm437, %v8654, %v8658
      %v8660 = vshrl.u32 %v8516, 16
      %v8662 = vor.u32 %v8660, %v8658
      %v8664 = vshll.u32 %v8517, 16
      %v8666 = vrot.slane %v8664, 1
      %v8667 = vsel %vm437, %v8662, %v8666
      %v8668 = vshrl.u32 %v8517, 16
      %v8670 = vor.u32 %v8668, %v8666
      %v8672 = vshll.u32 %v8518, 16
      %v8674 = vrot.slane %v8672, 1
      %v8675 = vsel %vm437, %v8670, %v8674
      %v8676 = vshrl.u32 %v8518, 16
      %v8678 = vor.u32 %v8676, %v8674
      %v8680 = vshll.u32 %v8519, 16
      %v8682 = vrot.slane %v8680, 1
      %v8683 = vsel %vm437, %v8678, %v8682
      %v8684 = vshrl.u32 %v8519, 16
      %v8686 = vor.u32 %v8684, %v8682
      %v8688 = vshll.u32 %v8520, 16
      %v8690 = vrot.slane %v8688, 1
      %v8691 = vsel %vm437, %v8686, %v8690
      %v8692 = vshrl.u32 %v8520, 16
      %v8694 = vor.u32 %v8692, %v8690
      %v8696 = vshll.u32 %v8521, 16
      %v8698 = vrot.slane %v8696, 1
      %v8699 = vsel %vm437, %v8694, %v8698
      %v8700 = vshrl.u32 %v8521, 16
      %v8702 = vor.u32 %v8700, %v8698
      %v8704 = vshll.u32 %v8522, 16
      %v8706 = vrot.slane %v8704, 1
      %v8707 = vsel %vm437, %v8702, %v8706
      %v8708 = vshrl.u32 %v8522, 16
      %v8710 = vor.u32 %v8708, %v8706
      %v8712 = vshll.u32 %v8523, 16
      %v8714 = vrot.slane %v8712, 1
      %v8715 = vsel %vm437, %v8710, %v8714
      %v8716 = vshrl.u32 %v8523, 16
      %v8718 = vor.u32 %v8716, %v8714
      %v8720 = vshll.u32 %v8524, 16
      %v8722 = vrot.slane %v8720, 1
      %v8723 = vsel %vm437, %v8718, %v8722
      %v8724 = vshrl.u32 %v8524, 16
      %v8726 = vor.u32 %v8724, %v8722
      %v8728 = vshll.u32 %v8525, 16
      %v8730 = vrot.slane %v8728, 1
      %v8731 = vsel %vm437, %v8726, %v8730
      %v8732 = vshrl.u32 %v8525, 16
      %v8734 = vor.u32 %v8732, %v8730
      %v8736 = vshll.u32 %v8526, 16
      %v8738 = vrot.slane %v8736, 1
      %v8739 = vsel %vm437, %v8734, %v8738
      %v8780 = vunpack.c.l.b16 %v8528
      %v8781 = vunpack.c.l.b16 %v8529
      %v8782 = vunpack.c.l.b16 %v8530
      %v8783 = vunpack.c.l.b16 %v8531
      %v8784 = vunpack.c.l.b16 %v8532
      %v8785 = vunpack.c.l.b16 %v8533
      %v8786 = vunpack.c.l.b16 %v8534
      %v8787 = vunpack.c.l.b16 %v8535
      %v8788 = vunpack.c.l.b16 %v8536
      %v8789 = vunpack.c.l.b16 %v8537
      %v8790 = vunpack.c.l.b16 %v8538
      %v8791 = vunpack.c.l.b16 %v8539
      %v8792 = vunpack.c.l.b16 %v8540
      %v8793 = vunpack.c.l.b16 %v8541
      %v8794 = vunpack.c.l.b16 %v8542
      %v8795 = vunpack.c.l.b16 %v8543
      %v8796 = vpack.c.b16 %v8781, %v8780
      %v8797 = vpack.c.b16 %v8783, %v8782
      %v8798 = vpack.c.b16 %v8785, %v8784
      %v8799 = vpack.c.b16 %v8787, %v8786
      %v8800 = vpack.c.b16 %v8789, %v8788
      %v8801 = vpack.c.b16 %v8791, %v8790
      %v8802 = vpack.c.b16 %v8793, %v8792
      %v8803 = vpack.c.b16 %v8795, %v8794
      %8812 = vmatprep.subr.bf16.mxu0 0
      %8813 = vmatpush1.bf16.msra.mxu0 %v8796
      %8814 = vmatprep.subr.bf16.mxu0 0
      %8815 = vmatpush1.bf16.msra.mxu0 %v8797
      %8816 = vmatprep.subr.bf16.mxu0 0
      %8817 = vmatpush1.bf16.msra.mxu0 %v8798
      %8818 = vmatprep.subr.bf16.mxu0 0
      %8819 = vmatpush1.bf16.msra.mxu0 %v8799
      %8820 = vmatprep.subr.bf16.mxu0 0
      %8821 = vmatpush1.bf16.msra.mxu0 %v8800
      %8822 = vmatprep.subr.bf16.mxu0 0
      %8823 = vmatpush1.bf16.msra.mxu0 %v8801
      %8824 = vmatprep.subr.bf16.mxu0 0
      %8825 = vmatpush1.bf16.msra.mxu0 %v8802
      %8826 = vmatprep.subr.bf16.mxu0 0
      %8827 = vmatpush1.bf16.msra.mxu0 %v8803
      %8828 = vmatprep.subr.bf16.mxu0 0
      %8829 = vmatpush1.bf16.msra.mxu0 0
      %8830 = vmatprep.subr.bf16.mxu0 0
      %8831 = vmatpush1.bf16.msra.mxu0 0
      %8832 = vmatprep.subr.bf16.mxu0 0
      %8833 = vmatpush1.bf16.msra.mxu0 0
      %8834 = vmatprep.subr.bf16.mxu0 0
      %8835 = vmatpush1.bf16.msra.mxu0 0
      %8836 = vmatprep.subr.bf16.mxu0 0
      %8837 = vmatpush1.bf16.msra.mxu0 0
      %8838 = vmatprep.subr.bf16.mxu0 0
      %8839 = vmatpush1.bf16.msra.mxu0 0
      %8840 = vmatprep.subr.bf16.mxu0 0
      %8841 = vmatpush1.bf16.msra.mxu0 0
      %8842 = vmatprep.subr.bf16.mxu0 0
      %8843 = vmatpush1.bf16.msra.mxu0 0
      %8844 = vmatprep.mubr.bf16.mxu0 0
      %8845 = vmatmul.mubr.bf16.gmra.mrb[0].mxu0 %v8555
      %v8846 = vpop.f32.mrb[0].mxu0
      %v8847 = vadd.f32 0.0, %v8846
      %v8848 = vpop.f32.mrb[0].mxu0
      %v8849 = vpop.f32.mrb[0].mxu0
      %v8850 = vadd.f32 0.0, %v8849
      %v8851 = vpop.f32.mrb[0].mxu0
      %8852 = vmatprep.mubr.bf16.mxu0 0
      %8853 = vmatmul.mubr.bf16.gmra.mrb[0].mxu0 %v8563
      %v8854 = vpop.f32.mrb[0].mxu0
      %v8855 = vadd.f32 0.0, %v8854
      %v8856 = vpop.f32.mrb[0].mxu0
      %v8857 = vpop.f32.mrb[0].mxu0
      %v8858 = vadd.f32 0.0, %v8857
      %v8859 = vpop.f32.mrb[0].mxu0
      %8860 = vmatprep.mubr.bf16.mxu0 0
      %8861 = vmatmul.mubr.bf16.gmra.mrb[0].mxu0 %v8571
      %v8862 = vpop.f32.mrb[0].mxu0
      %v8863 = vadd.f32 0.0, %v8862
      %v8864 = vpop.f32.mrb[0].mxu0
      %v8865 = vpop.f32.mrb[0].mxu0
      %v8866 = vadd.f32 0.0, %v8865
      %v8867 = vpop.f32.mrb[0].mxu0
      %8868 = vmatprep.mubr.bf16.mxu0 0
      %8869 = vmatmul.mubr.bf16.gmra.mrb[0].mxu0 %v8579
      %v8870 = vpop.f32.mrb[0].mxu0
      %v8871 = vadd.f32 0.0, %v8870
      %v8872 = vpop.f32.mrb[0].mxu0
      %v8873 = vpop.f32.mrb[0].mxu0
      %v8874 = vadd.f32 0.0, %v8873
      %v8875 = vpop.f32.mrb[0].mxu0
      %8876 = vmatprep.mubr.bf16.mxu0 0
      %8877 = vmatmul.mubr.bf16.gmra.mrb[0].mxu0 %v8587
      %v8878 = vpop.f32.mrb[0].mxu0
      %v8879 = vadd.f32 0.0, %v8878
      %v8880 = vpop.f32.mrb[0].mxu0
      %v8881 = vpop.f32.mrb[0].mxu0
      %v8882 = vadd.f32 0.0, %v8881
      %v8883 = vpop.f32.mrb[0].mxu0
      %8884 = vmatprep.mubr.bf16.mxu0 0
      %8885 = vmatmul.mubr.bf16.gmra.mrb[0].mxu0 %v8595
      %v8886 = vpop.f32.mrb[0].mxu0
      %v8887 = vadd.f32 0.0, %v8886
      %v8888 = vpop.f32.mrb[0].mxu0
      %v8889 = vpop.f32.mrb[0].mxu0
      %v8890 = vadd.f32 0.0, %v8889
      %v8891 = vpop.f32.mrb[0].mxu0
      %8892 = vmatprep.mubr.bf16.mxu0 0
      %8893 = vmatmul.mubr.bf16.gmra.mrb[0].mxu0 %v8603
      %v8894 = vpop.f32.mrb[0].mxu0
      %v8895 = vadd.f32 0.0, %v8894
      %v8896 = vpop.f32.mrb[0].mxu0
      %v8897 = vpop.f32.mrb[0].mxu0
      %v8898 = vadd.f32 0.0, %v8897
      %v8899 = vpop.f32.mrb[0].mxu0
      %8900 = vmatprep.mubr.bf16.mxu0 0
      %8901 = vmatmul.mubr.bf16.gmra.mrb[0].mxu0 %v8611
      %v8902 = vpop.f32.mrb[0].mxu0
      %v8903 = vadd.f32 0.0, %v8902
      %v8904 = vpop.f32.mrb[0].mxu0
      %v8905 = vpop.f32.mrb[0].mxu0
      %v8906 = vadd.f32 0.0, %v8905
      %v8907 = vpop.f32.mrb[0].mxu0
      %8908 = vmatprep.mubr.bf16.mxu0 0
      %8909 = vmatmul.mubr.bf16.gmra.mrb[0].mxu0 %v8619
      %v8910 = vpop.f32.mrb[0].mxu0
      %v8911 = vadd.f32 0.0, %v8910
      %v8912 = vpop.f32.mrb[0].mxu0
      %v8913 = vpop.f32.mrb[0].mxu0
      %v8914 = vadd.f32 0.0, %v8913
      %v8915 = vpop.f32.mrb[0].mxu0
      %8916 = vmatprep.mubr.bf16.mxu0 0
      %8917 = vmatmul.mubr.bf16.gmra.mrb[0].mxu0 %v8627
      %v8918 = vpop.f32.mrb[0].mxu0
      %v8919 = vadd.f32 0.0, %v8918
      %v8920 = vpop.f32.mrb[0].mxu0
      %v8921 = vpop.f32.mrb[0].mxu0
      %v8922 = vadd.f32 0.0, %v8921
      %v8923 = vpop.f32.mrb[0].mxu0
      %8924 = vmatprep.mubr.bf16.mxu0 0
      %8925 = vmatmul.mubr.bf16.gmra.mrb[0].mxu0 %v8635
      %v8926 = vpop.f32.mrb[0].mxu0
      %v8927 = vadd.f32 0.0, %v8926
      %v8928 = vpop.f32.mrb[0].mxu0
      %v8929 = vpop.f32.mrb[0].mxu0
      %v8930 = vadd.f32 0.0, %v8929
      %v8931 = vpop.f32.mrb[0].mxu0
      %8932 = vmatprep.mubr.bf16.mxu0 0
      %8933 = vmatmul.mubr.bf16.gmra.mrb[0].mxu0 %v8643
      %v8934 = vpop.f32.mrb[0].mxu0
      %v8935 = vadd.f32 0.0, %v8934
      %v8936 = vpop.f32.mrb[0].mxu0
      %v8937 = vpop.f32.mrb[0].mxu0
      %v8938 = vadd.f32 0.0, %v8937
      %v8939 = vpop.f32.mrb[0].mxu0
      %8940 = vmatprep.mubr.bf16.mxu0 0
      %8941 = vmatmul.mubr.bf16.gmra.mrb[0].mxu0 %v8651
      %v8942 = vpop.f32.mrb[0].mxu0
      %v8943 = vadd.f32 0.0, %v8942
      %v8944 = vpop.f32.mrb[0].mxu0
      %v8945 = vpop.f32.mrb[0].mxu0
      %v8946 = vadd.f32 0.0, %v8945
      %v8947 = vpop.f32.mrb[0].mxu0
      %8948 = vmatprep.mubr.bf16.mxu0 0
      %8949 = vmatmul.mubr.bf16.gmra.mrb[0].mxu0 %v8659
      %v8950 = vpop.f32.mrb[0].mxu0
      %v8951 = vadd.f32 0.0, %v8950
      %v8952 = vpop.f32.mrb[0].mxu0
      %v8953 = vpop.f32.mrb[0].mxu0
      %v8954 = vadd.f32 0.0, %v8953
      %v8955 = vpop.f32.mrb[0].mxu0
      %8956 = vmatprep.mubr.bf16.mxu0 0
      %8957 = vmatmul.mubr.bf16.gmra.mrb[0].mxu0 %v8667
      %v8958 = vpop.f32.mrb[0].mxu0
      %v8959 = vadd.f32 0.0, %v8958
      %v8960 = vpop.f32.mrb[0].mxu0
      %v8961 = vpop.f32.mrb[0].mxu0
      %v8962 = vadd.f32 0.0, %v8961
      %v8963 = vpop.f32.mrb[0].mxu0
      %8964 = vmatprep.mubr.bf16.mxu0 0
      %8965 = vmatmul.mubr.bf16.gmra.mrb[0].mxu0 %v8675
      %v8966 = vpop.f32.mrb[0].mxu0
      %v8967 = vadd.f32 0.0, %v8966
      %v8968 = vpop.f32.mrb[0].mxu0
      %v8969 = vpop.f32.mrb[0].mxu0
      %v8970 = vadd.f32 0.0, %v8969
      %v8971 = vpop.f32.mrb[0].mxu0
      %8972 = vmatprep.mubr.bf16.mxu0 0
      %8973 = vmatmul.mubr.bf16.gmra.mrb[0].mxu0 %v8683
      %v8974 = vpop.f32.mrb[0].mxu0
      %v8975 = vadd.f32 0.0, %v8974
      %v8976 = vpop.f32.mrb[0].mxu0
      %v8977 = vpop.f32.mrb[0].mxu0
      %v8978 = vadd.f32 0.0, %v8977
      %v8979 = vpop.f32.mrb[0].mxu0
      %8980 = vmatprep.mubr.bf16.mxu0 0
      %8981 = vmatmul.mubr.bf16.gmra.mrb[0].mxu0 %v8691
      %v8982 = vpop.f32.mrb[0].mxu0
      %v8983 = vadd.f32 0.0, %v8982
      %v8984 = vpop.f32.mrb[0].mxu0
      %v8985 = vpop.f32.mrb[0].mxu0
      %v8986 = vadd.f32 0.0, %v8985
      %v8987 = vpop.f32.mrb[0].mxu0
      %8988 = vmatprep.mubr.bf16.mxu0 0
      %8989 = vmatmul.mubr.bf16.gmra.mrb[0].mxu0 %v8699
      %v8990 = vpop.f32.mrb[0].mxu0
      %v8991 = vadd.f32 0.0, %v8990
      %v8992 = vpop.f32.mrb[0].mxu0
      %v8993 = vpop.f32.mrb[0].mxu0
      %v8994 = vadd.f32 0.0, %v8993
      %v8995 = vpop.f32.mrb[0].mxu0
      %8996 = vmatprep.mubr.bf16.mxu0 0
      %8997 = vmatmul.mubr.bf16.gmra.mrb[0].mxu0 %v8707
      %v8998 = vpop.f32.mrb[0].mxu0
      %v8999 = vadd.f32 0.0, %v8998
      %v9000 = vpop.f32.mrb[0].mxu0
      %v9001 = vpop.f32.mrb[0].mxu0
      %v9002 = vadd.f32 0.0, %v9001
      %v9003 = vpop.f32.mrb[0].mxu0
      %9004 = vmatprep.mubr.bf16.mxu0 0
      %9005 = vmatmul.mubr.bf16.gmra.mrb[0].mxu0 %v8715
      %v9006 = vpop.f32.mrb[0].mxu0
      %v9007 = vadd.f32 0.0, %v9006
      %v9008 = vpop.f32.mrb[0].mxu0
      %v9009 = vpop.f32.mrb[0].mxu0
      %v9010 = vadd.f32 0.0, %v9009
      %v9011 = vpop.f32.mrb[0].mxu0
      %9012 = vmatprep.mubr.bf16.mxu0 0
      %9013 = vmatmul.mubr.bf16.gmra.mrb[0].mxu0 %v8723
      %v9014 = vpop.f32.mrb[0].mxu0
      %v9015 = vadd.f32 0.0, %v9014
      %v9016 = vpop.f32.mrb[0].mxu0
      %v9017 = vpop.f32.mrb[0].mxu0
      %v9018 = vadd.f32 0.0, %v9017
      %v9019 = vpop.f32.mrb[0].mxu0
      %9020 = vmatprep.mubr.bf16.mxu0 0
      %9021 = vmatmul.mubr.bf16.gmra.mrb[0].mxu0 %v8731
      %v9022 = vpop.f32.mrb[0].mxu0
      %v9023 = vadd.f32 0.0, %v9022
      %v9024 = vpop.f32.mrb[0].mxu0
      %v9025 = vpop.f32.mrb[0].mxu0
      %v9026 = vadd.f32 0.0, %v9025
      %v9027 = vpop.f32.mrb[0].mxu0
      %9028 = vmatprep.mubr.bf16.mxu0 0
      %9029 = vmatmul.mubr.bf16.gmra.mrb[0].mxu0 %v8739
      %v9030 = vpop.f32.mrb[0].mxu0
      %v9031 = vadd.f32 0.0, %v9030
      %v9032 = vpop.f32.mrb[0].mxu0
      %v9033 = vpop.f32.mrb[0].mxu0
      %v9034 = vadd.f32 0.0, %v9033
      %v9035 = vpop.f32.mrb[0].mxu0
      %9036 = vdwg.mxu0
      %v9037 = vadd.f32 %v8454, %v8847
      %v9038 = vadd.f32 %v8455, %v8850
      %v9039 = vadd.f32 %v8456, %v8855
      %v9040 = vadd.f32 %v8457, %v8858
      %v9041 = vadd.f32 %v8458, %v8863
      %v9042 = vadd.f32 %v8459, %v8866
      %v9043 = vadd.f32 %v8460, %v8871
      %v9044 = vadd.f32 %v8461, %v8874
      %v9045 = vadd.f32 %v8462, %v8879
      %v9046 = vadd.f32 %v8463, %v8882
      %v9047 = vadd.f32 %v8464, %v8887
      %v9048 = vadd.f32 %v8465, %v8890
      %v9049 = vadd.f32 %v8466, %v8895
      %v9050 = vadd.f32 %v8467, %v8898
      %v9051 = vadd.f32 %v8468, %v8903
      %v9052 = vadd.f32 %v8469, %v8906
      %v9053 = vadd.f32 %v8470, %v8911
      %v9054 = vadd.f32 %v8471, %v8914
      %v9055 = vadd.f32 %v8472, %v8919
      %v9056 = vadd.f32 %v8473, %v8922
      %v9057 = vadd.f32 %v8474, %v8927
      %v9058 = vadd.f32 %v8475, %v8930
      %v9059 = vadd.f32 %v8476, %v8935
      %v9060 = vadd.f32 %v8477, %v8938
      %v9061 = vadd.f32 %v8478, %v8943
      %v9062 = vadd.f32 %v8479, %v8946
      %v9063 = vadd.f32 %v8480, %v8951
      %v9064 = vadd.f32 %v8481, %v8954
      %v9065 = vadd.f32 %v8482, %v8959
      %v9066 = vadd.f32 %v8483, %v8962
      %v9067 = vadd.f32 %v8484, %v8967
      %v9068 = vadd.f32 %v8485, %v8970
      %v9069 = vadd.f32 %v8486, %v8975
      %v9070 = vadd.f32 %v8487, %v8978
      %v9071 = vadd.f32 %v8488, %v8983
      %v9072 = vadd.f32 %v8489, %v8986
      %v9073 = vadd.f32 %v8490, %v8991
      %v9074 = vadd.f32 %v8491, %v8994
      %v9075 = vadd.f32 %v8492, %v8999
      %v9076 = vadd.f32 %v8493, %v9002
      %v9077 = vadd.f32 %v8494, %v9007
      %v9078 = vadd.f32 %v8495, %v9010
      %v9079 = vadd.f32 %v8496, %v9015
      %v9080 = vadd.f32 %v8497, %v9018
      %v9081 = vadd.f32 %v8498, %v9023
      %v9082 = vadd.f32 %v8499, %v9026
      %v9083 = vadd.f32 %v8500, %v9031
      %v9084 = vadd.f32 %v8501, %v9034
      %v9085 = vld [vmem:[#allocation2 + $0x20] sm:$0xf8]
      %v9086 = vld [vmem:[#allocation2 + $0x28] sm:$0xff]
      %v9087 = vld [vmem:[#allocation2 + $0x30] sm:$0xff]
      %v9088 = vld [vmem:[#allocation2 + $0x38] sm:$0xff]
      %v9089 = vld [vmem:[#allocation2 + $0x40] sm:$0xff]
      %v9090 = vld [vmem:[#allocation2 + $0x48] sm:$0xff]
      %v9091 = vld [vmem:[#allocation2 + $0x50] sm:$0xff]
      %v9092 = vld [vmem:[#allocation2 + $0x58] sm:$0xff]
      %v9093 = vld [vmem:[#allocation2 + $0x60] sm:$0xff]
      %v9094 = vld [vmem:[#allocation2 + $0x68] sm:$0xff]
      %v9095 = vld [vmem:[#allocation2 + $0x70] sm:$0xff]
      %v9096 = vld [vmem:[#allocation2 + $0x78] sm:$0xff]
      %v9097 = vld [vmem:[#allocation2 + $0x80] sm:$0xff]
      %v9098 = vld [vmem:[#allocation2 + $0x88] sm:$0xff]
      %v9099 = vld [vmem:[#allocation2 + $0x90] sm:$0xff]
      %v9100 = vld [vmem:[#allocation2 + $0x98] sm:$0xff]
      %v9101 = vld [vmem:[#allocation2 + $0xa0] sm:$0xff]
      %v9102 = vld [vmem:[#allocation2 + $0xa8] sm:$0xff]
      %v9103 = vld [vmem:[#allocation2 + $0xb0] sm:$0xff]
      %v9104 = vld [vmem:[#allocation2 + $0xb8] sm:$0xff]
      %v9105 = vld [vmem:[#allocation2 + $0xc0] sm:$0xff]
      %v9106 = vld [vmem:[#allocation2 + $0xc8] sm:$0xff]
      %v9107 = vld [vmem:[#allocation2 + $0xd0] sm:$0xff]
      %v9108 = vld [vmem:[#allocation2 + $0xd8] sm:$0xff]
      %v9109 = vld [vmem:[#allocation2 + $0xe0] sm:$0xf]
      %s9110 = scalar_lea.vmem %s3, 384
      %v9111 = vld [vmem:[%s9110] sm:$0xf]
      %v9112 = vld [vmem:[%s9110 + $0x4] sm:$0xf]
      %v9113 = vld [vmem:[%s9110 + $0x8] sm:$0xf]
      %v9114 = vld [vmem:[%s9110 + $0xc] sm:$0xf]
      %v9115 = vld [vmem:[%s9110 + $0x10] sm:$0xf]
      %v9116 = vld [vmem:[%s9110 + $0x14] sm:$0xf]
      %v9117 = vld [vmem:[%s9110 + $0x18] sm:$0xf]
      %v9118 = vld [vmem:[%s9110 + $0x1c] sm:$0xf]
      %v9119 = vld [vmem:[%s9110 + $0x20] sm:$0xf]
      %v9120 = vld [vmem:[%s9110 + $0x24] sm:$0xf]
      %v9121 = vld [vmem:[%s9110 + $0x28] sm:$0xf]
      %v9122 = vld [vmem:[%s9110 + $0x2c] sm:$0xf]
      %v9123 = vld [vmem:[%s9110 + $0x30] sm:$0xf]
      %v9124 = vld [vmem:[%s9110 + $0x34] sm:$0xf]
      %v9125 = vld [vmem:[%s9110 + $0x38] sm:$0xf]
      %v9126 = vld [vmem:[%s9110 + $0x3c] sm:$0xf]
      %v9128 = vshrl.u32 %v9085, 16
      %v9130 = vrot.slane %v9128, 3
      %v9131 = vshll.u32 %v9085, 16
      %v9133 = vrot.slane %v9131, 4
      %v9134 = vor.u32 %v9130, %v9133
      %v9136 = vshrl.u32 %v9086, 16
      %v9138 = vrot.slane %v9136, 3
      %v9139 = vshll.u32 %v9086, 16
      %v9141 = vrot.slane %v9139, 4
      %v9142 = vor.u32 %v9138, %v9141
      %v9143 = vsel %vm6585, %v9134, %v9142
      %v9145 = vshrl.u32 %v9087, 16
      %v9147 = vrot.slane %v9145, 3
      %v9148 = vshll.u32 %v9087, 16
      %v9150 = vrot.slane %v9148, 4
      %v9151 = vor.u32 %v9147, %v9150
      %v9152 = vsel %vm6585, %v9142, %v9151
      %v9154 = vshrl.u32 %v9088, 16
      %v9156 = vrot.slane %v9154, 3
      %v9157 = vshll.u32 %v9088, 16
      %v9159 = vrot.slane %v9157, 4
      %v9160 = vor.u32 %v9156, %v9159
      %v9161 = vsel %vm6585, %v9151, %v9160
      %v9163 = vshrl.u32 %v9089, 16
      %v9165 = vrot.slane %v9163, 3
      %v9166 = vshll.u32 %v9089, 16
      %v9168 = vrot.slane %v9166, 4
      %v9169 = vor.u32 %v9165, %v9168
      %v9170 = vsel %vm6585, %v9160, %v9169
      %v9172 = vshrl.u32 %v9090, 16
      %v9174 = vrot.slane %v9172, 3
      %v9175 = vshll.u32 %v9090, 16
      %v9177 = vrot.slane %v9175, 4
      %v9178 = vor.u32 %v9174, %v9177
      %v9179 = vsel %vm6585, %v9169, %v9178
      %v9181 = vshrl.u32 %v9091, 16
      %v9183 = vrot.slane %v9181, 3
      %v9184 = vshll.u32 %v9091, 16
      %v9186 = vrot.slane %v9184, 4
      %v9187 = vor.u32 %v9183, %v9186
      %v9188 = vsel %vm6585, %v9178, %v9187
      %v9190 = vshrl.u32 %v9092, 16
      %v9192 = vrot.slane %v9190, 3
      %v9193 = vshll.u32 %v9092, 16
      %v9195 = vrot.slane %v9193, 4
      %v9196 = vor.u32 %v9192, %v9195
      %v9197 = vsel %vm6585, %v9187, %v9196
      %v9199 = vshrl.u32 %v9093, 16
      %v9201 = vrot.slane %v9199, 3
      %v9202 = vshll.u32 %v9093, 16
      %v9204 = vrot.slane %v9202, 4
      %v9205 = vor.u32 %v9201, %v9204
      %v9206 = vsel %vm6585, %v9196, %v9205
      %v9208 = vshrl.u32 %v9094, 16
      %v9210 = vrot.slane %v9208, 3
      %v9211 = vshll.u32 %v9094, 16
      %v9213 = vrot.slane %v9211, 4
      %v9214 = vor.u32 %v9210, %v9213
      %v9215 = vsel %vm6585, %v9205, %v9214
      %v9217 = vshrl.u32 %v9095, 16
      %v9219 = vrot.slane %v9217, 3
      %v9220 = vshll.u32 %v9095, 16
      %v9222 = vrot.slane %v9220, 4
      %v9223 = vor.u32 %v9219, %v9222
      %v9224 = vsel %vm6585, %v9214, %v9223
      %v9226 = vshrl.u32 %v9096, 16
      %v9228 = vrot.slane %v9226, 3
      %v9229 = vshll.u32 %v9096, 16
      %v9231 = vrot.slane %v9229, 4
      %v9232 = vor.u32 %v9228, %v9231
      %v9233 = vsel %vm6585, %v9223, %v9232
      %v9235 = vshrl.u32 %v9097, 16
      %v9237 = vrot.slane %v9235, 3
      %v9238 = vshll.u32 %v9097, 16
      %v9240 = vrot.slane %v9238, 4
      %v9241 = vor.u32 %v9237, %v9240
      %v9242 = vsel %vm6585, %v9232, %v9241
      %v9244 = vshrl.u32 %v9098, 16
      %v9246 = vrot.slane %v9244, 3
      %v9247 = vshll.u32 %v9098, 16
      %v9249 = vrot.slane %v9247, 4
      %v9250 = vor.u32 %v9246, %v9249
      %v9251 = vsel %vm6585, %v9241, %v9250
      %v9253 = vshrl.u32 %v9099, 16
      %v9255 = vrot.slane %v9253, 3
      %v9256 = vshll.u32 %v9099, 16
      %v9258 = vrot.slane %v9256, 4
      %v9259 = vor.u32 %v9255, %v9258
      %v9260 = vsel %vm6585, %v9250, %v9259
      %v9262 = vshrl.u32 %v9100, 16
      %v9264 = vrot.slane %v9262, 3
      %v9265 = vshll.u32 %v9100, 16
      %v9267 = vrot.slane %v9265, 4
      %v9268 = vor.u32 %v9264, %v9267
      %v9269 = vsel %vm6585, %v9259, %v9268
      %v9271 = vshrl.u32 %v9101, 16
      %v9273 = vrot.slane %v9271, 3
      %v9274 = vshll.u32 %v9101, 16
      %v9276 = vrot.slane %v9274, 4
      %v9277 = vor.u32 %v9273, %v9276
      %v9278 = vsel %vm6585, %v9268, %v9277
      %v9280 = vshrl.u32 %v9102, 16
      %v9282 = vrot.slane %v9280, 3
      %v9283 = vshll.u32 %v9102, 16
      %v9285 = vrot.slane %v9283, 4
      %v9286 = vor.u32 %v9282, %v9285
      %v9287 = vsel %vm6585, %v9277, %v9286
      %v9289 = vshrl.u32 %v9103, 16
      %v9291 = vrot.slane %v9289, 3
      %v9292 = vshll.u32 %v9103, 16
      %v9294 = vrot.slane %v9292, 4
      %v9295 = vor.u32 %v9291, %v9294
      %v9296 = vsel %vm6585, %v9286, %v9295
      %v9298 = vshrl.u32 %v9104, 16
      %v9300 = vrot.slane %v9298, 3
      %v9301 = vshll.u32 %v9104, 16
      %v9303 = vrot.slane %v9301, 4
      %v9304 = vor.u32 %v9300, %v9303
      %v9305 = vsel %vm6585, %v9295, %v9304
      %v9307 = vshrl.u32 %v9105, 16
      %v9309 = vrot.slane %v9307, 3
      %v9310 = vshll.u32 %v9105, 16
      %v9312 = vrot.slane %v9310, 4
      %v9313 = vor.u32 %v9309, %v9312
      %v9314 = vsel %vm6585, %v9304, %v9313
      %v9316 = vshrl.u32 %v9106, 16
      %v9318 = vrot.slane %v9316, 3
      %v9319 = vshll.u32 %v9106, 16
      %v9321 = vrot.slane %v9319, 4
      %v9322 = vor.u32 %v9318, %v9321
      %v9323 = vsel %vm6585, %v9313, %v9322
      %v9325 = vshrl.u32 %v9107, 16
      %v9327 = vrot.slane %v9325, 3
      %v9328 = vshll.u32 %v9107, 16
      %v9330 = vrot.slane %v9328, 4
      %v9331 = vor.u32 %v9327, %v9330
      %v9332 = vsel %vm6585, %v9322, %v9331
      %v9334 = vshrl.u32 %v9108, 16
      %v9336 = vrot.slane %v9334, 3
      %v9337 = vshll.u32 %v9108, 16
      %v9339 = vrot.slane %v9337, 4
      %v9340 = vor.u32 %v9336, %v9339
      %v9341 = vsel %vm6585, %v9331, %v9340
      %v9343 = vshrl.u32 %v9109, 16
      %v9345 = vrot.slane %v9343, 3
      %v9346 = vshll.u32 %v9109, 16
      %v9348 = vrot.slane %v9346, 4
      %v9349 = vor.u32 %v9345, %v9348
      %v9350 = vsel %vm6585, %v9340, %v9349
      %v9391 = vunpack.c.l.b16 %v9111
      %v9392 = vunpack.c.l.b16 %v9112
      %v9393 = vunpack.c.l.b16 %v9113
      %v9394 = vunpack.c.l.b16 %v9114
      %v9395 = vunpack.c.l.b16 %v9115
      %v9396 = vunpack.c.l.b16 %v9116
      %v9397 = vunpack.c.l.b16 %v9117
      %v9398 = vunpack.c.l.b16 %v9118
      %v9399 = vunpack.c.l.b16 %v9119
      %v9400 = vunpack.c.l.b16 %v9120
      %v9401 = vunpack.c.l.b16 %v9121
      %v9402 = vunpack.c.l.b16 %v9122
      %v9403 = vunpack.c.l.b16 %v9123
      %v9404 = vunpack.c.l.b16 %v9124
      %v9405 = vunpack.c.l.b16 %v9125
      %v9406 = vunpack.c.l.b16 %v9126
      %v9407 = vpack.c.b16 %v9392, %v9391
      %v9408 = vpack.c.b16 %v9394, %v9393
      %v9409 = vpack.c.b16 %v9396, %v9395
      %v9410 = vpack.c.b16 %v9398, %v9397
      %v9411 = vpack.c.b16 %v9400, %v9399
      %v9412 = vpack.c.b16 %v9402, %v9401
      %v9413 = vpack.c.b16 %v9404, %v9403
      %v9414 = vpack.c.b16 %v9406, %v9405
      %9423 = vmatprep.subr.bf16.mxu0 0
      %9424 = vmatpush1.bf16.msra.mxu0 %v9407
      %9425 = vmatprep.subr.bf16.mxu0 0
      %9426 = vmatpush1.bf16.msra.mxu0 %v9408
      %9427 = vmatprep.subr.bf16.mxu0 0
      %9428 = vmatpush1.bf16.msra.mxu0 %v9409
      %9429 = vmatprep.subr.bf16.mxu0 0
      %9430 = vmatpush1.bf16.msra.mxu0 %v9410
      %9431 = vmatprep.subr.bf16.mxu0 0
      %9432 = vmatpush1.bf16.msra.mxu0 %v9411
      %9433 = vmatprep.subr.bf16.mxu0 0
      %9434 = vmatpush1.bf16.msra.mxu0 %v9412
      %9435 = vmatprep.subr.bf16.mxu0 0
      %9436 = vmatpush1.bf16.msra.mxu0 %v9413
      %9437 = vmatprep.subr.bf16.mxu0 0
      %9438 = vmatpush1.bf16.msra.mxu0 %v9414
      %9439 = vmatprep.subr.bf16.mxu0 0
      %9440 = vmatpush1.bf16.msra.mxu0 0
      %9441 = vmatprep.subr.bf16.mxu0 0
      %9442 = vmatpush1.bf16.msra.mxu0 0
      %9443 = vmatprep.subr.bf16.mxu0 0
      %9444 = vmatpush1.bf16.msra.mxu0 0
      %9445 = vmatprep.subr.bf16.mxu0 0
      %9446 = vmatpush1.bf16.msra.mxu0 0
      %9447 = vmatprep.subr.bf16.mxu0 0
      %9448 = vmatpush1.bf16.msra.mxu0 0
      %9449 = vmatprep.subr.bf16.mxu0 0
      %9450 = vmatpush1.bf16.msra.mxu0 0
      %9451 = vmatprep.subr.bf16.mxu0 0
      %9452 = vmatpush1.bf16.msra.mxu0 0
      %9453 = vmatprep.subr.bf16.mxu0 0
      %9454 = vmatpush1.bf16.msra.mxu0 0
      %9455 = vmatprep.mubr.bf16.mxu0 0
      %9456 = vmatmul.mubr.bf16.gmra.mrb[0].mxu0 %v9143
      %v9457 = vpop.f32.mrb[0].mxu0
      %v9458 = vadd.f32 0.0, %v9457
      %v9459 = vpop.f32.mrb[0].mxu0
      %v9460 = vpop.f32.mrb[0].mxu0
      %v9461 = vadd.f32 0.0, %v9460
      %v9462 = vpop.f32.mrb[0].mxu0
      %9463 = vmatprep.mubr.bf16.mxu0 0
      %9464 = vmatmul.mubr.bf16.gmra.mrb[0].mxu0 %v9152
      %v9465 = vpop.f32.mrb[0].mxu0
      %v9466 = vadd.f32 0.0, %v9465
      %v9467 = vpop.f32.mrb[0].mxu0
      %v9468 = vpop.f32.mrb[0].mxu0
      %v9469 = vadd.f32 0.0, %v9468
      %v9470 = vpop.f32.mrb[0].mxu0
      %9471 = vmatprep.mubr.bf16.mxu0 0
      %9472 = vmatmul.mubr.bf16.gmra.mrb[0].mxu0 %v9161
      %v9473 = vpop.f32.mrb[0].mxu0
      %v9474 = vadd.f32 0.0, %v9473
      %v9475 = vpop.f32.mrb[0].mxu0
      %v9476 = vpop.f32.mrb[0].mxu0
      %v9477 = vadd.f32 0.0, %v9476
      %v9478 = vpop.f32.mrb[0].mxu0
      %9479 = vmatprep.mubr.bf16.mxu0 0
      %9480 = vmatmul.mubr.bf16.gmra.mrb[0].mxu0 %v9170
      %v9481 = vpop.f32.mrb[0].mxu0
      %v9482 = vadd.f32 0.0, %v9481
      %v9483 = vpop.f32.mrb[0].mxu0
      %v9484 = vpop.f32.mrb[0].mxu0
      %v9485 = vadd.f32 0.0, %v9484
      %v9486 = vpop.f32.mrb[0].mxu0
      %9487 = vmatprep.mubr.bf16.mxu0 0
      %9488 = vmatmul.mubr.bf16.gmra.mrb[0].mxu0 %v9179
      %v9489 = vpop.f32.mrb[0].mxu0
      %v9490 = vadd.f32 0.0, %v9489
      %v9491 = vpop.f32.mrb[0].mxu0
      %v9492 = vpop.f32.mrb[0].mxu0
      %v9493 = vadd.f32 0.0, %v9492
      %v9494 = vpop.f32.mrb[0].mxu0
      %9495 = vmatprep.mubr.bf16.mxu0 0
      %9496 = vmatmul.mubr.bf16.gmra.mrb[0].mxu0 %v9188
      %v9497 = vpop.f32.mrb[0].mxu0
      %v9498 = vadd.f32 0.0, %v9497
      %v9499 = vpop.f32.mrb[0].mxu0
      %v9500 = vpop.f32.mrb[0].mxu0
      %v9501 = vadd.f32 0.0, %v9500
      %v9502 = vpop.f32.mrb[0].mxu0
      %9503 = vmatprep.mubr.bf16.mxu0 0
      %9504 = vmatmul.mubr.bf16.gmra.mrb[0].mxu0 %v9197
      %v9505 = vpop.f32.mrb[0].mxu0
      %v9506 = vadd.f32 0.0, %v9505
      %v9507 = vpop.f32.mrb[0].mxu0
      %v9508 = vpop.f32.mrb[0].mxu0
      %v9509 = vadd.f32 0.0, %v9508
      %v9510 = vpop.f32.mrb[0].mxu0
      %9511 = vmatprep.mubr.bf16.mxu0 0
      %9512 = vmatmul.mubr.bf16.gmra.mrb[0].mxu0 %v9206
      %v9513 = vpop.f32.mrb[0].mxu0
      %v9514 = vadd.f32 0.0, %v9513
      %v9515 = vpop.f32.mrb[0].mxu0
      %v9516 = vpop.f32.mrb[0].mxu0
      %v9517 = vadd.f32 0.0, %v9516
      %v9518 = vpop.f32.mrb[0].mxu0
      %9519 = vmatprep.mubr.bf16.mxu0 0
      %9520 = vmatmul.mubr.bf16.gmra.mrb[0].mxu0 %v9215
      %v9521 = vpop.f32.mrb[0].mxu0
      %v9522 = vadd.f32 0.0, %v9521
      %v9523 = vpop.f32.mrb[0].mxu0
      %v9524 = vpop.f32.mrb[0].mxu0
      %v9525 = vadd.f32 0.0, %v9524
      %v9526 = vpop.f32.mrb[0].mxu0
      %9527 = vmatprep.mubr.bf16.mxu0 0
      %9528 = vmatmul.mubr.bf16.gmra.mrb[0].mxu0 %v9224
      %v9529 = vpop.f32.mrb[0].mxu0
      %v9530 = vadd.f32 0.0, %v9529
      %v9531 = vpop.f32.mrb[0].mxu0
      %v9532 = vpop.f32.mrb[0].mxu0
      %v9533 = vadd.f32 0.0, %v9532
      %v9534 = vpop.f32.mrb[0].mxu0
      %9535 = vmatprep.mubr.bf16.mxu0 0
      %9536 = vmatmul.mubr.bf16.gmra.mrb[0].mxu0 %v9233
      %v9537 = vpop.f32.mrb[0].mxu0
      %v9538 = vadd.f32 0.0, %v9537
      %v9539 = vpop.f32.mrb[0].mxu0
      %v9540 = vpop.f32.mrb[0].mxu0
      %v9541 = vadd.f32 0.0, %v9540
      %v9542 = vpop.f32.mrb[0].mxu0
      %9543 = vmatprep.mubr.bf16.mxu0 0
      %9544 = vmatmul.mubr.bf16.gmra.mrb[0].mxu0 %v9242
      %v9545 = vpop.f32.mrb[0].mxu0
      %v9546 = vadd.f32 0.0, %v9545
      %v9547 = vpop.f32.mrb[0].mxu0
      %v9548 = vpop.f32.mrb[0].mxu0
      %v9549 = vadd.f32 0.0, %v9548
      %v9550 = vpop.f32.mrb[0].mxu0
      %9551 = vmatprep.mubr.bf16.mxu0 0
      %9552 = vmatmul.mubr.bf16.gmra.mrb[0].mxu0 %v9251
      %v9553 = vpop.f32.mrb[0].mxu0
      %v9554 = vadd.f32 0.0, %v9553
      %v9555 = vpop.f32.mrb[0].mxu0
      %v9556 = vpop.f32.mrb[0].mxu0
      %v9557 = vadd.f32 0.0, %v9556
      %v9558 = vpop.f32.mrb[0].mxu0
      %9559 = vmatprep.mubr.bf16.mxu0 0
      %9560 = vmatmul.mubr.bf16.gmra.mrb[0].mxu0 %v9260
      %v9561 = vpop.f32.mrb[0].mxu0
      %v9562 = vadd.f32 0.0, %v9561
      %v9563 = vpop.f32.mrb[0].mxu0
      %v9564 = vpop.f32.mrb[0].mxu0
      %v9565 = vadd.f32 0.0, %v9564
      %v9566 = vpop.f32.mrb[0].mxu0
      %9567 = vmatprep.mubr.bf16.mxu0 0
      %9568 = vmatmul.mubr.bf16.gmra.mrb[0].mxu0 %v9269
      %v9569 = vpop.f32.mrb[0].mxu0
      %v9570 = vadd.f32 0.0, %v9569
      %v9571 = vpop.f32.mrb[0].mxu0
      %v9572 = vpop.f32.mrb[0].mxu0
      %v9573 = vadd.f32 0.0, %v9572
      %v9574 = vpop.f32.mrb[0].mxu0
      %9575 = vmatprep.mubr.bf16.mxu0 0
      %9576 = vmatmul.mubr.bf16.gmra.mrb[0].mxu0 %v9278
      %v9577 = vpop.f32.mrb[0].mxu0
      %v9578 = vadd.f32 0.0, %v9577
      %v9579 = vpop.f32.mrb[0].mxu0
      %v9580 = vpop.f32.mrb[0].mxu0
      %v9581 = vadd.f32 0.0, %v9580
      %v9582 = vpop.f32.mrb[0].mxu0
      %9583 = vmatprep.mubr.bf16.mxu0 0
      %9584 = vmatmul.mubr.bf16.gmra.mrb[0].mxu0 %v9287
      %v9585 = vpop.f32.mrb[0].mxu0
      %v9586 = vadd.f32 0.0, %v9585
      %v9587 = vpop.f32.mrb[0].mxu0
      %v9588 = vpop.f32.mrb[0].mxu0
      %v9589 = vadd.f32 0.0, %v9588
      %v9590 = vpop.f32.mrb[0].mxu0
      %9591 = vmatprep.mubr.bf16.mxu0 0
      %9592 = vmatmul.mubr.bf16.gmra.mrb[0].mxu0 %v9296
      %v9593 = vpop.f32.mrb[0].mxu0
      %v9594 = vadd.f32 0.0, %v9593
      %v9595 = vpop.f32.mrb[0].mxu0
      %v9596 = vpop.f32.mrb[0].mxu0
      %v9597 = vadd.f32 0.0, %v9596
      %v9598 = vpop.f32.mrb[0].mxu0
      %9599 = vmatprep.mubr.bf16.mxu0 0
      %9600 = vmatmul.mubr.bf16.gmra.mrb[0].mxu0 %v9305
      %v9601 = vpop.f32.mrb[0].mxu0
      %v9602 = vadd.f32 0.0, %v9601
      %v9603 = vpop.f32.mrb[0].mxu0
      %v9604 = vpop.f32.mrb[0].mxu0
      %v9605 = vadd.f32 0.0, %v9604
      %v9606 = vpop.f32.mrb[0].mxu0
      %9607 = vmatprep.mubr.bf16.mxu0 0
      %9608 = vmatmul.mubr.bf16.gmra.mrb[0].mxu0 %v9314
      %v9609 = vpop.f32.mrb[0].mxu0
      %v9610 = vadd.f32 0.0, %v9609
      %v9611 = vpop.f32.mrb[0].mxu0
      %v9612 = vpop.f32.mrb[0].mxu0
      %v9613 = vadd.f32 0.0, %v9612
      %v9614 = vpop.f32.mrb[0].mxu0
      %9615 = vmatprep.mubr.bf16.mxu0 0
      %9616 = vmatmul.mubr.bf16.gmra.mrb[0].mxu0 %v9323
      %v9617 = vpop.f32.mrb[0].mxu0
      %v9618 = vadd.f32 0.0, %v9617
      %v9619 = vpop.f32.mrb[0].mxu0
      %v9620 = vpop.f32.mrb[0].mxu0
      %v9621 = vadd.f32 0.0, %v9620
      %v9622 = vpop.f32.mrb[0].mxu0
      %9623 = vmatprep.mubr.bf16.mxu0 0
      %9624 = vmatmul.mubr.bf16.gmra.mrb[0].mxu0 %v9332
      %v9625 = vpop.f32.mrb[0].mxu0
      %v9626 = vadd.f32 0.0, %v9625
      %v9627 = vpop.f32.mrb[0].mxu0
      %v9628 = vpop.f32.mrb[0].mxu0
      %v9629 = vadd.f32 0.0, %v9628
      %v9630 = vpop.f32.mrb[0].mxu0
      %9631 = vmatprep.mubr.bf16.mxu0 0
      %9632 = vmatmul.mubr.bf16.gmra.mrb[0].mxu0 %v9341
      %v9633 = vpop.f32.mrb[0].mxu0
      %v9634 = vadd.f32 0.0, %v9633
      %v9635 = vpop.f32.mrb[0].mxu0
      %v9636 = vpop.f32.mrb[0].mxu0
      %v9637 = vadd.f32 0.0, %v9636
      %v9638 = vpop.f32.mrb[0].mxu0
      %9639 = vmatprep.mubr.bf16.mxu0 0
      %9640 = vmatmul.mubr.bf16.gmra.mrb[0].mxu0 %v9350
      %v9641 = vpop.f32.mrb[0].mxu0
      %v9642 = vadd.f32 0.0, %v9641
      %v9643 = vpop.f32.mrb[0].mxu0
      %v9644 = vpop.f32.mrb[0].mxu0
      %v9645 = vadd.f32 0.0, %v9644
      %v9646 = vpop.f32.mrb[0].mxu0
      %9647 = vdwg.mxu0
      %v9648 = vadd.f32 %v9037, %v9458
      %v9649 = vadd.f32 %v9038, %v9461
      %v9650 = vadd.f32 %v9039, %v9466
      %v9651 = vadd.f32 %v9040, %v9469
      %v9652 = vadd.f32 %v9041, %v9474
      %v9653 = vadd.f32 %v9042, %v9477
      %v9654 = vadd.f32 %v9043, %v9482
      %v9655 = vadd.f32 %v9044, %v9485
      %v9656 = vadd.f32 %v9045, %v9490
      %v9657 = vadd.f32 %v9046, %v9493
      %v9658 = vadd.f32 %v9047, %v9498
      %v9659 = vadd.f32 %v9048, %v9501
      %v9660 = vadd.f32 %v9049, %v9506
      %v9661 = vadd.f32 %v9050, %v9509
      %v9662 = vadd.f32 %v9051, %v9514
      %v9663 = vadd.f32 %v9052, %v9517
      %v9664 = vadd.f32 %v9053, %v9522
      %v9665 = vadd.f32 %v9054, %v9525
      %v9666 = vadd.f32 %v9055, %v9530
      %v9667 = vadd.f32 %v9056, %v9533
      %v9668 = vadd.f32 %v9057, %v9538
      %v9669 = vadd.f32 %v9058, %v9541
      %v9670 = vadd.f32 %v9059, %v9546
      %v9671 = vadd.f32 %v9060, %v9549
      %v9672 = vadd.f32 %v9061, %v9554
      %v9673 = vadd.f32 %v9062, %v9557
      %v9674 = vadd.f32 %v9063, %v9562
      %v9675 = vadd.f32 %v9064, %v9565
      %v9676 = vadd.f32 %v9065, %v9570
      %v9677 = vadd.f32 %v9066, %v9573
      %v9678 = vadd.f32 %v9067, %v9578
      %v9679 = vadd.f32 %v9068, %v9581
      %v9680 = vadd.f32 %v9069, %v9586
      %v9681 = vadd.f32 %v9070, %v9589
      %v9682 = vadd.f32 %v9071, %v9594
      %v9683 = vadd.f32 %v9072, %v9597
      %v9684 = vadd.f32 %v9073, %v9602
      %v9685 = vadd.f32 %v9074, %v9605
      %v9686 = vadd.f32 %v9075, %v9610
      %v9687 = vadd.f32 %v9076, %v9613
      %v9688 = vadd.f32 %v9077, %v9618
      %v9689 = vadd.f32 %v9078, %v9621
      %v9690 = vadd.f32 %v9079, %v9626
      %v9691 = vadd.f32 %v9080, %v9629
      %v9692 = vadd.f32 %v9081, %v9634
      %v9693 = vadd.f32 %v9082, %v9637
      %v9694 = vadd.f32 %v9083, %v9642
      %v9695 = vadd.f32 %v9084, %v9645
      %v9696 = vld [vmem:[#allocation2 + $0x20] sm:$0xf0]
      %s9697 = scalar_lea.vmem %s3, 448
      %v9698 = vld [vmem:[%s9697] sm:$0xf]
      %v9699 = vld [vmem:[%s9697 + $0x4] sm:$0xf]
      %v9700 = vld [vmem:[%s9697 + $0x8] sm:$0xf]
      %v9701 = vld [vmem:[%s9697 + $0xc] sm:$0xf]
      %v9702 = vld [vmem:[%s9697 + $0x10] sm:$0xf]
      %v9703 = vld [vmem:[%s9697 + $0x14] sm:$0xf]
      %v9704 = vld [vmem:[%s9697 + $0x18] sm:$0xf]
      %v9705 = vld [vmem:[%s9697 + $0x1c] sm:$0xf]
      %v9706 = vld [vmem:[%s9697 + $0x20] sm:$0xf]
      %v9707 = vld [vmem:[%s9697 + $0x24] sm:$0xf]
      %v9708 = vld [vmem:[%s9697 + $0x28] sm:$0xf]
      %v9709 = vld [vmem:[%s9697 + $0x2c] sm:$0xf]
      %v9710 = vld [vmem:[%s9697 + $0x30] sm:$0xf]
      %v9711 = vld [vmem:[%s9697 + $0x34] sm:$0xf]
      %v9712 = vld [vmem:[%s9697 + $0x38] sm:$0xf]
      %v9713 = vld [vmem:[%s9697 + $0x3c] sm:$0xf]
      %v9739 = vrot.slane %v9696, 4
      %v9740 = vrot.slane %v9086, 4
      %v9741 = vsel %vm6238, %v9739, %v9740
      %v9742 = vrot.slane %v9087, 4
      %v9743 = vsel %vm6238, %v9740, %v9742
      %v9744 = vrot.slane %v9088, 4
      %v9745 = vsel %vm6238, %v9742, %v9744
      %v9746 = vrot.slane %v9089, 4
      %v9747 = vsel %vm6238, %v9744, %v9746
      %v9748 = vrot.slane %v9090, 4
      %v9749 = vsel %vm6238, %v9746, %v9748
      %v9750 = vrot.slane %v9091, 4
      %v9751 = vsel %vm6238, %v9748, %v9750
      %v9752 = vrot.slane %v9092, 4
      %v9753 = vsel %vm6238, %v9750, %v9752
      %v9754 = vrot.slane %v9093, 4
      %v9755 = vsel %vm6238, %v9752, %v9754
      %v9756 = vrot.slane %v9094, 4
      %v9757 = vsel %vm6238, %v9754, %v9756
      %v9758 = vrot.slane %v9095, 4
      %v9759 = vsel %vm6238, %v9756, %v9758
      %v9760 = vrot.slane %v9096, 4
      %v9761 = vsel %vm6238, %v9758, %v9760
      %v9762 = vrot.slane %v9097, 4
      %v9763 = vsel %vm6238, %v9760, %v9762
      %v9764 = vrot.slane %v9098, 4
      %v9765 = vsel %vm6238, %v9762, %v9764
      %v9766 = vrot.slane %v9099, 4
      %v9767 = vsel %vm6238, %v9764, %v9766
      %v9768 = vrot.slane %v9100, 4
      %v9769 = vsel %vm6238, %v9766, %v9768
      %v9770 = vrot.slane %v9101, 4
      %v9771 = vsel %vm6238, %v9768, %v9770
      %v9772 = vrot.slane %v9102, 4
      %v9773 = vsel %vm6238, %v9770, %v9772
      %v9774 = vrot.slane %v9103, 4
      %v9775 = vsel %vm6238, %v9772, %v9774
      %v9776 = vrot.slane %v9104, 4
      %v9777 = vsel %vm6238, %v9774, %v9776
      %v9778 = vrot.slane %v9105, 4
      %v9779 = vsel %vm6238, %v9776, %v9778
      %v9780 = vrot.slane %v9106, 4
      %v9781 = vsel %vm6238, %v9778, %v9780
      %v9782 = vrot.slane %v9107, 4
      %v9783 = vsel %vm6238, %v9780, %v9782
      %v9784 = vrot.slane %v9108, 4
      %v9785 = vsel %vm6238, %v9782, %v9784
      %v9786 = vrot.slane %v9109, 4
      %v9787 = vsel %vm6238, %v9784, %v9786
      %v9828 = vunpack.c.l.b16 %v9698
      %v9829 = vunpack.c.l.b16 %v9699
      %v9830 = vunpack.c.l.b16 %v9700
      %v9831 = vunpack.c.l.b16 %v9701
      %v9832 = vunpack.c.l.b16 %v9702
      %v9833 = vunpack.c.l.b16 %v9703
      %v9834 = vunpack.c.l.b16 %v9704
      %v9835 = vunpack.c.l.b16 %v9705
      %v9836 = vunpack.c.l.b16 %v9706
      %v9837 = vunpack.c.l.b16 %v9707
      %v9838 = vunpack.c.l.b16 %v9708
      %v9839 = vunpack.c.l.b16 %v9709
      %v9840 = vunpack.c.l.b16 %v9710
      %v9841 = vunpack.c.l.b16 %v9711
      %v9842 = vunpack.c.l.b16 %v9712
      %v9843 = vunpack.c.l.b16 %v9713
      %v9844 = vpack.c.b16 %v9829, %v9828
      %v9845 = vpack.c.b16 %v9831, %v9830
      %v9846 = vpack.c.b16 %v9833, %v9832
      %v9847 = vpack.c.b16 %v9835, %v9834
      %v9848 = vpack.c.b16 %v9837, %v9836
      %v9849 = vpack.c.b16 %v9839, %v9838
      %v9850 = vpack.c.b16 %v9841, %v9840
      %v9851 = vpack.c.b16 %v9843, %v9842
      %9860 = vmatprep.subr.bf16.mxu0 0
      %9861 = vmatpush1.bf16.msra.mxu0 %v9844
      %9862 = vmatprep.subr.bf16.mxu0 0
      %9863 = vmatpush1.bf16.msra.mxu0 %v9845
      %9864 = vmatprep.subr.bf16.mxu0 0
      %9865 = vmatpush1.bf16.msra.mxu0 %v9846
      %9866 = vmatprep.subr.bf16.mxu0 0
      %9867 = vmatpush1.bf16.msra.mxu0 %v9847
      %9868 = vmatprep.subr.bf16.mxu0 0
      %9869 = vmatpush1.bf16.msra.mxu0 %v9848
      %9870 = vmatprep.subr.bf16.mxu0 0
      %9871 = vmatpush1.bf16.msra.mxu0 %v9849
      %9872 = vmatprep.subr.bf16.mxu0 0
      %9873 = vmatpush1.bf16.msra.mxu0 %v9850
      %9874 = vmatprep.subr.bf16.mxu0 0
      %9875 = vmatpush1.bf16.msra.mxu0 %v9851
      %9876 = vmatprep.subr.bf16.mxu0 0
      %9877 = vmatpush1.bf16.msra.mxu0 0
      %9878 = vmatprep.subr.bf16.mxu0 0
      %9879 = vmatpush1.bf16.msra.mxu0 0
      %9880 = vmatprep.subr.bf16.mxu0 0
      %9881 = vmatpush1.bf16.msra.mxu0 0
      %9882 = vmatprep.subr.bf16.mxu0 0
      %9883 = vmatpush1.bf16.msra.mxu0 0
      %9884 = vmatprep.subr.bf16.mxu0 0
      %9885 = vmatpush1.bf16.msra.mxu0 0
      %9886 = vmatprep.subr.bf16.mxu0 0
      %9887 = vmatpush1.bf16.msra.mxu0 0
      %9888 = vmatprep.subr.bf16.mxu0 0
      %9889 = vmatpush1.bf16.msra.mxu0 0
      %9890 = vmatprep.subr.bf16.mxu0 0
      %9891 = vmatpush1.bf16.msra.mxu0 0
      %9892 = vmatprep.mubr.bf16.mxu0 0
      %9893 = vmatmul.mubr.bf16.gmra.mrb[0].mxu0 %v9741
      %v9894 = vpop.f32.mrb[0].mxu0
      %v9895 = vadd.f32 0.0, %v9894
      %v9896 = vpop.f32.mrb[0].mxu0
      %v9897 = vpop.f32.mrb[0].mxu0
      %v9898 = vadd.f32 0.0, %v9897
      %v9899 = vpop.f32.mrb[0].mxu0
      %9900 = vmatprep.mubr.bf16.mxu0 0
      %9901 = vmatmul.mubr.bf16.gmra.mrb[0].mxu0 %v9743
      %v9902 = vpop.f32.mrb[0].mxu0
      %v9903 = vadd.f32 0.0, %v9902
      %v9904 = vpop.f32.mrb[0].mxu0
      %v9905 = vpop.f32.mrb[0].mxu0
      %v9906 = vadd.f32 0.0, %v9905
      %v9907 = vpop.f32.mrb[0].mxu0
      %9908 = vmatprep.mubr.bf16.mxu0 0
      %9909 = vmatmul.mubr.bf16.gmra.mrb[0].mxu0 %v9745
      %v9910 = vpop.f32.mrb[0].mxu0
      %v9911 = vadd.f32 0.0, %v9910
      %v9912 = vpop.f32.mrb[0].mxu0
      %v9913 = vpop.f32.mrb[0].mxu0
      %v9914 = vadd.f32 0.0, %v9913
      %v9915 = vpop.f32.mrb[0].mxu0
      %9916 = vmatprep.mubr.bf16.mxu0 0
      %9917 = vmatmul.mubr.bf16.gmra.mrb[0].mxu0 %v9747
      %v9918 = vpop.f32.mrb[0].mxu0
      %v9919 = vadd.f32 0.0, %v9918
      %v9920 = vpop.f32.mrb[0].mxu0
      %v9921 = vpop.f32.mrb[0].mxu0
      %v9922 = vadd.f32 0.0, %v9921
      %v9923 = vpop.f32.mrb[0].mxu0
      %9924 = vmatprep.mubr.bf16.mxu0 0
      %9925 = vmatmul.mubr.bf16.gmra.mrb[0].mxu0 %v9749
      %v9926 = vpop.f32.mrb[0].mxu0
      %v9927 = vadd.f32 0.0, %v9926
      %v9928 = vpop.f32.mrb[0].mxu0
      %v9929 = vpop.f32.mrb[0].mxu0
      %v9930 = vadd.f32 0.0, %v9929
      %v9931 = vpop.f32.mrb[0].mxu0
      %9932 = vmatprep.mubr.bf16.mxu0 0
      %9933 = vmatmul.mubr.bf16.gmra.mrb[0].mxu0 %v9751
      %v9934 = vpop.f32.mrb[0].mxu0
      %v9935 = vadd.f32 0.0, %v9934
      %v9936 = vpop.f32.mrb[0].mxu0
      %v9937 = vpop.f32.mrb[0].mxu0
      %v9938 = vadd.f32 0.0, %v9937
      %v9939 = vpop.f32.mrb[0].mxu0
      %9940 = vmatprep.mubr.bf16.mxu0 0
      %9941 = vmatmul.mubr.bf16.gmra.mrb[0].mxu0 %v9753
      %v9942 = vpop.f32.mrb[0].mxu0
      %v9943 = vadd.f32 0.0, %v9942
      %v9944 = vpop.f32.mrb[0].mxu0
      %v9945 = vpop.f32.mrb[0].mxu0
      %v9946 = vadd.f32 0.0, %v9945
      %v9947 = vpop.f32.mrb[0].mxu0
      %9948 = vmatprep.mubr.bf16.mxu0 0
      %9949 = vmatmul.mubr.bf16.gmra.mrb[0].mxu0 %v9755
      %v9950 = vpop.f32.mrb[0].mxu0
      %v9951 = vadd.f32 0.0, %v9950
      %v9952 = vpop.f32.mrb[0].mxu0
      %v9953 = vpop.f32.mrb[0].mxu0
      %v9954 = vadd.f32 0.0, %v9953
      %v9955 = vpop.f32.mrb[0].mxu0
      %9956 = vmatprep.mubr.bf16.mxu0 0
      %9957 = vmatmul.mubr.bf16.gmra.mrb[0].mxu0 %v9757
      %v9958 = vpop.f32.mrb[0].mxu0
      %v9959 = vadd.f32 0.0, %v9958
      %v9960 = vpop.f32.mrb[0].mxu0
      %v9961 = vpop.f32.mrb[0].mxu0
      %v9962 = vadd.f32 0.0, %v9961
      %v9963 = vpop.f32.mrb[0].mxu0
      %9964 = vmatprep.mubr.bf16.mxu0 0
      %9965 = vmatmul.mubr.bf16.gmra.mrb[0].mxu0 %v9759
      %v9966 = vpop.f32.mrb[0].mxu0
      %v9967 = vadd.f32 0.0, %v9966
      %v9968 = vpop.f32.mrb[0].mxu0
      %v9969 = vpop.f32.mrb[0].mxu0
      %v9970 = vadd.f32 0.0, %v9969
      %v9971 = vpop.f32.mrb[0].mxu0
      %9972 = vmatprep.mubr.bf16.mxu0 0
      %9973 = vmatmul.mubr.bf16.gmra.mrb[0].mxu0 %v9761
      %v9974 = vpop.f32.mrb[0].mxu0
      %v9975 = vadd.f32 0.0, %v9974
      %v9976 = vpop.f32.mrb[0].mxu0
      %v9977 = vpop.f32.mrb[0].mxu0
      %v9978 = vadd.f32 0.0, %v9977
      %v9979 = vpop.f32.mrb[0].mxu0
      %9980 = vmatprep.mubr.bf16.mxu0 0
      %9981 = vmatmul.mubr.bf16.gmra.mrb[0].mxu0 %v9763
      %v9982 = vpop.f32.mrb[0].mxu0
      %v9983 = vadd.f32 0.0, %v9982
      %v9984 = vpop.f32.mrb[0].mxu0
      %v9985 = vpop.f32.mrb[0].mxu0
      %v9986 = vadd.f32 0.0, %v9985
      %v9987 = vpop.f32.mrb[0].mxu0
      %9988 = vmatprep.mubr.bf16.mxu0 0
      %9989 = vmatmul.mubr.bf16.gmra.mrb[0].mxu0 %v9765
      %v9990 = vpop.f32.mrb[0].mxu0
      %v9991 = vadd.f32 0.0, %v9990
      %v9992 = vpop.f32.mrb[0].mxu0
      %v9993 = vpop.f32.mrb[0].mxu0
      %v9994 = vadd.f32 0.0, %v9993
      %v9995 = vpop.f32.mrb[0].mxu0
      %9996 = vmatprep.mubr.bf16.mxu0 0
      %9997 = vmatmul.mubr.bf16.gmra.mrb[0].mxu0 %v9767
      %v9998 = vpop.f32.mrb[0].mxu0
      %v9999 = vadd.f32 0.0, %v9998
      %v10000 = vpop.f32.mrb[0].mxu0
      %v10001 = vpop.f32.mrb[0].mxu0
      %v10002 = vadd.f32 0.0, %v10001
      %v10003 = vpop.f32.mrb[0].mxu0
      %10004 = vmatprep.mubr.bf16.mxu0 0
      %10005 = vmatmul.mubr.bf16.gmra.mrb[0].mxu0 %v9769
      %v10006 = vpop.f32.mrb[0].mxu0
      %v10007 = vadd.f32 0.0, %v10006
      %v10008 = vpop.f32.mrb[0].mxu0
      %v10009 = vpop.f32.mrb[0].mxu0
      %v10010 = vadd.f32 0.0, %v10009
      %v10011 = vpop.f32.mrb[0].mxu0
      %10012 = vmatprep.mubr.bf16.mxu0 0
      %10013 = vmatmul.mubr.bf16.gmra.mrb[0].mxu0 %v9771
      %v10014 = vpop.f32.mrb[0].mxu0
      %v10015 = vadd.f32 0.0, %v10014
      %v10016 = vpop.f32.mrb[0].mxu0
      %v10017 = vpop.f32.mrb[0].mxu0
      %v10018 = vadd.f32 0.0, %v10017
      %v10019 = vpop.f32.mrb[0].mxu0
      %10020 = vmatprep.mubr.bf16.mxu0 0
      %10021 = vmatmul.mubr.bf16.gmra.mrb[0].mxu0 %v9773
      %v10022 = vpop.f32.mrb[0].mxu0
      %v10023 = vadd.f32 0.0, %v10022
      %v10024 = vpop.f32.mrb[0].mxu0
      %v10025 = vpop.f32.mrb[0].mxu0
      %v10026 = vadd.f32 0.0, %v10025
      %v10027 = vpop.f32.mrb[0].mxu0
      %10028 = vmatprep.mubr.bf16.mxu0 0
      %10029 = vmatmul.mubr.bf16.gmra.mrb[0].mxu0 %v9775
      %v10030 = vpop.f32.mrb[0].mxu0
      %v10031 = vadd.f32 0.0, %v10030
      %v10032 = vpop.f32.mrb[0].mxu0
      %v10033 = vpop.f32.mrb[0].mxu0
      %v10034 = vadd.f32 0.0, %v10033
      %v10035 = vpop.f32.mrb[0].mxu0
      %10036 = vmatprep.mubr.bf16.mxu0 0
      %10037 = vmatmul.mubr.bf16.gmra.mrb[0].mxu0 %v9777
      %v10038 = vpop.f32.mrb[0].mxu0
      %v10039 = vadd.f32 0.0, %v10038
      %v10040 = vpop.f32.mrb[0].mxu0
      %v10041 = vpop.f32.mrb[0].mxu0
      %v10042 = vadd.f32 0.0, %v10041
      %v10043 = vpop.f32.mrb[0].mxu0
      %10044 = vmatprep.mubr.bf16.mxu0 0
      %10045 = vmatmul.mubr.bf16.gmra.mrb[0].mxu0 %v9779
      %v10046 = vpop.f32.mrb[0].mxu0
      %v10047 = vadd.f32 0.0, %v10046
      %v10048 = vpop.f32.mrb[0].mxu0
      %v10049 = vpop.f32.mrb[0].mxu0
      %v10050 = vadd.f32 0.0, %v10049
      %v10051 = vpop.f32.mrb[0].mxu0
      %10052 = vmatprep.mubr.bf16.mxu0 0
      %10053 = vmatmul.mubr.bf16.gmra.mrb[0].mxu0 %v9781
      %v10054 = vpop.f32.mrb[0].mxu0
      %v10055 = vadd.f32 0.0, %v10054
      %v10056 = vpop.f32.mrb[0].mxu0
      %v10057 = vpop.f32.mrb[0].mxu0
      %v10058 = vadd.f32 0.0, %v10057
      %v10059 = vpop.f32.mrb[0].mxu0
      %10060 = vmatprep.mubr.bf16.mxu0 0
      %10061 = vmatmul.mubr.bf16.gmra.mrb[0].mxu0 %v9783
      %v10062 = vpop.f32.mrb[0].mxu0
      %v10063 = vadd.f32 0.0, %v10062
      %v10064 = vpop.f32.mrb[0].mxu0
      %v10065 = vpop.f32.mrb[0].mxu0
      %v10066 = vadd.f32 0.0, %v10065
      %v10067 = vpop.f32.mrb[0].mxu0
      %10068 = vmatprep.mubr.bf16.mxu0 0
      %10069 = vmatmul.mubr.bf16.gmra.mrb[0].mxu0 %v9785
      %v10070 = vpop.f32.mrb[0].mxu0
      %v10071 = vadd.f32 0.0, %v10070
      %v10072 = vpop.f32.mrb[0].mxu0
      %v10073 = vpop.f32.mrb[0].mxu0
      %v10074 = vadd.f32 0.0, %v10073
      %v10075 = vpop.f32.mrb[0].mxu0
      %10076 = vmatprep.mubr.bf16.mxu0 0
      %10077 = vmatmul.mubr.bf16.gmra.mrb[0].mxu0 %v9787
      %v10078 = vpop.f32.mrb[0].mxu0
      %v10079 = vadd.f32 0.0, %v10078
      %v10080 = vpop.f32.mrb[0].mxu0
      %v10081 = vpop.f32.mrb[0].mxu0
      %v10082 = vadd.f32 0.0, %v10081
      %v10083 = vpop.f32.mrb[0].mxu0
      %10084 = vdwg.mxu0
      %v10085 = vadd.f32 %v9648, %v9895
      %v10086 = vadd.f32 %v9649, %v9898
      %v10087 = vadd.f32 %v9650, %v9903
      %v10088 = vadd.f32 %v9651, %v9906
      %v10089 = vadd.f32 %v9652, %v9911
      %v10090 = vadd.f32 %v9653, %v9914
      %v10091 = vadd.f32 %v9654, %v9919
      %v10092 = vadd.f32 %v9655, %v9922
      %v10093 = vadd.f32 %v9656, %v9927
      %v10094 = vadd.f32 %v9657, %v9930
      %v10095 = vadd.f32 %v9658, %v9935
      %v10096 = vadd.f32 %v9659, %v9938
      %v10097 = vadd.f32 %v9660, %v9943
      %v10098 = vadd.f32 %v9661, %v9946
      %v10099 = vadd.f32 %v9662, %v9951
      %v10100 = vadd.f32 %v9663, %v9954
      %v10101 = vadd.f32 %v9664, %v9959
      %v10102 = vadd.f32 %v9665, %v9962
      %v10103 = vadd.f32 %v9666, %v9967
      %v10104 = vadd.f32 %v9667, %v9970
      %v10105 = vadd.f32 %v9668, %v9975
      %v10106 = vadd.f32 %v9669, %v9978
      %v10107 = vadd.f32 %v9670, %v9983
      %v10108 = vadd.f32 %v9671, %v9986
      %v10109 = vadd.f32 %v9672, %v9991
      %v10110 = vadd.f32 %v9673, %v9994
      %v10111 = vadd.f32 %v9674, %v9999
      %v10112 = vadd.f32 %v9675, %v10002
      %v10113 = vadd.f32 %v9676, %v10007
      %v10114 = vadd.f32 %v9677, %v10010
      %v10115 = vadd.f32 %v9678, %v10015
      %v10116 = vadd.f32 %v9679, %v10018
      %v10117 = vadd.f32 %v9680, %v10023
      %v10118 = vadd.f32 %v9681, %v10026
      %v10119 = vadd.f32 %v9682, %v10031
      %v10120 = vadd.f32 %v9683, %v10034
      %v10121 = vadd.f32 %v9684, %v10039
      %v10122 = vadd.f32 %v9685, %v10042
      %v10123 = vadd.f32 %v9686, %v10047
      %v10124 = vadd.f32 %v9687, %v10050
      %v10125 = vadd.f32 %v9688, %v10055
      %v10126 = vadd.f32 %v9689, %v10058
      %v10127 = vadd.f32 %v9690, %v10063
      %v10128 = vadd.f32 %v9691, %v10066
      %v10129 = vadd.f32 %v9692, %v10071
      %v10130 = vadd.f32 %v9693, %v10074
      %v10131 = vadd.f32 %v9694, %v10079
      %v10132 = vadd.f32 %v9695, %v10082
      %v10133 = vld [vmem:[#allocation2 + $0xe0] sm:$0x1f]
      %s10134 = scalar_lea.vmem %s3, 512
      %v10135 = vld [vmem:[%s10134] sm:$0xf]
      %v10136 = vld [vmem:[%s10134 + $0x4] sm:$0xf]
      %v10137 = vld [vmem:[%s10134 + $0x8] sm:$0xf]
      %v10138 = vld [vmem:[%s10134 + $0xc] sm:$0xf]
      %v10139 = vld [vmem:[%s10134 + $0x10] sm:$0xf]
      %v10140 = vld [vmem:[%s10134 + $0x14] sm:$0xf]
      %v10141 = vld [vmem:[%s10134 + $0x18] sm:$0xf]
      %v10142 = vld [vmem:[%s10134 + $0x1c] sm:$0xf]
      %v10143 = vld [vmem:[%s10134 + $0x20] sm:$0xf]
      %v10144 = vld [vmem:[%s10134 + $0x24] sm:$0xf]
      %v10145 = vld [vmem:[%s10134 + $0x28] sm:$0xf]
      %v10146 = vld [vmem:[%s10134 + $0x2c] sm:$0xf]
      %v10147 = vld [vmem:[%s10134 + $0x30] sm:$0xf]
      %v10148 = vld [vmem:[%s10134 + $0x34] sm:$0xf]
      %v10149 = vld [vmem:[%s10134 + $0x38] sm:$0xf]
      %v10150 = vld [vmem:[%s10134 + $0x3c] sm:$0xf]
      %v10152 = vshrl.u32 %v9696, 16
      %v10154 = vrot.slane %v10152, 4
      %v10155 = vshll.u32 %v9696, 16
      %v10157 = vrot.slane %v10155, 5
      %v10158 = vor.u32 %v10154, %v10157
      %v10159 = vrot.slane %v9136, 4
      %v10160 = vrot.slane %v9139, 5
      %v10161 = vor.u32 %v10159, %v10160
      %v10162 = vsel %vm7125, %v10158, %v10161
      %v10163 = vrot.slane %v9145, 4
      %v10164 = vrot.slane %v9148, 5
      %v10165 = vor.u32 %v10163, %v10164
      %v10166 = vsel %vm7125, %v10161, %v10165
      %v10167 = vrot.slane %v9154, 4
      %v10168 = vrot.slane %v9157, 5
      %v10169 = vor.u32 %v10167, %v10168
      %v10170 = vsel %vm7125, %v10165, %v10169
      %v10171 = vrot.slane %v9163, 4
      %v10172 = vrot.slane %v9166, 5
      %v10173 = vor.u32 %v10171, %v10172
      %v10174 = vsel %vm7125, %v10169, %v10173
      %v10175 = vrot.slane %v9172, 4
      %v10176 = vrot.slane %v9175, 5
      %v10177 = vor.u32 %v10175, %v10176
      %v10178 = vsel %vm7125, %v10173, %v10177
      %v10179 = vrot.slane %v9181, 4
      %v10180 = vrot.slane %v9184, 5
      %v10181 = vor.u32 %v10179, %v10180
      %v10182 = vsel %vm7125, %v10177, %v10181
      %v10183 = vrot.slane %v9190, 4
      %v10184 = vrot.slane %v9193, 5
      %v10185 = vor.u32 %v10183, %v10184
      %v10186 = vsel %vm7125, %v10181, %v10185
      %v10187 = vrot.slane %v9199, 4
      %v10188 = vrot.slane %v9202, 5
      %v10189 = vor.u32 %v10187, %v10188
      %v10190 = vsel %vm7125, %v10185, %v10189
      %v10191 = vrot.slane %v9208, 4
      %v10192 = vrot.slane %v9211, 5
      %v10193 = vor.u32 %v10191, %v10192
      %v10194 = vsel %vm7125, %v10189, %v10193
      %v10195 = vrot.slane %v9217, 4
      %v10196 = vrot.slane %v9220, 5
      %v10197 = vor.u32 %v10195, %v10196
      %v10198 = vsel %vm7125, %v10193, %v10197
      %v10199 = vrot.slane %v9226, 4
      %v10200 = vrot.slane %v9229, 5
      %v10201 = vor.u32 %v10199, %v10200
      %v10202 = vsel %vm7125, %v10197, %v10201
      %v10203 = vrot.slane %v9235, 4
      %v10204 = vrot.slane %v9238, 5
      %v10205 = vor.u32 %v10203, %v10204
      %v10206 = vsel %vm7125, %v10201, %v10205
      %v10207 = vrot.slane %v9244, 4
      %v10208 = vrot.slane %v9247, 5
      %v10209 = vor.u32 %v10207, %v10208
      %v10210 = vsel %vm7125, %v10205, %v10209
      %v10211 = vrot.slane %v9253, 4
      %v10212 = vrot.slane %v9256, 5
      %v10213 = vor.u32 %v10211, %v10212
      %v10214 = vsel %vm7125, %v10209, %v10213
      %v10215 = vrot.slane %v9262, 4
      %v10216 = vrot.slane %v9265, 5
      %v10217 = vor.u32 %v10215, %v10216
      %v10218 = vsel %vm7125, %v10213, %v10217
      %v10219 = vrot.slane %v9271, 4
      %v10220 = vrot.slane %v9274, 5
      %v10221 = vor.u32 %v10219, %v10220
      %v10222 = vsel %vm7125, %v10217, %v10221
      %v10223 = vrot.slane %v9280, 4
      %v10224 = vrot.slane %v9283, 5
      %v10225 = vor.u32 %v10223, %v10224
      %v10226 = vsel %vm7125, %v10221, %v10225
      %v10227 = vrot.slane %v9289, 4
      %v10228 = vrot.slane %v9292, 5
      %v10229 = vor.u32 %v10227, %v10228
      %v10230 = vsel %vm7125, %v10225, %v10229
      %v10231 = vrot.slane %v9298, 4
      %v10232 = vrot.slane %v9301, 5
      %v10233 = vor.u32 %v10231, %v10232
      %v10234 = vsel %vm7125, %v10229, %v10233
      %v10235 = vrot.slane %v9307, 4
      %v10236 = vrot.slane %v9310, 5
      %v10237 = vor.u32 %v10235, %v10236
      %v10238 = vsel %vm7125, %v10233, %v10237
      %v10239 = vrot.slane %v9316, 4
      %v10240 = vrot.slane %v9319, 5
      %v10241 = vor.u32 %v10239, %v10240
      %v10242 = vsel %vm7125, %v10237, %v10241
      %v10243 = vrot.slane %v9325, 4
      %v10244 = vrot.slane %v9328, 5
      %v10245 = vor.u32 %v10243, %v10244
      %v10246 = vsel %vm7125, %v10241, %v10245
      %v10247 = vrot.slane %v9334, 4
      %v10248 = vrot.slane %v9337, 5
      %v10249 = vor.u32 %v10247, %v10248
      %v10250 = vsel %vm7125, %v10245, %v10249
      %v10252 = vshrl.u32 %v10133, 16
      %v10254 = vrot.slane %v10252, 4
      %v10255 = vshll.u32 %v10133, 16
      %v10257 = vrot.slane %v10255, 5
      %v10258 = vor.u32 %v10254, %v10257
      %v10259 = vsel %vm7125, %v10249, %v10258
      %v10300 = vunpack.c.l.b16 %v10135
      %v10301 = vunpack.c.l.b16 %v10136
      %v10302 = vunpack.c.l.b16 %v10137
      %v10303 = vunpack.c.l.b16 %v10138
      %v10304 = vunpack.c.l.b16 %v10139
      %v10305 = vunpack.c.l.b16 %v10140
      %v10306 = vunpack.c.l.b16 %v10141
      %v10307 = vunpack.c.l.b16 %v10142
      %v10308 = vunpack.c.l.b16 %v10143
      %v10309 = vunpack.c.l.b16 %v10144
      %v10310 = vunpack.c.l.b16 %v10145
      %v10311 = vunpack.c.l.b16 %v10146
      %v10312 = vunpack.c.l.b16 %v10147
      %v10313 = vunpack.c.l.b16 %v10148
      %v10314 = vunpack.c.l.b16 %v10149
      %v10315 = vunpack.c.l.b16 %v10150
      %v10316 = vpack.c.b16 %v10301, %v10300
      %v10317 = vpack.c.b16 %v10303, %v10302
      %v10318 = vpack.c.b16 %v10305, %v10304
      %v10319 = vpack.c.b16 %v10307, %v10306
      %v10320 = vpack.c.b16 %v10309, %v10308
      %v10321 = vpack.c.b16 %v10311, %v10310
      %v10322 = vpack.c.b16 %v10313, %v10312
      %v10323 = vpack.c.b16 %v10315, %v10314
      %10332 = vmatprep.subr.bf16.mxu0 0
      %10333 = vmatpush1.bf16.msra.mxu0 %v10316
      %10334 = vmatprep.subr.bf16.mxu0 0
      %10335 = vmatpush1.bf16.msra.mxu0 %v10317
      %10336 = vmatprep.subr.bf16.mxu0 0
      %10337 = vmatpush1.bf16.msra.mxu0 %v10318
      %10338 = vmatprep.subr.bf16.mxu0 0
      %10339 = vmatpush1.bf16.msra.mxu0 %v10319
      %10340 = vmatprep.subr.bf16.mxu0 0
      %10341 = vmatpush1.bf16.msra.mxu0 %v10320
      %10342 = vmatprep.subr.bf16.mxu0 0
      %10343 = vmatpush1.bf16.msra.mxu0 %v10321
      %10344 = vmatprep.subr.bf16.mxu0 0
      %10345 = vmatpush1.bf16.msra.mxu0 %v10322
      %10346 = vmatprep.subr.bf16.mxu0 0
      %10347 = vmatpush1.bf16.msra.mxu0 %v10323
      %10348 = vmatprep.subr.bf16.mxu0 0
      %10349 = vmatpush1.bf16.msra.mxu0 0
      %10350 = vmatprep.subr.bf16.mxu0 0
      %10351 = vmatpush1.bf16.msra.mxu0 0
      %10352 = vmatprep.subr.bf16.mxu0 0
      %10353 = vmatpush1.bf16.msra.mxu0 0
      %10354 = vmatprep.subr.bf16.mxu0 0
      %10355 = vmatpush1.bf16.msra.mxu0 0
      %10356 = vmatprep.subr.bf16.mxu0 0
      %10357 = vmatpush1.bf16.msra.mxu0 0
      %10358 = vmatprep.subr.bf16.mxu0 0
      %10359 = vmatpush1.bf16.msra.mxu0 0
      %10360 = vmatprep.subr.bf16.mxu0 0
      %10361 = vmatpush1.bf16.msra.mxu0 0
      %10362 = vmatprep.subr.bf16.mxu0 0
      %10363 = vmatpush1.bf16.msra.mxu0 0
      %10364 = vmatprep.mubr.bf16.mxu0 0
      %10365 = vmatmul.mubr.bf16.gmra.mrb[0].mxu0 %v10162
      %v10366 = vpop.f32.mrb[0].mxu0
      %v10367 = vadd.f32 0.0, %v10366
      %v10368 = vpop.f32.mrb[0].mxu0
      %v10369 = vpop.f32.mrb[0].mxu0
      %v10370 = vadd.f32 0.0, %v10369
      %v10371 = vpop.f32.mrb[0].mxu0
      %10372 = vmatprep.mubr.bf16.mxu0 0
      %10373 = vmatmul.mubr.bf16.gmra.mrb[0].mxu0 %v10166
      %v10374 = vpop.f32.mrb[0].mxu0
      %v10375 = vadd.f32 0.0, %v10374
      %v10376 = vpop.f32.mrb[0].mxu0
      %v10377 = vpop.f32.mrb[0].mxu0
      %v10378 = vadd.f32 0.0, %v10377
      %v10379 = vpop.f32.mrb[0].mxu0
      %10380 = vmatprep.mubr.bf16.mxu0 0
      %10381 = vmatmul.mubr.bf16.gmra.mrb[0].mxu0 %v10170
      %v10382 = vpop.f32.mrb[0].mxu0
      %v10383 = vadd.f32 0.0, %v10382
      %v10384 = vpop.f32.mrb[0].mxu0
      %v10385 = vpop.f32.mrb[0].mxu0
      %v10386 = vadd.f32 0.0, %v10385
      %v10387 = vpop.f32.mrb[0].mxu0
      %10388 = vmatprep.mubr.bf16.mxu0 0
      %10389 = vmatmul.mubr.bf16.gmra.mrb[0].mxu0 %v10174
      %v10390 = vpop.f32.mrb[0].mxu0
      %v10391 = vadd.f32 0.0, %v10390
      %v10392 = vpop.f32.mrb[0].mxu0
      %v10393 = vpop.f32.mrb[0].mxu0
      %v10394 = vadd.f32 0.0, %v10393
      %v10395 = vpop.f32.mrb[0].mxu0
      %10396 = vmatprep.mubr.bf16.mxu0 0
      %10397 = vmatmul.mubr.bf16.gmra.mrb[0].mxu0 %v10178
      %v10398 = vpop.f32.mrb[0].mxu0
      %v10399 = vadd.f32 0.0, %v10398
      %v10400 = vpop.f32.mrb[0].mxu0
      %v10401 = vpop.f32.mrb[0].mxu0
      %v10402 = vadd.f32 0.0, %v10401
      %v10403 = vpop.f32.mrb[0].mxu0
      %10404 = vmatprep.mubr.bf16.mxu0 0
      %10405 = vmatmul.mubr.bf16.gmra.mrb[0].mxu0 %v10182
      %v10406 = vpop.f32.mrb[0].mxu0
      %v10407 = vadd.f32 0.0, %v10406
      %v10408 = vpop.f32.mrb[0].mxu0
      %v10409 = vpop.f32.mrb[0].mxu0
      %v10410 = vadd.f32 0.0, %v10409
      %v10411 = vpop.f32.mrb[0].mxu0
      %10412 = vmatprep.mubr.bf16.mxu0 0
      %10413 = vmatmul.mubr.bf16.gmra.mrb[0].mxu0 %v10186
      %v10414 = vpop.f32.mrb[0].mxu0
      %v10415 = vadd.f32 0.0, %v10414
      %v10416 = vpop.f32.mrb[0].mxu0
      %v10417 = vpop.f32.mrb[0].mxu0
      %v10418 = vadd.f32 0.0, %v10417
      %v10419 = vpop.f32.mrb[0].mxu0
      %10420 = vmatprep.mubr.bf16.mxu0 0
      %10421 = vmatmul.mubr.bf16.gmra.mrb[0].mxu0 %v10190
      %v10422 = vpop.f32.mrb[0].mxu0
      %v10423 = vadd.f32 0.0, %v10422
      %v10424 = vpop.f32.mrb[0].mxu0
      %v10425 = vpop.f32.mrb[0].mxu0
      %v10426 = vadd.f32 0.0, %v10425
      %v10427 = vpop.f32.mrb[0].mxu0
      %10428 = vmatprep.mubr.bf16.mxu0 0
      %10429 = vmatmul.mubr.bf16.gmra.mrb[0].mxu0 %v10194
      %v10430 = vpop.f32.mrb[0].mxu0
      %v10431 = vadd.f32 0.0, %v10430
      %v10432 = vpop.f32.mrb[0].mxu0
      %v10433 = vpop.f32.mrb[0].mxu0
      %v10434 = vadd.f32 0.0, %v10433
      %v10435 = vpop.f32.mrb[0].mxu0
      %10436 = vmatprep.mubr.bf16.mxu0 0
      %10437 = vmatmul.mubr.bf16.gmra.mrb[0].mxu0 %v10198
      %v10438 = vpop.f32.mrb[0].mxu0
      %v10439 = vadd.f32 0.0, %v10438
      %v10440 = vpop.f32.mrb[0].mxu0
      %v10441 = vpop.f32.mrb[0].mxu0
      %v10442 = vadd.f32 0.0, %v10441
      %v10443 = vpop.f32.mrb[0].mxu0
      %10444 = vmatprep.mubr.bf16.mxu0 0
      %10445 = vmatmul.mubr.bf16.gmra.mrb[0].mxu0 %v10202
      %v10446 = vpop.f32.mrb[0].mxu0
      %v10447 = vadd.f32 0.0, %v10446
      %v10448 = vpop.f32.mrb[0].mxu0
      %v10449 = vpop.f32.mrb[0].mxu0
      %v10450 = vadd.f32 0.0, %v10449
      %v10451 = vpop.f32.mrb[0].mxu0
      %10452 = vmatprep.mubr.bf16.mxu0 0
      %10453 = vmatmul.mubr.bf16.gmra.mrb[0].mxu0 %v10206
      %v10454 = vpop.f32.mrb[0].mxu0
      %v10455 = vadd.f32 0.0, %v10454
      %v10456 = vpop.f32.mrb[0].mxu0
      %v10457 = vpop.f32.mrb[0].mxu0
      %v10458 = vadd.f32 0.0, %v10457
      %v10459 = vpop.f32.mrb[0].mxu0
      %10460 = vmatprep.mubr.bf16.mxu0 0
      %10461 = vmatmul.mubr.bf16.gmra.mrb[0].mxu0 %v10210
      %v10462 = vpop.f32.mrb[0].mxu0
      %v10463 = vadd.f32 0.0, %v10462
      %v10464 = vpop.f32.mrb[0].mxu0
      %v10465 = vpop.f32.mrb[0].mxu0
      %v10466 = vadd.f32 0.0, %v10465
      %v10467 = vpop.f32.mrb[0].mxu0
      %10468 = vmatprep.mubr.bf16.mxu0 0
      %10469 = vmatmul.mubr.bf16.gmra.mrb[0].mxu0 %v10214
      %v10470 = vpop.f32.mrb[0].mxu0
      %v10471 = vadd.f32 0.0, %v10470
      %v10472 = vpop.f32.mrb[0].mxu0
      %v10473 = vpop.f32.mrb[0].mxu0
      %v10474 = vadd.f32 0.0, %v10473
      %v10475 = vpop.f32.mrb[0].mxu0
      %10476 = vmatprep.mubr.bf16.mxu0 0
      %10477 = vmatmul.mubr.bf16.gmra.mrb[0].mxu0 %v10218
      %v10478 = vpop.f32.mrb[0].mxu0
      %v10479 = vadd.f32 0.0, %v10478
      %v10480 = vpop.f32.mrb[0].mxu0
      %v10481 = vpop.f32.mrb[0].mxu0
      %v10482 = vadd.f32 0.0, %v10481
      %v10483 = vpop.f32.mrb[0].mxu0
      %10484 = vmatprep.mubr.bf16.mxu0 0
      %10485 = vmatmul.mubr.bf16.gmra.mrb[0].mxu0 %v10222
      %v10486 = vpop.f32.mrb[0].mxu0
      %v10487 = vadd.f32 0.0, %v10486
      %v10488 = vpop.f32.mrb[0].mxu0
      %v10489 = vpop.f32.mrb[0].mxu0
      %v10490 = vadd.f32 0.0, %v10489
      %v10491 = vpop.f32.mrb[0].mxu0
      %10492 = vmatprep.mubr.bf16.mxu0 0
      %10493 = vmatmul.mubr.bf16.gmra.mrb[0].mxu0 %v10226
      %v10494 = vpop.f32.mrb[0].mxu0
      %v10495 = vadd.f32 0.0, %v10494
      %v10496 = vpop.f32.mrb[0].mxu0
      %v10497 = vpop.f32.mrb[0].mxu0
      %v10498 = vadd.f32 0.0, %v10497
      %v10499 = vpop.f32.mrb[0].mxu0
      %10500 = vmatprep.mubr.bf16.mxu0 0
      %10501 = vmatmul.mubr.bf16.gmra.mrb[0].mxu0 %v10230
      %v10502 = vpop.f32.mrb[0].mxu0
      %v10503 = vadd.f32 0.0, %v10502
      %v10504 = vpop.f32.mrb[0].mxu0
      %v10505 = vpop.f32.mrb[0].mxu0
      %v10506 = vadd.f32 0.0, %v10505
      %v10507 = vpop.f32.mrb[0].mxu0
      %10508 = vmatprep.mubr.bf16.mxu0 0
      %10509 = vmatmul.mubr.bf16.gmra.mrb[0].mxu0 %v10234
      %v10510 = vpop.f32.mrb[0].mxu0
      %v10511 = vadd.f32 0.0, %v10510
      %v10512 = vpop.f32.mrb[0].mxu0
      %v10513 = vpop.f32.mrb[0].mxu0
      %v10514 = vadd.f32 0.0, %v10513
      %v10515 = vpop.f32.mrb[0].mxu0
      %10516 = vmatprep.mubr.bf16.mxu0 0
      %10517 = vmatmul.mubr.bf16.gmra.mrb[0].mxu0 %v10238
      %v10518 = vpop.f32.mrb[0].mxu0
      %v10519 = vadd.f32 0.0, %v10518
      %v10520 = vpop.f32.mrb[0].mxu0
      %v10521 = vpop.f32.mrb[0].mxu0
      %v10522 = vadd.f32 0.0, %v10521
      %v10523 = vpop.f32.mrb[0].mxu0
      %10524 = vmatprep.mubr.bf16.mxu0 0
      %10525 = vmatmul.mubr.bf16.gmra.mrb[0].mxu0 %v10242
      %v10526 = vpop.f32.mrb[0].mxu0
      %v10527 = vadd.f32 0.0, %v10526
      %v10528 = vpop.f32.mrb[0].mxu0
      %v10529 = vpop.f32.mrb[0].mxu0
      %v10530 = vadd.f32 0.0, %v10529
      %v10531 = vpop.f32.mrb[0].mxu0
      %10532 = vmatprep.mubr.bf16.mxu0 0
      %10533 = vmatmul.mubr.bf16.gmra.mrb[0].mxu0 %v10246
      %v10534 = vpop.f32.mrb[0].mxu0
      %v10535 = vadd.f32 0.0, %v10534
      %v10536 = vpop.f32.mrb[0].mxu0
      %v10537 = vpop.f32.mrb[0].mxu0
      %v10538 = vadd.f32 0.0, %v10537
      %v10539 = vpop.f32.mrb[0].mxu0
      %10540 = vmatprep.mubr.bf16.mxu0 0
      %10541 = vmatmul.mubr.bf16.gmra.mrb[0].mxu0 %v10250
      %v10542 = vpop.f32.mrb[0].mxu0
      %v10543 = vadd.f32 0.0, %v10542
      %v10544 = vpop.f32.mrb[0].mxu0
      %v10545 = vpop.f32.mrb[0].mxu0
      %v10546 = vadd.f32 0.0, %v10545
      %v10547 = vpop.f32.mrb[0].mxu0
      %10548 = vmatprep.mubr.bf16.mxu0 0
      %10549 = vmatmul.mubr.bf16.gmra.mrb[0].mxu0 %v10259
      %v10550 = vpop.f32.mrb[0].mxu0
      %v10551 = vadd.f32 0.0, %v10550
      %v10552 = vpop.f32.mrb[0].mxu0
      %v10553 = vpop.f32.mrb[0].mxu0
      %v10554 = vadd.f32 0.0, %v10553
      %v10555 = vpop.f32.mrb[0].mxu0
      %10556 = vdwg.mxu0
      %v10557 = vadd.f32 %v10085, %v10367
      %v10558 = vadd.f32 %v10086, %v10370
      %v10559 = vadd.f32 %v10087, %v10375
      %v10560 = vadd.f32 %v10088, %v10378
      %v10561 = vadd.f32 %v10089, %v10383
      %v10562 = vadd.f32 %v10090, %v10386
      %v10563 = vadd.f32 %v10091, %v10391
      %v10564 = vadd.f32 %v10092, %v10394
      %v10565 = vadd.f32 %v10093, %v10399
      %v10566 = vadd.f32 %v10094, %v10402
      %v10567 = vadd.f32 %v10095, %v10407
      %v10568 = vadd.f32 %v10096, %v10410
      %v10569 = vadd.f32 %v10097, %v10415
      %v10570 = vadd.f32 %v10098, %v10418
      %v10571 = vadd.f32 %v10099, %v10423
      %v10572 = vadd.f32 %v10100, %v10426
      %v10573 = vadd.f32 %v10101, %v10431
      %v10574 = vadd.f32 %v10102, %v10434
      %v10575 = vadd.f32 %v10103, %v10439
      %v10576 = vadd.f32 %v10104, %v10442
      %v10577 = vadd.f32 %v10105, %v10447
      %v10578 = vadd.f32 %v10106, %v10450
      %v10579 = vadd.f32 %v10107, %v10455
      %v10580 = vadd.f32 %v10108, %v10458
      %v10581 = vadd.f32 %v10109, %v10463
      %v10582 = vadd.f32 %v10110, %v10466
      %v10583 = vadd.f32 %v10111, %v10471
      %v10584 = vadd.f32 %v10112, %v10474
      %v10585 = vadd.f32 %v10113, %v10479
      %v10586 = vadd.f32 %v10114, %v10482
      %v10587 = vadd.f32 %v10115, %v10487
      %v10588 = vadd.f32 %v10116, %v10490
      %v10589 = vadd.f32 %v10117, %v10495
      %v10590 = vadd.f32 %v10118, %v10498
      %v10591 = vadd.f32 %v10119, %v10503
      %v10592 = vadd.f32 %v10120, %v10506
      %v10593 = vadd.f32 %v10121, %v10511
      %v10594 = vadd.f32 %v10122, %v10514
      %v10595 = vadd.f32 %v10123, %v10519
      %v10596 = vadd.f32 %v10124, %v10522
      %v10597 = vadd.f32 %v10125, %v10527
      %v10598 = vadd.f32 %v10126, %v10530
      %v10599 = vadd.f32 %v10127, %v10535
      %v10600 = vadd.f32 %v10128, %v10538
      %v10601 = vadd.f32 %v10129, %v10543
      %v10602 = vadd.f32 %v10130, %v10546
      %v10603 = vadd.f32 %v10131, %v10551
      %v10604 = vadd.f32 %v10132, %v10554
      %v10605 = vld [vmem:[%s4] sm:$0x1]
      %v10607 = vlaneseq
      %v10608 = vshrl.u32 %v10607, 7
      %v10609 = vsub.s32 0, %v10608
      %v10610 = vrot.slane %v10605, %v10609
      %v10612 = vadd.f32 %v10557, %v10610
      %v10613 = vadd.f32 %v10558, %v10610
      %v10614 = vadd.f32 %v10559, %v10610
      %v10615 = vadd.f32 %v10560, %v10610
      %v10616 = vadd.f32 %v10561, %v10610
      %v10617 = vadd.f32 %v10562, %v10610
      %v10618 = vadd.f32 %v10563, %v10610
      %v10619 = vadd.f32 %v10564, %v10610
      %v10620 = vadd.f32 %v10565, %v10610
      %v10621 = vadd.f32 %v10566, %v10610
      %v10622 = vadd.f32 %v10567, %v10610
      %v10623 = vadd.f32 %v10568, %v10610
      %v10624 = vadd.f32 %v10569, %v10610
      %v10625 = vadd.f32 %v10570, %v10610
      %v10626 = vadd.f32 %v10571, %v10610
      %v10627 = vadd.f32 %v10572, %v10610
      %v10628 = vadd.f32 %v10573, %v10610
      %v10629 = vadd.f32 %v10574, %v10610
      %v10630 = vadd.f32 %v10575, %v10610
      %v10631 = vadd.f32 %v10576, %v10610
      %v10632 = vadd.f32 %v10577, %v10610
      %v10633 = vadd.f32 %v10578, %v10610
      %v10634 = vadd.f32 %v10579, %v10610
      %v10635 = vadd.f32 %v10580, %v10610
      %v10636 = vadd.f32 %v10581, %v10610
      %v10637 = vadd.f32 %v10582, %v10610
      %v10638 = vadd.f32 %v10583, %v10610
      %v10639 = vadd.f32 %v10584, %v10610
      %v10640 = vadd.f32 %v10585, %v10610
      %v10641 = vadd.f32 %v10586, %v10610
      %v10642 = vadd.f32 %v10587, %v10610
      %v10643 = vadd.f32 %v10588, %v10610
      %v10644 = vadd.f32 %v10589, %v10610
      %v10645 = vadd.f32 %v10590, %v10610
      %v10646 = vadd.f32 %v10591, %v10610
      %v10647 = vadd.f32 %v10592, %v10610
      %v10648 = vadd.f32 %v10593, %v10610
      %v10649 = vadd.f32 %v10594, %v10610
      %v10650 = vadd.f32 %v10595, %v10610
      %v10651 = vadd.f32 %v10596, %v10610
      %v10652 = vadd.f32 %v10597, %v10610
      %v10653 = vadd.f32 %v10598, %v10610
      %v10654 = vadd.f32 %v10599, %v10610
      %v10655 = vadd.f32 %v10600, %v10610
      %v10656 = vadd.f32 %v10601, %v10610
      %v10657 = vadd.f32 %v10602, %v10610
      %v10658 = vadd.f32 %v10603, %v10610
      %v10659 = vadd.f32 %v10604, %v10610
      %v10660 = vmax.f32 %v10612, 0.0
      %v10661 = vmax.f32 %v10613, 0.0
      %v10662 = vmax.f32 %v10614, 0.0
      %v10663 = vmax.f32 %v10615, 0.0
      %v10664 = vmax.f32 %v10616, 0.0
      %v10665 = vmax.f32 %v10617, 0.0
      %v10666 = vmax.f32 %v10618, 0.0
      %v10667 = vmax.f32 %v10619, 0.0
      %v10668 = vmax.f32 %v10620, 0.0
      %v10669 = vmax.f32 %v10621, 0.0
      %v10670 = vmax.f32 %v10622, 0.0
      %v10671 = vmax.f32 %v10623, 0.0
      %v10672 = vmax.f32 %v10624, 0.0
      %v10673 = vmax.f32 %v10625, 0.0
      %v10674 = vmax.f32 %v10626, 0.0
      %v10675 = vmax.f32 %v10627, 0.0
      %v10676 = vmax.f32 %v10628, 0.0
      %v10677 = vmax.f32 %v10629, 0.0
      %v10678 = vmax.f32 %v10630, 0.0
      %v10679 = vmax.f32 %v10631, 0.0
      %v10680 = vmax.f32 %v10632, 0.0
      %v10681 = vmax.f32 %v10633, 0.0
      %v10682 = vmax.f32 %v10634, 0.0
      %v10683 = vmax.f32 %v10635, 0.0
      %v10684 = vmax.f32 %v10636, 0.0
      %v10685 = vmax.f32 %v10637, 0.0
      %v10686 = vmax.f32 %v10638, 0.0
      %v10687 = vmax.f32 %v10639, 0.0
      %v10688 = vmax.f32 %v10640, 0.0
      %v10689 = vmax.f32 %v10641, 0.0
      %v10690 = vmax.f32 %v10642, 0.0
      %v10691 = vmax.f32 %v10643, 0.0
      %v10692 = vmax.f32 %v10644, 0.0
      %v10693 = vmax.f32 %v10645, 0.0
      %v10694 = vmax.f32 %v10646, 0.0
      %v10695 = vmax.f32 %v10647, 0.0
      %v10696 = vmax.f32 %v10648, 0.0
      %v10697 = vmax.f32 %v10649, 0.0
      %v10698 = vmax.f32 %v10650, 0.0
      %v10699 = vmax.f32 %v10651, 0.0
      %v10700 = vmax.f32 %v10652, 0.0
      %v10701 = vmax.f32 %v10653, 0.0
      %v10702 = vmax.f32 %v10654, 0.0
      %v10703 = vmax.f32 %v10655, 0.0
      %v10704 = vmax.f32 %v10656, 0.0
      %v10705 = vmax.f32 %v10657, 0.0
      %v10706 = vmax.f32 %v10658, 0.0
      %v10707 = vmax.f32 %v10659, 0.0
      %10708 = vst [vmem:[%s224] sm:$0xff] %v10660
      %10709 = vst [vmem:[%s224 + $0x8] sm:$0xff] %v10661
      %10710 = vst [vmem:[%s224 + $0x10] sm:$0xff] %v10662
      %10711 = vst [vmem:[%s224 + $0x18] sm:$0xff] %v10663
      %10712 = vst [vmem:[%s224 + $0x20] sm:$0xff] %v10664
      %10713 = vst [vmem:[%s224 + $0x28] sm:$0xff] %v10665
      %10714 = vst [vmem:[%s224 + $0x30] sm:$0xff] %v10666
      %10715 = vst [vmem:[%s224 + $0x38] sm:$0xff] %v10667
      %10716 = vst [vmem:[%s224 + $0x40] sm:$0xff] %v10668
      %10717 = vst [vmem:[%s224 + $0x48] sm:$0xff] %v10669
      %10718 = vst [vmem:[%s224 + $0x50] sm:$0xff] %v10670
      %10719 = vst [vmem:[%s224 + $0x58] sm:$0xff] %v10671
      %10720 = vst [vmem:[%s224 + $0x60] sm:$0xff] %v10672
      %10721 = vst [vmem:[%s224 + $0x68] sm:$0xff] %v10673
      %10722 = vst [vmem:[%s224 + $0x70] sm:$0xff] %v10674
      %10723 = vst [vmem:[%s224 + $0x78] sm:$0xff] %v10675
      %10724 = vst [vmem:[%s224 + $0x80] sm:$0xff] %v10676
      %10725 = vst [vmem:[%s224 + $0x88] sm:$0xff] %v10677
      %10726 = vst [vmem:[%s224 + $0x90] sm:$0xff] %v10678
      %10727 = vst [vmem:[%s224 + $0x98] sm:$0xff] %v10679
      %10728 = vst [vmem:[%s224 + $0xa0] sm:$0xff] %v10680
      %10729 = vst [vmem:[%s224 + $0xa8] sm:$0xff] %v10681
      %10730 = vst [vmem:[%s224 + $0xb0] sm:$0xff] %v10682
      %10731 = vst [vmem:[%s224 + $0xb8] sm:$0xff] %v10683
      %10732 = vst [vmem:[%s224 + $0xc0] sm:$0xff] %v10684
      %10733 = vst [vmem:[%s224 + $0xc8] sm:$0xff] %v10685
      %10734 = vst [vmem:[%s224 + $0xd0] sm:$0xff] %v10686
      %10735 = vst [vmem:[%s224 + $0xd8] sm:$0xff] %v10687
      %10736 = vst [vmem:[%s224 + $0xe0] sm:$0xff] %v10688
      %10737 = vst [vmem:[%s224 + $0xe8] sm:$0xff] %v10689
      %10738 = vst [vmem:[%s224 + $0xf0] sm:$0xff] %v10690
      %10739 = vst [vmem:[%s224 + $0xf8] sm:$0xff] %v10691
      %10740 = vst [vmem:[%s224 + $0x100] sm:$0xff] %v10692
      %10741 = vst [vmem:[%s224 + $0x108] sm:$0xff] %v10693
      %10742 = vst [vmem:[%s224 + $0x110] sm:$0xff] %v10694
      %10743 = vst [vmem:[%s224 + $0x118] sm:$0xff] %v10695
      %10744 = vst [vmem:[%s224 + $0x120] sm:$0xff] %v10696
      %10745 = vst [vmem:[%s224 + $0x128] sm:$0xff] %v10697
      %10746 = vst [vmem:[%s224 + $0x130] sm:$0xff] %v10698
      %10747 = vst [vmem:[%s224 + $0x138] sm:$0xff] %v10699
      %10748 = vst [vmem:[%s224 + $0x140] sm:$0xff] %v10700
      %10749 = vst [vmem:[%s224 + $0x148] sm:$0xff] %v10701
      %10750 = vst [vmem:[%s224 + $0x150] sm:$0xff] %v10702
      %10751 = vst [vmem:[%s224 + $0x158] sm:$0xff] %v10703
      %10752 = vst [vmem:[%s224 + $0x160] sm:$0xff] %v10704
      %10753 = vst [vmem:[%s224 + $0x168] sm:$0xff] %v10705
      %10754 = vst [vmem:[%s224 + $0x170] sm:$0xff] %v10706
      %10755 = vst [vmem:[%s224 + $0x178] sm:$0xff] %v10707
      %p10756 = scmp.lt.s32.totalorder %s16, 1
      %s10757 = scalar_select %p10756, %s16, 1
      %s10758 = smul.addr %s10757, 48
      %s10759 = smul.addr %s10758, 8
      %s10760 = scalar_lea.vmem %s5, %s10759
      // Predicated region
      $region41: #{double_conv_forward.1} parent=39 // pred_check
        %p10761 = pneg %p144
      $region42: #{double_conv_forward.1} parent=39 // pred_check_branch
        %10763 = sbr.rel (%p10761) target = $region44
      $region43: #{double_conv_forward.1} parent=39 // pred_region
        _
      $region44: #{double_conv_forward.1} parent=39 // pred_fallthru
        _
    $region40: #{double_conv_forward.1} parent=5 // pred_fallthru
      _
    %p10764 = scmp.le.s32.totalorder 2, %s11
    // Predicated region
    $region45: #{double_conv_forward.1} parent=5 // pred_check
      %p10765 = pneg %p10764
    $region46: #{double_conv_forward.1} parent=5 // pred_check_branch
      %10767 = sbr.rel (%p10765) target = $region48
    $region47: #{double_conv_forward.1} parent=5 // pred_region
      %s10768 = ssub.s32 %s11, 2
      // Predicated region
      $region49: #{double_conv_forward.1} parent=47 // pred_check
        %p10769 = pneg %p150
      $region50: #{double_conv_forward.1} parent=47 // pred_check_branch
        %10771 = sbr.rel (%p10769) target = $region52
      $region51: #{double_conv_forward.1} parent=47 // pred_region
        %p10772 = scmp.lt.s32.totalorder %s17, 1
        %s10773 = scalar_select %p10772, %s17, 1
        %s10774 = smul.addr %s10773, 48
        %s10775 = smul.addr %s10774, 8
        %s10776 = scalar_lea.vmem %s5, %s10775
      $region52: #{double_conv_forward.1} parent=47 // pred_fallthru
        _
    $region48: #{double_conv_forward.1} parent=5 // pred_fallthru
      _
  $region6: #{double_conv_forward.1} parent=0 // loop_footer
    %s15 = sadd.s32 1, %s11
  $region7: #{double_conv_forward.1} parent=0 // loop_footer_branch
    %10 = sbr.rel target = $region3
  $region8: #{double_conv_forward.1} parent=0 // loop_exit
    _

</llo_original>
